<compile_context>
chip_gen: v7x
topology: tpu7x:2x2x1
jax: 0.10.0
libtpu: 0.0.40
codegen_flags: <defaults>
</compile_context>

<pallas_src>
import functools
import math

import jax
import jax.numpy as jnp
from jax import lax
from jax.experimental import pallas as pl
from jax.experimental.pallas import tpu as pltpu


# ---------------------------------------------------------------------------
# Pallas kernels
# ---------------------------------------------------------------------------

def _embed_kernel(cols_ref, w_ref, pos_ref, o_ref):
    """im2col conv1d (k=3, circular) as one matmul, fused with positional-embedding add."""
    acc = jnp.dot(cols_ref[...], w_ref[...], preferred_element_type=jnp.float32)
    o_ref[...] = (acc + pos_ref[...]).astype(o_ref.dtype)


def _norm_proj_kernel(h_ref, g_ref, b_ref, w_ref, pb_ref, o_ref):
    """Final decoder LayerNorm fused with the output projection."""
    x = h_ref[...].astype(jnp.float32)
    mean = jnp.mean(x, axis=-1, keepdims=True)
    var = jnp.mean((x - mean) ** 2, axis=-1, keepdims=True)
    xn = (x - mean) * lax.rsqrt(var + 1e-5) * g_ref[...] + b_ref[...]
    o_ref[...] = (jnp.dot(xn, w_ref[...], preferred_element_type=jnp.float32)
                  + pb_ref[...]).astype(o_ref.dtype)


def _decoder_layer_kernel(x_ref, wqkv_ref, bqkv_ref, wo_ref, bo_ref,
                          n1g_ref, n1b_ref, w1_ref, b1_ref, w2_ref, b2_ref,
                          n2g_ref, n2b_ref, *rest,
                          n_heads, n_attn, n_hidden, bb):
    """Fully fused decoder layer for a block of `bb` batch elements.

    All dense projections run as single rank-2 matmuls over bb*L rows; the causal
    attention is batched over the block with einsum (batch dims). Everything stays
    in VMEM for the whole grid; weights are hoisted once per grid step.
    """
    if n_hidden > 0:
        hidw_ref, hidb_ref = rest[0], rest[1]
        hidb_all = hidb_ref[...]
    o_ref = rest[-1]

    # Hoist all weight loads.
    bqkv_all = bqkv_ref[...]                 # (A, 3D)
    bo_all = bo_ref[...]                     # (A, D)
    n1g, n1b = n1g_ref[...], n1b_ref[...]
    n2g, n2b = n2g_ref[...], n2b_ref[...]
    w1, b1 = w1_ref[...], b1_ref[...]
    w2, b2 = w2_ref[...], b2_ref[...]
    wqkv_list = [wqkv_ref[a] for a in range(n_attn)]   # each (D, 3D)
    wo_list = [wo_ref[a] for a in range(n_attn)]       # each (D, D)
    hidw_list = [hidw_ref[j] for j in range(n_hidden)] if n_hidden > 0 else []

    L = x_ref.shape[1]
    D = x_ref.shape[2]
    H = n_heads
    E = D // H
    M = bb * L
    scale = 1.0 / math.sqrt(E)

    row = lax.broadcasted_iota(jnp.int32, (L, L), 0)
    col = lax.broadcasted_iota(jnp.int32, (L, L), 1)
    causal = col <= row                      # (L, L), broadcasts over the batch dim

    def ln(v, g, b):
        mean = jnp.mean(v, axis=-1, keepdims=True)
        var = jnp.mean((v - mean) ** 2, axis=-1, keepdims=True)
        return (v - mean) * lax.rsqrt(var + 1e-5) * g + b

    h2 = x_ref[...].astype(jnp.float32).reshape(M, D)          # (bb*L, D)

    for a in range(n_attn):
        # Fused QKV projection over all rows at once.
        qkv2 = (jnp.dot(h2, wqkv_list[a], preferred_element_type=jnp.float32)
                + bqkv_all[a:a + 1, :])                        # (bb*L, 3D)
        qkv = qkv2.reshape(bb, L, 3 * D)
        wo = wo_list[a]

        attn2 = None                                           # (bb*L, D) accumulator
        for hh in range(H):
            q = qkv[:, :, hh * E:(hh + 1) * E]                 # (bb, L, E)
            k = qkv[:, :, D + hh * E:D + (hh + 1) * E]
            v = qkv[:, :, 2 * D + hh * E:2 * D + (hh + 1) * E]
            s = jnp.einsum('bqe,bke->bqk', q, k,
                           preferred_element_type=jnp.float32) * scale
            s = jnp.where(causal, s, -1e30)
            m = jnp.max(s, axis=-1, keepdims=True)
            p = jnp.exp(s - m)
            p = p * pl.reciprocal(jnp.sum(p, axis=-1, keepdims=True), approx=True)
            o_h = jnp.einsum('bqk,bke->bqe', p, v,
                             preferred_element_type=jnp.float32)      # (bb, L, E)
            # Fold the O-projection into the head loop (no concat of heads).
            contrib = jnp.dot(o_h.reshape(M, E), wo[hh * E:(hh + 1) * E, :],
                              preferred_element_type=jnp.float32)     # (bb*L, D)
            attn2 = contrib if attn2 is None else attn2 + contrib

        attn2 = attn2 + bo_all[a:a + 1, :]
        h2 = ln(h2 + attn2, n1g, n1b)

    # Feed-forward stack (ReLU), intermediates never leave VMEM.
    y = jnp.maximum(jnp.dot(h2, w1, preferred_element_type=jnp.float32) + b1, 0.0)
    for j in range(n_hidden):
        y = jnp.maximum(jnp.dot(y, hidw_list[j], preferred_element_type=jnp.float32)
                        + hidb_all[j:j + 1, :], 0.0)
    y = jnp.dot(y, w2, preferred_element_type=jnp.float32) + b2

    out2 = ln(h2 + y, n2g, n2b)
    o_ref[...] = out2.reshape(bb, L, D).astype(o_ref.dtype)


# ---------------------------------------------------------------------------
# Model components (JAX glue around the Pallas kernels)
# ---------------------------------------------------------------------------

def positional_embedding(max_len, d_model):
    pos = jnp.arange(max_len, dtype=jnp.float32)[:, None]
    div = jnp.exp(jnp.arange(0, d_model, 2, dtype=jnp.float32)
                  * (-math.log(10000.0) / d_model))
    pe = jnp.zeros((max_len, d_model), dtype=jnp.float32)
    pe = pe.at[:, 0::2].set(jnp.sin(pos * div))
    pe = pe.at[:, 1::2].set(jnp.cos(pos * div))
    return pe


def token_embedding(x, params):
    """Conv1d(k=3, circular padding, no bias) + positional embedding, fused.

    x: (BT, L, C); params['emb_conv']: (C*3, d_model) with flat index c*3 + k.
    """
    BT, L, C = x.shape
    D = params['emb_conv'].shape[1]
    xp = jnp.concatenate([x[:, -1:, :], x, x[:, :1, :]], axis=1)        # circular pad
    windows = jnp.stack([xp[:, k:k + L, :] for k in range(3)], axis=2)  # (BT, L, 3, C)
    cols = jnp.transpose(windows, (0, 1, 3, 2)).reshape(BT * L, C * 3)  # (c, k) order
    pos = jnp.tile(params['pos_emb'][:L, :], (BT, 1))                   # (BT*L, D)
    out = pl.pallas_call(
        _embed_kernel,
        out_shape=jax.ShapeDtypeStruct((BT * L, D), jnp.float32),
    )(cols.astype(jnp.float32), params['emb_conv'], pos)
    return out.reshape(BT, L, D)


def decoder_layer(x, p, cfg):
    BT, L, D = x.shape
    n_attn = p['wqkv'].shape[0]
    n_hidden = p['ff_hid_w'].shape[0] if 'ff_hid_w' in p else 0

    # Block over the batch axis; prefer a size-2 grid (one step per v7x TensorCore).
    bb = BT // 2 if (BT % 2 == 0 and BT >= 2) else BT
    grid = (BT // bb,)

    in_arrays = [x, p['wqkv'], p['bqkv'], p['wo'], p['bo'],
                 p['norm1_g'], p['norm1_b'],
                 p['ff_w1'], p['ff_b1'], p['ff_w2'], p['ff_b2'],
                 p['norm2_g'], p['norm2_b']]
    if n_hidden > 0:
        in_arrays += [p['ff_hid_w'], p['ff_hid_b']]

    def full_spec(arr):
        nd = arr.ndim
        return pl.BlockSpec(arr.shape, lambda g, _nd=nd: (0,) * _nd)

    in_specs = ([pl.BlockSpec((bb, L, D), lambda g: (g, 0, 0))]
                + [full_spec(a) for a in in_arrays[1:]])
    out_spec = pl.BlockSpec((bb, L, D), lambda g: (g, 0, 0))

    kern = functools.partial(_decoder_layer_kernel, n_heads=cfg['n_heads'],
                             n_attn=n_attn, n_hidden=n_hidden, bb=bb)
    return pl.pallas_call(
        kern,
        out_shape=jax.ShapeDtypeStruct((BT, L, D), jnp.float32),
        grid=grid,
        in_specs=in_specs,
        out_specs=out_spec,
        compiler_params=pltpu.CompilerParams(dimension_semantics=("parallel",)),
    )(*in_arrays)


def embed_and_decode(inp, params, cfg):
    """DataEmbedding_wo_temp + Decoder (layers + final norm + projection)."""
    BT, L, _ = inp.shape
    D = cfg['d_model']
    h = token_embedding(inp, params)
    for lp in params['dec_layers']:
        h = decoder_layer(h, lp, cfg)
    out = pl.pallas_call(
        _norm_proj_kernel,
        out_shape=jax.ShapeDtypeStruct((BT * L, cfg['c_out']), jnp.float32),
    )(h.reshape(BT * L, D), params['norm_g'], params['norm_b'],
      params['proj_w'], params['proj_b'])
    return out.reshape(BT, L, cfg['c_out'])


def model_forward(params, y, y_tilde, x, key, cfg):
    """y: (B, L, y_dim), y_tilde: (2,) = (min, max), x: (B, L, x_dim)."""
    B, L, _ = y.shape
    n_draws = cfg['n_draws']

    # Batch the real pass and all drawn passes into one forward.
    y_drawn = jax.random.uniform(key, (n_draws,) + y.shape, dtype=jnp.float32,
                                 minval=y_tilde[0], maxval=y_tilde[1])
    y_all = jnp.concatenate([y[None], y_drawn], axis=0)        # (1+n_draws, B, L, y_dim)
    if cfg['x_in']:
        x_all = jnp.broadcast_to(x[None], (n_draws + 1,) + x.shape)
        inp = jnp.concatenate([y_all, x_all], axis=-1)
    else:
        inp = y_all
    C = inp.shape[-1]
    inp = inp.reshape((n_draws + 1) * B, L, C)

    out = embed_and_decode(inp, params, cfg)                   # (BT, L, c_out)
    out = out.reshape(n_draws + 1, B, L, cfg['c_out'])

    pred = cfg['pred_len']
    dec_out = out[0]
    dec_outs_tilde = out[1:]
    return dec_out[:, -pred:, :], dec_outs_tilde[..., -pred:, :]


# ---------------------------------------------------------------------------
# Deterministic parameter initialization (synthetic)
# ---------------------------------------------------------------------------

def init_params(key, cfg, max_len=64):
    D = cfg['d_model']
    Dff = cfg['d_ff']
    A = cfg['time_layers']
    Hf = max(cfg['ff_layers'] - 1, 0)
    c_in = cfg['y_dim'] + (cfg['x_dim'] if cfg['x_in'] else 0)
    keys = iter(jax.random.split(key, 256))

    def dense(shape):
        fan_in = shape[-2] if len(shape) >= 2 else shape[0]
        bound = 1.0 / math.sqrt(fan_in)
        return jax.random.uniform(next(keys), shape, dtype=jnp.float32,
                                  minval=-bound, maxval=bound)

    params = {
        'emb_conv': dense((c_in * 3, D)),
        'pos_emb': positional_embedding(max_len, D),
        'norm_g': jnp.ones((1, D), jnp.float32),
        'norm_b': jnp.zeros((1, D), jnp.float32),
        'proj_w': dense((D, cfg['c_out'])),
        'proj_b': jnp.zeros((1, cfg['c_out']), jnp.float32),
    }

    # Fused QKV weights: (A, D, 3D); per-layer O-projection: (A, D, D).
    wqkv = jnp.stack([jnp.concatenate([dense((D, D)), dense((D, D)), dense((D, D))],
                                      axis=-1) for _ in range(A)])
    wo = jnp.stack([dense((D, D)) for _ in range(A)])

    layer = {
        'wqkv': wqkv,
        'bqkv': jnp.zeros((A, 3 * D), jnp.float32),
        'wo': wo,
        'bo': jnp.zeros((A, D), jnp.float32),
        'norm1_g': jnp.ones((1, D), jnp.float32), 'norm1_b': jnp.zeros((1, D), jnp.float32),
        'norm2_g': jnp.ones((1, D), jnp.float32), 'norm2_b': jnp.zeros((1, D), jnp.float32),
        'ff_w1': dense((D, Dff)), 'ff_b1': jnp.zeros((1, Dff), jnp.float32),
        'ff_w2': dense((Dff, D)), 'ff_b2': jnp.zeros((1, D), jnp.float32),
    }
    if Hf > 0:
        layer['ff_hid_w'] = jnp.stack([dense((Dff, Dff)) for _ in range(Hf)])
        layer['ff_hid_b'] = jnp.zeros((Hf, Dff), jnp.float32)
    params['dec_layers'] = [layer]
    return params


# ---------------------------------------------------------------------------
# Main
# ---------------------------------------------------------------------------

if __name__ == "__main__":
    cfg = dict(
        label_len=4, pred_len=4, x_in=True, y_dim=3, x_dim=2,
        d_model=32, d_ff=32, n_heads=4, c_out=1, dropout=0.0,
        output_attention=False, ff_layers=1, n_draws=2,
        time_layers=2, activation='relu', factor=5,
    )
    B = 2
    L = cfg['label_len'] + cfg['pred_len']

    key = jax.random.PRNGKey(0)
    kp, ky, kx, kdraw = jax.random.split(key, 4)

    params = init_params(kp, cfg)
    y = jax.random.normal(ky, (B, L, cfg['y_dim']), dtype=jnp.float32)
    x = jax.random.normal(kx, (B, L, cfg['x_dim']), dtype=jnp.float32)
    y_tilde = jnp.array([-1.0, 1.0], dtype=jnp.float32)  # (min, max) for draw_y

    fwd = jax.jit(functools.partial(model_forward, cfg=cfg))
    dec_out, dec_outs_tilde = fwd(params, y, y_tilde, x, kdraw)
    jax.block_until_ready((dec_out, dec_outs_tilde))

    assert dec_out.shape == (B, cfg['pred_len'], cfg['c_out'])
    assert dec_outs_tilde.shape == (cfg['n_draws'], B, cfg['pred_len'], cfg['c_out'])
    assert bool(jnp.all(jnp.isfinite(dec_out))) and bool(jnp.all(jnp.isfinite(dec_outs_tilde)))
    print("KERNEL_OK")
</pallas_src>

<mosaic_0001>
module attributes {stable_mosaic.version = 11 : i64} {
  func.func @_embed_kernel(%arg0: memref<48x15xf32, #tpu.memory_space<vmem>>, %arg1: memref<15x32xf32, #tpu.memory_space<vmem>>, %arg2: memref<48x32xf32, #tpu.memory_space<vmem>>, %arg3: memref<48x32xf32, #tpu.memory_space<vmem>>) attributes {dimension_semantics = [], scalar_prefetch = 0 : i64, scratch_operands = 0 : i64, tpu.core_type = #tpu.core_type<tc>} {
    %c0 = arith.constant 0 : index
    %c0_0 = arith.constant 0 : index
    %0 = vector.load %arg0[%c0, %c0_0] : memref<48x15xf32, #tpu.memory_space<vmem>>, vector<48x15xf32>
    %c0_1 = arith.constant 0 : index
    %c0_2 = arith.constant 0 : index
    %1 = vector.load %arg1[%c0_1, %c0_2] : memref<15x32xf32, #tpu.memory_space<vmem>>, vector<15x32xf32>
    %cst = arith.constant dense<0.000000e+00> : vector<48x32xf32>
    %2 = tpu.matmul %0, %1, %cst {dimension_numbers = #tpu.dot_dimension_numbers<[1], [0], [0], [1], [0, 0, 1, 1], [], []>} : vector<48x15xf32>, vector<15x32xf32>, vector<48x32xf32> -> vector<48x32xf32>
    %c0_3 = arith.constant 0 : index
    %c0_4 = arith.constant 0 : index
    %3 = vector.load %arg2[%c0_3, %c0_4] : memref<48x32xf32, #tpu.memory_space<vmem>>, vector<48x32xf32>
    %4 = arith.addf %2, %3 : vector<48x32xf32>
    %c0_5 = arith.constant 0 : index
    %c0_6 = arith.constant 0 : index
    %5 = vector.load %arg3[%c0_5, %c0_6] : memref<48x32xf32, #tpu.memory_space<vmem>>, vector<48x32xf32>
    tpu.vector_store %arg3[%c0_5, %c0_6], %4 {strides = array<i32>} : memref<48x32xf32, #tpu.memory_space<vmem>>, vector<48x32xf32>,
    return
  }
}

module attributes {stable_mosaic.version = 11 : i64} {
  func.func @_norm_proj_kernel(%arg0: memref<48x32xf32, #tpu.memory_space<vmem>>, %arg1: memref<1x32xf32, #tpu.memory_space<vmem>>, %arg2: memref<1x32xf32, #tpu.memory_space<vmem>>, %arg3: memref<32x1xf32, #tpu.memory_space<vmem>>, %arg4: memref<1x1xf32, #tpu.memory_space<vmem>>, %arg5: memref<48x1xf32, #tpu.memory_space<vmem>>) attributes {dimension_semantics = [], scalar_prefetch = 0 : i64, scratch_operands = 0 : i64, tpu.core_type = #tpu.core_type<tc>} {
    %c0 = arith.constant 0 : index
    %c0_0 = arith.constant 0 : index
    %0 = vector.load %arg0[%c0, %c0_0] : memref<48x32xf32, #tpu.memory_space<vmem>>, vector<48x32xf32>
    %cst = arith.constant dense<0.000000e+00> : vector<48xf32>
    %1 = vector.multi_reduction <add>, %0, %cst [1] : vector<48x32xf32> to vector<48xf32>
    %2 = vector.shape_cast %1 : vector<48xf32> to vector<48x1xf32>
    %cst_1 = arith.constant 3.200000e+01 : f32
    %3 = vector.broadcast %cst_1 : f32 to vector<48x1xf32>
    %4 = arith.divf %2, %3 : vector<48x1xf32>
    %5 = vector.broadcast %4 : vector<48x1xf32> to vector<48x32xf32>
    %6 = arith.subf %0, %5 : vector<48x32xf32>
    %7 = arith.mulf %6, %6 : vector<48x32xf32>
    %cst_2 = arith.constant dense<0.000000e+00> : vector<48xf32>
    %8 = vector.multi_reduction <add>, %7, %cst_2 [1] : vector<48x32xf32> to vector<48xf32>
    %9 = vector.shape_cast %8 : vector<48xf32> to vector<48x1xf32>
    %cst_3 = arith.constant 3.200000e+01 : f32
    %10 = vector.broadcast %cst_3 : f32 to vector<48x1xf32>
    %11 = arith.divf %9, %10 : vector<48x1xf32>
    %12 = vector.broadcast %4 : vector<48x1xf32> to vector<48x32xf32>
    %13 = arith.subf %0, %12 : vector<48x32xf32>
    %cst_4 = arith.constant 9.99999974E-6 : f32
    %14 = vector.broadcast %cst_4 : f32 to vector<48x1xf32>
    %15 = arith.addf %11, %14 : vector<48x1xf32>
    %16 = math.rsqrt %15 : vector<48x1xf32>
    %17 = vector.broadcast %16 : vector<48x1xf32> to vector<48x32xf32>
    %18 = arith.mulf %13, %17 : vector<48x32xf32>
    %c0_5 = arith.constant 0 : index
    %c0_6 = arith.constant 0 : index
    %19 = vector.load %arg1[%c0_5, %c0_6] : memref<1x32xf32, #tpu.memory_space<vmem>>, vector<1x32xf32>
    %20 = vector.broadcast %19 : vector<1x32xf32> to vector<48x32xf32>
    %21 = arith.mulf %18, %20 : vector<48x32xf32>
    %c0_7 = arith.constant 0 : index
    %c0_8 = arith.constant 0 : index
    %22 = vector.load %arg2[%c0_7, %c0_8] : memref<1x32xf32, #tpu.memory_space<vmem>>, vector<1x32xf32>
    %23 = vector.broadcast %22 : vector<1x32xf32> to vector<48x32xf32>
    %24 = arith.addf %21, %23 : vector<48x32xf32>
    %c0_9 = arith.constant 0 : index
    %c0_10 = arith.constant 0 : index
    %25 = vector.load %arg3[%c0_9, %c0_10] : memref<32x1xf32, #tpu.memory_space<vmem>>, vector<32x1xf32>
    %cst_11 = arith.constant dense<0.000000e+00> : vector<48x1xf32>
    %26 = tpu.matmul %24, %25, %cst_11 {dimension_numbers = #tpu.dot_dimension_numbers<[1], [0], [0], [1], [0, 0, 1, 1], [], []>} : vector<48x32xf32>, vector<32x1xf32>, vector<48x1xf32> -> vector<48x1xf32>
    %c0_12 = arith.constant 0 : index
    %c0_13 = arith.constant 0 : index
    %27 = vector.load %arg4[%c0_12, %c0_13] : memref<1x1xf32, #tpu.memory_space<vmem>>, vector<1x1xf32>
    %28 = vector.broadcast %27 : vector<1x1xf32> to vector<48x1xf32>
    %29 = arith.addf %26, %28 : vector<48x1xf32>
    %c0_14 = arith.constant 0 : index
    %c0_15 = arith.constant 0 : index
    %30 = vector.load %arg5[%c0_14, %c0_15] : memref<48x1xf32, #tpu.memory_space<vmem>>, vector<48x1xf32>
    tpu.vector_store %arg5[%c0_14, %c0_15], %29 {strides = array<i32>} : memref<48x1xf32, #tpu.memory_space<vmem>>, vector<48x1xf32>,
    return
  }
}

module attributes {stable_mosaic.version = 11 : i64} {
  func.func @_decoder_layer_kernel(%arg0: i32, %arg1: memref<3x8x32xf32, #tpu.memory_space<vmem>>, %arg2: memref<2x32x96xf32, #tpu.memory_space<vmem>>, %arg3: memref<2x96xf32, #tpu.memory_space<vmem>>, %arg4: memref<2x32x32xf32, #tpu.memory_space<vmem>>, %arg5: memref<2x32xf32, #tpu.memory_space<vmem>>, %arg6: memref<1x32xf32, #tpu.memory_space<vmem>>, %arg7: memref<1x32xf32, #tpu.memory_space<vmem>>, %arg8: memref<32x32xf32, #tpu.memory_space<vmem>>, %arg9: memref<1x32xf32, #tpu.memory_space<vmem>>, %arg10: memref<32x32xf32, #tpu.memory_space<vmem>>, %arg11: memref<1x32xf32, #tpu.memory_space<vmem>>, %arg12: memref<1x32xf32, #tpu.memory_space<vmem>>, %arg13: memref<1x32xf32, #tpu.memory_space<vmem>>, %arg14: memref<3x8x32xf32, #tpu.memory_space<vmem>>) attributes {dimension_semantics = [#tpu.dimension_semantics<parallel>], iteration_bounds = array<i64: 2>, scalar_prefetch = 0 : i64, scratch_operands = 0 : i64, tpu.core_type = #tpu.core_type<tc>, window_params = [{transform_indices = @transform_0, window_bounds = array<i64: 3, 8, 32>}, {pipeline_mode = #tpu.pipeline_mode<synchronous>, transform_indices = @transform_1, window_bounds = array<i64: 2, 32, 96>}, {pipeline_mode = #tpu.pipeline_mode<synchronous>, transform_indices = @transform_2, window_bounds = array<i64: 2, 96>}, {pipeline_mode = #tpu.pipeline_mode<synchronous>, transform_indices = @transform_3, window_bounds = array<i64: 2, 32, 32>}, {pipeline_mode = #tpu.pipeline_mode<synchronous>, transform_indices = @transform_4, window_bounds = array<i64: 2, 32>}, {pipeline_mode = #tpu.pipeline_mode<synchronous>, transform_indices = @transform_5, window_bounds = array<i64: 1, 32>}, {pipeline_mode = #tpu.pipeline_mode<synchronous>, transform_indices = @transform_6, window_bounds = array<i64: 1, 32>}, {pipeline_mode = #tpu.pipeline_mode<synchronous>, transform_indices = @transform_7, window_bounds = array<i64: 32, 32>}, {pipeline_mode = #tpu.pipeline_mode<synchronous>, transform_indices = @transform_8, window_bounds = array<i64: 1, 32>}, {pipeline_mode = #tpu.pipeline_mode<synchronous>, transform_indices = @transform_9, window_bounds = array<i64: 32, 32>}, {pipeline_mode = #tpu.pipeline_mode<synchronous>, transform_indices = @transform_10, window_bounds = array<i64: 1, 32>}, {pipeline_mode = #tpu.pipeline_mode<synchronous>, transform_indices = @transform_11, window_bounds = array<i64: 1, 32>}, {pipeline_mode = #tpu.pipeline_mode<synchronous>, transform_indices = @transform_12, window_bounds = array<i64: 1, 32>}, {transform_indices = @transform_13, window_bounds = array<i64: 3, 8, 32>}]} {
    %c0 = arith.constant 0 : index
    %c0_0 = arith.constant 0 : index
    %0 = vector.load %arg3[%c0, %c0_0] : memref<2x96xf32, #tpu.memory_space<vmem>>, vector<2x96xf32>
    %c0_1 = arith.constant 0 : index
    %c0_2 = arith.constant 0 : index
    %1 = vector.load %arg5[%c0_1, %c0_2] : memref<2x32xf32, #tpu.memory_space<vmem>>, vector<2x32xf32>
    %c0_3 = arith.constant 0 : index
    %c0_4 = arith.constant 0 : index
    %2 = vector.load %arg6[%c0_3, %c0_4] : memref<1x32xf32, #tpu.memory_space<vmem>>, vector<1x32xf32>
    %c0_5 = arith.constant 0 : index
    %c0_6 = arith.constant 0 : index
    %3 = vector.load %arg7[%c0_5, %c0_6] : memref<1x32xf32, #tpu.memory_space<vmem>>, vector<1x32xf32>
    %c0_7 = arith.constant 0 : index
    %c0_8 = arith.constant 0 : index
    %4 = vector.load %arg12[%c0_7, %c0_8] : memref<1x32xf32, #tpu.memory_space<vmem>>, vector<1x32xf32>
    %c0_9 = arith.constant 0 : index
    %c0_10 = arith.constant 0 : index
    %5 = vector.load %arg13[%c0_9, %c0_10] : memref<1x32xf32, #tpu.memory_space<vmem>>, vector<1x32xf32>
    %c0_11 = arith.constant 0 : index
    %c0_12 = arith.constant 0 : index
    %6 = vector.load %arg8[%c0_11, %c0_12] : memref<32x32xf32, #tpu.memory_space<vmem>>, vector<32x32xf32>
    %c0_13 = arith.constant 0 : index
    %c0_14 = arith.constant 0 : index
    %7 = vector.load %arg9[%c0_13, %c0_14] : memref<1x32xf32, #tpu.memory_space<vmem>>, vector<1x32xf32>
    %c0_15 = arith.constant 0 : index
    %c0_16 = arith.constant 0 : index
    %8 = vector.load %arg10[%c0_15, %c0_16] : memref<32x32xf32, #tpu.memory_space<vmem>>, vector<32x32xf32>
    %c0_17 = arith.constant 0 : index
    %c0_18 = arith.constant 0 : index
    %9 = vector.load %arg11[%c0_17, %c0_18] : memref<1x32xf32, #tpu.memory_space<vmem>>, vector<1x32xf32>
    %c0_19 = arith.constant 0 : index
    %c0_20 = arith.constant 0 : index
    %c0_21 = arith.constant 0 : index
    %10 = vector.load %arg2[%c0_19, %c0_20, %c0_21] : memref<2x32x96xf32, #tpu.memory_space<vmem>>, vector<1x32x96xf32>
    %11 = vector.shape_cast %10 : vector<1x32x96xf32> to vector<32x96xf32>
    %c1 = arith.constant 1 : index
    %c0_22 = arith.constant 0 : index
    %c0_23 = arith.constant 0 : index
    %12 = vector.load %arg2[%c1, %c0_22, %c0_23] : memref<2x32x96xf32, #tpu.memory_space<vmem>>, vector<1x32x96xf32>
    %13 = vector.shape_cast %12 : vector<1x32x96xf32> to vector<32x96xf32>
    %c0_24 = arith.constant 0 : index
    %c0_25 = arith.constant 0 : index
    %c0_26 = arith.constant 0 : index
    %14 = vector.load %arg4[%c0_24, %c0_25, %c0_26] : memref<2x32x32xf32, #tpu.memory_space<vmem>>, vector<1x32x32xf32>
    %15 = vector.shape_cast %14 : vector<1x32x32xf32> to vector<32x32xf32>
    %c1_27 = arith.constant 1 : index
    %c0_28 = arith.constant 0 : index
    %c0_29 = arith.constant 0 : index
    %16 = vector.load %arg4[%c1_27, %c0_28, %c0_29] : memref<2x32x32xf32, #tpu.memory_space<vmem>>, vector<1x32x32xf32>
    %17 = vector.shape_cast %16 : vector<1x32x32xf32> to vector<32x32xf32>
    %18 = tpu.iota {dimensions = array<i32: 0>} : vector<8x8xi32>
    %19 = tpu.iota {dimensions = array<i32: 1>} : vector<8x8xi32>
    %20 = arith.cmpi sle, %19, %18 : vector<8x8xi32>
    %c0_30 = arith.constant 0 : index
    %c0_31 = arith.constant 0 : index
    %c0_32 = arith.constant 0 : index
    %21 = vector.load %arg1[%c0_30, %c0_31, %c0_32] : memref<3x8x32xf32, #tpu.memory_space<vmem>>, vector<3x8x32xf32>
    %22 = vector.shape_cast %21 : vector<3x8x32xf32> to vector<24x32xf32>
    %cst = arith.constant dense<0.000000e+00> : vector<24x96xf32>
    %23 = tpu.matmul %22, %11, %cst {dimension_numbers = #tpu.dot_dimension_numbers<[1], [0], [0], [1], [0, 0, 1, 1], [], []>} : vector<24x32xf32>, vector<32x96xf32>, vector<24x96xf32> -> vector<24x96xf32>
    %24 = vector.extract_strided_slice %0 {offsets = [0, 0], sizes = [1, 96], strides = [1, 1]} : vector<2x96xf32> to vector<1x96xf32>
    %25 = vector.broadcast %24 : vector<1x96xf32> to vector<24x96xf32>
    %26 = arith.addf %23, %25 : vector<24x96xf32>
    %27 = vector.shape_cast %26 : vector<24x96xf32> to vector<3x8x96xf32>
    %28 = vector.extract_strided_slice %27 {offsets = [0, 0, 0], sizes = [3, 8, 8], strides = [1, 1, 1]} : vector<3x8x96xf32> to vector<3x8x8xf32>
    %29 = vector.extract_strided_slice %27 {offsets = [0, 0, 32], sizes = [3, 8, 8], strides = [1, 1, 1]} : vector<3x8x96xf32> to vector<3x8x8xf32>
    %30 = vector.extract_strided_slice %27 {offsets = [0, 0, 64], sizes = [3, 8, 8], strides = [1, 1, 1]} : vector<3x8x96xf32> to vector<3x8x8xf32>
    "tpu.trace_start"() <{level = 10 : i32, message = "bqe,bke->bqk"}> : () -> ()
    %cst_33 = arith.constant dense<0.000000e+00> : vector<3x8x8xf32>
    %31 = tpu.matmul %28, %29, %cst_33 {dimension_numbers = #tpu.dot_dimension_numbers<[2], [2], [1], [1], [0, 0, 0, 1, 1, 1], [0], [0]>} : vector<3x8x8xf32>, vector<3x8x8xf32>, vector<3x8x8xf32> -> vector<3x8x8xf32>
    "tpu.trace_stop"() : () -> ()
    %cst_34 = arith.constant 0.353553385 : f32
    %32 = vector.broadcast %cst_34 : f32 to vector<3x8x8xf32>
    %33 = arith.mulf %31, %32 : vector<3x8x8xf32>
    %cst_35 = arith.constant -1.000000e+30 : f32
    %34 = vector.shape_cast %20 : vector<8x8xi1> to vector<1x8x8xi1>
    %35 = vector.broadcast %34 : vector<1x8x8xi1> to vector<3x8x8xi1>
    %36 = vector.broadcast %cst_35 : f32 to vector<3x8x8xf32>
    %37 = arith.select %35, %33, %36 : vector<3x8x8xi1>, vector<3x8x8xf32>
    %cst_36 = arith.constant dense<0xFF800000> : vector<3x8xf32>
    %38 = vector.multi_reduction <maximumf>, %37, %cst_36 [2] : vector<3x8x8xf32> to vector<3x8xf32>
    %39 = vector.shape_cast %38 : vector<3x8xf32> to vector<3x8x1xf32>
    %40 = vector.broadcast %39 : vector<3x8x1xf32> to vector<3x8x8xf32>
    %41 = arith.subf %37, %40 : vector<3x8x8xf32>
    %42 = math.exp %41 : vector<3x8x8xf32>
    %cst_37 = arith.constant dense<0.000000e+00> : vector<3x8xf32>
    %43 = vector.multi_reduction <add>, %42, %cst_37 [2] : vector<3x8x8xf32> to vector<3x8xf32>
    %44 = vector.shape_cast %43 : vector<3x8xf32> to vector<3x8x1xf32>
    %45 = tpu.reciprocal %44 {approx = true} : vector<3x8x1xf32> -> vector<3x8x1xf32>
    %46 = vector.broadcast %45 : vector<3x8x1xf32> to vector<3x8x8xf32>
    %47 = arith.mulf %42, %46 : vector<3x8x8xf32>
    "tpu.trace_start"() <{level = 10 : i32, message = "bqk,bke->bqe"}> : () -> ()
    %cst_38 = arith.constant dense<0.000000e+00> : vector<3x8x8xf32>
    %48 = tpu.matmul %47, %30, %cst_38 {dimension_numbers = #tpu.dot_dimension_numbers<[2], [1], [1], [2], [0, 0, 0, 1, 1, 2], [0], [0]>} : vector<3x8x8xf32>, vector<3x8x8xf32>, vector<3x8x8xf32> -> vector<3x8x8xf32>
    "tpu.trace_stop"() : () -> ()
    %49 = vector.shape_cast %48 : vector<3x8x8xf32> to vector<24x8xf32>
    %50 = vector.extract_strided_slice %15 {offsets = [0, 0], sizes = [8, 32], strides = [1, 1]} : vector<32x32xf32> to vector<8x32xf32>
    %cst_39 = arith.constant dense<0.000000e+00> : vector<24x32xf32>
    %51 = tpu.matmul %49, %50, %cst_39 {dimension_numbers = #tpu.dot_dimension_numbers<[1], [0], [0], [1], [0, 0, 1, 1], [], []>} : vector<24x8xf32>, vector<8x32xf32>, vector<24x32xf32> -> vector<24x32xf32>
    %52 = vector.extract_strided_slice %27 {offsets = [0, 0, 8], sizes = [3, 8, 8], strides = [1, 1, 1]} : vector<3x8x96xf32> to vector<3x8x8xf32>
    %53 = vector.extract_strided_slice %27 {offsets = [0, 0, 40], sizes = [3, 8, 8], strides = [1, 1, 1]} : vector<3x8x96xf32> to vector<3x8x8xf32>
    %54 = vector.extract_strided_slice %27 {offsets = [0, 0, 72], sizes = [3, 8, 8], strides = [1, 1, 1]} : vector<3x8x96xf32> to vector<3x8x8xf32>
    "tpu.trace_start"() <{level = 10 : i32, message = "bqe,bke->bqk"}> : () -> ()
    %cst_40 = arith.constant dense<0.000000e+00> : vector<3x8x8xf32>
    %55 = tpu.matmul %52, %53, %cst_40 {dimension_numbers = #tpu.dot_dimension_numbers<[2], [2], [1], [1], [0, 0, 0, 1, 1, 1], [0], [0]>} : vector<3x8x8xf32>, vector<3x8x8xf32>, vector<3x8x8xf32> -> vector<3x8x8xf32>
    "tpu.trace_stop"() : () -> ()
    %cst_41 = arith.constant 0.353553385 : f32
    %56 = vector.broadcast %cst_41 : f32 to vector<3x8x8xf32>
    %57 = arith.mulf %55, %56 : vector<3x8x8xf32>
    %cst_42 = arith.constant -1.000000e+30 : f32
    %58 = vector.shape_cast %20 : vector<8x8xi1> to vector<1x8x8xi1>
    %59 = vector.broadcast %58 : vector<1x8x8xi1> to vector<3x8x8xi1>
    %60 = vector.broadcast %cst_42 : f32 to vector<3x8x8xf32>
    %61 = arith.select %59, %57, %60 : vector<3x8x8xi1>, vector<3x8x8xf32>
    %cst_43 = arith.constant dense<0xFF800000> : vector<3x8xf32>
    %62 = vector.multi_reduction <maximumf>, %61, %cst_43 [2] : vector<3x8x8xf32> to vector<3x8xf32>
    %63 = vector.shape_cast %62 : vector<3x8xf32> to vector<3x8x1xf32>
    %64 = vector.broadcast %63 : vector<3x8x1xf32> to vector<3x8x8xf32>
    %65 = arith.subf %61, %64 : vector<3x8x8xf32>
    %66 = math.exp %65 : vector<3x8x8xf32>
    %cst_44 = arith.constant dense<0.000000e+00> : vector<3x8xf32>
    %67 = vector.multi_reduction <add>, %66, %cst_44 [2] : vector<3x8x8xf32> to vector<3x8xf32>
    %68 = vector.shape_cast %67 : vector<3x8xf32> to vector<3x8x1xf32>
    %69 = tpu.reciprocal %68 {approx = true} : vector<3x8x1xf32> -> vector<3x8x1xf32>
    %70 = vector.broadcast %69 : vector<3x8x1xf32> to vector<3x8x8xf32>
    %71 = arith.mulf %66, %70 : vector<3x8x8xf32>
    "tpu.trace_start"() <{level = 10 : i32, message = "bqk,bke->bqe"}> : () -> ()
    %cst_45 = arith.constant dense<0.000000e+00> : vector<3x8x8xf32>
    %72 = tpu.matmul %71, %54, %cst_45 {dimension_numbers = #tpu.dot_dimension_numbers<[2], [1], [1], [2], [0, 0, 0, 1, 1, 2], [0], [0]>} : vector<3x8x8xf32>, vector<3x8x8xf32>, vector<3x8x8xf32> -> vector<3x8x8xf32>
    "tpu.trace_stop"() : () -> ()
    %73 = vector.shape_cast %72 : vector<3x8x8xf32> to vector<24x8xf32>
    %74 = vector.extract_strided_slice %15 {offsets = [8, 0], sizes = [8, 32], strides = [1, 1]} : vector<32x32xf32> to vector<8x32xf32>
    %cst_46 = arith.constant dense<0.000000e+00> : vector<24x32xf32>
    %75 = tpu.matmul %73, %74, %cst_46 {dimension_numbers = #tpu.dot_dimension_numbers<[1], [0], [0], [1], [0, 0, 1, 1], [], []>} : vector<24x8xf32>, vector<8x32xf32>, vector<24x32xf32> -> vector<24x32xf32>
    %76 = arith.addf %51, %75 : vector<24x32xf32>
    %77 = vector.extract_strided_slice %27 {offsets = [0, 0, 16], sizes = [3, 8, 8], strides = [1, 1, 1]} : vector<3x8x96xf32> to vector<3x8x8xf32>
    %78 = vector.extract_strided_slice %27 {offsets = [0, 0, 48], sizes = [3, 8, 8], strides = [1, 1, 1]} : vector<3x8x96xf32> to vector<3x8x8xf32>
    %79 = vector.extract_strided_slice %27 {offsets = [0, 0, 80], sizes = [3, 8, 8], strides = [1, 1, 1]} : vector<3x8x96xf32> to vector<3x8x8xf32>
    "tpu.trace_start"() <{level = 10 : i32, message = "bqe,bke->bqk"}> : () -> ()
    %cst_47 = arith.constant dense<0.000000e+00> : vector<3x8x8xf32>
    %80 = tpu.matmul %77, %78, %cst_47 {dimension_numbers = #tpu.dot_dimension_numbers<[2], [2], [1], [1], [0, 0, 0, 1, 1, 1], [0], [0]>} : vector<3x8x8xf32>, vector<3x8x8xf32>, vector<3x8x8xf32> -> vector<3x8x8xf32>
    "tpu.trace_stop"() : () -> ()
    %cst_48 = arith.constant 0.353553385 : f32
    %81 = vector.broadcast %cst_48 : f32 to vector<3x8x8xf32>
    %82 = arith.mulf %80, %81 : vector<3x8x8xf32>
    %cst_49 = arith.constant -1.000000e+30 : f32
    %83 = vector.shape_cast %20 : vector<8x8xi1> to vector<1x8x8xi1>
    %84 = vector.broadcast %83 : vector<1x8x8xi1> to vector<3x8x8xi1>
    %85 = vector.broadcast %cst_49 : f32 to vector<3x8x8xf32>
    %86 = arith.select %84, %82, %85 : vector<3x8x8xi1>, vector<3x8x8xf32>
    %cst_50 = arith.constant dense<0xFF800000> : vector<3x8xf32>
    %87 = vector.multi_reduction <maximumf>, %86, %cst_50 [2] : vector<3x8x8xf32> to vector<3x8xf32>
    %88 = vector.shape_cast %87 : vector<3x8xf32> to vector<3x8x1xf32>
    %89 = vector.broadcast %88 : vector<3x8x1xf32> to vector<3x8x8xf32>
    %90 = arith.subf %86, %89 : vector<3x8x8xf32>
    %91 = math.exp %90 : vector<3x8x8xf32>
    %cst_51 = arith.constant dense<0.000000e+00> : vector<3x8xf32>
    %92 = vector.multi_reduction <add>, %91, %cst_51 [2] : vector<3x8x8xf32> to vector<3x8xf32>
    %93 = vector.shape_cast %92 : vector<3x8xf32> to vector<3x8x1xf32>
    %94 = tpu.reciprocal %93 {approx = true} : vector<3x8x1xf32> -> vector<3x8x1xf32>
    %95 = vector.broadcast %94 : vector<3x8x1xf32> to vector<3x8x8xf32>
    %96 = arith.mulf %91, %95 : vector<3x8x8xf32>
    "tpu.trace_start"() <{level = 10 : i32, message = "bqk,bke->bqe"}> : () -> ()
    %cst_52 = arith.constant dense<0.000000e+00> : vector<3x8x8xf32>
    %97 = tpu.matmul %96, %79, %cst_52 {dimension_numbers = #tpu.dot_dimension_numbers<[2], [1], [1], [2], [0, 0, 0, 1, 1, 2], [0], [0]>} : vector<3x8x8xf32>, vector<3x8x8xf32>, vector<3x8x8xf32> -> vector<3x8x8xf32>
    "tpu.trace_stop"() : () -> ()
    %98 = vector.shape_cast %97 : vector<3x8x8xf32> to vector<24x8xf32>
    %99 = vector.extract_strided_slice %15 {offsets = [16, 0], sizes = [8, 32], strides = [1, 1]} : vector<32x32xf32> to vector<8x32xf32>
    %cst_53 = arith.constant dense<0.000000e+00> : vector<24x32xf32>
    %100 = tpu.matmul %98, %99, %cst_53 {dimension_numbers = #tpu.dot_dimension_numbers<[1], [0], [0], [1], [0, 0, 1, 1], [], []>} : vector<24x8xf32>, vector<8x32xf32>, vector<24x32xf32> -> vector<24x32xf32>
    %101 = arith.addf %76, %100 : vector<24x32xf32>
    %102 = vector.extract_strided_slice %27 {offsets = [0, 0, 24], sizes = [3, 8, 8], strides = [1, 1, 1]} : vector<3x8x96xf32> to vector<3x8x8xf32>
    %103 = vector.extract_strided_slice %27 {offsets = [0, 0, 56], sizes = [3, 8, 8], strides = [1, 1, 1]} : vector<3x8x96xf32> to vector<3x8x8xf32>
    %104 = vector.extract_strided_slice %27 {offsets = [0, 0, 88], sizes = [3, 8, 8], strides = [1, 1, 1]} : vector<3x8x96xf32> to vector<3x8x8xf32>
    "tpu.trace_start"() <{level = 10 : i32, message = "bqe,bke->bqk"}> : () -> ()
    %cst_54 = arith.constant dense<0.000000e+00> : vector<3x8x8xf32>
    %105 = tpu.matmul %102, %103, %cst_54 {dimension_numbers = #tpu.dot_dimension_numbers<[2], [2], [1], [1], [0, 0, 0, 1, 1, 1], [0], [0]>} : vector<3x8x8xf32>, vector<3x8x8xf32>, vector<3x8x8xf32> -> vector<3x8x8xf32>
    "tpu.trace_stop"() : () -> ()
    %cst_55 = arith.constant 0.353553385 : f32
    %106 = vector.broadcast %cst_55 : f32 to vector<3x8x8xf32>
    %107 = arith.mulf %105, %106 : vector<3x8x8xf32>
    %cst_56 = arith.constant -1.000000e+30 : f32
    %108 = vector.shape_cast %20 : vector<8x8xi1> to vector<1x8x8xi1>
    %109 = vector.broadcast %108 : vector<1x8x8xi1> to vector<3x8x8xi1>
    %110 = vector.broadcast %cst_56 : f32 to vector<3x8x8xf32>
    %111 = arith.select %109, %107, %110 : vector<3x8x8xi1>, vector<3x8x8xf32>
    %cst_57 = arith.constant dense<0xFF800000> : vector<3x8xf32>
    %112 = vector.multi_reduction <maximumf>, %111, %cst_57 [2] : vector<3x8x8xf32> to vector<3x8xf32>
    %113 = vector.shape_cast %112 : vector<3x8xf32> to vector<3x8x1xf32>
    %114 = vector.broadcast %113 : vector<3x8x1xf32> to vector<3x8x8xf32>
    %115 = arith.subf %111, %114 : vector<3x8x8xf32>
    %116 = math.exp %115 : vector<3x8x8xf32>
    %cst_58 = arith.constant dense<0.000000e+00> : vector<3x8xf32>
    %117 = vector.multi_reduction <add>, %116, %cst_58 [2] : vector<3x8x8xf32> to vector<3x8xf32>
    %118 = vector.shape_cast %117 : vector<3x8xf32> to vector<3x8x1xf32>
    %119 = tpu.reciprocal %118 {approx = true} : vector<3x8x1xf32> -> vector<3x8x1xf32>
    %120 = vector.broadcast %119 : vector<3x8x1xf32> to vector<3x8x8xf32>
    %121 = arith.mulf %116, %120 : vector<3x8x8xf32>
    "tpu.trace_start"() <{level = 10 : i32, message = "bqk,bke->bqe"}> : () -> ()
    %cst_59 = arith.constant dense<0.000000e+00> : vector<3x8x8xf32>
    %122 = tpu.matmul %121, %104, %cst_59 {dimension_numbers = #tpu.dot_dimension_numbers<[2], [1], [1], [2], [0, 0, 0, 1, 1, 2], [0], [0]>} : vector<3x8x8xf32>, vector<3x8x8xf32>, vector<3x8x8xf32> -> vector<3x8x8xf32>
    "tpu.trace_stop"() : () -> ()
    %123 = vector.shape_cast %122 : vector<3x8x8xf32> to vector<24x8xf32>
    %124 = vector.extract_strided_slice %15 {offsets = [24, 0], sizes = [8, 32], strides = [1, 1]} : vector<32x32xf32> to vector<8x32xf32>
    %cst_60 = arith.constant dense<0.000000e+00> : vector<24x32xf32>
    %125 = tpu.matmul %123, %124, %cst_60 {dimension_numbers = #tpu.dot_dimension_numbers<[1], [0], [0], [1], [0, 0, 1, 1], [], []>} : vector<24x8xf32>, vector<8x32xf32>, vector<24x32xf32> -> vector<24x32xf32>
    %126 = arith.addf %101, %125 : vector<24x32xf32>
    %127 = vector.extract_strided_slice %1 {offsets = [0, 0], sizes = [1, 32], strides = [1, 1]} : vector<2x32xf32> to vector<1x32xf32>
    %128 = vector.broadcast %127 : vector<1x32xf32> to vector<24x32xf32>
    %129 = arith.addf %126, %128 : vector<24x32xf32>
    %130 = arith.addf %22, %129 : vector<24x32xf32>
    %cst_61 = arith.constant dense<0.000000e+00> : vector<24xf32>
    %131 = vector.multi_reduction <add>, %130, %cst_61 [1] : vector<24x32xf32> to vector<24xf32>
    %132 = vector.shape_cast %131 : vector<24xf32> to vector<24x1xf32>
    %cst_62 = arith.constant 3.200000e+01 : f32
    %133 = vector.broadcast %cst_62 : f32 to vector<24x1xf32>
    %134 = arith.divf %132, %133 : vector<24x1xf32>
    %135 = vector.broadcast %134 : vector<24x1xf32> to vector<24x32xf32>
    %136 = arith.subf %130, %135 : vector<24x32xf32>
    %137 = arith.mulf %136, %136 : vector<24x32xf32>
    %cst_63 = arith.constant dense<0.000000e+00> : vector<24xf32>
    %138 = vector.multi_reduction <add>, %137, %cst_63 [1] : vector<24x32xf32> to vector<24xf32>
    %139 = vector.shape_cast %138 : vector<24xf32> to vector<24x1xf32>
    %cst_64 = arith.constant 3.200000e+01 : f32
    %140 = vector.broadcast %cst_64 : f32 to vector<24x1xf32>
    %141 = arith.divf %139, %140 : vector<24x1xf32>
    %142 = vector.broadcast %134 : vector<24x1xf32> to vector<24x32xf32>
    %143 = arith.subf %130, %142 : vector<24x32xf32>
    %cst_65 = arith.constant 9.99999974E-6 : f32
    %144 = vector.broadcast %cst_65 : f32 to vector<24x1xf32>
    %145 = arith.addf %141, %144 : vector<24x1xf32>
    %146 = math.rsqrt %145 : vector<24x1xf32>
    %147 = vector.broadcast %146 : vector<24x1xf32> to vector<24x32xf32>
    %148 = arith.mulf %143, %147 : vector<24x32xf32>
    %149 = vector.broadcast %2 : vector<1x32xf32> to vector<24x32xf32>
    %150 = arith.mulf %148, %149 : vector<24x32xf32>
    %151 = vector.broadcast %3 : vector<1x32xf32> to vector<24x32xf32>
    %152 = arith.addf %150, %151 : vector<24x32xf32>
    %cst_66 = arith.constant dense<0.000000e+00> : vector<24x96xf32>
    %153 = tpu.matmul %152, %13, %cst_66 {dimension_numbers = #tpu.dot_dimension_numbers<[1], [0], [0], [1], [0, 0, 1, 1], [], []>} : vector<24x32xf32>, vector<32x96xf32>, vector<24x96xf32> -> vector<24x96xf32>
    %154 = vector.extract_strided_slice %0 {offsets = [1, 0], sizes = [1, 96], strides = [1, 1]} : vector<2x96xf32> to vector<1x96xf32>
    %155 = vector.broadcast %154 : vector<1x96xf32> to vector<24x96xf32>
    %156 = arith.addf %153, %155 : vector<24x96xf32>
    %157 = vector.shape_cast %156 : vector<24x96xf32> to vector<3x8x96xf32>
    %158 = vector.extract_strided_slice %157 {offsets = [0, 0, 0], sizes = [3, 8, 8], strides = [1, 1, 1]} : vector<3x8x96xf32> to vector<3x8x8xf32>
    %159 = vector.extract_strided_slice %157 {offsets = [0, 0, 32], sizes = [3, 8, 8], strides = [1, 1, 1]} : vector<3x8x96xf32> to vector<3x8x8xf32>
    %160 = vector.extract_strided_slice %157 {offsets = [0, 0, 64], sizes = [3, 8, 8], strides = [1, 1, 1]} : vector<3x8x96xf32> to vector<3x8x8xf32>
    "tpu.trace_start"() <{level = 10 : i32, message = "bqe,bke->bqk"}> : () -> ()
    %cst_67 = arith.constant dense<0.000000e+00> : vector<3x8x8xf32>
    %161 = tpu.matmul %158, %159, %cst_67 {dimension_numbers = #tpu.dot_dimension_numbers<[2], [2], [1], [1], [0, 0, 0, 1, 1, 1], [0], [0]>} : vector<3x8x8xf32>, vector<3x8x8xf32>, vector<3x8x8xf32> -> vector<3x8x8xf32>
    "tpu.trace_stop"() : () -> ()
    %cst_68 = arith.constant 0.353553385 : f32
    %162 = vector.broadcast %cst_68 : f32 to vector<3x8x8xf32>
    %163 = arith.mulf %161, %162 : vector<3x8x8xf32>
    %cst_69 = arith.constant -1.000000e+30 : f32
    %164 = vector.shape_cast %20 : vector<8x8xi1> to vector<1x8x8xi1>
    %165 = vector.broadcast %164 : vector<1x8x8xi1> to vector<3x8x8xi1>
    %166 = vector.broadcast %cst_69 : f32 to vector<3x8x8xf32>
    %167 = arith.select %165, %163, %166 : vector<3x8x8xi1>, vector<3x8x8xf32>
    %cst_70 = arith.constant dense<0xFF800000> : vector<3x8xf32>
    %168 = vector.multi_reduction <maximumf>, %167, %cst_70 [2] : vector<3x8x8xf32> to vector<3x8xf32>
    %169 = vector.shape_cast %168 : vector<3x8xf32> to vector<3x8x1xf32>
    %170 = vector.broadcast %169 : vector<3x8x1xf32> to vector<3x8x8xf32>
    %171 = arith.subf %167, %170 : vector<3x8x8xf32>
    %172 = math.exp %171 : vector<3x8x8xf32>
    %cst_71 = arith.constant dense<0.000000e+00> : vector<3x8xf32>
    %173 = vector.multi_reduction <add>, %172, %cst_71 [2] : vector<3x8x8xf32> to vector<3x8xf32>
    %174 = vector.shape_cast %173 : vector<3x8xf32> to vector<3x8x1xf32>
    %175 = tpu.reciprocal %174 {approx = true} : vector<3x8x1xf32> -> vector<3x8x1xf32>
    %176 = vector.broadcast %175 : vector<3x8x1xf32> to vector<3x8x8xf32>
    %177 = arith.mulf %172, %176 : vector<3x8x8xf32>
    "tpu.trace_start"() <{level = 10 : i32, message = "bqk,bke->bqe"}> : () -> ()
    %cst_72 = arith.constant dense<0.000000e+00> : vector<3x8x8xf32>
    %178 = tpu.matmul %177, %160, %cst_72 {dimension_numbers = #tpu.dot_dimension_numbers<[2], [1], [1], [2], [0, 0, 0, 1, 1, 2], [0], [0]>} : vector<3x8x8xf32>, vector<3x8x8xf32>, vector<3x8x8xf32> -> vector<3x8x8xf32>
    "tpu.trace_stop"() : () -> ()
    %179 = vector.shape_cast %178 : vector<3x8x8xf32> to vector<24x8xf32>
    %180 = vector.extract_strided_slice %17 {offsets = [0, 0], sizes = [8, 32], strides = [1, 1]} : vector<32x32xf32> to vector<8x32xf32>
    %cst_73 = arith.constant dense<0.000000e+00> : vector<24x32xf32>
    %181 = tpu.matmul %179, %180, %cst_73 {dimension_numbers = #tpu.dot_dimension_numbers<[1], [0], [0], [1], [0, 0, 1, 1], [], []>} : vector<24x8xf32>, vector<8x32xf32>, vector<24x32xf32> -> vector<24x32xf32>
    %182 = vector.extract_strided_slice %157 {offsets = [0, 0, 8], sizes = [3, 8, 8], strides = [1, 1, 1]} : vector<3x8x96xf32> to vector<3x8x8xf32>
    %183 = vector.extract_strided_slice %157 {offsets = [0, 0, 40], sizes = [3, 8, 8], strides = [1, 1, 1]} : vector<3x8x96xf32> to vector<3x8x8xf32>
    %184 = vector.extract_strided_slice %157 {offsets = [0, 0, 72], sizes = [3, 8, 8], strides = [1, 1, 1]} : vector<3x8x96xf32> to vector<3x8x8xf32>
    "tpu.trace_start"() <{level = 10 : i32, message = "bqe,bke->bqk"}> : () -> ()
    %cst_74 = arith.constant dense<0.000000e+00> : vector<3x8x8xf32>
    %185 = tpu.matmul %182, %183, %cst_74 {dimension_numbers = #tpu.dot_dimension_numbers<[2], [2], [1], [1], [0, 0, 0, 1, 1, 1], [0], [0]>} : vector<3x8x8xf32>, vector<3x8x8xf32>, vector<3x8x8xf32> -> vector<3x8x8xf32>
    "tpu.trace_stop"() : () -> ()
    %cst_75 = arith.constant 0.353553385 : f32
    %186 = vector.broadcast %cst_75 : f32 to vector<3x8x8xf32>
    %187 = arith.mulf %185, %186 : vector<3x8x8xf32>
    %cst_76 = arith.constant -1.000000e+30 : f32
    %188 = vector.shape_cast %20 : vector<8x8xi1> to vector<1x8x8xi1>
    %189 = vector.broadcast %188 : vector<1x8x8xi1> to vector<3x8x8xi1>
    %190 = vector.broadcast %cst_76 : f32 to vector<3x8x8xf32>
    %191 = arith.select %189, %187, %190 : vector<3x8x8xi1>, vector<3x8x8xf32>
    %cst_77 = arith.constant dense<0xFF800000> : vector<3x8xf32>
    %192 = vector.multi_reduction <maximumf>, %191, %cst_77 [2] : vector<3x8x8xf32> to vector<3x8xf32>
    %193 = vector.shape_cast %192 : vector<3x8xf32> to vector<3x8x1xf32>
    %194 = vector.broadcast %193 : vector<3x8x1xf32> to vector<3x8x8xf32>
    %195 = arith.subf %191, %194 : vector<3x8x8xf32>
    %196 = math.exp %195 : vector<3x8x8xf32>
    %cst_78 = arith.constant dense<0.000000e+00> : vector<3x8xf32>
    %197 = vector.multi_reduction <add>, %196, %cst_78 [2] : vector<3x8x8xf32> to vector<3x8xf32>
    %198 = vector.shape_cast %197 : vector<3x8xf32> to vector<3x8x1xf32>
    %199 = tpu.reciprocal %198 {approx = true} : vector<3x8x1xf32> -> vector<3x8x1xf32>
    %200 = vector.broadcast %199 : vector<3x8x1xf32> to vector<3x8x8xf32>
    %201 = arith.mulf %196, %200 : vector<3x8x8xf32>
    "tpu.trace_start"() <{level = 10 : i32, message = "bqk,bke->bqe"}> : () -> ()
    %cst_79 = arith.constant dense<0.000000e+00> : vector<3x8x8xf32>
    %202 = tpu.matmul %201, %184, %cst_79 {dimension_numbers = #tpu.dot_dimension_numbers<[2], [1], [1], [2], [0, 0, 0, 1, 1, 2], [0], [0]>} : vector<3x8x8xf32>, vector<3x8x8xf32>, vector<3x8x8xf32> -> vector<3x8x8xf32>
    "tpu.trace_stop"() : () -> ()
    %203 = vector.shape_cast %202 : vector<3x8x8xf32> to vector<24x8xf32>
    %204 = vector.extract_strided_slice %17 {offsets = [8, 0], sizes = [8, 32], strides = [1, 1]} : vector<32x32xf32> to vector<8x32xf32>
    %cst_80 = arith.constant dense<0.000000e+00> : vector<24x32xf32>
    %205 = tpu.matmul %203, %204, %cst_80 {dimension_numbers = #tpu.dot_dimension_numbers<[1], [0], [0], [1], [0, 0, 1, 1], [], []>} : vector<24x8xf32>, vector<8x32xf32>, vector<24x32xf32> -> vector<24x32xf32>
    %206 = arith.addf %181, %205 : vector<24x32xf32>
    %207 = vector.extract_strided_slice %157 {offsets = [0, 0, 16], sizes = [3, 8, 8], strides = [1, 1, 1]} : vector<3x8x96xf32> to vector<3x8x8xf32>
    %208 = vector.extract_strided_slice %157 {offsets = [0, 0, 48], sizes = [3, 8, 8], strides = [1, 1, 1]} : vector<3x8x96xf32> to vector<3x8x8xf32>
    %209 = vector.extract_strided_slice %157 {offsets = [0, 0, 80], sizes = [3, 8, 8], strides = [1, 1, 1]} : vector<3x8x96xf32> to vector<3x8x8xf32>
    "tpu.trace_start"() <{level = 10 : i32, message = "bqe,bke->bqk"}> : () -> ()
    %cst_81 = arith.constant dense<0.000000e+00> : vector<3x8x8xf32>
    %210 = tpu.matmul %207, %208, %cst_81 {dimension_numbers = #tpu.dot_dimension_numbers<[2], [2], [1], [1], [0, 0, 0, 1, 1, 1], [0], [0]>} : vector<3x8x8xf32>, vector<3x8x8xf32>, vector<3x8x8xf32> -> vector<3x8x8xf32>
    "tpu.trace_stop"() : () -> ()
    %cst_82 = arith.constant 0.353553385 : f32
    %211 = vector.broadcast %cst_82 : f32 to vector<3x8x8xf32>
    %212 = arith.mulf %210, %211 : vector<3x8x8xf32>
    %cst_83 = arith.constant -1.000000e+30 : f32
    %213 = vector.shape_cast %20 : vector<8x8xi1> to vector<1x8x8xi1>
    %214 = vector.broadcast %213 : vector<1x8x8xi1> to vector<3x8x8xi1>
    %215 = vector.broadcast %cst_83 : f32 to vector<3x8x8xf32>
    %216 = arith.select %214, %212, %215 : vector<3x8x8xi1>, vector<3x8x8xf32>
    %cst_84 = arith.constant dense<0xFF800000> : vector<3x8xf32>
    %217 = vector.multi_reduction <maximumf>, %216, %cst_84 [2] : vector<3x8x8xf32> to vector<3x8xf32>
    %218 = vector.shape_cast %217 : vector<3x8xf32> to vector<3x8x1xf32>
    %219 = vector.broadcast %218 : vector<3x8x1xf32> to vector<3x8x8xf32>
    %220 = arith.subf %216, %219 : vector<3x8x8xf32>
    %221 = math.exp %220 : vector<3x8x8xf32>
    %cst_85 = arith.constant dense<0.000000e+00> : vector<3x8xf32>
    %222 = vector.multi_reduction <add>, %221, %cst_85 [2] : vector<3x8x8xf32> to vector<3x8xf32>
    %223 = vector.shape_cast %222 : vector<3x8xf32> to vector<3x8x1xf32>
    %224 = tpu.reciprocal %223 {approx = true} : vector<3x8x1xf32> -> vector<3x8x1xf32>
    %225 = vector.broadcast %224 : vector<3x8x1xf32> to vector<3x8x8xf32>
    %226 = arith.mulf %221, %225 : vector<3x8x8xf32>
    "tpu.trace_start"() <{level = 10 : i32, message = "bqk,bke->bqe"}> : () -> ()
    %cst_86 = arith.constant dense<0.000000e+00> : vector<3x8x8xf32>
    %227 = tpu.matmul %226, %209, %cst_86 {dimension_numbers = #tpu.dot_dimension_numbers<[2], [1], [1], [2], [0, 0, 0, 1, 1, 2], [0], [0]>} : vector<3x8x8xf32>, vector<3x8x8xf32>, vector<3x8x8xf32> -> vector<3x8x8xf32>
    "tpu.trace_stop"() : () -> ()
    %228 = vector.shape_cast %227 : vector<3x8x8xf32> to vector<24x8xf32>
    %229 = vector.extract_strided_slice %17 {offsets = [16, 0], sizes = [8, 32], strides = [1, 1]} : vector<32x32xf32> to vector<8x32xf32>
    %cst_87 = arith.constant dense<0.000000e+00> : vector<24x32xf32>
    %230 = tpu.matmul %228, %229, %cst_87 {dimension_numbers = #tpu.dot_dimension_numbers<[1], [0], [0], [1], [0, 0, 1, 1], [], []>} : vector<24x8xf32>, vector<8x32xf32>, vector<24x32xf32> -> vector<24x32xf32>
    %231 = arith.addf %206, %230 : vector<24x32xf32>
    %232 = vector.extract_strided_slice %157 {offsets = [0, 0, 24], sizes = [3, 8, 8], strides = [1, 1, 1]} : vector<3x8x96xf32> to vector<3x8x8xf32>
    %233 = vector.extract_strided_slice %157 {offsets = [0, 0, 56], sizes = [3, 8, 8], strides = [1, 1, 1]} : vector<3x8x96xf32> to vector<3x8x8xf32>
    %234 = vector.extract_strided_slice %157 {offsets = [0, 0, 88], sizes = [3, 8, 8], strides = [1, 1, 1]} : vector<3x8x96xf32> to vector<3x8x8xf32>
    "tpu.trace_start"() <{level = 10 : i32, message = "bqe,bke->bqk"}> : () -> ()
    %cst_88 = arith.constant dense<0.000000e+00> : vector<3x8x8xf32>
    %235 = tpu.matmul %232, %233, %cst_88 {dimension_numbers = #tpu.dot_dimension_numbers<[2], [2], [1], [1], [0, 0, 0, 1, 1, 1], [0], [0]>} : vector<3x8x8xf32>, vector<3x8x8xf32>, vector<3x8x8xf32> -> vector<3x8x8xf32>
    "tpu.trace_stop"() : () -> ()
    %cst_89 = arith.constant 0.353553385 : f32
    %236 = vector.broadcast %cst_89 : f32 to vector<3x8x8xf32>
    %237 = arith.mulf %235, %236 : vector<3x8x8xf32>
    %cst_90 = arith.constant -1.000000e+30 : f32
    %238 = vector.shape_cast %20 : vector<8x8xi1> to vector<1x8x8xi1>
    %239 = vector.broadcast %238 : vector<1x8x8xi1> to vector<3x8x8xi1>
    %240 = vector.broadcast %cst_90 : f32 to vector<3x8x8xf32>
    %241 = arith.select %239, %237, %240 : vector<3x8x8xi1>, vector<3x8x8xf32>
    %cst_91 = arith.constant dense<0xFF800000> : vector<3x8xf32>
    %242 = vector.multi_reduction <maximumf>, %241, %cst_91 [2] : vector<3x8x8xf32> to vector<3x8xf32>
    %243 = vector.shape_cast %242 : vector<3x8xf32> to vector<3x8x1xf32>
    %244 = vector.broadcast %243 : vector<3x8x1xf32> to vector<3x8x8xf32>
    %245 = arith.subf %241, %244 : vector<3x8x8xf32>
    %246 = math.exp %245 : vector<3x8x8xf32>
    %cst_92 = arith.constant dense<0.000000e+00> : vector<3x8xf32>
    %247 = vector.multi_reduction <add>, %246, %cst_92 [2] : vector<3x8x8xf32> to vector<3x8xf32>
    %248 = vector.shape_cast %247 : vector<3x8xf32> to vector<3x8x1xf32>
    %249 = tpu.reciprocal %248 {approx = true} : vector<3x8x1xf32> -> vector<3x8x1xf32>
    %250 = vector.broadcast %249 : vector<3x8x1xf32> to vector<3x8x8xf32>
    %251 = arith.mulf %246, %250 : vector<3x8x8xf32>
    "tpu.trace_start"() <{level = 10 : i32, message = "bqk,bke->bqe"}> : () -> ()
    %cst_93 = arith.constant dense<0.000000e+00> : vector<3x8x8xf32>
    %252 = tpu.matmul %251, %234, %cst_93 {dimension_numbers = #tpu.dot_dimension_numbers<[2], [1], [1], [2], [0, 0, 0, 1, 1, 2], [0], [0]>} : vector<3x8x8xf32>, vector<3x8x8xf32>, vector<3x8x8xf32> -> vector<3x8x8xf32>
    "tpu.trace_stop"() : () -> ()
    %253 = vector.shape_cast %252 : vector<3x8x8xf32> to vector<24x8xf32>
    %254 = vector.extract_strided_slice %17 {offsets = [24, 0], sizes = [8, 32], strides = [1, 1]} : vector<32x32xf32> to vector<8x32xf32>
    %cst_94 = arith.constant dense<0.000000e+00> : vector<24x32xf32>
    %255 = tpu.matmul %253, %254, %cst_94 {dimension_numbers = #tpu.dot_dimension_numbers<[1], [0], [0], [1], [0, 0, 1, 1], [], []>} : vector<24x8xf32>, vector<8x32xf32>, vector<24x32xf32> -> vector<24x32xf32>
    %256 = arith.addf %231, %255 : vector<24x32xf32>
    %257 = vector.extract_strided_slice %1 {offsets = [1, 0], sizes = [1, 32], strides = [1, 1]} : vector<2x32xf32> to vector<1x32xf32>
    %258 = vector.broadcast %257 : vector<1x32xf32> to vector<24x32xf32>
    %259 = arith.addf %256, %258 : vector<24x32xf32>
    %260 = arith.addf %152, %259 : vector<24x32xf32>
    %cst_95 = arith.constant dense<0.000000e+00> : vector<24xf32>
    %261 = vector.multi_reduction <add>, %260, %cst_95 [1] : vector<24x32xf32> to vector<24xf32>
    %262 = vector.shape_cast %261 : vector<24xf32> to vector<24x1xf32>
    %cst_96 = arith.constant 3.200000e+01 : f32
    %263 = vector.broadcast %cst_96 : f32 to vector<24x1xf32>
    %264 = arith.divf %262, %263 : vector<24x1xf32>
    %265 = vector.broadcast %264 : vector<24x1xf32> to vector<24x32xf32>
    %266 = arith.subf %260, %265 : vector<24x32xf32>
    %267 = arith.mulf %266, %266 : vector<24x32xf32>
    %cst_97 = arith.constant dense<0.000000e+00> : vector<24xf32>
    %268 = vector.multi_reduction <add>, %267, %cst_97 [1] : vector<24x32xf32> to vector<24xf32>
    %269 = vector.shape_cast %268 : vector<24xf32> to vector<24x1xf32>
    %cst_98 = arith.constant 3.200000e+01 : f32
    %270 = vector.broadcast %cst_98 : f32 to vector<24x1xf32>
    %271 = arith.divf %269, %270 : vector<24x1xf32>
    %272 = vector.broadcast %264 : vector<24x1xf32> to vector<24x32xf32>
    %273 = arith.subf %260, %272 : vector<24x32xf32>
    %cst_99 = arith.constant 9.99999974E-6 : f32
    %274 = vector.broadcast %cst_99 : f32 to vector<24x1xf32>
    %275 = arith.addf %271, %274 : vector<24x1xf32>
    %276 = math.rsqrt %275 : vector<24x1xf32>
    %277 = vector.broadcast %276 : vector<24x1xf32> to vector<24x32xf32>
    %278 = arith.mulf %273, %277 : vector<24x32xf32>
    %279 = vector.broadcast %2 : vector<1x32xf32> to vector<24x32xf32>
    %280 = arith.mulf %278, %279 : vector<24x32xf32>
    %281 = vector.broadcast %3 : vector<1x32xf32> to vector<24x32xf32>
    %282 = arith.addf %280, %281 : vector<24x32xf32>
    %cst_100 = arith.constant dense<0.000000e+00> : vector<24x32xf32>
    %283 = tpu.matmul %282, %6, %cst_100 {dimension_numbers = #tpu.dot_dimension_numbers<[1], [0], [0], [1], [0, 0, 1, 1], [], []>} : vector<24x32xf32>, vector<32x32xf32>, vector<24x32xf32> -> vector<24x32xf32>
    %284 = vector.broadcast %7 : vector<1x32xf32> to vector<24x32xf32>
    %285 = arith.addf %283, %284 : vector<24x32xf32>
    %cst_101 = arith.constant 0.000000e+00 : f32
    %286 = vector.broadcast %cst_101 : f32 to vector<24x32xf32>
    %287 = arith.maximumf %285, %286 : vector<24x32xf32>
    %cst_102 = arith.constant dense<0.000000e+00> : vector<24x32xf32>
    %288 = tpu.matmul %287, %8, %cst_102 {dimension_numbers = #tpu.dot_dimension_numbers<[1], [0], [0], [1], [0, 0, 1, 1], [], []>} : vector<24x32xf32>, vector<32x32xf32>, vector<24x32xf32> -> vector<24x32xf32>
    %289 = vector.broadcast %9 : vector<1x32xf32> to vector<24x32xf32>
    %290 = arith.addf %288, %289 : vector<24x32xf32>
    %291 = arith.addf %282, %290 : vector<24x32xf32>
    %cst_103 = arith.constant dense<0.000000e+00> : vector<24xf32>
    %292 = vector.multi_reduction <add>, %291, %cst_103 [1] : vector<24x32xf32> to vector<24xf32>
    %293 = vector.shape_cast %292 : vector<24xf32> to vector<24x1xf32>
    %cst_104 = arith.constant 3.200000e+01 : f32
    %294 = vector.broadcast %cst_104 : f32 to vector<24x1xf32>
    %295 = arith.divf %293, %294 : vector<24x1xf32>
    %296 = vector.broadcast %295 : vector<24x1xf32> to vector<24x32xf32>
    %297 = arith.subf %291, %296 : vector<24x32xf32>
    %298 = arith.mulf %297, %297 : vector<24x32xf32>
    %cst_105 = arith.constant dense<0.000000e+00> : vector<24xf32>
    %299 = vector.multi_reduction <add>, %298, %cst_105 [1] : vector<24x32xf32> to vector<24xf32>
    %300 = vector.shape_cast %299 : vector<24xf32> to vector<24x1xf32>
    %cst_106 = arith.constant 3.200000e+01 : f32
    %301 = vector.broadcast %cst_106 : f32 to vector<24x1xf32>
    %302 = arith.divf %300, %301 : vector<24x1xf32>
    %303 = vector.broadcast %295 : vector<24x1xf32> to vector<24x32xf32>
    %304 = arith.subf %291, %303 : vector<24x32xf32>
    %cst_107 = arith.constant 9.99999974E-6 : f32
    %305 = vector.broadcast %cst_107 : f32 to vector<24x1xf32>
    %306 = arith.addf %302, %305 : vector<24x1xf32>
    %307 = math.rsqrt %306 : vector<24x1xf32>
    %308 = vector.broadcast %307 : vector<24x1xf32> to vector<24x32xf32>
    %309 = arith.mulf %304, %308 : vector<24x32xf32>
    %310 = vector.broadcast %4 : vector<1x32xf32> to vector<24x32xf32>
    %311 = arith.mulf %309, %310 : vector<24x32xf32>
    %312 = vector.broadcast %5 : vector<1x32xf32> to vector<24x32xf32>
    %313 = arith.addf %311, %312 : vector<24x32xf32>
    %314 = vector.shape_cast %313 : vector<24x32xf32> to vector<3x8x32xf32>
    %c0_108 = arith.constant 0 : index
    %c0_109 = arith.constant 0 : index
    %c0_110 = arith.constant 0 : index
    %315 = vector.load %arg14[%c0_108, %c0_109, %c0_110] : memref<3x8x32xf32, #tpu.memory_space<vmem>>, vector<3x8x32xf32>
    tpu.vector_store %arg14[%c0_108, %c0_109, %c0_110], %314 {strides = array<i32>} : memref<3x8x32xf32, #tpu.memory_space<vmem>>, vector<3x8x32xf32>,
    return
  }
  func.func @transform_0(%arg0: i32) -> (i32, i32, i32) {
    %c0_i32 = arith.constant 0 : i32
    %c0_i32_0 = arith.constant 0 : i32
    %c0_i32_1 = arith.constant 0 : i32
    return %arg0, %c0_i32, %c0_i32_0 : i32, i32, i32
  }
  func.func @transform_1(%arg0: i32) -> (i32, i32, i32) {
    %c0_i32 = arith.constant 0 : i32
    %c0_i32_0 = arith.constant 0 : i32
    %c0_i32_1 = arith.constant 0 : i32
    %c0_i32_2 = arith.constant 0 : i32
    return %c0_i32, %c0_i32_0, %c0_i32_1 : i32, i32, i32
  }
  func.func @transform_2(%arg0: i32) -> (i32, i32) {
    %c0_i32 = arith.constant 0 : i32
    %c0_i32_0 = arith.constant 0 : i32
    %c0_i32_1 = arith.constant 0 : i32
    return %c0_i32, %c0_i32_0 : i32, i32
  }
  func.func @transform_3(%arg0: i32) -> (i32, i32, i32) {
    %c0_i32 = arith.constant 0 : i32
    %c0_i32_0 = arith.constant 0 : i32
    %c0_i32_1 = arith.constant 0 : i32
    %c0_i32_2 = arith.constant 0 : i32
    return %c0_i32, %c0_i32_0, %c0_i32_1 : i32, i32, i32
  }
  func.func @transform_4(%arg0: i32) -> (i32, i32) {
    %c0_i32 = arith.constant 0 : i32
    %c0_i32_0 = arith.constant 0 : i32
    %c0_i32_1 = arith.constant 0 : i32
    return %c0_i32, %c0_i32_0 : i32, i32
  }
  func.func @transform_5(%arg0: i32) -> (i32, i32) {
    %c0_i32 = arith.constant 0 : i32
    %c0_i32_0 = arith.constant 0 : i32
    %c0_i32_1 = arith.constant 0 : i32
    return %c0_i32, %c0_i32_0 : i32, i32
  }
  func.func @transform_6(%arg0: i32) -> (i32, i32) {
    %c0_i32 = arith.constant 0 : i32
    %c0_i32_0 = arith.constant 0 : i32
    %c0_i32_1 = arith.constant 0 : i32
    return %c0_i32, %c0_i32_0 : i32, i32
  }
  func.func @transform_7(%arg0: i32) -> (i32, i32) {
    %c0_i32 = arith.constant 0 : i32
    %c0_i32_0 = arith.constant 0 : i32
    %c0_i32_1 = arith.constant 0 : i32
    return %c0_i32, %c0_i32_0 : i32, i32
  }
  func.func @transform_8(%arg0: i32) -> (i32, i32) {
    %c0_i32 = arith.constant 0 : i32
    %c0_i32_0 = arith.constant 0 : i32
    %c0_i32_1 = arith.constant 0 : i32
    return %c0_i32, %c0_i32_0 : i32, i32
  }
  func.func @transform_9(%arg0: i32) -> (i32, i32) {
    %c0_i32 = arith.constant 0 : i32
    %c0_i32_0 = arith.constant 0 : i32
    %c0_i32_1 = arith.constant 0 : i32
    return %c0_i32, %c0_i32_0 : i32, i32
  }
  func.func @transform_10(%arg0: i32) -> (i32, i32) {
    %c0_i32 = arith.constant 0 : i32
    %c0_i32_0 = arith.constant 0 : i32
    %c0_i32_1 = arith.constant 0 : i32
    return %c0_i32, %c0_i32_0 : i32, i32
  }
  func.func @transform_11(%arg0: i32) -> (i32, i32) {
    %c0_i32 = arith.constant 0 : i32
    %c0_i32_0 = arith.constant 0 : i32
    %c0_i32_1 = arith.constant 0 : i32
    return %c0_i32, %c0_i32_0 : i32, i32
  }
  func.func @transform_12(%arg0: i32) -> (i32, i32) {
    %c0_i32 = arith.constant 0 : i32
    %c0_i32_0 = arith.constant 0 : i32
    %c0_i32_1 = arith.constant 0 : i32
    return %c0_i32, %c0_i32_0 : i32, i32
  }
  func.func @transform_13(%arg0: i32) -> (i32, i32, i32) {
    %c0_i32 = arith.constant 0 : i32
    %c0_i32_0 = arith.constant 0 : i32
    %c0_i32_1 = arith.constant 0 : i32
    return %arg0, %c0_i32, %c0_i32_0 : i32, i32, i32
  }
}

</mosaic_0001>

<llo_original>
// kernel: squeeze.9
$region0: #{squeeze.9}
  %s0 = inlined_call_operand.vmem [shape: f32[16], index: 0, kind: input, shape index: {}]
  %s1 = inlined_call_operand.vmem [shape: f32[2,8,1], index: 1, kind: output, shape index: {}]
  $region1: #{squeeze.9} parent=0
    #allocation0 [shape = 'u8[4096]{0}', space=vmem, size = 0x1000, scoped, tag = 'scoped mem for output reshape']
    #allocation1 [shape = 'u8[4096]{0}', space=vmem, size = 0x1000, scoped, tag = 'scoped mem for input reshape']
    %s3 = sshllo.u32 0, 1
    %v4 = vld [vmem:[%s0] sm:%s3]
    %5 = vst [vmem:[#allocation1] sm:%s3] %v4
    %v6 = vld [vmem:[#allocation1] sm:$0x1]
    %vm7 = vcmask 64512
    %8 = vst.msk [vmem:[#allocation0] sm:$0x1] %vm7, %v6
    %v9 = vld [vmem:[#allocation1] sm:$0x1]
    %10 = vrot.lane.b32.xlu0 %v9, 120
    %v11 = vpop.permute.xlu0 %10
    %vm12 = vcmask 64512
    %s13 = scalar_lea.vmem [#allocation0], 1
    %14 = vst.msk [vmem:[%s13] sm:$0x1] %vm12, %v11
    %s16 = sshllo.u32 0, 2
    %v18 = vld [vmem:[#allocation0] sm:%s16]
    %s19 = sshllo.u32 0, 2
    %20 = vst [vmem:[%s1] sm:%s19] %v18

// kernel: model_forward.5
$region0: #{model_forward.5}
  #allocation0 [shape = 'u32[]', space=smem, size = 0x4, offset = 0x4, fixed_abs, tag = 'smem constant byte address 0x4 - core index']
  #allocation1 [shape = 'u32[144,128]{1,0:T(1,128)}', space=vmem, size = 0x12000, scoped, tag = 'internal scratch']
  #allocation2 [shape = 'f32[1,1]{1,0:T(1,128)S(1)}', space=vmem, size = 0x200, scoped, tag = 'scoped memory for model_forward.5']
  %s0 = inlined_call_operand.vmem [shape: f32[48,32], index: 0, kind: input, shape index: {}]
  %s1 = inlined_call_operand.vmem [shape: f32[1,32], index: 1, kind: input, shape index: {}]
  %s2 = inlined_call_operand.vmem [shape: f32[1,32], index: 2, kind: input, shape index: {}]
  %s3 = inlined_call_operand.vmem [shape: f32[32,1], index: 3, kind: input, shape index: {}]
  %s4 = inlined_call_operand.<no memory space> [shape: f32[1,1], index: 4, kind: input, shape index: {}]
  %s5 = inlined_call_operand.vmem [shape: f32[48,1], index: 5, kind: output, shape index: {}]
  %s6 = sld [smem:[#allocation0]]
  $region30: #{model_forward.5} parent=0
    _
  %s8 = ssub.s32 1, %s6
  %s9 = scalar_select 0, %s8, %s6
  %v10 = vstv %s4
  %11 = vst [vmem:[#allocation2] sm:$0x1] %v10
  // Predicated region
  $region2: #{model_forward.5} parent=0 // pred_check
    _
  $region3: #{model_forward.5} parent=0 // pred_check_branch
    %13 = sbr.rel (0) target = $region5
  $region4: #{model_forward.5} parent=0 // pred_region
    _
  $region5: #{model_forward.5} parent=0 // pred_fallthru
    _
  // Predicated region
  $region6: #{model_forward.5} parent=0 // pred_check
    _
  $region7: #{model_forward.5} parent=0 // pred_check_branch
    %15 = sbr.rel (0) target = $region9
  $region8: #{model_forward.5} parent=0 // pred_region
    _
  $region9: #{model_forward.5} parent=0 // pred_fallthru
    _
  // Predicated region
  $region10: #{model_forward.5} parent=0 // pred_check
    _
  $region11: #{model_forward.5} parent=0 // pred_check_branch
    %17 = sbr.rel (0) target = $region13
  $region12: #{model_forward.5} parent=0 // pred_region
    _
  $region13: #{model_forward.5} parent=0 // pred_fallthru
    _
  // Predicated region
  $region14: #{model_forward.5} parent=0 // pred_check
    _
  $region15: #{model_forward.5} parent=0 // pred_check_branch
    %19 = sbr.rel (0) target = $region17
  $region16: #{model_forward.5} parent=0 // pred_region
    _
  $region17: #{model_forward.5} parent=0 // pred_fallthru
    _
  // Predicated region
  $region18: #{model_forward.5} parent=0 // pred_check
    _
  $region19: #{model_forward.5} parent=0 // pred_check_branch
    %21 = sbr.rel (0) target = $region21
  $region20: #{model_forward.5} parent=0 // pred_region
    _
  $region21: #{model_forward.5} parent=0 // pred_fallthru
    _
  %v22 = vld [vmem:[%s0] sm:$0xff]
  %v23 = vld [vmem:[%s0 + $0x8] sm:$0xff]
  %v24 = vld [vmem:[%s0 + $0x10] sm:$0xff]
  %v25 = vld [vmem:[%s0 + $0x18] sm:$0xff]
  %v26 = vld [vmem:[%s0 + $0x20] sm:$0xff]
  %v27 = vld [vmem:[%s0 + $0x28] sm:$0xff]
  %vm28 = vcmask 261120
  %v29 = vsel %vm28, %v22, 0.0
  %30 = vadd.xlane.f32.xlu0 %v29
  %v31 = vpop.xlane.xlu0 %30
  %v32 = vsel %vm28, %v23, 0.0
  %33 = vadd.xlane.f32.xlu0 %v32
  %v34 = vpop.xlane.xlu0 %33
  %v35 = vsel %vm28, %v24, 0.0
  %36 = vadd.xlane.f32.xlu0 %v35
  %v37 = vpop.xlane.xlu0 %36
  %v38 = vsel %vm28, %v25, 0.0
  %39 = vadd.xlane.f32.xlu0 %v38
  %v40 = vpop.xlane.xlu0 %39
  %v41 = vsel %vm28, %v26, 0.0
  %42 = vadd.xlane.f32.xlu0 %v41
  %v43 = vpop.xlane.xlu0 %42
  %v44 = vsel %vm28, %v27, 0.0
  %45 = vadd.xlane.f32.xlu0 %v44
  %v46 = vpop.xlane.xlu0 %45
  %v47 = vrcp.pop 32.0
  %v48 = vmul.f32 %v31, %v47
  %v49 = vmul.f32 %v34, %v47
  %v50 = vmul.f32 %v37, %v47
  %v51 = vmul.f32 %v40, %v47
  %v52 = vmul.f32 %v43, %v47
  %v53 = vmul.f32 %v46, %v47
  %v54 = vsub.f32 %v22, %v48
  %v55 = vsub.f32 %v23, %v49
  %v56 = vsub.f32 %v24, %v50
  %v57 = vsub.f32 %v25, %v51
  %v58 = vsub.f32 %v26, %v52
  %v59 = vsub.f32 %v27, %v53
  %v60 = vmul.f32 %v54, %v54
  %v61 = vmul.f32 %v55, %v55
  %v62 = vmul.f32 %v56, %v56
  %v63 = vmul.f32 %v57, %v57
  %v64 = vmul.f32 %v58, %v58
  %v65 = vmul.f32 %v59, %v59
  %v66 = vsel %vm28, %v60, 0.0
  %67 = vadd.xlane.f32.xlu0 %v66
  %v68 = vpop.xlane.xlu0 %67
  %v69 = vsel %vm28, %v61, 0.0
  %70 = vadd.xlane.f32.xlu0 %v69
  %v71 = vpop.xlane.xlu0 %70
  %v72 = vsel %vm28, %v62, 0.0
  %73 = vadd.xlane.f32.xlu0 %v72
  %v74 = vpop.xlane.xlu0 %73
  %v75 = vsel %vm28, %v63, 0.0
  %76 = vadd.xlane.f32.xlu0 %v75
  %v77 = vpop.xlane.xlu0 %76
  %v78 = vsel %vm28, %v64, 0.0
  %79 = vadd.xlane.f32.xlu0 %v78
  %v80 = vpop.xlane.xlu0 %79
  %v81 = vsel %vm28, %v65, 0.0
  %82 = vadd.xlane.f32.xlu0 %v81
  %v83 = vpop.xlane.xlu0 %82
  %v84 = vmul.f32 %v68, %v47
  %v85 = vmul.f32 %v71, %v47
  %v86 = vmul.f32 %v74, %v47
  %v87 = vmul.f32 %v77, %v47
  %v88 = vmul.f32 %v80, %v47
  %v89 = vmul.f32 %v83, %v47
  %v90 = vadd.f32 %v84, 1e-05
  %v91 = vadd.f32 %v85, 1e-05
  %v92 = vadd.f32 %v86, 1e-05
  %v93 = vadd.f32 %v87, 1e-05
  %v94 = vadd.f32 %v88, 1e-05
  %v95 = vadd.f32 %v89, 1e-05
  %v96 = vrsqrt.pop %v90
  %v97 = vrsqrt.pop %v91
  %v98 = vrsqrt.pop %v92
  %v99 = vrsqrt.pop %v93
  %v100 = vrsqrt.pop %v94
  %v101 = vrsqrt.pop %v95
  %v102 = vmul.f32 %v54, %v96
  %v103 = vmul.f32 %v55, %v97
  %v104 = vmul.f32 %v56, %v98
  %v105 = vmul.f32 %v57, %v99
  %v106 = vmul.f32 %v58, %v100
  %v107 = vmul.f32 %v59, %v101
  %v108 = vld [vmem:[%s1] sm:$0x1]
  %v110 = vlaneseq
  %v111 = vshrl.u32 %v110, 7
  %v112 = vsub.s32 0, %v111
  %v113 = vrot.slane %v108, %v112
  %v115 = vmul.f32 %v102, %v113
  %v116 = vmul.f32 %v103, %v113
  %v117 = vmul.f32 %v104, %v113
  %v118 = vmul.f32 %v105, %v113
  %v119 = vmul.f32 %v106, %v113
  %v120 = vmul.f32 %v107, %v113
  %v121 = vld [vmem:[%s2] sm:$0x1]
  %v123 = vlaneseq
  %v124 = vshrl.u32 %v123, 7
  %v125 = vsub.s32 0, %v124
  %v126 = vrot.slane %v121, %v125
  %v128 = vadd.f32 %v115, %v126
  %v129 = vadd.f32 %v116, %v126
  %v130 = vadd.f32 %v117, %v126
  %v131 = vadd.f32 %v118, %v126
  %v132 = vadd.f32 %v119, %v126
  %v133 = vadd.f32 %v120, %v126
  %v134 = vld [vmem:[%s3] sm:$0xff]
  %v135 = vld [vmem:[%s3 + $0x8] sm:$0xff]
  %v136 = vld [vmem:[%s3 + $0x10] sm:$0xff]
  %v137 = vld [vmem:[%s3 + $0x18] sm:$0xff]
  %v138 = vld [vmem:[#allocation2] sm:$0x1]
  %v140 = vlaneseq
  %v141 = vshrl.u32 %v140, 7
  %v142 = vsub.s32 0, %v141
  %v143 = vrot.slane %v138, %v142
  %v146 = vsel %vm28, %v128, 0
  %v149 = vsel %vm28, %v129, 0
  %v152 = vsel %vm28, %v130, 0
  %v155 = vsel %vm28, %v131, 0
  %v158 = vsel %vm28, %v132, 0
  %v161 = vsel %vm28, %v133, 0
  %163 = vmatprep.subr.mxu0 0.0
  %164 = vmatpush1.msra.mxu0 %v134
  %165 = vmatprep.subr.mxu0 0.0
  %166 = vmatpush1.msra.mxu0 %v135
  %167 = vmatprep.subr.mxu0 0.0
  %168 = vmatpush1.msra.mxu0 %v136
  %169 = vmatprep.subr.mxu0 0.0
  %170 = vmatpush1.msra.mxu0 %v137
  %171 = vmatprep.subr.mxu0 0.0
  %172 = vmatpush1.msra.mxu0 0.0
  %173 = vmatprep.subr.mxu0 0.0
  %174 = vmatpush1.msra.mxu0 0.0
  %175 = vmatprep.subr.mxu0 0.0
  %176 = vmatpush1.msra.mxu0 0.0
  %177 = vmatprep.subr.mxu0 0.0
  %178 = vmatpush1.msra.mxu0 0.0
  %179 = vmatprep.subr.mxu0 0.0
  %180 = vmatpush1.msra.mxu0 0.0
  %181 = vmatprep.subr.mxu0 0.0
  %182 = vmatpush1.msra.mxu0 0.0
  %183 = vmatprep.subr.mxu0 0.0
  %184 = vmatpush1.msra.mxu0 0.0
  %185 = vmatprep.subr.mxu0 0.0
  %186 = vmatpush1.msra.mxu0 0.0
  %187 = vmatprep.subr.mxu0 0.0
  %188 = vmatpush1.msra.mxu0 0.0
  %189 = vmatprep.subr.mxu0 0.0
  %190 = vmatpush1.msra.mxu0 0.0
  %191 = vmatprep.subr.mxu0 0.0
  %192 = vmatpush1.msra.mxu0 0.0
  %193 = vmatprep.subr.mxu0 0.0
  %194 = vmatpush1.msra.mxu0 0.0
  %195 = vmatprep.subr.mxu0 0.0
  %196 = vmatpush1.msra.mxu0 0.0
  %197 = vmatprep.subr.mxu0 0.0
  %198 = vmatpush1.msra.mxu0 0.0
  %199 = vmatprep.subr.mxu0 0.0
  %200 = vmatpush1.msra.mxu0 0.0
  %201 = vmatprep.subr.mxu0 0.0
  %202 = vmatpush1.msra.mxu0 0.0
  %203 = vmatprep.subr.mxu0 0.0
  %204 = vmatpush1.msra.mxu0 0.0
  %205 = vmatprep.subr.mxu0 0.0
  %206 = vmatpush1.msra.mxu0 0.0
  %207 = vmatprep.subr.mxu0 0.0
  %208 = vmatpush1.msra.mxu0 0.0
  %209 = vmatprep.subr.mxu0 0.0
  %210 = vmatpush1.msra.mxu0 0.0
  %211 = vmatprep.subr.mxu0 0.0
  %212 = vmatpush1.msra.mxu0 0.0
  %213 = vmatprep.subr.mxu0 0.0
  %214 = vmatpush1.msra.mxu0 0.0
  %215 = vmatprep.subr.mxu0 0.0
  %216 = vmatpush1.msra.mxu0 0.0
  %217 = vmatprep.subr.mxu0 0.0
  %218 = vmatpush1.msra.mxu0 0.0
  %219 = vmatprep.subr.mxu0 0.0
  %220 = vmatpush1.msra.mxu0 0.0
  %221 = vmatprep.subr.mxu0 0.0
  %222 = vmatpush1.msra.mxu0 0.0
  %223 = vmatprep.subr.mxu0 0.0
  %224 = vmatpush1.msra.mxu0 0.0
  %225 = vmatprep.subr.mxu0 0.0
  %226 = vmatpush1.msra.mxu0 0.0
  %227 = vmatprep.mubr.f32.mxu0 0.0
  %228 = vmatmul.mubr.f32.gmra.mrb[0].mxu0 %v146
  %v229 = vpop.f32.mrb[0].mxu0
  %v230 = vadd.f32 %v143, %v229
  %v231 = vpop.f32.mrb[0].mxu0
  %232 = vmatprep.mubr.f32.mxu0 0.0
  %233 = vmatmul.mubr.f32.gmra.mrb[0].mxu0 %v149
  %v234 = vpop.f32.mrb[0].mxu0
  %v235 = vadd.f32 %v143, %v234
  %v236 = vpop.f32.mrb[0].mxu0
  %237 = vmatprep.mubr.f32.mxu0 0.0
  %238 = vmatmul.mubr.f32.gmra.mrb[0].mxu0 %v152
  %v239 = vpop.f32.mrb[0].mxu0
  %v240 = vadd.f32 %v143, %v239
  %v241 = vpop.f32.mrb[0].mxu0
  %242 = vmatprep.mubr.f32.mxu0 0.0
  %243 = vmatmul.mubr.f32.gmra.mrb[0].mxu0 %v155
  %v244 = vpop.f32.mrb[0].mxu0
  %v245 = vadd.f32 %v143, %v244
  %v246 = vpop.f32.mrb[0].mxu0
  %247 = vmatprep.mubr.f32.mxu0 0.0
  %248 = vmatmul.mubr.f32.gmra.mrb[0].mxu0 %v158
  %v249 = vpop.f32.mrb[0].mxu0
  %v250 = vadd.f32 %v143, %v249
  %v251 = vpop.f32.mrb[0].mxu0
  %252 = vmatprep.mubr.f32.mxu0 0.0
  %253 = vmatmul.mubr.f32.gmra.mrb[0].mxu0 %v161
  %v254 = vpop.f32.mrb[0].mxu0
  %v255 = vadd.f32 %v143, %v254
  %v256 = vpop.f32.mrb[0].mxu0
  %257 = vdwg.mxu0
  %vm258 = vcmask 7168
  %259 = vst.msk [vmem:[%s5] sm:$0xff] %vm258, %v230
  %260 = vst.msk [vmem:[%s5 + $0x8] sm:$0xff] %vm258, %v235
  %261 = vst.msk [vmem:[%s5 + $0x10] sm:$0xff] %vm258, %v240
  %262 = vst.msk [vmem:[%s5 + $0x18] sm:$0xff] %vm258, %v245
  %263 = vst.msk [vmem:[%s5 + $0x20] sm:$0xff] %vm258, %v250
  %264 = vst.msk [vmem:[%s5 + $0x28] sm:$0xff] %vm258, %v255
  // Predicated region
  $region22: #{model_forward.5} parent=0 // pred_check
    _
  $region23: #{model_forward.5} parent=0 // pred_check_branch
    %266 = sbr.rel (0) target = $region25
  $region24: #{model_forward.5} parent=0 // pred_region
    _
  $region25: #{model_forward.5} parent=0 // pred_fallthru
    _
  // Predicated region
  $region26: #{model_forward.5} parent=0 // pred_check
    _
  $region27: #{model_forward.5} parent=0 // pred_check_branch
    %268 = sbr.rel (0) target = $region29
  $region28: #{model_forward.5} parent=0 // pred_region
    _
  $region29: #{model_forward.5} parent=0 // pred_fallthru
    _

// kernel: model_forward.3
$region0: #{model_forward.3}
  #allocation0 [shape = 'u32[]', space=smem, size = 0x4, offset = 0x4, fixed_abs, tag = 'smem constant byte address 0x4 - core index']
  #allocation1 [shape = 'u32[144,128]{1,0:T(1,128)}', space=vmem, size = 0x12000, scoped, tag = 'internal scratch']
  %s0 = inlined_call_operand.vmem [shape: f32[48,15], index: 0, kind: input, shape index: {}]
  %s1 = inlined_call_operand.vmem [shape: f32[15,32], index: 1, kind: input, shape index: {}]
  %s2 = inlined_call_operand.vmem [shape: f32[48,32], index: 2, kind: input, shape index: {}]
  %s3 = inlined_call_operand.vmem [shape: f32[48,32], index: 3, kind: output, shape index: {}]
  %s4 = sld [smem:[#allocation0]]
  $region22: #{model_forward.3} parent=0
    _
  %s6 = ssub.s32 1, %s4
  %s7 = scalar_select 0, %s6, %s4
  // Predicated region
  $region2: #{model_forward.3} parent=0 // pred_check
    _
  $region3: #{model_forward.3} parent=0 // pred_check_branch
    %9 = sbr.rel (0) target = $region5
  $region4: #{model_forward.3} parent=0 // pred_region
    _
  $region5: #{model_forward.3} parent=0 // pred_fallthru
    _
  // Predicated region
  $region6: #{model_forward.3} parent=0 // pred_check
    _
  $region7: #{model_forward.3} parent=0 // pred_check_branch
    %11 = sbr.rel (0) target = $region9
  $region8: #{model_forward.3} parent=0 // pred_region
    _
  $region9: #{model_forward.3} parent=0 // pred_fallthru
    _
  // Predicated region
  $region10: #{model_forward.3} parent=0 // pred_check
    _
  $region11: #{model_forward.3} parent=0 // pred_check_branch
    %13 = sbr.rel (0) target = $region13
  $region12: #{model_forward.3} parent=0 // pred_region
    _
  $region13: #{model_forward.3} parent=0 // pred_fallthru
    _
  %v14 = vld [vmem:[%s0] sm:$0xff]
  %v15 = vld [vmem:[%s0 + $0x8] sm:$0xff]
  %v16 = vld [vmem:[%s0 + $0x10] sm:$0xff]
  %v17 = vld [vmem:[%s0 + $0x18] sm:$0xff]
  %v18 = vld [vmem:[%s0 + $0x20] sm:$0xff]
  %v19 = vld [vmem:[%s0 + $0x28] sm:$0xff]
  %v20 = vld [vmem:[%s1] sm:$0xff]
  %v21 = vld [vmem:[%s1 + $0x8] sm:$0x7f]
  %v22 = vld [vmem:[%s2] sm:$0xff]
  %v23 = vld [vmem:[%s2 + $0x8] sm:$0xff]
  %v24 = vld [vmem:[%s2 + $0x10] sm:$0xff]
  %v25 = vld [vmem:[%s2 + $0x18] sm:$0xff]
  %v26 = vld [vmem:[%s2 + $0x20] sm:$0xff]
  %v27 = vld [vmem:[%s2 + $0x28] sm:$0xff]
  %vm28 = vcmask 121856
  %v30 = vsel %vm28, %v14, 0
  %v33 = vsel %vm28, %v15, 0
  %v36 = vsel %vm28, %v16, 0
  %v39 = vsel %vm28, %v17, 0
  %v42 = vsel %vm28, %v18, 0
  %v45 = vsel %vm28, %v19, 0
  %vm47 = vcmask 1046528
  %v49 = vsel %vm47, %v21, 0
  %51 = vmatprep.subr.mxu0 0.0
  %52 = vmatpush1.msra.mxu0 %v20
  %53 = vmatprep.subr.mxu0 0.0
  %54 = vmatpush1.msra.mxu0 %v49
  %55 = vmatprep.subr.mxu0 0.0
  %56 = vmatpush1.msra.mxu0 0.0
  %57 = vmatprep.subr.mxu0 0.0
  %58 = vmatpush1.msra.mxu0 0.0
  %59 = vmatprep.subr.mxu0 0.0
  %60 = vmatpush1.msra.mxu0 0.0
  %61 = vmatprep.subr.mxu0 0.0
  %62 = vmatpush1.msra.mxu0 0.0
  %63 = vmatprep.subr.mxu0 0.0
  %64 = vmatpush1.msra.mxu0 0.0
  %65 = vmatprep.subr.mxu0 0.0
  %66 = vmatpush1.msra.mxu0 0.0
  %67 = vmatprep.subr.mxu0 0.0
  %68 = vmatpush1.msra.mxu0 0.0
  %69 = vmatprep.subr.mxu0 0.0
  %70 = vmatpush1.msra.mxu0 0.0
  %71 = vmatprep.subr.mxu0 0.0
  %72 = vmatpush1.msra.mxu0 0.0
  %73 = vmatprep.subr.mxu0 0.0
  %74 = vmatpush1.msra.mxu0 0.0
  %75 = vmatprep.subr.mxu0 0.0
  %76 = vmatpush1.msra.mxu0 0.0
  %77 = vmatprep.subr.mxu0 0.0
  %78 = vmatpush1.msra.mxu0 0.0
  %79 = vmatprep.subr.mxu0 0.0
  %80 = vmatpush1.msra.mxu0 0.0
  %81 = vmatprep.subr.mxu0 0.0
  %82 = vmatpush1.msra.mxu0 0.0
  %83 = vmatprep.subr.mxu0 0.0
  %84 = vmatpush1.msra.mxu0 0.0
  %85 = vmatprep.subr.mxu0 0.0
  %86 = vmatpush1.msra.mxu0 0.0
  %87 = vmatprep.subr.mxu0 0.0
  %88 = vmatpush1.msra.mxu0 0.0
  %89 = vmatprep.subr.mxu0 0.0
  %90 = vmatpush1.msra.mxu0 0.0
  %91 = vmatprep.subr.mxu0 0.0
  %92 = vmatpush1.msra.mxu0 0.0
  %93 = vmatprep.subr.mxu0 0.0
  %94 = vmatpush1.msra.mxu0 0.0
  %95 = vmatprep.subr.mxu0 0.0
  %96 = vmatpush1.msra.mxu0 0.0
  %97 = vmatprep.subr.mxu0 0.0
  %98 = vmatpush1.msra.mxu0 0.0
  %99 = vmatprep.subr.mxu0 0.0
  %100 = vmatpush1.msra.mxu0 0.0
  %101 = vmatprep.subr.mxu0 0.0
  %102 = vmatpush1.msra.mxu0 0.0
  %103 = vmatprep.subr.mxu0 0.0
  %104 = vmatpush1.msra.mxu0 0.0
  %105 = vmatprep.subr.mxu0 0.0
  %106 = vmatpush1.msra.mxu0 0.0
  %107 = vmatprep.subr.mxu0 0.0
  %108 = vmatpush1.msra.mxu0 0.0
  %109 = vmatprep.subr.mxu0 0.0
  %110 = vmatpush1.msra.mxu0 0.0
  %111 = vmatprep.subr.mxu0 0.0
  %112 = vmatpush1.msra.mxu0 0.0
  %113 = vmatprep.subr.mxu0 0.0
  %114 = vmatpush1.msra.mxu0 0.0
  %115 = vmatprep.mubr.f32.mxu0 0.0
  %116 = vmatmul.mubr.f32.gmra.mrb[0].mxu0 %v30
  %v117 = vpop.f32.mrb[0].mxu0
  %v118 = vadd.f32 %v22, %v117
  %v119 = vpop.f32.mrb[0].mxu0
  %120 = vmatprep.mubr.f32.mxu0 0.0
  %121 = vmatmul.mubr.f32.gmra.mrb[0].mxu0 %v33
  %v122 = vpop.f32.mrb[0].mxu0
  %v123 = vadd.f32 %v23, %v122
  %v124 = vpop.f32.mrb[0].mxu0
  %125 = vmatprep.mubr.f32.mxu0 0.0
  %126 = vmatmul.mubr.f32.gmra.mrb[0].mxu0 %v36
  %v127 = vpop.f32.mrb[0].mxu0
  %v128 = vadd.f32 %v24, %v127
  %v129 = vpop.f32.mrb[0].mxu0
  %130 = vmatprep.mubr.f32.mxu0 0.0
  %131 = vmatmul.mubr.f32.gmra.mrb[0].mxu0 %v39
  %v132 = vpop.f32.mrb[0].mxu0
  %v133 = vadd.f32 %v25, %v132
  %v134 = vpop.f32.mrb[0].mxu0
  %135 = vmatprep.mubr.f32.mxu0 0.0
  %136 = vmatmul.mubr.f32.gmra.mrb[0].mxu0 %v42
  %v137 = vpop.f32.mrb[0].mxu0
  %v138 = vadd.f32 %v26, %v137
  %v139 = vpop.f32.mrb[0].mxu0
  %140 = vmatprep.mubr.f32.mxu0 0.0
  %141 = vmatmul.mubr.f32.gmra.mrb[0].mxu0 %v45
  %v142 = vpop.f32.mrb[0].mxu0
  %v143 = vadd.f32 %v27, %v142
  %v144 = vpop.f32.mrb[0].mxu0
  %145 = vdwg.mxu0
  %vm146 = vcmask 261120
  %147 = vst.msk [vmem:[%s3] sm:$0xff] %vm146, %v118
  %148 = vst.msk [vmem:[%s3 + $0x8] sm:$0xff] %vm146, %v123
  %149 = vst.msk [vmem:[%s3 + $0x10] sm:$0xff] %vm146, %v128
  %150 = vst.msk [vmem:[%s3 + $0x18] sm:$0xff] %vm146, %v133
  %151 = vst.msk [vmem:[%s3 + $0x20] sm:$0xff] %vm146, %v138
  %152 = vst.msk [vmem:[%s3 + $0x28] sm:$0xff] %vm146, %v143
  // Predicated region
  $region14: #{model_forward.3} parent=0 // pred_check
    _
  $region15: #{model_forward.3} parent=0 // pred_check_branch
    %154 = sbr.rel (0) target = $region17
  $region16: #{model_forward.3} parent=0 // pred_region
    _
  $region17: #{model_forward.3} parent=0 // pred_fallthru
    _
  // Predicated region
  $region18: #{model_forward.3} parent=0 // pred_check
    _
  $region19: #{model_forward.3} parent=0 // pred_check_branch
    %156 = sbr.rel (0) target = $region21
  $region20: #{model_forward.3} parent=0 // pred_region
    _
  $region21: #{model_forward.3} parent=0 // pred_fallthru
    _

// kernel: model_forward.4
$region0: #{model_forward.4}
  #allocation0 [shape = 'u32[]', space=smem, size = 0x4, offset = 0x4, fixed_abs, tag = 'smem constant byte address 0x4 - core index']
  #allocation1 [shape = 'u32[144,128]{1,0:T(1,128)}', space=vmem, size = 0x12000, scoped, tag = 'internal scratch']
  %s0 = inlined_call_operand.vmem [shape: f32[6,8,32], index: 0, kind: input, shape index: {}]
  %s1 = inlined_call_operand.vmem [shape: f32[2,32,96], index: 1, kind: input, shape index: {}]
  %s2 = inlined_call_operand.vmem [shape: f32[2,96], index: 2, kind: input, shape index: {}]
  %s3 = inlined_call_operand.vmem [shape: f32[2,32,32], index: 3, kind: input, shape index: {}]
  %s4 = inlined_call_operand.vmem [shape: f32[2,32], index: 4, kind: input, shape index: {}]
  %s5 = inlined_call_operand.vmem [shape: f32[1,32], index: 5, kind: input, shape index: {}]
  %s6 = inlined_call_operand.vmem [shape: f32[1,32], index: 6, kind: input, shape index: {}]
  %s7 = inlined_call_operand.vmem [shape: f32[32,32], index: 7, kind: input, shape index: {}]
  %s8 = inlined_call_operand.vmem [shape: f32[1,32], index: 8, kind: input, shape index: {}]
  %s9 = inlined_call_operand.vmem [shape: f32[32,32], index: 9, kind: input, shape index: {}]
  %s10 = inlined_call_operand.vmem [shape: f32[1,32], index: 10, kind: input, shape index: {}]
  %s11 = inlined_call_operand.vmem [shape: f32[1,32], index: 11, kind: input, shape index: {}]
  %s12 = inlined_call_operand.vmem [shape: f32[1,32], index: 12, kind: input, shape index: {}]
  %s13 = inlined_call_operand.vmem [shape: f32[6,8,32], index: 13, kind: output, shape index: {}]
  %s14 = sld [smem:[#allocation0]]
  $region85: #{model_forward.4} parent=0
    _
  %s16 = ssub.s32 1, %s14
  %s17 = scalar_select 0, %s16, %s14
  loop: start=0, step=1, limit=4
  $region2: #{model_forward.4} parent=0 // loop_pre_header
    _
  $region3: #{model_forward.4} parent=0 // loop_header
    %s19 = sphi 0, %s23
    %p20 = scmp.ge.s32.totalorder %s19, 4
    %s29 = sphi 0, %s31
    %s32 = sphi 0, %s29
    %s33 = sphi 0, %s32
    %s49 = sphi 0, %s33
    %s53 = sphi 0, %s53
    %s55 = sphi 0, %s53
    %s56 = sphi 0, %s55
    %s70 = sphi 0, %s56
    %s74 = sphi 0, %s74
    %s76 = sphi 0, %s74
    %s77 = sphi 0, %s76
    %s91 = sphi 0, %s77
    %s95 = sphi 0, %s95
    %s97 = sphi 0, %s95
    %s98 = sphi 0, %s97
    %s112 = sphi 0, %s98
    %s116 = sphi 0, %s116
    %s118 = sphi 0, %s116
    %s119 = sphi 0, %s118
    %s133 = sphi 0, %s119
    %s137 = sphi 0, %s137
    %s139 = sphi 0, %s137
    %s140 = sphi 0, %s139
    %s154 = sphi 0, %s140
    %s158 = sphi 0, %s158
    %s160 = sphi 0, %s158
    %s161 = sphi 0, %s160
    %s175 = sphi 0, %s161
    %s179 = sphi 0, %s179
    %s181 = sphi 0, %s179
    %s182 = sphi 0, %s181
    %s196 = sphi 0, %s182
    %s200 = sphi 0, %s200
    %s202 = sphi 0, %s200
    %s203 = sphi 0, %s202
    %s217 = sphi 0, %s203
    %s221 = sphi 0, %s221
    %s223 = sphi 0, %s221
    %s224 = sphi 0, %s223
    %s238 = sphi 0, %s224
    %s242 = sphi 0, %s242
    %s244 = sphi 0, %s242
    %s245 = sphi 0, %s244
    %s259 = sphi 0, %s245
    %s263 = sphi 0, %s263
    %s265 = sphi 0, %s263
    %s266 = sphi 0, %s265
    %s280 = sphi 0, %s266
    %s284 = sphi 0, %s284
    %s286 = sphi 0, %s284
    %s287 = sphi 0, %s286
    %s301 = sphi 0, %s287
    %s307 = sphi 0, %s309
    %s310 = sphi 0, %s307
    %s311 = sphi 0, %s310
    %s327 = sphi 0, %s311
  $region4: #{model_forward.4} parent=0 // loop_header_branch
    %22 = sbr.rel (%p20) target = $region8
  $region5: #{model_forward.4} parent=0 // loop_body
    %s24 = ssub.s32 %s19, 1
    %s25 = ssub.s32 %s19, 2
    %s26 = sadd.s32 %s19, 1
    %s27 = ssub.s32 %s19, %s26
    %p28 = scmp.eq.s32.totalorder %s27, 0
    %s30 = sadd.s32 %s29, 1
    %s31 = scalar_select %p28, %s29, %s30
    %p34 = pneg %p28
    %p35 = scmp.eq.s32.totalorder %s19, 1
    %p36 = por %p34, %p35
    %p37 = scmp.ne.s32.totalorder %s29, %s32
    %p38 = scmp.eq.s32.totalorder %s19, 0
    %p39 = por %p37, %p38
    %p40 = scmp.ne.s32.totalorder %s29, %s32
    %p41 = scmp.eq.s32.totalorder %s24, 1
    %p42 = por %p40, %p41
    %p43 = scmp.ne.s32.totalorder %s32, %s33
    %p44 = scmp.eq.s32.totalorder %s24, 0
    %p45 = por %p43, %p44
    %p46 = scmp.ne.s32.totalorder %s32, %s33
    %p47 = scmp.eq.s32.totalorder %s25, 1
    %p48 = por %p46, %p47
    %p50 = scmp.ne.s32.totalorder %s33, %s49
    %p51 = scmp.eq.s32.totalorder %s25, 0
    %p52 = por %p50, %p51
    %s54 = sadd.s32 %s53, 1
    %p57 = scmp.eq.s32.totalorder %s19, 1
    %p58 = scmp.ne.s32.totalorder %s53, %s55
    %p59 = scmp.eq.s32.totalorder %s19, 0
    %p60 = por %p58, %p59
    %p61 = scmp.ne.s32.totalorder %s53, %s55
    %p62 = scmp.eq.s32.totalorder %s24, 1
    %p63 = por %p61, %p62
    %p64 = scmp.ne.s32.totalorder %s55, %s56
    %p65 = scmp.eq.s32.totalorder %s24, 0
    %p66 = por %p64, %p65
    %p67 = scmp.ne.s32.totalorder %s55, %s56
    %p68 = scmp.eq.s32.totalorder %s25, 1
    %p69 = por %p67, %p68
    %p71 = scmp.ne.s32.totalorder %s56, %s70
    %p72 = scmp.eq.s32.totalorder %s25, 0
    %p73 = por %p71, %p72
    %s75 = sadd.s32 %s74, 1
    %p78 = scmp.eq.s32.totalorder %s19, 1
    %p79 = scmp.ne.s32.totalorder %s74, %s76
    %p80 = scmp.eq.s32.totalorder %s19, 0
    %p81 = por %p79, %p80
    %p82 = scmp.ne.s32.totalorder %s74, %s76
    %p83 = scmp.eq.s32.totalorder %s24, 1
    %p84 = por %p82, %p83
    %p85 = scmp.ne.s32.totalorder %s76, %s77
    %p86 = scmp.eq.s32.totalorder %s24, 0
    %p87 = por %p85, %p86
    %p88 = scmp.ne.s32.totalorder %s76, %s77
    %p89 = scmp.eq.s32.totalorder %s25, 1
    %p90 = por %p88, %p89
    %p92 = scmp.ne.s32.totalorder %s77, %s91
    %p93 = scmp.eq.s32.totalorder %s25, 0
    %p94 = por %p92, %p93
    %s96 = sadd.s32 %s95, 1
    %p99 = scmp.eq.s32.totalorder %s19, 1
    %p100 = scmp.ne.s32.totalorder %s95, %s97
    %p101 = scmp.eq.s32.totalorder %s19, 0
    %p102 = por %p100, %p101
    %p103 = scmp.ne.s32.totalorder %s95, %s97
    %p104 = scmp.eq.s32.totalorder %s24, 1
    %p105 = por %p103, %p104
    %p106 = scmp.ne.s32.totalorder %s97, %s98
    %p107 = scmp.eq.s32.totalorder %s24, 0
    %p108 = por %p106, %p107
    %p109 = scmp.ne.s32.totalorder %s97, %s98
    %p110 = scmp.eq.s32.totalorder %s25, 1
    %p111 = por %p109, %p110
    %p113 = scmp.ne.s32.totalorder %s98, %s112
    %p114 = scmp.eq.s32.totalorder %s25, 0
    %p115 = por %p113, %p114
    %s117 = sadd.s32 %s116, 1
    %p120 = scmp.eq.s32.totalorder %s19, 1
    %p121 = scmp.ne.s32.totalorder %s116, %s118
    %p122 = scmp.eq.s32.totalorder %s19, 0
    %p123 = por %p121, %p122
    %p124 = scmp.ne.s32.totalorder %s116, %s118
    %p125 = scmp.eq.s32.totalorder %s24, 1
    %p126 = por %p124, %p125
    %p127 = scmp.ne.s32.totalorder %s118, %s119
    %p128 = scmp.eq.s32.totalorder %s24, 0
    %p129 = por %p127, %p128
    %p130 = scmp.ne.s32.totalorder %s118, %s119
    %p131 = scmp.eq.s32.totalorder %s25, 1
    %p132 = por %p130, %p131
    %p134 = scmp.ne.s32.totalorder %s119, %s133
    %p135 = scmp.eq.s32.totalorder %s25, 0
    %p136 = por %p134, %p135
    %s138 = sadd.s32 %s137, 1
    %p141 = scmp.eq.s32.totalorder %s19, 1
    %p142 = scmp.ne.s32.totalorder %s137, %s139
    %p143 = scmp.eq.s32.totalorder %s19, 0
    %p144 = por %p142, %p143
    %p145 = scmp.ne.s32.totalorder %s137, %s139
    %p146 = scmp.eq.s32.totalorder %s24, 1
    %p147 = por %p145, %p146
    %p148 = scmp.ne.s32.totalorder %s139, %s140
    %p149 = scmp.eq.s32.totalorder %s24, 0
    %p150 = por %p148, %p149
    %p151 = scmp.ne.s32.totalorder %s139, %s140
    %p152 = scmp.eq.s32.totalorder %s25, 1
    %p153 = por %p151, %p152
    %p155 = scmp.ne.s32.totalorder %s140, %s154
    %p156 = scmp.eq.s32.totalorder %s25, 0
    %p157 = por %p155, %p156
    %s159 = sadd.s32 %s158, 1
    %p162 = scmp.eq.s32.totalorder %s19, 1
    %p163 = scmp.ne.s32.totalorder %s158, %s160
    %p164 = scmp.eq.s32.totalorder %s19, 0
    %p165 = por %p163, %p164
    %p166 = scmp.ne.s32.totalorder %s158, %s160
    %p167 = scmp.eq.s32.totalorder %s24, 1
    %p168 = por %p166, %p167
    %p169 = scmp.ne.s32.totalorder %s160, %s161
    %p170 = scmp.eq.s32.totalorder %s24, 0
    %p171 = por %p169, %p170
    %p172 = scmp.ne.s32.totalorder %s160, %s161
    %p173 = scmp.eq.s32.totalorder %s25, 1
    %p174 = por %p172, %p173
    %p176 = scmp.ne.s32.totalorder %s161, %s175
    %p177 = scmp.eq.s32.totalorder %s25, 0
    %p178 = por %p176, %p177
    %s180 = sadd.s32 %s179, 1
    %p183 = scmp.eq.s32.totalorder %s19, 1
    %p184 = scmp.ne.s32.totalorder %s179, %s181
    %p185 = scmp.eq.s32.totalorder %s19, 0
    %p186 = por %p184, %p185
    %p187 = scmp.ne.s32.totalorder %s179, %s181
    %p188 = scmp.eq.s32.totalorder %s24, 1
    %p189 = por %p187, %p188
    %p190 = scmp.ne.s32.totalorder %s181, %s182
    %p191 = scmp.eq.s32.totalorder %s24, 0
    %p192 = por %p190, %p191
    %p193 = scmp.ne.s32.totalorder %s181, %s182
    %p194 = scmp.eq.s32.totalorder %s25, 1
    %p195 = por %p193, %p194
    %p197 = scmp.ne.s32.totalorder %s182, %s196
    %p198 = scmp.eq.s32.totalorder %s25, 0
    %p199 = por %p197, %p198
    %s201 = sadd.s32 %s200, 1
    %p204 = scmp.eq.s32.totalorder %s19, 1
    %p205 = scmp.ne.s32.totalorder %s200, %s202
    %p206 = scmp.eq.s32.totalorder %s19, 0
    %p207 = por %p205, %p206
    %p208 = scmp.ne.s32.totalorder %s200, %s202
    %p209 = scmp.eq.s32.totalorder %s24, 1
    %p210 = por %p208, %p209
    %p211 = scmp.ne.s32.totalorder %s202, %s203
    %p212 = scmp.eq.s32.totalorder %s24, 0
    %p213 = por %p211, %p212
    %p214 = scmp.ne.s32.totalorder %s202, %s203
    %p215 = scmp.eq.s32.totalorder %s25, 1
    %p216 = por %p214, %p215
    %p218 = scmp.ne.s32.totalorder %s203, %s217
    %p219 = scmp.eq.s32.totalorder %s25, 0
    %p220 = por %p218, %p219
    %s222 = sadd.s32 %s221, 1
    %p225 = scmp.eq.s32.totalorder %s19, 1
    %p226 = scmp.ne.s32.totalorder %s221, %s223
    %p227 = scmp.eq.s32.totalorder %s19, 0
    %p228 = por %p226, %p227
    %p229 = scmp.ne.s32.totalorder %s221, %s223
    %p230 = scmp.eq.s32.totalorder %s24, 1
    %p231 = por %p229, %p230
    %p232 = scmp.ne.s32.totalorder %s223, %s224
    %p233 = scmp.eq.s32.totalorder %s24, 0
    %p234 = por %p232, %p233
    %p235 = scmp.ne.s32.totalorder %s223, %s224
    %p236 = scmp.eq.s32.totalorder %s25, 1
    %p237 = por %p235, %p236
    %p239 = scmp.ne.s32.totalorder %s224, %s238
    %p240 = scmp.eq.s32.totalorder %s25, 0
    %p241 = por %p239, %p240
    %s243 = sadd.s32 %s242, 1
    %p246 = scmp.eq.s32.totalorder %s19, 1
    %p247 = scmp.ne.s32.totalorder %s242, %s244
    %p248 = scmp.eq.s32.totalorder %s19, 0
    %p249 = por %p247, %p248
    %p250 = scmp.ne.s32.totalorder %s242, %s244
    %p251 = scmp.eq.s32.totalorder %s24, 1
    %p252 = por %p250, %p251
    %p253 = scmp.ne.s32.totalorder %s244, %s245
    %p254 = scmp.eq.s32.totalorder %s24, 0
    %p255 = por %p253, %p254
    %p256 = scmp.ne.s32.totalorder %s244, %s245
    %p257 = scmp.eq.s32.totalorder %s25, 1
    %p258 = por %p256, %p257
    %p260 = scmp.ne.s32.totalorder %s245, %s259
    %p261 = scmp.eq.s32.totalorder %s25, 0
    %p262 = por %p260, %p261
    %s264 = sadd.s32 %s263, 1
    %p267 = scmp.eq.s32.totalorder %s19, 1
    %p268 = scmp.ne.s32.totalorder %s263, %s265
    %p269 = scmp.eq.s32.totalorder %s19, 0
    %p270 = por %p268, %p269
    %p271 = scmp.ne.s32.totalorder %s263, %s265
    %p272 = scmp.eq.s32.totalorder %s24, 1
    %p273 = por %p271, %p272
    %p274 = scmp.ne.s32.totalorder %s265, %s266
    %p275 = scmp.eq.s32.totalorder %s24, 0
    %p276 = por %p274, %p275
    %p277 = scmp.ne.s32.totalorder %s265, %s266
    %p278 = scmp.eq.s32.totalorder %s25, 1
    %p279 = por %p277, %p278
    %p281 = scmp.ne.s32.totalorder %s266, %s280
    %p282 = scmp.eq.s32.totalorder %s25, 0
    %p283 = por %p281, %p282
    %s285 = sadd.s32 %s284, 1
    %p288 = scmp.eq.s32.totalorder %s19, 1
    %p289 = scmp.ne.s32.totalorder %s284, %s286
    %p290 = scmp.eq.s32.totalorder %s19, 0
    %p291 = por %p289, %p290
    %p292 = scmp.ne.s32.totalorder %s284, %s286
    %p293 = scmp.eq.s32.totalorder %s24, 1
    %p294 = por %p292, %p293
    %p295 = scmp.ne.s32.totalorder %s286, %s287
    %p296 = scmp.eq.s32.totalorder %s24, 0
    %p297 = por %p295, %p296
    %p298 = scmp.ne.s32.totalorder %s286, %s287
    %p299 = scmp.eq.s32.totalorder %s25, 1
    %p300 = por %p298, %p299
    %p302 = scmp.ne.s32.totalorder %s287, %s301
    %p303 = scmp.eq.s32.totalorder %s25, 0
    %p304 = por %p302, %p303
    %s305 = ssub.s32 %s19, %s26
    %p306 = scmp.eq.s32.totalorder %s305, 0
    %s308 = sadd.s32 %s307, 1
    %s309 = scalar_select %p306, %s307, %s308
    %p312 = pneg %p306
    %p313 = scmp.eq.s32.totalorder %s19, 1
    %p314 = por %p312, %p313
    %p315 = scmp.ne.s32.totalorder %s307, %s310
    %p316 = scmp.eq.s32.totalorder %s19, 0
    %p317 = por %p315, %p316
    %p318 = scmp.ne.s32.totalorder %s307, %s310
    %p319 = scmp.eq.s32.totalorder %s24, 1
    %p320 = por %p318, %p319
    %p321 = scmp.ne.s32.totalorder %s310, %s311
    %p322 = scmp.eq.s32.totalorder %s24, 0
    %p323 = por %p321, %p322
    %p324 = scmp.ne.s32.totalorder %s310, %s311
    %p325 = scmp.eq.s32.totalorder %s25, 1
    %p326 = por %p324, %p325
    %p328 = scmp.ne.s32.totalorder %s311, %s327
    %p329 = scmp.eq.s32.totalorder %s25, 0
    %p330 = por %p328, %p329
    %p331 = scmp.le.s32.totalorder 1, %s19
    %p332 = scmp.lt.s32.totalorder %s19, 3
    %p333 = pnand %p331, %p332
    %p334 = pneg %p333
    // Predicated region
    $region9: #{model_forward.4} parent=5 // pred_check
      _
    $region10: #{model_forward.4} parent=5 // pred_check_branch
      %336 = sbr.rel (%p333) target = $region12
    $region11: #{model_forward.4} parent=5 // pred_region
      %s337 = ssub.s32 %s19, 1
      // Predicated region
      $region13: #{model_forward.4} parent=11 // pred_check
        %p338 = pneg %p66
      $region14: #{model_forward.4} parent=11 // pred_check_branch
        %340 = sbr.rel (%p338) target = $region16
      $region15: #{model_forward.4} parent=11 // pred_region
        _
      $region16: #{model_forward.4} parent=11 // pred_fallthru
        _
      // Predicated region
      $region17: #{model_forward.4} parent=11 // pred_check
        %p341 = pneg %p87
      $region18: #{model_forward.4} parent=11 // pred_check_branch
        %343 = sbr.rel (%p341) target = $region20
      $region19: #{model_forward.4} parent=11 // pred_region
        _
      $region20: #{model_forward.4} parent=11 // pred_fallthru
        _
      // Predicated region
      $region21: #{model_forward.4} parent=11 // pred_check
        %p344 = pneg %p108
      $region22: #{model_forward.4} parent=11 // pred_check_branch
        %346 = sbr.rel (%p344) target = $region24
      $region23: #{model_forward.4} parent=11 // pred_region
        _
      $region24: #{model_forward.4} parent=11 // pred_fallthru
        _
      // Predicated region
      $region25: #{model_forward.4} parent=11 // pred_check
        %p347 = pneg %p129
      $region26: #{model_forward.4} parent=11 // pred_check_branch
        %349 = sbr.rel (%p347) target = $region28
      $region27: #{model_forward.4} parent=11 // pred_region
        _
      $region28: #{model_forward.4} parent=11 // pred_fallthru
        _
      // Predicated region
      $region29: #{model_forward.4} parent=11 // pred_check
        %p350 = pneg %p150
      $region30: #{model_forward.4} parent=11 // pred_check_branch
        %352 = sbr.rel (%p350) target = $region32
      $region31: #{model_forward.4} parent=11 // pred_region
        _
      $region32: #{model_forward.4} parent=11 // pred_fallthru
        _
      // Predicated region
      $region33: #{model_forward.4} parent=11 // pred_check
        %p353 = pneg %p171
      $region34: #{model_forward.4} parent=11 // pred_check_branch
        %355 = sbr.rel (%p353) target = $region36
      $region35: #{model_forward.4} parent=11 // pred_region
        _
      $region36: #{model_forward.4} parent=11 // pred_fallthru
        _
      // Predicated region
      $region37: #{model_forward.4} parent=11 // pred_check
        %p356 = pneg %p192
      $region38: #{model_forward.4} parent=11 // pred_check_branch
        %358 = sbr.rel (%p356) target = $region40
      $region39: #{model_forward.4} parent=11 // pred_region
        _
      $region40: #{model_forward.4} parent=11 // pred_fallthru
        _
      // Predicated region
      $region41: #{model_forward.4} parent=11 // pred_check
        %p359 = pneg %p213
      $region42: #{model_forward.4} parent=11 // pred_check_branch
        %361 = sbr.rel (%p359) target = $region44
      $region43: #{model_forward.4} parent=11 // pred_region
        _
      $region44: #{model_forward.4} parent=11 // pred_fallthru
        _
      // Predicated region
      $region45: #{model_forward.4} parent=11 // pred_check
        %p362 = pneg %p234
      $region46: #{model_forward.4} parent=11 // pred_check_branch
        %364 = sbr.rel (%p362) target = $region48
      $region47: #{model_forward.4} parent=11 // pred_region
        _
      $region48: #{model_forward.4} parent=11 // pred_fallthru
        _
      // Predicated region
      $region49: #{model_forward.4} parent=11 // pred_check
        %p365 = pneg %p255
      $region50: #{model_forward.4} parent=11 // pred_check_branch
        %367 = sbr.rel (%p365) target = $region52
      $region51: #{model_forward.4} parent=11 // pred_region
        _
      $region52: #{model_forward.4} parent=11 // pred_fallthru
        _
      // Predicated region
      $region53: #{model_forward.4} parent=11 // pred_check
        %p368 = pneg %p276
      $region54: #{model_forward.4} parent=11 // pred_check_branch
        %370 = sbr.rel (%p368) target = $region56
      $region55: #{model_forward.4} parent=11 // pred_region
        _
      $region56: #{model_forward.4} parent=11 // pred_fallthru
        _
      // Predicated region
      $region57: #{model_forward.4} parent=11 // pred_check
        %p371 = pneg %p297
      $region58: #{model_forward.4} parent=11 // pred_check_branch
        %373 = sbr.rel (%p371) target = $region60
      $region59: #{model_forward.4} parent=11 // pred_region
        _
      $region60: #{model_forward.4} parent=11 // pred_fallthru
        _
    $region12: #{model_forward.4} parent=5 // pred_fallthru
      _
    %p374 = scmp.lt.s32.totalorder %s19, 2
    // Predicated region
    $region61: #{model_forward.4} parent=5 // pred_check
      %p375 = pneg %p374
    $region62: #{model_forward.4} parent=5 // pred_check_branch
      %377 = sbr.rel (%p375) target = $region64
    $region63: #{model_forward.4} parent=5 // pred_region
      // Predicated region
      $region65: #{model_forward.4} parent=63 // pred_check
        %p378 = pneg %p39
      $region66: #{model_forward.4} parent=63 // pred_check_branch
        %380 = sbr.rel (%p378) target = $region68
      $region67: #{model_forward.4} parent=63 // pred_region
        %s381 = smul.u32 3, %s19
        %p382 = scmp.lt.s32.totalorder %s381, 5
        %s383 = scalar_select %p382, %s381, 5
        %s384 = smul.addr %s383, 8
        %s385 = scalar_lea.vmem %s0, %s384
        %s386 = smul.u32 3, %s19
      $region68: #{model_forward.4} parent=63 // pred_fallthru
        _
    $region64: #{model_forward.4} parent=5 // pred_fallthru
      _
    %p387 = scmp.le.s32.totalorder 1, %s19
    %p388 = scmp.lt.s32.totalorder %s19, 3
    %p389 = pnand %p387, %p388
    %p390 = pneg %p389
    // Predicated region
    $region69: #{model_forward.4} parent=5 // pred_check
      _
    $region70: #{model_forward.4} parent=5 // pred_check_branch
      %392 = sbr.rel (%p389) target = $region72
    $region71: #{model_forward.4} parent=5 // pred_region
      %s393 = ssub.s32 %s19, 1
      %s394 = smul.u32 3, %s24
      %p395 = scmp.lt.s32.totalorder %s394, 5
      %s396 = scalar_select %p395, %s394, 5
      %s397 = smul.addr %s396, 8
      %s398 = scalar_lea.vmem %s0, %s397
      %p399 = pneg %p45
      %p400 = pneg %p42
      %p401 = pneg %p66
      %p402 = pneg %p63
      %p403 = pneg %p87
      %p404 = pneg %p84
      %p405 = pneg %p108
      %p406 = pneg %p105
      %p407 = pneg %p129
      %p408 = pneg %p126
      %p409 = pneg %p150
      %p410 = pneg %p147
      %p411 = pneg %p171
      %p412 = pneg %p168
      %p413 = pneg %p192
      %p414 = pneg %p189
      %p415 = pneg %p213
      %p416 = pneg %p210
      %p417 = pneg %p234
      %p418 = pneg %p231
      %p419 = pneg %p255
      %p420 = pneg %p252
      %p421 = pneg %p276
      %p422 = pneg %p273
      %p423 = pneg %p297
      %p424 = pneg %p294
      %p425 = pneg %p323
      %p426 = pneg %p320
      %s427 = smul.u32 3, %s24
      %p428 = scmp.lt.s32.totalorder %s427, 5
      %s429 = scalar_select %p428, %s427, 5
      %s430 = smul.addr %s429, 8
      %s431 = scalar_lea.vmem %s13, %s430
      %s432 = smul.u32 3, %s24
      %p433 = scmp.lt.s32.totalorder %s432, 5
      %s434 = scalar_select %p433, %s432, 5
      %s435 = smul.addr %s434, 8
      %s436 = scalar_lea.vmem %s0, %s435
      %s437 = smul.u32 3, %s24
      %s438 = smul.u32 3, %s24
      %p439 = scmp.lt.s32.totalorder %s438, 5
      %s440 = scalar_select %p439, %s438, 5
      %s441 = smul.addr %s440, 8
      %s442 = scalar_lea.vmem %s13, %s441
      %s443 = smul.u32 3, %s24
      %v444 = vld [vmem:[%s2] sm:$0x3]
      %v445 = vld [vmem:[%s4] sm:$0x3]
      %v446 = vld [vmem:[%s5] sm:$0x1]
      %v447 = vld [vmem:[%s6] sm:$0x1]
      %v448 = vld [vmem:[%s11] sm:$0x1]
      %v449 = vld [vmem:[%s12] sm:$0x1]
      %v450 = vld [vmem:[%s7] sm:$0xff]
      %v451 = vld [vmem:[%s7 + $0x8] sm:$0xff]
      %v452 = vld [vmem:[%s7 + $0x10] sm:$0xff]
      %v453 = vld [vmem:[%s7 + $0x18] sm:$0xff]
      %v454 = vld [vmem:[%s8] sm:$0x1]
      %v455 = vld [vmem:[%s9] sm:$0xff]
      %v456 = vld [vmem:[%s9 + $0x8] sm:$0xff]
      %v457 = vld [vmem:[%s9 + $0x10] sm:$0xff]
      %v458 = vld [vmem:[%s9 + $0x18] sm:$0xff]
      %v459 = vld [vmem:[%s10] sm:$0x1]
      %v460 = vld [vmem:[%s1] sm:$0xff]
      %v461 = vld [vmem:[%s1 + $0x8] sm:$0xff]
      %v462 = vld [vmem:[%s1 + $0x10] sm:$0xff]
      %v463 = vld [vmem:[%s1 + $0x18] sm:$0xff]
      %s464 = scalar_lea.vmem %s1, 32
      %v465 = vld [vmem:[%s464] sm:$0xff]
      %v466 = vld [vmem:[%s464 + $0x8] sm:$0xff]
      %v467 = vld [vmem:[%s464 + $0x10] sm:$0xff]
      %v468 = vld [vmem:[%s464 + $0x18] sm:$0xff]
      %v469 = vld [vmem:[%s3] sm:$0xff]
      %v470 = vld [vmem:[%s3 + $0x8] sm:$0xff]
      %v471 = vld [vmem:[%s3 + $0x10] sm:$0xff]
      %v472 = vld [vmem:[%s3 + $0x18] sm:$0xff]
      %s473 = scalar_lea.vmem %s3, 32
      %v474 = vld [vmem:[%s473] sm:$0xff]
      %v475 = vld [vmem:[%s473 + $0x8] sm:$0xff]
      %v476 = vld [vmem:[%s473 + $0x10] sm:$0xff]
      %v477 = vld [vmem:[%s473 + $0x18] sm:$0xff]
      %v478 = vlaneseq
      %v479 = vshrl.u32 %v478, 7
      %v480 = vlaneseq
      %v481 = vand.u32 %v480, 127
      %vm482 = vcmp.le.s32.totalorder %v481, %v479
      %v483 = vld [vmem:[%s436] sm:$0xff]
      %v484 = vld [vmem:[%s436 + $0x8] sm:$0xff]
      %v485 = vld [vmem:[%s436 + $0x10] sm:$0xff]
      %v486 = vlaneseq
      %v487 = vshrl.u32 %v486, 7
      %v488 = vsub.s32 0, %v487
      %v489 = vrot.slane %v444, %v488
      %vm490 = vcmask 261120
      %v492 = vsel %vm490, %v483, 0
      %v495 = vsel %vm490, %v484, 0
      %v498 = vsel %vm490, %v485, 0
      %500 = vmatprep.subr.mxu0 0.0
      %501 = vmatpush1.msra.mxu0 %v460
      %502 = vmatprep.subr.mxu0 0.0
      %503 = vmatpush1.msra.mxu0 %v461
      %504 = vmatprep.subr.mxu0 0.0
      %505 = vmatpush1.msra.mxu0 %v462
      %506 = vmatprep.subr.mxu0 0.0
      %507 = vmatpush1.msra.mxu0 %v463
      %508 = vmatprep.subr.mxu0 0.0
      %509 = vmatpush1.msra.mxu0 0.0
      %510 = vmatprep.subr.mxu0 0.0
      %511 = vmatpush1.msra.mxu0 0.0
      %512 = vmatprep.subr.mxu0 0.0
      %513 = vmatpush1.msra.mxu0 0.0
      %514 = vmatprep.subr.mxu0 0.0
      %515 = vmatpush1.msra.mxu0 0.0
      %516 = vmatprep.subr.mxu0 0.0
      %517 = vmatpush1.msra.mxu0 0.0
      %518 = vmatprep.subr.mxu0 0.0
      %519 = vmatpush1.msra.mxu0 0.0
      %520 = vmatprep.subr.mxu0 0.0
      %521 = vmatpush1.msra.mxu0 0.0
      %522 = vmatprep.subr.mxu0 0.0
      %523 = vmatpush1.msra.mxu0 0.0
      %524 = vmatprep.subr.mxu0 0.0
      %525 = vmatpush1.msra.mxu0 0.0
      %526 = vmatprep.subr.mxu0 0.0
      %527 = vmatpush1.msra.mxu0 0.0
      %528 = vmatprep.subr.mxu0 0.0
      %529 = vmatpush1.msra.mxu0 0.0
      %530 = vmatprep.subr.mxu0 0.0
      %531 = vmatpush1.msra.mxu0 0.0
      %532 = vmatprep.subr.mxu0 0.0
      %533 = vmatpush1.msra.mxu0 0.0
      %534 = vmatprep.subr.mxu0 0.0
      %535 = vmatpush1.msra.mxu0 0.0
      %536 = vmatprep.subr.mxu0 0.0
      %537 = vmatpush1.msra.mxu0 0.0
      %538 = vmatprep.subr.mxu0 0.0
      %539 = vmatpush1.msra.mxu0 0.0
      %540 = vmatprep.subr.mxu0 0.0
      %541 = vmatpush1.msra.mxu0 0.0
      %542 = vmatprep.subr.mxu0 0.0
      %543 = vmatpush1.msra.mxu0 0.0
      %544 = vmatprep.subr.mxu0 0.0
      %545 = vmatpush1.msra.mxu0 0.0
      %546 = vmatprep.subr.mxu0 0.0
      %547 = vmatpush1.msra.mxu0 0.0
      %548 = vmatprep.subr.mxu0 0.0
      %549 = vmatpush1.msra.mxu0 0.0
      %550 = vmatprep.subr.mxu0 0.0
      %551 = vmatpush1.msra.mxu0 0.0
      %552 = vmatprep.subr.mxu0 0.0
      %553 = vmatpush1.msra.mxu0 0.0
      %554 = vmatprep.subr.mxu0 0.0
      %555 = vmatpush1.msra.mxu0 0.0
      %556 = vmatprep.subr.mxu0 0.0
      %557 = vmatpush1.msra.mxu0 0.0
      %558 = vmatprep.subr.mxu0 0.0
      %559 = vmatpush1.msra.mxu0 0.0
      %560 = vmatprep.subr.mxu0 0.0
      %561 = vmatpush1.msra.mxu0 0.0
      %562 = vmatprep.subr.mxu0 0.0
      %563 = vmatpush1.msra.mxu0 0.0
      %564 = vmatprep.mubr.f32.mxu0 0.0
      %565 = vmatmul.mubr.f32.gmra.mrb[0].mxu0 %v492
      %v566 = vpop.f32.mrb[0].mxu0
      %v567 = vadd.f32 %v489, %v566
      %v568 = vpop.f32.mrb[0].mxu0
      %569 = vmatprep.mubr.f32.mxu0 0.0
      %570 = vmatmul.mubr.f32.gmra.mrb[0].mxu0 %v495
      %v571 = vpop.f32.mrb[0].mxu0
      %v572 = vadd.f32 %v489, %v571
      %v573 = vpop.f32.mrb[0].mxu0
      %574 = vmatprep.mubr.f32.mxu0 0.0
      %575 = vmatmul.mubr.f32.gmra.mrb[0].mxu0 %v498
      %v576 = vpop.f32.mrb[0].mxu0
      %v577 = vadd.f32 %v489, %v576
      %v578 = vpop.f32.mrb[0].mxu0
      %579 = vdwg.mxu0
      %581 = vrot.lane.b32.xlu0 %v567, 96
      %v582 = vpop.permute.xlu0 %581
      %vm583 = vcmask 64512
      %v584 = vsel %vm583, %v567, 0
      %v586 = vsel %vm583, %v582, 0
      %588 = vmatprep.subr.mxu0 0.0
      %589 = vmatpush1.xpose.msra.mxu0 %v586
      %590 = vmatprep.subr.mxu0 0.0
      %591 = vmatpush1.xpose.msra.mxu0 0.0
      %592 = vmatprep.subr.mxu0 0.0
      %593 = vmatpush1.xpose.msra.mxu0 0.0
      %594 = vmatprep.subr.mxu0 0.0
      %595 = vmatpush1.xpose.msra.mxu0 0.0
      %596 = vmatprep.subr.mxu0 0.0
      %597 = vmatpush1.xpose.msra.mxu0 0.0
      %598 = vmatprep.subr.mxu0 0.0
      %599 = vmatpush1.xpose.msra.mxu0 0.0
      %600 = vmatprep.subr.mxu0 0.0
      %601 = vmatpush1.xpose.msra.mxu0 0.0
      %602 = vmatprep.subr.mxu0 0.0
      %603 = vmatpush1.xpose.msra.mxu0 0.0
      %604 = vmatprep.subr.mxu0 0.0
      %605 = vmatpush1.xpose.msra.mxu0 0.0
      %606 = vmatprep.subr.mxu0 0.0
      %607 = vmatpush1.xpose.msra.mxu0 0.0
      %608 = vmatprep.subr.mxu0 0.0
      %609 = vmatpush1.xpose.msra.mxu0 0.0
      %610 = vmatprep.subr.mxu0 0.0
      %611 = vmatpush1.xpose.msra.mxu0 0.0
      %612 = vmatprep.subr.mxu0 0.0
      %613 = vmatpush1.xpose.msra.mxu0 0.0
      %614 = vmatprep.subr.mxu0 0.0
      %615 = vmatpush1.xpose.msra.mxu0 0.0
      %616 = vmatprep.subr.mxu0 0.0
      %617 = vmatpush1.xpose.msra.mxu0 0.0
      %618 = vmatprep.subr.mxu0 0.0
      %619 = vmatpush1.xpose.msra.mxu0 0.0
      %620 = vmatprep.subr.mxu0 0.0
      %621 = vmatpush1.xpose.msra.mxu0 0.0
      %622 = vmatprep.subr.mxu0 0.0
      %623 = vmatpush1.xpose.msra.mxu0 0.0
      %624 = vmatprep.subr.mxu0 0.0
      %625 = vmatpush1.xpose.msra.mxu0 0.0
      %626 = vmatprep.subr.mxu0 0.0
      %627 = vmatpush1.xpose.msra.mxu0 0.0
      %628 = vmatprep.subr.mxu0 0.0
      %629 = vmatpush1.xpose.msra.mxu0 0.0
      %630 = vmatprep.subr.mxu0 0.0
      %631 = vmatpush1.xpose.msra.mxu0 0.0
      %632 = vmatprep.subr.mxu0 0.0
      %633 = vmatpush1.xpose.msra.mxu0 0.0
      %634 = vmatprep.subr.mxu0 0.0
      %635 = vmatpush1.xpose.msra.mxu0 0.0
      %636 = vmatprep.subr.mxu0 0.0
      %637 = vmatpush1.xpose.msra.mxu0 0.0
      %638 = vmatprep.subr.mxu0 0.0
      %639 = vmatpush1.xpose.msra.mxu0 0.0
      %640 = vmatprep.subr.mxu0 0.0
      %641 = vmatpush1.xpose.msra.mxu0 0.0
      %642 = vmatprep.subr.mxu0 0.0
      %643 = vmatpush1.xpose.msra.mxu0 0.0
      %644 = vmatprep.subr.mxu0 0.0
      %645 = vmatpush1.xpose.msra.mxu0 0.0
      %646 = vmatprep.subr.mxu0 0.0
      %647 = vmatpush1.xpose.msra.mxu0 0.0
      %648 = vmatprep.subr.mxu0 0.0
      %649 = vmatpush1.xpose.msra.mxu0 0.0
      %650 = vmatprep.subr.mxu0 0.0
      %651 = vmatpush1.xpose.msra.mxu0 0.0
      %652 = vmatprep.mubr.f32.mxu0 0.0
      %653 = vmatmul.mubr.f32.gmra.mrb[0].mxu0 %v584
      %v654 = vpop.f32.mrb[0].mxu0
      %v655 = vadd.f32 0.0, %v654
      %v656 = vpop.f32.mrb[0].mxu0
      %657 = vdwg.mxu0
      %659 = vrot.lane.b32.xlu0 %v572, 96
      %v660 = vpop.permute.xlu0 %659
      %v661 = vsel %vm583, %v572, 0
      %v663 = vsel %vm583, %v660, 0
      %665 = vmatprep.subr.mxu0 0.0
      %666 = vmatpush1.xpose.msra.mxu0 %v663
      %667 = vmatprep.subr.mxu0 0.0
      %668 = vmatpush1.xpose.msra.mxu0 0.0
      %669 = vmatprep.subr.mxu0 0.0
      %670 = vmatpush1.xpose.msra.mxu0 0.0
      %671 = vmatprep.subr.mxu0 0.0
      %672 = vmatpush1.xpose.msra.mxu0 0.0
      %673 = vmatprep.subr.mxu0 0.0
      %674 = vmatpush1.xpose.msra.mxu0 0.0
      %675 = vmatprep.subr.mxu0 0.0
      %676 = vmatpush1.xpose.msra.mxu0 0.0
      %677 = vmatprep.subr.mxu0 0.0
      %678 = vmatpush1.xpose.msra.mxu0 0.0
      %679 = vmatprep.subr.mxu0 0.0
      %680 = vmatpush1.xpose.msra.mxu0 0.0
      %681 = vmatprep.subr.mxu0 0.0
      %682 = vmatpush1.xpose.msra.mxu0 0.0
      %683 = vmatprep.subr.mxu0 0.0
      %684 = vmatpush1.xpose.msra.mxu0 0.0
      %685 = vmatprep.subr.mxu0 0.0
      %686 = vmatpush1.xpose.msra.mxu0 0.0
      %687 = vmatprep.subr.mxu0 0.0
      %688 = vmatpush1.xpose.msra.mxu0 0.0
      %689 = vmatprep.subr.mxu0 0.0
      %690 = vmatpush1.xpose.msra.mxu0 0.0
      %691 = vmatprep.subr.mxu0 0.0
      %692 = vmatpush1.xpose.msra.mxu0 0.0
      %693 = vmatprep.subr.mxu0 0.0
      %694 = vmatpush1.xpose.msra.mxu0 0.0
      %695 = vmatprep.subr.mxu0 0.0
      %696 = vmatpush1.xpose.msra.mxu0 0.0
      %697 = vmatprep.subr.mxu0 0.0
      %698 = vmatpush1.xpose.msra.mxu0 0.0
      %699 = vmatprep.subr.mxu0 0.0
      %700 = vmatpush1.xpose.msra.mxu0 0.0
      %701 = vmatprep.subr.mxu0 0.0
      %702 = vmatpush1.xpose.msra.mxu0 0.0
      %703 = vmatprep.subr.mxu0 0.0
      %704 = vmatpush1.xpose.msra.mxu0 0.0
      %705 = vmatprep.subr.mxu0 0.0
      %706 = vmatpush1.xpose.msra.mxu0 0.0
      %707 = vmatprep.subr.mxu0 0.0
      %708 = vmatpush1.xpose.msra.mxu0 0.0
      %709 = vmatprep.subr.mxu0 0.0
      %710 = vmatpush1.xpose.msra.mxu0 0.0
      %711 = vmatprep.subr.mxu0 0.0
      %712 = vmatpush1.xpose.msra.mxu0 0.0
      %713 = vmatprep.subr.mxu0 0.0
      %714 = vmatpush1.xpose.msra.mxu0 0.0
      %715 = vmatprep.subr.mxu0 0.0
      %716 = vmatpush1.xpose.msra.mxu0 0.0
      %717 = vmatprep.subr.mxu0 0.0
      %718 = vmatpush1.xpose.msra.mxu0 0.0
      %719 = vmatprep.subr.mxu0 0.0
      %720 = vmatpush1.xpose.msra.mxu0 0.0
      %721 = vmatprep.subr.mxu0 0.0
      %722 = vmatpush1.xpose.msra.mxu0 0.0
      %723 = vmatprep.subr.mxu0 0.0
      %724 = vmatpush1.xpose.msra.mxu0 0.0
      %725 = vmatprep.subr.mxu0 0.0
      %726 = vmatpush1.xpose.msra.mxu0 0.0
      %727 = vmatprep.subr.mxu0 0.0
      %728 = vmatpush1.xpose.msra.mxu0 0.0
      %729 = vmatprep.mubr.f32.mxu0 0.0
      %730 = vmatmul.mubr.f32.gmra.mrb[0].mxu0 %v661
      %v731 = vpop.f32.mrb[0].mxu0
      %v732 = vadd.f32 0.0, %v731
      %v733 = vpop.f32.mrb[0].mxu0
      %734 = vdwg.mxu0
      %736 = vrot.lane.b32.xlu0 %v577, 96
      %v737 = vpop.permute.xlu0 %736
      %v738 = vsel %vm583, %v577, 0
      %v740 = vsel %vm583, %v737, 0
      %742 = vmatprep.subr.mxu0 0.0
      %743 = vmatpush1.xpose.msra.mxu0 %v740
      %744 = vmatprep.subr.mxu0 0.0
      %745 = vmatpush1.xpose.msra.mxu0 0.0
      %746 = vmatprep.subr.mxu0 0.0
      %747 = vmatpush1.xpose.msra.mxu0 0.0
      %748 = vmatprep.subr.mxu0 0.0
      %749 = vmatpush1.xpose.msra.mxu0 0.0
      %750 = vmatprep.subr.mxu0 0.0
      %751 = vmatpush1.xpose.msra.mxu0 0.0
      %752 = vmatprep.subr.mxu0 0.0
      %753 = vmatpush1.xpose.msra.mxu0 0.0
      %754 = vmatprep.subr.mxu0 0.0
      %755 = vmatpush1.xpose.msra.mxu0 0.0
      %756 = vmatprep.subr.mxu0 0.0
      %757 = vmatpush1.xpose.msra.mxu0 0.0
      %758 = vmatprep.subr.mxu0 0.0
      %759 = vmatpush1.xpose.msra.mxu0 0.0
      %760 = vmatprep.subr.mxu0 0.0
      %761 = vmatpush1.xpose.msra.mxu0 0.0
      %762 = vmatprep.subr.mxu0 0.0
      %763 = vmatpush1.xpose.msra.mxu0 0.0
      %764 = vmatprep.subr.mxu0 0.0
      %765 = vmatpush1.xpose.msra.mxu0 0.0
      %766 = vmatprep.subr.mxu0 0.0
      %767 = vmatpush1.xpose.msra.mxu0 0.0
      %768 = vmatprep.subr.mxu0 0.0
      %769 = vmatpush1.xpose.msra.mxu0 0.0
      %770 = vmatprep.subr.mxu0 0.0
      %771 = vmatpush1.xpose.msra.mxu0 0.0
      %772 = vmatprep.subr.mxu0 0.0
      %773 = vmatpush1.xpose.msra.mxu0 0.0
      %774 = vmatprep.subr.mxu0 0.0
      %775 = vmatpush1.xpose.msra.mxu0 0.0
      %776 = vmatprep.subr.mxu0 0.0
      %777 = vmatpush1.xpose.msra.mxu0 0.0
      %778 = vmatprep.subr.mxu0 0.0
      %779 = vmatpush1.xpose.msra.mxu0 0.0
      %780 = vmatprep.subr.mxu0 0.0
      %781 = vmatpush1.xpose.msra.mxu0 0.0
      %782 = vmatprep.subr.mxu0 0.0
      %783 = vmatpush1.xpose.msra.mxu0 0.0
      %784 = vmatprep.subr.mxu0 0.0
      %785 = vmatpush1.xpose.msra.mxu0 0.0
      %786 = vmatprep.subr.mxu0 0.0
      %787 = vmatpush1.xpose.msra.mxu0 0.0
      %788 = vmatprep.subr.mxu0 0.0
      %789 = vmatpush1.xpose.msra.mxu0 0.0
      %790 = vmatprep.subr.mxu0 0.0
      %791 = vmatpush1.xpose.msra.mxu0 0.0
      %792 = vmatprep.subr.mxu0 0.0
      %793 = vmatpush1.xpose.msra.mxu0 0.0
      %794 = vmatprep.subr.mxu0 0.0
      %795 = vmatpush1.xpose.msra.mxu0 0.0
      %796 = vmatprep.subr.mxu0 0.0
      %797 = vmatpush1.xpose.msra.mxu0 0.0
      %798 = vmatprep.subr.mxu0 0.0
      %799 = vmatpush1.xpose.msra.mxu0 0.0
      %800 = vmatprep.subr.mxu0 0.0
      %801 = vmatpush1.xpose.msra.mxu0 0.0
      %802 = vmatprep.subr.mxu0 0.0
      %803 = vmatpush1.xpose.msra.mxu0 0.0
      %804 = vmatprep.subr.mxu0 0.0
      %805 = vmatpush1.xpose.msra.mxu0 0.0
      %806 = vmatprep.mubr.f32.mxu0 0.0
      %807 = vmatmul.mubr.f32.gmra.mrb[0].mxu0 %v738
      %v808 = vpop.f32.mrb[0].mxu0
      %v809 = vadd.f32 0.0, %v808
      %v810 = vpop.f32.mrb[0].mxu0
      %811 = vdwg.mxu0
      %v812 = vmul.f32 %v655, 0.35355338
      %v813 = vmul.f32 %v732, 0.35355338
      %v814 = vmul.f32 %v809, 0.35355338
      %v815 = vsel %vm482, 1, 0
      %vm816 = vcmp.eq.s32.totalorder %v815, 1
      %v817 = vsel %vm816, %v812, -1e+30
      %v818 = vsel %vm816, %v813, -1e+30
      %v819 = vsel %vm816, %v814, -1e+30
      %v820 = vsel %vm583, %v817, -inf
      %821 = vmax.xlane.f32.xlu0 %v820
      %v822 = vpop.xlane.xlu0 %821
      %v823 = vsel %vm583, %v818, -inf
      %824 = vmax.xlane.f32.xlu0 %v823
      %v825 = vpop.xlane.xlu0 %824
      %v826 = vsel %vm583, %v819, -inf
      %827 = vmax.xlane.f32.xlu0 %v826
      %v828 = vpop.xlane.xlu0 %827
      %v829 = vsub.f32 %v817, %v822
      %v830 = vsub.f32 %v818, %v825
      %v831 = vsub.f32 %v819, %v828
      %v832 = vmul.f32 %v829, 1.442695
      %v833 = vpow.pop %v832
      %v834 = vmul.f32 %v830, 1.442695
      %v835 = vpow.pop %v834
      %v836 = vmul.f32 %v831, 1.442695
      %v837 = vpow.pop %v836
      %v838 = vsel %vm583, %v833, 0.0
      %839 = vadd.xlane.f32.xlu0 %v838
      %v840 = vpop.xlane.xlu0 %839
      %v841 = vsel %vm583, %v835, 0.0
      %842 = vadd.xlane.f32.xlu0 %v841
      %v843 = vpop.xlane.xlu0 %842
      %v844 = vsel %vm583, %v837, 0.0
      %845 = vadd.xlane.f32.xlu0 %v844
      %v846 = vpop.xlane.xlu0 %845
      %v847 = vrcp.pop %v840
      %v848 = vrcp.pop %v843
      %v849 = vrcp.pop %v846
      %v850 = vmul.f32 %v833, %v847
      %v851 = vmul.f32 %v835, %v848
      %v852 = vmul.f32 %v837, %v849
      %853 = vrot.lane.b32.xlu0 %v567, 64
      %v854 = vpop.permute.xlu0 %853
      %v857 = vsel %vm583, %v850, 0
      %859 = vmatprep.subr.mxu0 0.0
      %860 = vmatpush1.msra.mxu0 %v854
      %861 = vmatprep.subr.mxu0 0.0
      %862 = vmatpush1.msra.mxu0 0.0
      %863 = vmatprep.subr.mxu0 0.0
      %864 = vmatpush1.msra.mxu0 0.0
      %865 = vmatprep.subr.mxu0 0.0
      %866 = vmatpush1.msra.mxu0 0.0
      %867 = vmatprep.subr.mxu0 0.0
      %868 = vmatpush1.msra.mxu0 0.0
      %869 = vmatprep.subr.mxu0 0.0
      %870 = vmatpush1.msra.mxu0 0.0
      %871 = vmatprep.subr.mxu0 0.0
      %872 = vmatpush1.msra.mxu0 0.0
      %873 = vmatprep.subr.mxu0 0.0
      %874 = vmatpush1.msra.mxu0 0.0
      %875 = vmatprep.subr.mxu0 0.0
      %876 = vmatpush1.msra.mxu0 0.0
      %877 = vmatprep.subr.mxu0 0.0
      %878 = vmatpush1.msra.mxu0 0.0
      %879 = vmatprep.subr.mxu0 0.0
      %880 = vmatpush1.msra.mxu0 0.0
      %881 = vmatprep.subr.mxu0 0.0
      %882 = vmatpush1.msra.mxu0 0.0
      %883 = vmatprep.subr.mxu0 0.0
      %884 = vmatpush1.msra.mxu0 0.0
      %885 = vmatprep.subr.mxu0 0.0
      %886 = vmatpush1.msra.mxu0 0.0
      %887 = vmatprep.subr.mxu0 0.0
      %888 = vmatpush1.msra.mxu0 0.0
      %889 = vmatprep.subr.mxu0 0.0
      %890 = vmatpush1.msra.mxu0 0.0
      %891 = vmatprep.subr.mxu0 0.0
      %892 = vmatpush1.msra.mxu0 0.0
      %893 = vmatprep.subr.mxu0 0.0
      %894 = vmatpush1.msra.mxu0 0.0
      %895 = vmatprep.subr.mxu0 0.0
      %896 = vmatpush1.msra.mxu0 0.0
      %897 = vmatprep.subr.mxu0 0.0
      %898 = vmatpush1.msra.mxu0 0.0
      %899 = vmatprep.subr.mxu0 0.0
      %900 = vmatpush1.msra.mxu0 0.0
      %901 = vmatprep.subr.mxu0 0.0
      %902 = vmatpush1.msra.mxu0 0.0
      %903 = vmatprep.subr.mxu0 0.0
      %904 = vmatpush1.msra.mxu0 0.0
      %905 = vmatprep.subr.mxu0 0.0
      %906 = vmatpush1.msra.mxu0 0.0
      %907 = vmatprep.subr.mxu0 0.0
      %908 = vmatpush1.msra.mxu0 0.0
      %909 = vmatprep.subr.mxu0 0.0
      %910 = vmatpush1.msra.mxu0 0.0
      %911 = vmatprep.subr.mxu0 0.0
      %912 = vmatpush1.msra.mxu0 0.0
      %913 = vmatprep.subr.mxu0 0.0
      %914 = vmatpush1.msra.mxu0 0.0
      %915 = vmatprep.subr.mxu0 0.0
      %916 = vmatpush1.msra.mxu0 0.0
      %917 = vmatprep.subr.mxu0 0.0
      %918 = vmatpush1.msra.mxu0 0.0
      %919 = vmatprep.subr.mxu0 0.0
      %920 = vmatpush1.msra.mxu0 0.0
      %921 = vmatprep.subr.mxu0 0.0
      %922 = vmatpush1.msra.mxu0 0.0
      %923 = vmatprep.mubr.f32.mxu0 0.0
      %924 = vmatmul.mubr.f32.gmra.mrb[0].mxu0 %v857
      %v925 = vpop.f32.mrb[0].mxu0
      %v926 = vadd.f32 0.0, %v925
      %v927 = vpop.f32.mrb[0].mxu0
      %928 = vdwg.mxu0
      %929 = vrot.lane.b32.xlu0 %v572, 64
      %v930 = vpop.permute.xlu0 %929
      %v933 = vsel %vm583, %v851, 0
      %935 = vmatprep.subr.mxu0 0.0
      %936 = vmatpush1.msra.mxu0 %v930
      %937 = vmatprep.subr.mxu0 0.0
      %938 = vmatpush1.msra.mxu0 0.0
      %939 = vmatprep.subr.mxu0 0.0
      %940 = vmatpush1.msra.mxu0 0.0
      %941 = vmatprep.subr.mxu0 0.0
      %942 = vmatpush1.msra.mxu0 0.0
      %943 = vmatprep.subr.mxu0 0.0
      %944 = vmatpush1.msra.mxu0 0.0
      %945 = vmatprep.subr.mxu0 0.0
      %946 = vmatpush1.msra.mxu0 0.0
      %947 = vmatprep.subr.mxu0 0.0
      %948 = vmatpush1.msra.mxu0 0.0
      %949 = vmatprep.subr.mxu0 0.0
      %950 = vmatpush1.msra.mxu0 0.0
      %951 = vmatprep.subr.mxu0 0.0
      %952 = vmatpush1.msra.mxu0 0.0
      %953 = vmatprep.subr.mxu0 0.0
      %954 = vmatpush1.msra.mxu0 0.0
      %955 = vmatprep.subr.mxu0 0.0
      %956 = vmatpush1.msra.mxu0 0.0
      %957 = vmatprep.subr.mxu0 0.0
      %958 = vmatpush1.msra.mxu0 0.0
      %959 = vmatprep.subr.mxu0 0.0
      %960 = vmatpush1.msra.mxu0 0.0
      %961 = vmatprep.subr.mxu0 0.0
      %962 = vmatpush1.msra.mxu0 0.0
      %963 = vmatprep.subr.mxu0 0.0
      %964 = vmatpush1.msra.mxu0 0.0
      %965 = vmatprep.subr.mxu0 0.0
      %966 = vmatpush1.msra.mxu0 0.0
      %967 = vmatprep.subr.mxu0 0.0
      %968 = vmatpush1.msra.mxu0 0.0
      %969 = vmatprep.subr.mxu0 0.0
      %970 = vmatpush1.msra.mxu0 0.0
      %971 = vmatprep.subr.mxu0 0.0
      %972 = vmatpush1.msra.mxu0 0.0
      %973 = vmatprep.subr.mxu0 0.0
      %974 = vmatpush1.msra.mxu0 0.0
      %975 = vmatprep.subr.mxu0 0.0
      %976 = vmatpush1.msra.mxu0 0.0
      %977 = vmatprep.subr.mxu0 0.0
      %978 = vmatpush1.msra.mxu0 0.0
      %979 = vmatprep.subr.mxu0 0.0
      %980 = vmatpush1.msra.mxu0 0.0
      %981 = vmatprep.subr.mxu0 0.0
      %982 = vmatpush1.msra.mxu0 0.0
      %983 = vmatprep.subr.mxu0 0.0
      %984 = vmatpush1.msra.mxu0 0.0
      %985 = vmatprep.subr.mxu0 0.0
      %986 = vmatpush1.msra.mxu0 0.0
      %987 = vmatprep.subr.mxu0 0.0
      %988 = vmatpush1.msra.mxu0 0.0
      %989 = vmatprep.subr.mxu0 0.0
      %990 = vmatpush1.msra.mxu0 0.0
      %991 = vmatprep.subr.mxu0 0.0
      %992 = vmatpush1.msra.mxu0 0.0
      %993 = vmatprep.subr.mxu0 0.0
      %994 = vmatpush1.msra.mxu0 0.0
      %995 = vmatprep.subr.mxu0 0.0
      %996 = vmatpush1.msra.mxu0 0.0
      %997 = vmatprep.subr.mxu0 0.0
      %998 = vmatpush1.msra.mxu0 0.0
      %999 = vmatprep.mubr.f32.mxu0 0.0
      %1000 = vmatmul.mubr.f32.gmra.mrb[0].mxu0 %v933
      %v1001 = vpop.f32.mrb[0].mxu0
      %v1002 = vadd.f32 0.0, %v1001
      %v1003 = vpop.f32.mrb[0].mxu0
      %1004 = vdwg.mxu0
      %1005 = vrot.lane.b32.xlu0 %v577, 64
      %v1006 = vpop.permute.xlu0 %1005
      %v1009 = vsel %vm583, %v852, 0
      %1011 = vmatprep.subr.mxu0 0.0
      %1012 = vmatpush1.msra.mxu0 %v1006
      %1013 = vmatprep.subr.mxu0 0.0
      %1014 = vmatpush1.msra.mxu0 0.0
      %1015 = vmatprep.subr.mxu0 0.0
      %1016 = vmatpush1.msra.mxu0 0.0
      %1017 = vmatprep.subr.mxu0 0.0
      %1018 = vmatpush1.msra.mxu0 0.0
      %1019 = vmatprep.subr.mxu0 0.0
      %1020 = vmatpush1.msra.mxu0 0.0
      %1021 = vmatprep.subr.mxu0 0.0
      %1022 = vmatpush1.msra.mxu0 0.0
      %1023 = vmatprep.subr.mxu0 0.0
      %1024 = vmatpush1.msra.mxu0 0.0
      %1025 = vmatprep.subr.mxu0 0.0
      %1026 = vmatpush1.msra.mxu0 0.0
      %1027 = vmatprep.subr.mxu0 0.0
      %1028 = vmatpush1.msra.mxu0 0.0
      %1029 = vmatprep.subr.mxu0 0.0
      %1030 = vmatpush1.msra.mxu0 0.0
      %1031 = vmatprep.subr.mxu0 0.0
      %1032 = vmatpush1.msra.mxu0 0.0
      %1033 = vmatprep.subr.mxu0 0.0
      %1034 = vmatpush1.msra.mxu0 0.0
      %1035 = vmatprep.subr.mxu0 0.0
      %1036 = vmatpush1.msra.mxu0 0.0
      %1037 = vmatprep.subr.mxu0 0.0
      %1038 = vmatpush1.msra.mxu0 0.0
      %1039 = vmatprep.subr.mxu0 0.0
      %1040 = vmatpush1.msra.mxu0 0.0
      %1041 = vmatprep.subr.mxu0 0.0
      %1042 = vmatpush1.msra.mxu0 0.0
      %1043 = vmatprep.subr.mxu0 0.0
      %1044 = vmatpush1.msra.mxu0 0.0
      %1045 = vmatprep.subr.mxu0 0.0
      %1046 = vmatpush1.msra.mxu0 0.0
      %1047 = vmatprep.subr.mxu0 0.0
      %1048 = vmatpush1.msra.mxu0 0.0
      %1049 = vmatprep.subr.mxu0 0.0
      %1050 = vmatpush1.msra.mxu0 0.0
      %1051 = vmatprep.subr.mxu0 0.0
      %1052 = vmatpush1.msra.mxu0 0.0
      %1053 = vmatprep.subr.mxu0 0.0
      %1054 = vmatpush1.msra.mxu0 0.0
      %1055 = vmatprep.subr.mxu0 0.0
      %1056 = vmatpush1.msra.mxu0 0.0
      %1057 = vmatprep.subr.mxu0 0.0
      %1058 = vmatpush1.msra.mxu0 0.0
      %1059 = vmatprep.subr.mxu0 0.0
      %1060 = vmatpush1.msra.mxu0 0.0
      %1061 = vmatprep.subr.mxu0 0.0
      %1062 = vmatpush1.msra.mxu0 0.0
      %1063 = vmatprep.subr.mxu0 0.0
      %1064 = vmatpush1.msra.mxu0 0.0
      %1065 = vmatprep.subr.mxu0 0.0
      %1066 = vmatpush1.msra.mxu0 0.0
      %1067 = vmatprep.subr.mxu0 0.0
      %1068 = vmatpush1.msra.mxu0 0.0
      %1069 = vmatprep.subr.mxu0 0.0
      %1070 = vmatpush1.msra.mxu0 0.0
      %1071 = vmatprep.subr.mxu0 0.0
      %1072 = vmatpush1.msra.mxu0 0.0
      %1073 = vmatprep.subr.mxu0 0.0
      %1074 = vmatpush1.msra.mxu0 0.0
      %1075 = vmatprep.mubr.f32.mxu0 0.0
      %1076 = vmatmul.mubr.f32.gmra.mrb[0].mxu0 %v1009
      %v1077 = vpop.f32.mrb[0].mxu0
      %v1078 = vadd.f32 0.0, %v1077
      %v1079 = vpop.f32.mrb[0].mxu0
      %1080 = vdwg.mxu0
      %1081 = vrot.lane.b32.xlu0 %v567, 120
      %v1082 = vpop.permute.xlu0 %1081
      %1083 = vrot.lane.b32.xlu0 %v567, 88
      %v1084 = vpop.permute.xlu0 %1083
      %v1085 = vsel %vm583, %v1082, 0
      %v1087 = vsel %vm583, %v1084, 0
      %1089 = vmatprep.subr.mxu0 0.0
      %1090 = vmatpush1.xpose.msra.mxu0 %v1087
      %1091 = vmatprep.subr.mxu0 0.0
      %1092 = vmatpush1.xpose.msra.mxu0 0.0
      %1093 = vmatprep.subr.mxu0 0.0
      %1094 = vmatpush1.xpose.msra.mxu0 0.0
      %1095 = vmatprep.subr.mxu0 0.0
      %1096 = vmatpush1.xpose.msra.mxu0 0.0
      %1097 = vmatprep.subr.mxu0 0.0
      %1098 = vmatpush1.xpose.msra.mxu0 0.0
      %1099 = vmatprep.subr.mxu0 0.0
      %1100 = vmatpush1.xpose.msra.mxu0 0.0
      %1101 = vmatprep.subr.mxu0 0.0
      %1102 = vmatpush1.xpose.msra.mxu0 0.0
      %1103 = vmatprep.subr.mxu0 0.0
      %1104 = vmatpush1.xpose.msra.mxu0 0.0
      %1105 = vmatprep.subr.mxu0 0.0
      %1106 = vmatpush1.xpose.msra.mxu0 0.0
      %1107 = vmatprep.subr.mxu0 0.0
      %1108 = vmatpush1.xpose.msra.mxu0 0.0
      %1109 = vmatprep.subr.mxu0 0.0
      %1110 = vmatpush1.xpose.msra.mxu0 0.0
      %1111 = vmatprep.subr.mxu0 0.0
      %1112 = vmatpush1.xpose.msra.mxu0 0.0
      %1113 = vmatprep.subr.mxu0 0.0
      %1114 = vmatpush1.xpose.msra.mxu0 0.0
      %1115 = vmatprep.subr.mxu0 0.0
      %1116 = vmatpush1.xpose.msra.mxu0 0.0
      %1117 = vmatprep.subr.mxu0 0.0
      %1118 = vmatpush1.xpose.msra.mxu0 0.0
      %1119 = vmatprep.subr.mxu0 0.0
      %1120 = vmatpush1.xpose.msra.mxu0 0.0
      %1121 = vmatprep.subr.mxu0 0.0
      %1122 = vmatpush1.xpose.msra.mxu0 0.0
      %1123 = vmatprep.subr.mxu0 0.0
      %1124 = vmatpush1.xpose.msra.mxu0 0.0
      %1125 = vmatprep.subr.mxu0 0.0
      %1126 = vmatpush1.xpose.msra.mxu0 0.0
      %1127 = vmatprep.subr.mxu0 0.0
      %1128 = vmatpush1.xpose.msra.mxu0 0.0
      %1129 = vmatprep.subr.mxu0 0.0
      %1130 = vmatpush1.xpose.msra.mxu0 0.0
      %1131 = vmatprep.subr.mxu0 0.0
      %1132 = vmatpush1.xpose.msra.mxu0 0.0
      %1133 = vmatprep.subr.mxu0 0.0
      %1134 = vmatpush1.xpose.msra.mxu0 0.0
      %1135 = vmatprep.subr.mxu0 0.0
      %1136 = vmatpush1.xpose.msra.mxu0 0.0
      %1137 = vmatprep.subr.mxu0 0.0
      %1138 = vmatpush1.xpose.msra.mxu0 0.0
      %1139 = vmatprep.subr.mxu0 0.0
      %1140 = vmatpush1.xpose.msra.mxu0 0.0
      %1141 = vmatprep.subr.mxu0 0.0
      %1142 = vmatpush1.xpose.msra.mxu0 0.0
      %1143 = vmatprep.subr.mxu0 0.0
      %1144 = vmatpush1.xpose.msra.mxu0 0.0
      %1145 = vmatprep.subr.mxu0 0.0
      %1146 = vmatpush1.xpose.msra.mxu0 0.0
      %1147 = vmatprep.subr.mxu0 0.0
      %1148 = vmatpush1.xpose.msra.mxu0 0.0
      %1149 = vmatprep.subr.mxu0 0.0
      %1150 = vmatpush1.xpose.msra.mxu0 0.0
      %1151 = vmatprep.subr.mxu0 0.0
      %1152 = vmatpush1.xpose.msra.mxu0 0.0
      %1153 = vmatprep.mubr.f32.mxu0 0.0
      %1154 = vmatmul.mubr.f32.gmra.mrb[0].mxu0 %v1085
      %v1155 = vpop.f32.mrb[0].mxu0
      %v1156 = vadd.f32 0.0, %v1155
      %v1157 = vpop.f32.mrb[0].mxu0
      %1158 = vdwg.mxu0
      %1159 = vrot.lane.b32.xlu0 %v572, 120
      %v1160 = vpop.permute.xlu0 %1159
      %1161 = vrot.lane.b32.xlu0 %v572, 88
      %v1162 = vpop.permute.xlu0 %1161
      %v1163 = vsel %vm583, %v1160, 0
      %v1165 = vsel %vm583, %v1162, 0
      %1167 = vmatprep.subr.mxu0 0.0
      %1168 = vmatpush1.xpose.msra.mxu0 %v1165
      %1169 = vmatprep.subr.mxu0 0.0
      %1170 = vmatpush1.xpose.msra.mxu0 0.0
      %1171 = vmatprep.subr.mxu0 0.0
      %1172 = vmatpush1.xpose.msra.mxu0 0.0
      %1173 = vmatprep.subr.mxu0 0.0
      %1174 = vmatpush1.xpose.msra.mxu0 0.0
      %1175 = vmatprep.subr.mxu0 0.0
      %1176 = vmatpush1.xpose.msra.mxu0 0.0
      %1177 = vmatprep.subr.mxu0 0.0
      %1178 = vmatpush1.xpose.msra.mxu0 0.0
      %1179 = vmatprep.subr.mxu0 0.0
      %1180 = vmatpush1.xpose.msra.mxu0 0.0
      %1181 = vmatprep.subr.mxu0 0.0
      %1182 = vmatpush1.xpose.msra.mxu0 0.0
      %1183 = vmatprep.subr.mxu0 0.0
      %1184 = vmatpush1.xpose.msra.mxu0 0.0
      %1185 = vmatprep.subr.mxu0 0.0
      %1186 = vmatpush1.xpose.msra.mxu0 0.0
      %1187 = vmatprep.subr.mxu0 0.0
      %1188 = vmatpush1.xpose.msra.mxu0 0.0
      %1189 = vmatprep.subr.mxu0 0.0
      %1190 = vmatpush1.xpose.msra.mxu0 0.0
      %1191 = vmatprep.subr.mxu0 0.0
      %1192 = vmatpush1.xpose.msra.mxu0 0.0
      %1193 = vmatprep.subr.mxu0 0.0
      %1194 = vmatpush1.xpose.msra.mxu0 0.0
      %1195 = vmatprep.subr.mxu0 0.0
      %1196 = vmatpush1.xpose.msra.mxu0 0.0
      %1197 = vmatprep.subr.mxu0 0.0
      %1198 = vmatpush1.xpose.msra.mxu0 0.0
      %1199 = vmatprep.subr.mxu0 0.0
      %1200 = vmatpush1.xpose.msra.mxu0 0.0
      %1201 = vmatprep.subr.mxu0 0.0
      %1202 = vmatpush1.xpose.msra.mxu0 0.0
      %1203 = vmatprep.subr.mxu0 0.0
      %1204 = vmatpush1.xpose.msra.mxu0 0.0
      %1205 = vmatprep.subr.mxu0 0.0
      %1206 = vmatpush1.xpose.msra.mxu0 0.0
      %1207 = vmatprep.subr.mxu0 0.0
      %1208 = vmatpush1.xpose.msra.mxu0 0.0
      %1209 = vmatprep.subr.mxu0 0.0
      %1210 = vmatpush1.xpose.msra.mxu0 0.0
      %1211 = vmatprep.subr.mxu0 0.0
      %1212 = vmatpush1.xpose.msra.mxu0 0.0
      %1213 = vmatprep.subr.mxu0 0.0
      %1214 = vmatpush1.xpose.msra.mxu0 0.0
      %1215 = vmatprep.subr.mxu0 0.0
      %1216 = vmatpush1.xpose.msra.mxu0 0.0
      %1217 = vmatprep.subr.mxu0 0.0
      %1218 = vmatpush1.xpose.msra.mxu0 0.0
      %1219 = vmatprep.subr.mxu0 0.0
      %1220 = vmatpush1.xpose.msra.mxu0 0.0
      %1221 = vmatprep.subr.mxu0 0.0
      %1222 = vmatpush1.xpose.msra.mxu0 0.0
      %1223 = vmatprep.subr.mxu0 0.0
      %1224 = vmatpush1.xpose.msra.mxu0 0.0
      %1225 = vmatprep.subr.mxu0 0.0
      %1226 = vmatpush1.xpose.msra.mxu0 0.0
      %1227 = vmatprep.subr.mxu0 0.0
      %1228 = vmatpush1.xpose.msra.mxu0 0.0
      %1229 = vmatprep.subr.mxu0 0.0
      %1230 = vmatpush1.xpose.msra.mxu0 0.0
      %1231 = vmatprep.mubr.f32.mxu0 0.0
      %1232 = vmatmul.mubr.f32.gmra.mrb[0].mxu0 %v1163
      %v1233 = vpop.f32.mrb[0].mxu0
      %v1234 = vadd.f32 0.0, %v1233
      %v1235 = vpop.f32.mrb[0].mxu0
      %1236 = vdwg.mxu0
      %1237 = vrot.lane.b32.xlu0 %v577, 120
      %v1238 = vpop.permute.xlu0 %1237
      %1239 = vrot.lane.b32.xlu0 %v577, 88
      %v1240 = vpop.permute.xlu0 %1239
      %v1241 = vsel %vm583, %v1238, 0
      %v1243 = vsel %vm583, %v1240, 0
      %1245 = vmatprep.subr.mxu0 0.0
      %1246 = vmatpush1.xpose.msra.mxu0 %v1243
      %1247 = vmatprep.subr.mxu0 0.0
      %1248 = vmatpush1.xpose.msra.mxu0 0.0
      %1249 = vmatprep.subr.mxu0 0.0
      %1250 = vmatpush1.xpose.msra.mxu0 0.0
      %1251 = vmatprep.subr.mxu0 0.0
      %1252 = vmatpush1.xpose.msra.mxu0 0.0
      %1253 = vmatprep.subr.mxu0 0.0
      %1254 = vmatpush1.xpose.msra.mxu0 0.0
      %1255 = vmatprep.subr.mxu0 0.0
      %1256 = vmatpush1.xpose.msra.mxu0 0.0
      %1257 = vmatprep.subr.mxu0 0.0
      %1258 = vmatpush1.xpose.msra.mxu0 0.0
      %1259 = vmatprep.subr.mxu0 0.0
      %1260 = vmatpush1.xpose.msra.mxu0 0.0
      %1261 = vmatprep.subr.mxu0 0.0
      %1262 = vmatpush1.xpose.msra.mxu0 0.0
      %1263 = vmatprep.subr.mxu0 0.0
      %1264 = vmatpush1.xpose.msra.mxu0 0.0
      %1265 = vmatprep.subr.mxu0 0.0
      %1266 = vmatpush1.xpose.msra.mxu0 0.0
      %1267 = vmatprep.subr.mxu0 0.0
      %1268 = vmatpush1.xpose.msra.mxu0 0.0
      %1269 = vmatprep.subr.mxu0 0.0
      %1270 = vmatpush1.xpose.msra.mxu0 0.0
      %1271 = vmatprep.subr.mxu0 0.0
      %1272 = vmatpush1.xpose.msra.mxu0 0.0
      %1273 = vmatprep.subr.mxu0 0.0
      %1274 = vmatpush1.xpose.msra.mxu0 0.0
      %1275 = vmatprep.subr.mxu0 0.0
      %1276 = vmatpush1.xpose.msra.mxu0 0.0
      %1277 = vmatprep.subr.mxu0 0.0
      %1278 = vmatpush1.xpose.msra.mxu0 0.0
      %1279 = vmatprep.subr.mxu0 0.0
      %1280 = vmatpush1.xpose.msra.mxu0 0.0
      %1281 = vmatprep.subr.mxu0 0.0
      %1282 = vmatpush1.xpose.msra.mxu0 0.0
      %1283 = vmatprep.subr.mxu0 0.0
      %1284 = vmatpush1.xpose.msra.mxu0 0.0
      %1285 = vmatprep.subr.mxu0 0.0
      %1286 = vmatpush1.xpose.msra.mxu0 0.0
      %1287 = vmatprep.subr.mxu0 0.0
      %1288 = vmatpush1.xpose.msra.mxu0 0.0
      %1289 = vmatprep.subr.mxu0 0.0
      %1290 = vmatpush1.xpose.msra.mxu0 0.0
      %1291 = vmatprep.subr.mxu0 0.0
      %1292 = vmatpush1.xpose.msra.mxu0 0.0
      %1293 = vmatprep.subr.mxu0 0.0
      %1294 = vmatpush1.xpose.msra.mxu0 0.0
      %1295 = vmatprep.subr.mxu0 0.0
      %1296 = vmatpush1.xpose.msra.mxu0 0.0
      %1297 = vmatprep.subr.mxu0 0.0
      %1298 = vmatpush1.xpose.msra.mxu0 0.0
      %1299 = vmatprep.subr.mxu0 0.0
      %1300 = vmatpush1.xpose.msra.mxu0 0.0
      %1301 = vmatprep.subr.mxu0 0.0
      %1302 = vmatpush1.xpose.msra.mxu0 0.0
      %1303 = vmatprep.subr.mxu0 0.0
      %1304 = vmatpush1.xpose.msra.mxu0 0.0
      %1305 = vmatprep.subr.mxu0 0.0
      %1306 = vmatpush1.xpose.msra.mxu0 0.0
      %1307 = vmatprep.subr.mxu0 0.0
      %1308 = vmatpush1.xpose.msra.mxu0 0.0
      %1309 = vmatprep.mubr.f32.mxu0 0.0
      %1310 = vmatmul.mubr.f32.gmra.mrb[0].mxu0 %v1241
      %v1311 = vpop.f32.mrb[0].mxu0
      %v1312 = vadd.f32 0.0, %v1311
      %v1313 = vpop.f32.mrb[0].mxu0
      %1314 = vdwg.mxu0
      %v1315 = vmul.f32 %v1156, 0.35355338
      %v1316 = vmul.f32 %v1234, 0.35355338
      %v1317 = vmul.f32 %v1312, 0.35355338
      %v1318 = vsel %vm816, %v1315, -1e+30
      %v1319 = vsel %vm816, %v1316, -1e+30
      %v1320 = vsel %vm816, %v1317, -1e+30
      %v1321 = vsel %vm583, %v1318, -inf
      %1322 = vmax.xlane.f32.xlu0 %v1321
      %v1323 = vpop.xlane.xlu0 %1322
      %v1324 = vsel %vm583, %v1319, -inf
      %1325 = vmax.xlane.f32.xlu0 %v1324
      %v1326 = vpop.xlane.xlu0 %1325
      %v1327 = vsel %vm583, %v1320, -inf
      %1328 = vmax.xlane.f32.xlu0 %v1327
      %v1329 = vpop.xlane.xlu0 %1328
      %v1330 = vsub.f32 %v1318, %v1323
      %v1331 = vsub.f32 %v1319, %v1326
      %v1332 = vsub.f32 %v1320, %v1329
      %v1333 = vmul.f32 %v1330, 1.442695
      %v1334 = vpow.pop %v1333
      %v1335 = vmul.f32 %v1331, 1.442695
      %v1336 = vpow.pop %v1335
      %v1337 = vmul.f32 %v1332, 1.442695
      %v1338 = vpow.pop %v1337
      %v1339 = vsel %vm583, %v1334, 0.0
      %1340 = vadd.xlane.f32.xlu0 %v1339
      %v1341 = vpop.xlane.xlu0 %1340
      %v1342 = vsel %vm583, %v1336, 0.0
      %1343 = vadd.xlane.f32.xlu0 %v1342
      %v1344 = vpop.xlane.xlu0 %1343
      %v1345 = vsel %vm583, %v1338, 0.0
      %1346 = vadd.xlane.f32.xlu0 %v1345
      %v1347 = vpop.xlane.xlu0 %1346
      %v1348 = vrcp.pop %v1341
      %v1349 = vrcp.pop %v1344
      %v1350 = vrcp.pop %v1347
      %v1351 = vmul.f32 %v1334, %v1348
      %v1352 = vmul.f32 %v1336, %v1349
      %v1353 = vmul.f32 %v1338, %v1350
      %1354 = vrot.lane.b32.xlu0 %v567, 56
      %v1355 = vpop.permute.xlu0 %1354
      %v1358 = vsel %vm583, %v1351, 0
      %1360 = vmatprep.subr.mxu0 0.0
      %1361 = vmatpush1.msra.mxu0 %v1355
      %1362 = vmatprep.subr.mxu0 0.0
      %1363 = vmatpush1.msra.mxu0 0.0
      %1364 = vmatprep.subr.mxu0 0.0
      %1365 = vmatpush1.msra.mxu0 0.0
      %1366 = vmatprep.subr.mxu0 0.0
      %1367 = vmatpush1.msra.mxu0 0.0
      %1368 = vmatprep.subr.mxu0 0.0
      %1369 = vmatpush1.msra.mxu0 0.0
      %1370 = vmatprep.subr.mxu0 0.0
      %1371 = vmatpush1.msra.mxu0 0.0
      %1372 = vmatprep.subr.mxu0 0.0
      %1373 = vmatpush1.msra.mxu0 0.0
      %1374 = vmatprep.subr.mxu0 0.0
      %1375 = vmatpush1.msra.mxu0 0.0
      %1376 = vmatprep.subr.mxu0 0.0
      %1377 = vmatpush1.msra.mxu0 0.0
      %1378 = vmatprep.subr.mxu0 0.0
      %1379 = vmatpush1.msra.mxu0 0.0
      %1380 = vmatprep.subr.mxu0 0.0
      %1381 = vmatpush1.msra.mxu0 0.0
      %1382 = vmatprep.subr.mxu0 0.0
      %1383 = vmatpush1.msra.mxu0 0.0
      %1384 = vmatprep.subr.mxu0 0.0
      %1385 = vmatpush1.msra.mxu0 0.0
      %1386 = vmatprep.subr.mxu0 0.0
      %1387 = vmatpush1.msra.mxu0 0.0
      %1388 = vmatprep.subr.mxu0 0.0
      %1389 = vmatpush1.msra.mxu0 0.0
      %1390 = vmatprep.subr.mxu0 0.0
      %1391 = vmatpush1.msra.mxu0 0.0
      %1392 = vmatprep.subr.mxu0 0.0
      %1393 = vmatpush1.msra.mxu0 0.0
      %1394 = vmatprep.subr.mxu0 0.0
      %1395 = vmatpush1.msra.mxu0 0.0
      %1396 = vmatprep.subr.mxu0 0.0
      %1397 = vmatpush1.msra.mxu0 0.0
      %1398 = vmatprep.subr.mxu0 0.0
      %1399 = vmatpush1.msra.mxu0 0.0
      %1400 = vmatprep.subr.mxu0 0.0
      %1401 = vmatpush1.msra.mxu0 0.0
      %1402 = vmatprep.subr.mxu0 0.0
      %1403 = vmatpush1.msra.mxu0 0.0
      %1404 = vmatprep.subr.mxu0 0.0
      %1405 = vmatpush1.msra.mxu0 0.0
      %1406 = vmatprep.subr.mxu0 0.0
      %1407 = vmatpush1.msra.mxu0 0.0
      %1408 = vmatprep.subr.mxu0 0.0
      %1409 = vmatpush1.msra.mxu0 0.0
      %1410 = vmatprep.subr.mxu0 0.0
      %1411 = vmatpush1.msra.mxu0 0.0
      %1412 = vmatprep.subr.mxu0 0.0
      %1413 = vmatpush1.msra.mxu0 0.0
      %1414 = vmatprep.subr.mxu0 0.0
      %1415 = vmatpush1.msra.mxu0 0.0
      %1416 = vmatprep.subr.mxu0 0.0
      %1417 = vmatpush1.msra.mxu0 0.0
      %1418 = vmatprep.subr.mxu0 0.0
      %1419 = vmatpush1.msra.mxu0 0.0
      %1420 = vmatprep.subr.mxu0 0.0
      %1421 = vmatpush1.msra.mxu0 0.0
      %1422 = vmatprep.subr.mxu0 0.0
      %1423 = vmatpush1.msra.mxu0 0.0
      %1424 = vmatprep.mubr.f32.mxu0 0.0
      %1425 = vmatmul.mubr.f32.gmra.mrb[0].mxu0 %v1358
      %v1426 = vpop.f32.mrb[0].mxu0
      %v1427 = vadd.f32 0.0, %v1426
      %v1428 = vpop.f32.mrb[0].mxu0
      %1429 = vdwg.mxu0
      %1430 = vrot.lane.b32.xlu0 %v572, 56
      %v1431 = vpop.permute.xlu0 %1430
      %v1434 = vsel %vm583, %v1352, 0
      %1436 = vmatprep.subr.mxu0 0.0
      %1437 = vmatpush1.msra.mxu0 %v1431
      %1438 = vmatprep.subr.mxu0 0.0
      %1439 = vmatpush1.msra.mxu0 0.0
      %1440 = vmatprep.subr.mxu0 0.0
      %1441 = vmatpush1.msra.mxu0 0.0
      %1442 = vmatprep.subr.mxu0 0.0
      %1443 = vmatpush1.msra.mxu0 0.0
      %1444 = vmatprep.subr.mxu0 0.0
      %1445 = vmatpush1.msra.mxu0 0.0
      %1446 = vmatprep.subr.mxu0 0.0
      %1447 = vmatpush1.msra.mxu0 0.0
      %1448 = vmatprep.subr.mxu0 0.0
      %1449 = vmatpush1.msra.mxu0 0.0
      %1450 = vmatprep.subr.mxu0 0.0
      %1451 = vmatpush1.msra.mxu0 0.0
      %1452 = vmatprep.subr.mxu0 0.0
      %1453 = vmatpush1.msra.mxu0 0.0
      %1454 = vmatprep.subr.mxu0 0.0
      %1455 = vmatpush1.msra.mxu0 0.0
      %1456 = vmatprep.subr.mxu0 0.0
      %1457 = vmatpush1.msra.mxu0 0.0
      %1458 = vmatprep.subr.mxu0 0.0
      %1459 = vmatpush1.msra.mxu0 0.0
      %1460 = vmatprep.subr.mxu0 0.0
      %1461 = vmatpush1.msra.mxu0 0.0
      %1462 = vmatprep.subr.mxu0 0.0
      %1463 = vmatpush1.msra.mxu0 0.0
      %1464 = vmatprep.subr.mxu0 0.0
      %1465 = vmatpush1.msra.mxu0 0.0
      %1466 = vmatprep.subr.mxu0 0.0
      %1467 = vmatpush1.msra.mxu0 0.0
      %1468 = vmatprep.subr.mxu0 0.0
      %1469 = vmatpush1.msra.mxu0 0.0
      %1470 = vmatprep.subr.mxu0 0.0
      %1471 = vmatpush1.msra.mxu0 0.0
      %1472 = vmatprep.subr.mxu0 0.0
      %1473 = vmatpush1.msra.mxu0 0.0
      %1474 = vmatprep.subr.mxu0 0.0
      %1475 = vmatpush1.msra.mxu0 0.0
      %1476 = vmatprep.subr.mxu0 0.0
      %1477 = vmatpush1.msra.mxu0 0.0
      %1478 = vmatprep.subr.mxu0 0.0
      %1479 = vmatpush1.msra.mxu0 0.0
      %1480 = vmatprep.subr.mxu0 0.0
      %1481 = vmatpush1.msra.mxu0 0.0
      %1482 = vmatprep.subr.mxu0 0.0
      %1483 = vmatpush1.msra.mxu0 0.0
      %1484 = vmatprep.subr.mxu0 0.0
      %1485 = vmatpush1.msra.mxu0 0.0
      %1486 = vmatprep.subr.mxu0 0.0
      %1487 = vmatpush1.msra.mxu0 0.0
      %1488 = vmatprep.subr.mxu0 0.0
      %1489 = vmatpush1.msra.mxu0 0.0
      %1490 = vmatprep.subr.mxu0 0.0
      %1491 = vmatpush1.msra.mxu0 0.0
      %1492 = vmatprep.subr.mxu0 0.0
      %1493 = vmatpush1.msra.mxu0 0.0
      %1494 = vmatprep.subr.mxu0 0.0
      %1495 = vmatpush1.msra.mxu0 0.0
      %1496 = vmatprep.subr.mxu0 0.0
      %1497 = vmatpush1.msra.mxu0 0.0
      %1498 = vmatprep.subr.mxu0 0.0
      %1499 = vmatpush1.msra.mxu0 0.0
      %1500 = vmatprep.mubr.f32.mxu0 0.0
      %1501 = vmatmul.mubr.f32.gmra.mrb[0].mxu0 %v1434
      %v1502 = vpop.f32.mrb[0].mxu0
      %v1503 = vadd.f32 0.0, %v1502
      %v1504 = vpop.f32.mrb[0].mxu0
      %1505 = vdwg.mxu0
      %1506 = vrot.lane.b32.xlu0 %v577, 56
      %v1507 = vpop.permute.xlu0 %1506
      %v1510 = vsel %vm583, %v1353, 0
      %1512 = vmatprep.subr.mxu0 0.0
      %1513 = vmatpush1.msra.mxu0 %v1507
      %1514 = vmatprep.subr.mxu0 0.0
      %1515 = vmatpush1.msra.mxu0 0.0
      %1516 = vmatprep.subr.mxu0 0.0
      %1517 = vmatpush1.msra.mxu0 0.0
      %1518 = vmatprep.subr.mxu0 0.0
      %1519 = vmatpush1.msra.mxu0 0.0
      %1520 = vmatprep.subr.mxu0 0.0
      %1521 = vmatpush1.msra.mxu0 0.0
      %1522 = vmatprep.subr.mxu0 0.0
      %1523 = vmatpush1.msra.mxu0 0.0
      %1524 = vmatprep.subr.mxu0 0.0
      %1525 = vmatpush1.msra.mxu0 0.0
      %1526 = vmatprep.subr.mxu0 0.0
      %1527 = vmatpush1.msra.mxu0 0.0
      %1528 = vmatprep.subr.mxu0 0.0
      %1529 = vmatpush1.msra.mxu0 0.0
      %1530 = vmatprep.subr.mxu0 0.0
      %1531 = vmatpush1.msra.mxu0 0.0
      %1532 = vmatprep.subr.mxu0 0.0
      %1533 = vmatpush1.msra.mxu0 0.0
      %1534 = vmatprep.subr.mxu0 0.0
      %1535 = vmatpush1.msra.mxu0 0.0
      %1536 = vmatprep.subr.mxu0 0.0
      %1537 = vmatpush1.msra.mxu0 0.0
      %1538 = vmatprep.subr.mxu0 0.0
      %1539 = vmatpush1.msra.mxu0 0.0
      %1540 = vmatprep.subr.mxu0 0.0
      %1541 = vmatpush1.msra.mxu0 0.0
      %1542 = vmatprep.subr.mxu0 0.0
      %1543 = vmatpush1.msra.mxu0 0.0
      %1544 = vmatprep.subr.mxu0 0.0
      %1545 = vmatpush1.msra.mxu0 0.0
      %1546 = vmatprep.subr.mxu0 0.0
      %1547 = vmatpush1.msra.mxu0 0.0
      %1548 = vmatprep.subr.mxu0 0.0
      %1549 = vmatpush1.msra.mxu0 0.0
      %1550 = vmatprep.subr.mxu0 0.0
      %1551 = vmatpush1.msra.mxu0 0.0
      %1552 = vmatprep.subr.mxu0 0.0
      %1553 = vmatpush1.msra.mxu0 0.0
      %1554 = vmatprep.subr.mxu0 0.0
      %1555 = vmatpush1.msra.mxu0 0.0
      %1556 = vmatprep.subr.mxu0 0.0
      %1557 = vmatpush1.msra.mxu0 0.0
      %1558 = vmatprep.subr.mxu0 0.0
      %1559 = vmatpush1.msra.mxu0 0.0
      %1560 = vmatprep.subr.mxu0 0.0
      %1561 = vmatpush1.msra.mxu0 0.0
      %1562 = vmatprep.subr.mxu0 0.0
      %1563 = vmatpush1.msra.mxu0 0.0
      %1564 = vmatprep.subr.mxu0 0.0
      %1565 = vmatpush1.msra.mxu0 0.0
      %1566 = vmatprep.subr.mxu0 0.0
      %1567 = vmatpush1.msra.mxu0 0.0
      %1568 = vmatprep.subr.mxu0 0.0
      %1569 = vmatpush1.msra.mxu0 0.0
      %1570 = vmatprep.subr.mxu0 0.0
      %1571 = vmatpush1.msra.mxu0 0.0
      %1572 = vmatprep.subr.mxu0 0.0
      %1573 = vmatpush1.msra.mxu0 0.0
      %1574 = vmatprep.subr.mxu0 0.0
      %1575 = vmatpush1.msra.mxu0 0.0
      %1576 = vmatprep.mubr.f32.mxu0 0.0
      %1577 = vmatmul.mubr.f32.gmra.mrb[0].mxu0 %v1510
      %v1578 = vpop.f32.mrb[0].mxu0
      %v1579 = vadd.f32 0.0, %v1578
      %v1580 = vpop.f32.mrb[0].mxu0
      %1581 = vdwg.mxu0
      %v1583 = vsel %vm583, %v1427, 0
      %v1586 = vsel %vm583, %v1503, 0
      %v1589 = vsel %vm583, %v1579, 0
      %1591 = vmatprep.subr.mxu0 0.0
      %1592 = vmatpush1.msra.mxu0 %v470
      %1593 = vmatprep.subr.mxu0 0.0
      %1594 = vmatpush1.msra.mxu0 0.0
      %1595 = vmatprep.subr.mxu0 0.0
      %1596 = vmatpush1.msra.mxu0 0.0
      %1597 = vmatprep.subr.mxu0 0.0
      %1598 = vmatpush1.msra.mxu0 0.0
      %1599 = vmatprep.subr.mxu0 0.0
      %1600 = vmatpush1.msra.mxu0 0.0
      %1601 = vmatprep.subr.mxu0 0.0
      %1602 = vmatpush1.msra.mxu0 0.0
      %1603 = vmatprep.subr.mxu0 0.0
      %1604 = vmatpush1.msra.mxu0 0.0
      %1605 = vmatprep.subr.mxu0 0.0
      %1606 = vmatpush1.msra.mxu0 0.0
      %1607 = vmatprep.subr.mxu0 0.0
      %1608 = vmatpush1.msra.mxu0 0.0
      %1609 = vmatprep.subr.mxu0 0.0
      %1610 = vmatpush1.msra.mxu0 0.0
      %1611 = vmatprep.subr.mxu0 0.0
      %1612 = vmatpush1.msra.mxu0 0.0
      %1613 = vmatprep.subr.mxu0 0.0
      %1614 = vmatpush1.msra.mxu0 0.0
      %1615 = vmatprep.subr.mxu0 0.0
      %1616 = vmatpush1.msra.mxu0 0.0
      %1617 = vmatprep.subr.mxu0 0.0
      %1618 = vmatpush1.msra.mxu0 0.0
      %1619 = vmatprep.subr.mxu0 0.0
      %1620 = vmatpush1.msra.mxu0 0.0
      %1621 = vmatprep.subr.mxu0 0.0
      %1622 = vmatpush1.msra.mxu0 0.0
      %1623 = vmatprep.subr.mxu0 0.0
      %1624 = vmatpush1.msra.mxu0 0.0
      %1625 = vmatprep.subr.mxu0 0.0
      %1626 = vmatpush1.msra.mxu0 0.0
      %1627 = vmatprep.subr.mxu0 0.0
      %1628 = vmatpush1.msra.mxu0 0.0
      %1629 = vmatprep.subr.mxu0 0.0
      %1630 = vmatpush1.msra.mxu0 0.0
      %1631 = vmatprep.subr.mxu0 0.0
      %1632 = vmatpush1.msra.mxu0 0.0
      %1633 = vmatprep.subr.mxu0 0.0
      %1634 = vmatpush1.msra.mxu0 0.0
      %1635 = vmatprep.subr.mxu0 0.0
      %1636 = vmatpush1.msra.mxu0 0.0
      %1637 = vmatprep.subr.mxu0 0.0
      %1638 = vmatpush1.msra.mxu0 0.0
      %1639 = vmatprep.subr.mxu0 0.0
      %1640 = vmatpush1.msra.mxu0 0.0
      %1641 = vmatprep.subr.mxu0 0.0
      %1642 = vmatpush1.msra.mxu0 0.0
      %1643 = vmatprep.subr.mxu0 0.0
      %1644 = vmatpush1.msra.mxu0 0.0
      %1645 = vmatprep.subr.mxu0 0.0
      %1646 = vmatpush1.msra.mxu0 0.0
      %1647 = vmatprep.subr.mxu0 0.0
      %1648 = vmatpush1.msra.mxu0 0.0
      %1649 = vmatprep.subr.mxu0 0.0
      %1650 = vmatpush1.msra.mxu0 0.0
      %1651 = vmatprep.subr.mxu0 0.0
      %1652 = vmatpush1.msra.mxu0 0.0
      %1653 = vmatprep.subr.mxu0 0.0
      %1654 = vmatpush1.msra.mxu0 0.0
      %1655 = vmatprep.mubr.f32.mxu0 0.0
      %1656 = vmatmul.mubr.f32.gmra.mrb[0].mxu0 %v1583
      %v1657 = vpop.f32.mrb[0].mxu0
      %v1658 = vadd.f32 0.0, %v1657
      %v1659 = vpop.f32.mrb[0].mxu0
      %1660 = vmatprep.mubr.f32.mxu0 0.0
      %1661 = vmatmul.mubr.f32.gmra.mrb[0].mxu0 %v1586
      %v1662 = vpop.f32.mrb[0].mxu0
      %v1663 = vadd.f32 0.0, %v1662
      %v1664 = vpop.f32.mrb[0].mxu0
      %1665 = vmatprep.mubr.f32.mxu0 0.0
      %1666 = vmatmul.mubr.f32.gmra.mrb[0].mxu0 %v1589
      %v1667 = vpop.f32.mrb[0].mxu0
      %v1668 = vadd.f32 0.0, %v1667
      %v1669 = vpop.f32.mrb[0].mxu0
      %1670 = vdwg.mxu0
      %v1672 = vsel %vm583, %v926, 0
      %v1675 = vsel %vm583, %v1002, 0
      %v1678 = vsel %vm583, %v1078, 0
      %1680 = vmatprep.subr.mxu0 0.0
      %1681 = vmatpush1.msra.mxu0 %v469
      %1682 = vmatprep.subr.mxu0 0.0
      %1683 = vmatpush1.msra.mxu0 0.0
      %1684 = vmatprep.subr.mxu0 0.0
      %1685 = vmatpush1.msra.mxu0 0.0
      %1686 = vmatprep.subr.mxu0 0.0
      %1687 = vmatpush1.msra.mxu0 0.0
      %1688 = vmatprep.subr.mxu0 0.0
      %1689 = vmatpush1.msra.mxu0 0.0
      %1690 = vmatprep.subr.mxu0 0.0
      %1691 = vmatpush1.msra.mxu0 0.0
      %1692 = vmatprep.subr.mxu0 0.0
      %1693 = vmatpush1.msra.mxu0 0.0
      %1694 = vmatprep.subr.mxu0 0.0
      %1695 = vmatpush1.msra.mxu0 0.0
      %1696 = vmatprep.subr.mxu0 0.0
      %1697 = vmatpush1.msra.mxu0 0.0
      %1698 = vmatprep.subr.mxu0 0.0
      %1699 = vmatpush1.msra.mxu0 0.0
      %1700 = vmatprep.subr.mxu0 0.0
      %1701 = vmatpush1.msra.mxu0 0.0
      %1702 = vmatprep.subr.mxu0 0.0
      %1703 = vmatpush1.msra.mxu0 0.0
      %1704 = vmatprep.subr.mxu0 0.0
      %1705 = vmatpush1.msra.mxu0 0.0
      %1706 = vmatprep.subr.mxu0 0.0
      %1707 = vmatpush1.msra.mxu0 0.0
      %1708 = vmatprep.subr.mxu0 0.0
      %1709 = vmatpush1.msra.mxu0 0.0
      %1710 = vmatprep.subr.mxu0 0.0
      %1711 = vmatpush1.msra.mxu0 0.0
      %1712 = vmatprep.subr.mxu0 0.0
      %1713 = vmatpush1.msra.mxu0 0.0
      %1714 = vmatprep.subr.mxu0 0.0
      %1715 = vmatpush1.msra.mxu0 0.0
      %1716 = vmatprep.subr.mxu0 0.0
      %1717 = vmatpush1.msra.mxu0 0.0
      %1718 = vmatprep.subr.mxu0 0.0
      %1719 = vmatpush1.msra.mxu0 0.0
      %1720 = vmatprep.subr.mxu0 0.0
      %1721 = vmatpush1.msra.mxu0 0.0
      %1722 = vmatprep.subr.mxu0 0.0
      %1723 = vmatpush1.msra.mxu0 0.0
      %1724 = vmatprep.subr.mxu0 0.0
      %1725 = vmatpush1.msra.mxu0 0.0
      %1726 = vmatprep.subr.mxu0 0.0
      %1727 = vmatpush1.msra.mxu0 0.0
      %1728 = vmatprep.subr.mxu0 0.0
      %1729 = vmatpush1.msra.mxu0 0.0
      %1730 = vmatprep.subr.mxu0 0.0
      %1731 = vmatpush1.msra.mxu0 0.0
      %1732 = vmatprep.subr.mxu0 0.0
      %1733 = vmatpush1.msra.mxu0 0.0
      %1734 = vmatprep.subr.mxu0 0.0
      %1735 = vmatpush1.msra.mxu0 0.0
      %1736 = vmatprep.subr.mxu0 0.0
      %1737 = vmatpush1.msra.mxu0 0.0
      %1738 = vmatprep.subr.mxu0 0.0
      %1739 = vmatpush1.msra.mxu0 0.0
      %1740 = vmatprep.subr.mxu0 0.0
      %1741 = vmatpush1.msra.mxu0 0.0
      %1742 = vmatprep.subr.mxu0 0.0
      %1743 = vmatpush1.msra.mxu0 0.0
      %1744 = vmatprep.mubr.f32.mxu0 0.0
      %1745 = vmatmul.mubr.f32.gmra.mrb[0].mxu0 %v1672
      %v1746 = vpop.f32.mrb[0].mxu0
      %v1747 = vadd.f32 %v1658, %v1746
      %v1748 = vpop.f32.mrb[0].mxu0
      %1749 = vmatprep.mubr.f32.mxu0 0.0
      %1750 = vmatmul.mubr.f32.gmra.mrb[0].mxu0 %v1675
      %v1751 = vpop.f32.mrb[0].mxu0
      %v1752 = vadd.f32 %v1663, %v1751
      %v1753 = vpop.f32.mrb[0].mxu0
      %1754 = vmatprep.mubr.f32.mxu0 0.0
      %1755 = vmatmul.mubr.f32.gmra.mrb[0].mxu0 %v1678
      %v1756 = vpop.f32.mrb[0].mxu0
      %v1757 = vadd.f32 %v1668, %v1756
      %v1758 = vpop.f32.mrb[0].mxu0
      %1759 = vdwg.mxu0
      %1760 = vrot.lane.b32.xlu0 %v567, 112
      %v1761 = vpop.permute.xlu0 %1760
      %1762 = vrot.lane.b32.xlu0 %v567, 80
      %v1763 = vpop.permute.xlu0 %1762
      %v1764 = vsel %vm583, %v1761, 0
      %v1766 = vsel %vm583, %v1763, 0
      %1768 = vmatprep.subr.mxu0 0.0
      %1769 = vmatpush1.xpose.msra.mxu0 %v1766
      %1770 = vmatprep.subr.mxu0 0.0
      %1771 = vmatpush1.xpose.msra.mxu0 0.0
      %1772 = vmatprep.subr.mxu0 0.0
      %1773 = vmatpush1.xpose.msra.mxu0 0.0
      %1774 = vmatprep.subr.mxu0 0.0
      %1775 = vmatpush1.xpose.msra.mxu0 0.0
      %1776 = vmatprep.subr.mxu0 0.0
      %1777 = vmatpush1.xpose.msra.mxu0 0.0
      %1778 = vmatprep.subr.mxu0 0.0
      %1779 = vmatpush1.xpose.msra.mxu0 0.0
      %1780 = vmatprep.subr.mxu0 0.0
      %1781 = vmatpush1.xpose.msra.mxu0 0.0
      %1782 = vmatprep.subr.mxu0 0.0
      %1783 = vmatpush1.xpose.msra.mxu0 0.0
      %1784 = vmatprep.subr.mxu0 0.0
      %1785 = vmatpush1.xpose.msra.mxu0 0.0
      %1786 = vmatprep.subr.mxu0 0.0
      %1787 = vmatpush1.xpose.msra.mxu0 0.0
      %1788 = vmatprep.subr.mxu0 0.0
      %1789 = vmatpush1.xpose.msra.mxu0 0.0
      %1790 = vmatprep.subr.mxu0 0.0
      %1791 = vmatpush1.xpose.msra.mxu0 0.0
      %1792 = vmatprep.subr.mxu0 0.0
      %1793 = vmatpush1.xpose.msra.mxu0 0.0
      %1794 = vmatprep.subr.mxu0 0.0
      %1795 = vmatpush1.xpose.msra.mxu0 0.0
      %1796 = vmatprep.subr.mxu0 0.0
      %1797 = vmatpush1.xpose.msra.mxu0 0.0
      %1798 = vmatprep.subr.mxu0 0.0
      %1799 = vmatpush1.xpose.msra.mxu0 0.0
      %1800 = vmatprep.subr.mxu0 0.0
      %1801 = vmatpush1.xpose.msra.mxu0 0.0
      %1802 = vmatprep.subr.mxu0 0.0
      %1803 = vmatpush1.xpose.msra.mxu0 0.0
      %1804 = vmatprep.subr.mxu0 0.0
      %1805 = vmatpush1.xpose.msra.mxu0 0.0
      %1806 = vmatprep.subr.mxu0 0.0
      %1807 = vmatpush1.xpose.msra.mxu0 0.0
      %1808 = vmatprep.subr.mxu0 0.0
      %1809 = vmatpush1.xpose.msra.mxu0 0.0
      %1810 = vmatprep.subr.mxu0 0.0
      %1811 = vmatpush1.xpose.msra.mxu0 0.0
      %1812 = vmatprep.subr.mxu0 0.0
      %1813 = vmatpush1.xpose.msra.mxu0 0.0
      %1814 = vmatprep.subr.mxu0 0.0
      %1815 = vmatpush1.xpose.msra.mxu0 0.0
      %1816 = vmatprep.subr.mxu0 0.0
      %1817 = vmatpush1.xpose.msra.mxu0 0.0
      %1818 = vmatprep.subr.mxu0 0.0
      %1819 = vmatpush1.xpose.msra.mxu0 0.0
      %1820 = vmatprep.subr.mxu0 0.0
      %1821 = vmatpush1.xpose.msra.mxu0 0.0
      %1822 = vmatprep.subr.mxu0 0.0
      %1823 = vmatpush1.xpose.msra.mxu0 0.0
      %1824 = vmatprep.subr.mxu0 0.0
      %1825 = vmatpush1.xpose.msra.mxu0 0.0
      %1826 = vmatprep.subr.mxu0 0.0
      %1827 = vmatpush1.xpose.msra.mxu0 0.0
      %1828 = vmatprep.subr.mxu0 0.0
      %1829 = vmatpush1.xpose.msra.mxu0 0.0
      %1830 = vmatprep.subr.mxu0 0.0
      %1831 = vmatpush1.xpose.msra.mxu0 0.0
      %1832 = vmatprep.mubr.f32.mxu0 0.0
      %1833 = vmatmul.mubr.f32.gmra.mrb[0].mxu0 %v1764
      %v1834 = vpop.f32.mrb[0].mxu0
      %v1835 = vadd.f32 0.0, %v1834
      %v1836 = vpop.f32.mrb[0].mxu0
      %1837 = vdwg.mxu0
      %1838 = vrot.lane.b32.xlu0 %v572, 112
      %v1839 = vpop.permute.xlu0 %1838
      %1840 = vrot.lane.b32.xlu0 %v572, 80
      %v1841 = vpop.permute.xlu0 %1840
      %v1842 = vsel %vm583, %v1839, 0
      %v1844 = vsel %vm583, %v1841, 0
      %1846 = vmatprep.subr.mxu0 0.0
      %1847 = vmatpush1.xpose.msra.mxu0 %v1844
      %1848 = vmatprep.subr.mxu0 0.0
      %1849 = vmatpush1.xpose.msra.mxu0 0.0
      %1850 = vmatprep.subr.mxu0 0.0
      %1851 = vmatpush1.xpose.msra.mxu0 0.0
      %1852 = vmatprep.subr.mxu0 0.0
      %1853 = vmatpush1.xpose.msra.mxu0 0.0
      %1854 = vmatprep.subr.mxu0 0.0
      %1855 = vmatpush1.xpose.msra.mxu0 0.0
      %1856 = vmatprep.subr.mxu0 0.0
      %1857 = vmatpush1.xpose.msra.mxu0 0.0
      %1858 = vmatprep.subr.mxu0 0.0
      %1859 = vmatpush1.xpose.msra.mxu0 0.0
      %1860 = vmatprep.subr.mxu0 0.0
      %1861 = vmatpush1.xpose.msra.mxu0 0.0
      %1862 = vmatprep.subr.mxu0 0.0
      %1863 = vmatpush1.xpose.msra.mxu0 0.0
      %1864 = vmatprep.subr.mxu0 0.0
      %1865 = vmatpush1.xpose.msra.mxu0 0.0
      %1866 = vmatprep.subr.mxu0 0.0
      %1867 = vmatpush1.xpose.msra.mxu0 0.0
      %1868 = vmatprep.subr.mxu0 0.0
      %1869 = vmatpush1.xpose.msra.mxu0 0.0
      %1870 = vmatprep.subr.mxu0 0.0
      %1871 = vmatpush1.xpose.msra.mxu0 0.0
      %1872 = vmatprep.subr.mxu0 0.0
      %1873 = vmatpush1.xpose.msra.mxu0 0.0
      %1874 = vmatprep.subr.mxu0 0.0
      %1875 = vmatpush1.xpose.msra.mxu0 0.0
      %1876 = vmatprep.subr.mxu0 0.0
      %1877 = vmatpush1.xpose.msra.mxu0 0.0
      %1878 = vmatprep.subr.mxu0 0.0
      %1879 = vmatpush1.xpose.msra.mxu0 0.0
      %1880 = vmatprep.subr.mxu0 0.0
      %1881 = vmatpush1.xpose.msra.mxu0 0.0
      %1882 = vmatprep.subr.mxu0 0.0
      %1883 = vmatpush1.xpose.msra.mxu0 0.0
      %1884 = vmatprep.subr.mxu0 0.0
      %1885 = vmatpush1.xpose.msra.mxu0 0.0
      %1886 = vmatprep.subr.mxu0 0.0
      %1887 = vmatpush1.xpose.msra.mxu0 0.0
      %1888 = vmatprep.subr.mxu0 0.0
      %1889 = vmatpush1.xpose.msra.mxu0 0.0
      %1890 = vmatprep.subr.mxu0 0.0
      %1891 = vmatpush1.xpose.msra.mxu0 0.0
      %1892 = vmatprep.subr.mxu0 0.0
      %1893 = vmatpush1.xpose.msra.mxu0 0.0
      %1894 = vmatprep.subr.mxu0 0.0
      %1895 = vmatpush1.xpose.msra.mxu0 0.0
      %1896 = vmatprep.subr.mxu0 0.0
      %1897 = vmatpush1.xpose.msra.mxu0 0.0
      %1898 = vmatprep.subr.mxu0 0.0
      %1899 = vmatpush1.xpose.msra.mxu0 0.0
      %1900 = vmatprep.subr.mxu0 0.0
      %1901 = vmatpush1.xpose.msra.mxu0 0.0
      %1902 = vmatprep.subr.mxu0 0.0
      %1903 = vmatpush1.xpose.msra.mxu0 0.0
      %1904 = vmatprep.subr.mxu0 0.0
      %1905 = vmatpush1.xpose.msra.mxu0 0.0
      %1906 = vmatprep.subr.mxu0 0.0
      %1907 = vmatpush1.xpose.msra.mxu0 0.0
      %1908 = vmatprep.subr.mxu0 0.0
      %1909 = vmatpush1.xpose.msra.mxu0 0.0
      %1910 = vmatprep.mubr.f32.mxu0 0.0
      %1911 = vmatmul.mubr.f32.gmra.mrb[0].mxu0 %v1842
      %v1912 = vpop.f32.mrb[0].mxu0
      %v1913 = vadd.f32 0.0, %v1912
      %v1914 = vpop.f32.mrb[0].mxu0
      %1915 = vdwg.mxu0
      %1916 = vrot.lane.b32.xlu0 %v577, 112
      %v1917 = vpop.permute.xlu0 %1916
      %1918 = vrot.lane.b32.xlu0 %v577, 80
      %v1919 = vpop.permute.xlu0 %1918
      %v1920 = vsel %vm583, %v1917, 0
      %v1922 = vsel %vm583, %v1919, 0
      %1924 = vmatprep.subr.mxu0 0.0
      %1925 = vmatpush1.xpose.msra.mxu0 %v1922
      %1926 = vmatprep.subr.mxu0 0.0
      %1927 = vmatpush1.xpose.msra.mxu0 0.0
      %1928 = vmatprep.subr.mxu0 0.0
      %1929 = vmatpush1.xpose.msra.mxu0 0.0
      %1930 = vmatprep.subr.mxu0 0.0
      %1931 = vmatpush1.xpose.msra.mxu0 0.0
      %1932 = vmatprep.subr.mxu0 0.0
      %1933 = vmatpush1.xpose.msra.mxu0 0.0
      %1934 = vmatprep.subr.mxu0 0.0
      %1935 = vmatpush1.xpose.msra.mxu0 0.0
      %1936 = vmatprep.subr.mxu0 0.0
      %1937 = vmatpush1.xpose.msra.mxu0 0.0
      %1938 = vmatprep.subr.mxu0 0.0
      %1939 = vmatpush1.xpose.msra.mxu0 0.0
      %1940 = vmatprep.subr.mxu0 0.0
      %1941 = vmatpush1.xpose.msra.mxu0 0.0
      %1942 = vmatprep.subr.mxu0 0.0
      %1943 = vmatpush1.xpose.msra.mxu0 0.0
      %1944 = vmatprep.subr.mxu0 0.0
      %1945 = vmatpush1.xpose.msra.mxu0 0.0
      %1946 = vmatprep.subr.mxu0 0.0
      %1947 = vmatpush1.xpose.msra.mxu0 0.0
      %1948 = vmatprep.subr.mxu0 0.0
      %1949 = vmatpush1.xpose.msra.mxu0 0.0
      %1950 = vmatprep.subr.mxu0 0.0
      %1951 = vmatpush1.xpose.msra.mxu0 0.0
      %1952 = vmatprep.subr.mxu0 0.0
      %1953 = vmatpush1.xpose.msra.mxu0 0.0
      %1954 = vmatprep.subr.mxu0 0.0
      %1955 = vmatpush1.xpose.msra.mxu0 0.0
      %1956 = vmatprep.subr.mxu0 0.0
      %1957 = vmatpush1.xpose.msra.mxu0 0.0
      %1958 = vmatprep.subr.mxu0 0.0
      %1959 = vmatpush1.xpose.msra.mxu0 0.0
      %1960 = vmatprep.subr.mxu0 0.0
      %1961 = vmatpush1.xpose.msra.mxu0 0.0
      %1962 = vmatprep.subr.mxu0 0.0
      %1963 = vmatpush1.xpose.msra.mxu0 0.0
      %1964 = vmatprep.subr.mxu0 0.0
      %1965 = vmatpush1.xpose.msra.mxu0 0.0
      %1966 = vmatprep.subr.mxu0 0.0
      %1967 = vmatpush1.xpose.msra.mxu0 0.0
      %1968 = vmatprep.subr.mxu0 0.0
      %1969 = vmatpush1.xpose.msra.mxu0 0.0
      %1970 = vmatprep.subr.mxu0 0.0
      %1971 = vmatpush1.xpose.msra.mxu0 0.0
      %1972 = vmatprep.subr.mxu0 0.0
      %1973 = vmatpush1.xpose.msra.mxu0 0.0
      %1974 = vmatprep.subr.mxu0 0.0
      %1975 = vmatpush1.xpose.msra.mxu0 0.0
      %1976 = vmatprep.subr.mxu0 0.0
      %1977 = vmatpush1.xpose.msra.mxu0 0.0
      %1978 = vmatprep.subr.mxu0 0.0
      %1979 = vmatpush1.xpose.msra.mxu0 0.0
      %1980 = vmatprep.subr.mxu0 0.0
      %1981 = vmatpush1.xpose.msra.mxu0 0.0
      %1982 = vmatprep.subr.mxu0 0.0
      %1983 = vmatpush1.xpose.msra.mxu0 0.0
      %1984 = vmatprep.subr.mxu0 0.0
      %1985 = vmatpush1.xpose.msra.mxu0 0.0
      %1986 = vmatprep.subr.mxu0 0.0
      %1987 = vmatpush1.xpose.msra.mxu0 0.0
      %1988 = vmatprep.mubr.f32.mxu0 0.0
      %1989 = vmatmul.mubr.f32.gmra.mrb[0].mxu0 %v1920
      %v1990 = vpop.f32.mrb[0].mxu0
      %v1991 = vadd.f32 0.0, %v1990
      %v1992 = vpop.f32.mrb[0].mxu0
      %1993 = vdwg.mxu0
      %v1994 = vmul.f32 %v1835, 0.35355338
      %v1995 = vmul.f32 %v1913, 0.35355338
      %v1996 = vmul.f32 %v1991, 0.35355338
      %v1997 = vsel %vm816, %v1994, -1e+30
      %v1998 = vsel %vm816, %v1995, -1e+30
      %v1999 = vsel %vm816, %v1996, -1e+30
      %v2000 = vsel %vm583, %v1997, -inf
      %2001 = vmax.xlane.f32.xlu0 %v2000
      %v2002 = vpop.xlane.xlu0 %2001
      %v2003 = vsel %vm583, %v1998, -inf
      %2004 = vmax.xlane.f32.xlu0 %v2003
      %v2005 = vpop.xlane.xlu0 %2004
      %v2006 = vsel %vm583, %v1999, -inf
      %2007 = vmax.xlane.f32.xlu0 %v2006
      %v2008 = vpop.xlane.xlu0 %2007
      %v2009 = vsub.f32 %v1997, %v2002
      %v2010 = vsub.f32 %v1998, %v2005
      %v2011 = vsub.f32 %v1999, %v2008
      %v2012 = vmul.f32 %v2009, 1.442695
      %v2013 = vpow.pop %v2012
      %v2014 = vmul.f32 %v2010, 1.442695
      %v2015 = vpow.pop %v2014
      %v2016 = vmul.f32 %v2011, 1.442695
      %v2017 = vpow.pop %v2016
      %v2018 = vsel %vm583, %v2013, 0.0
      %2019 = vadd.xlane.f32.xlu0 %v2018
      %v2020 = vpop.xlane.xlu0 %2019
      %v2021 = vsel %vm583, %v2015, 0.0
      %2022 = vadd.xlane.f32.xlu0 %v2021
      %v2023 = vpop.xlane.xlu0 %2022
      %v2024 = vsel %vm583, %v2017, 0.0
      %2025 = vadd.xlane.f32.xlu0 %v2024
      %v2026 = vpop.xlane.xlu0 %2025
      %v2027 = vrcp.pop %v2020
      %v2028 = vrcp.pop %v2023
      %v2029 = vrcp.pop %v2026
      %v2030 = vmul.f32 %v2013, %v2027
      %v2031 = vmul.f32 %v2015, %v2028
      %v2032 = vmul.f32 %v2017, %v2029
      %2033 = vrot.lane.b32.xlu0 %v567, 48
      %v2034 = vpop.permute.xlu0 %2033
      %v2037 = vsel %vm583, %v2030, 0
      %2039 = vmatprep.subr.mxu0 0.0
      %2040 = vmatpush1.msra.mxu0 %v2034
      %2041 = vmatprep.subr.mxu0 0.0
      %2042 = vmatpush1.msra.mxu0 0.0
      %2043 = vmatprep.subr.mxu0 0.0
      %2044 = vmatpush1.msra.mxu0 0.0
      %2045 = vmatprep.subr.mxu0 0.0
      %2046 = vmatpush1.msra.mxu0 0.0
      %2047 = vmatprep.subr.mxu0 0.0
      %2048 = vmatpush1.msra.mxu0 0.0
      %2049 = vmatprep.subr.mxu0 0.0
      %2050 = vmatpush1.msra.mxu0 0.0
      %2051 = vmatprep.subr.mxu0 0.0
      %2052 = vmatpush1.msra.mxu0 0.0
      %2053 = vmatprep.subr.mxu0 0.0
      %2054 = vmatpush1.msra.mxu0 0.0
      %2055 = vmatprep.subr.mxu0 0.0
      %2056 = vmatpush1.msra.mxu0 0.0
      %2057 = vmatprep.subr.mxu0 0.0
      %2058 = vmatpush1.msra.mxu0 0.0
      %2059 = vmatprep.subr.mxu0 0.0
      %2060 = vmatpush1.msra.mxu0 0.0
      %2061 = vmatprep.subr.mxu0 0.0
      %2062 = vmatpush1.msra.mxu0 0.0
      %2063 = vmatprep.subr.mxu0 0.0
      %2064 = vmatpush1.msra.mxu0 0.0
      %2065 = vmatprep.subr.mxu0 0.0
      %2066 = vmatpush1.msra.mxu0 0.0
      %2067 = vmatprep.subr.mxu0 0.0
      %2068 = vmatpush1.msra.mxu0 0.0
      %2069 = vmatprep.subr.mxu0 0.0
      %2070 = vmatpush1.msra.mxu0 0.0
      %2071 = vmatprep.subr.mxu0 0.0
      %2072 = vmatpush1.msra.mxu0 0.0
      %2073 = vmatprep.subr.mxu0 0.0
      %2074 = vmatpush1.msra.mxu0 0.0
      %2075 = vmatprep.subr.mxu0 0.0
      %2076 = vmatpush1.msra.mxu0 0.0
      %2077 = vmatprep.subr.mxu0 0.0
      %2078 = vmatpush1.msra.mxu0 0.0
      %2079 = vmatprep.subr.mxu0 0.0
      %2080 = vmatpush1.msra.mxu0 0.0
      %2081 = vmatprep.subr.mxu0 0.0
      %2082 = vmatpush1.msra.mxu0 0.0
      %2083 = vmatprep.subr.mxu0 0.0
      %2084 = vmatpush1.msra.mxu0 0.0
      %2085 = vmatprep.subr.mxu0 0.0
      %2086 = vmatpush1.msra.mxu0 0.0
      %2087 = vmatprep.subr.mxu0 0.0
      %2088 = vmatpush1.msra.mxu0 0.0
      %2089 = vmatprep.subr.mxu0 0.0
      %2090 = vmatpush1.msra.mxu0 0.0
      %2091 = vmatprep.subr.mxu0 0.0
      %2092 = vmatpush1.msra.mxu0 0.0
      %2093 = vmatprep.subr.mxu0 0.0
      %2094 = vmatpush1.msra.mxu0 0.0
      %2095 = vmatprep.subr.mxu0 0.0
      %2096 = vmatpush1.msra.mxu0 0.0
      %2097 = vmatprep.subr.mxu0 0.0
      %2098 = vmatpush1.msra.mxu0 0.0
      %2099 = vmatprep.subr.mxu0 0.0
      %2100 = vmatpush1.msra.mxu0 0.0
      %2101 = vmatprep.subr.mxu0 0.0
      %2102 = vmatpush1.msra.mxu0 0.0
      %2103 = vmatprep.mubr.f32.mxu0 0.0
      %2104 = vmatmul.mubr.f32.gmra.mrb[0].mxu0 %v2037
      %v2105 = vpop.f32.mrb[0].mxu0
      %v2106 = vadd.f32 0.0, %v2105
      %v2107 = vpop.f32.mrb[0].mxu0
      %2108 = vdwg.mxu0
      %2109 = vrot.lane.b32.xlu0 %v572, 48
      %v2110 = vpop.permute.xlu0 %2109
      %v2113 = vsel %vm583, %v2031, 0
      %2115 = vmatprep.subr.mxu0 0.0
      %2116 = vmatpush1.msra.mxu0 %v2110
      %2117 = vmatprep.subr.mxu0 0.0
      %2118 = vmatpush1.msra.mxu0 0.0
      %2119 = vmatprep.subr.mxu0 0.0
      %2120 = vmatpush1.msra.mxu0 0.0
      %2121 = vmatprep.subr.mxu0 0.0
      %2122 = vmatpush1.msra.mxu0 0.0
      %2123 = vmatprep.subr.mxu0 0.0
      %2124 = vmatpush1.msra.mxu0 0.0
      %2125 = vmatprep.subr.mxu0 0.0
      %2126 = vmatpush1.msra.mxu0 0.0
      %2127 = vmatprep.subr.mxu0 0.0
      %2128 = vmatpush1.msra.mxu0 0.0
      %2129 = vmatprep.subr.mxu0 0.0
      %2130 = vmatpush1.msra.mxu0 0.0
      %2131 = vmatprep.subr.mxu0 0.0
      %2132 = vmatpush1.msra.mxu0 0.0
      %2133 = vmatprep.subr.mxu0 0.0
      %2134 = vmatpush1.msra.mxu0 0.0
      %2135 = vmatprep.subr.mxu0 0.0
      %2136 = vmatpush1.msra.mxu0 0.0
      %2137 = vmatprep.subr.mxu0 0.0
      %2138 = vmatpush1.msra.mxu0 0.0
      %2139 = vmatprep.subr.mxu0 0.0
      %2140 = vmatpush1.msra.mxu0 0.0
      %2141 = vmatprep.subr.mxu0 0.0
      %2142 = vmatpush1.msra.mxu0 0.0
      %2143 = vmatprep.subr.mxu0 0.0
      %2144 = vmatpush1.msra.mxu0 0.0
      %2145 = vmatprep.subr.mxu0 0.0
      %2146 = vmatpush1.msra.mxu0 0.0
      %2147 = vmatprep.subr.mxu0 0.0
      %2148 = vmatpush1.msra.mxu0 0.0
      %2149 = vmatprep.subr.mxu0 0.0
      %2150 = vmatpush1.msra.mxu0 0.0
      %2151 = vmatprep.subr.mxu0 0.0
      %2152 = vmatpush1.msra.mxu0 0.0
      %2153 = vmatprep.subr.mxu0 0.0
      %2154 = vmatpush1.msra.mxu0 0.0
      %2155 = vmatprep.subr.mxu0 0.0
      %2156 = vmatpush1.msra.mxu0 0.0
      %2157 = vmatprep.subr.mxu0 0.0
      %2158 = vmatpush1.msra.mxu0 0.0
      %2159 = vmatprep.subr.mxu0 0.0
      %2160 = vmatpush1.msra.mxu0 0.0
      %2161 = vmatprep.subr.mxu0 0.0
      %2162 = vmatpush1.msra.mxu0 0.0
      %2163 = vmatprep.subr.mxu0 0.0
      %2164 = vmatpush1.msra.mxu0 0.0
      %2165 = vmatprep.subr.mxu0 0.0
      %2166 = vmatpush1.msra.mxu0 0.0
      %2167 = vmatprep.subr.mxu0 0.0
      %2168 = vmatpush1.msra.mxu0 0.0
      %2169 = vmatprep.subr.mxu0 0.0
      %2170 = vmatpush1.msra.mxu0 0.0
      %2171 = vmatprep.subr.mxu0 0.0
      %2172 = vmatpush1.msra.mxu0 0.0
      %2173 = vmatprep.subr.mxu0 0.0
      %2174 = vmatpush1.msra.mxu0 0.0
      %2175 = vmatprep.subr.mxu0 0.0
      %2176 = vmatpush1.msra.mxu0 0.0
      %2177 = vmatprep.subr.mxu0 0.0
      %2178 = vmatpush1.msra.mxu0 0.0
      %2179 = vmatprep.mubr.f32.mxu0 0.0
      %2180 = vmatmul.mubr.f32.gmra.mrb[0].mxu0 %v2113
      %v2181 = vpop.f32.mrb[0].mxu0
      %v2182 = vadd.f32 0.0, %v2181
      %v2183 = vpop.f32.mrb[0].mxu0
      %2184 = vdwg.mxu0
      %2185 = vrot.lane.b32.xlu0 %v577, 48
      %v2186 = vpop.permute.xlu0 %2185
      %v2189 = vsel %vm583, %v2032, 0
      %2191 = vmatprep.subr.mxu0 0.0
      %2192 = vmatpush1.msra.mxu0 %v2186
      %2193 = vmatprep.subr.mxu0 0.0
      %2194 = vmatpush1.msra.mxu0 0.0
      %2195 = vmatprep.subr.mxu0 0.0
      %2196 = vmatpush1.msra.mxu0 0.0
      %2197 = vmatprep.subr.mxu0 0.0
      %2198 = vmatpush1.msra.mxu0 0.0
      %2199 = vmatprep.subr.mxu0 0.0
      %2200 = vmatpush1.msra.mxu0 0.0
      %2201 = vmatprep.subr.mxu0 0.0
      %2202 = vmatpush1.msra.mxu0 0.0
      %2203 = vmatprep.subr.mxu0 0.0
      %2204 = vmatpush1.msra.mxu0 0.0
      %2205 = vmatprep.subr.mxu0 0.0
      %2206 = vmatpush1.msra.mxu0 0.0
      %2207 = vmatprep.subr.mxu0 0.0
      %2208 = vmatpush1.msra.mxu0 0.0
      %2209 = vmatprep.subr.mxu0 0.0
      %2210 = vmatpush1.msra.mxu0 0.0
      %2211 = vmatprep.subr.mxu0 0.0
      %2212 = vmatpush1.msra.mxu0 0.0
      %2213 = vmatprep.subr.mxu0 0.0
      %2214 = vmatpush1.msra.mxu0 0.0
      %2215 = vmatprep.subr.mxu0 0.0
      %2216 = vmatpush1.msra.mxu0 0.0
      %2217 = vmatprep.subr.mxu0 0.0
      %2218 = vmatpush1.msra.mxu0 0.0
      %2219 = vmatprep.subr.mxu0 0.0
      %2220 = vmatpush1.msra.mxu0 0.0
      %2221 = vmatprep.subr.mxu0 0.0
      %2222 = vmatpush1.msra.mxu0 0.0
      %2223 = vmatprep.subr.mxu0 0.0
      %2224 = vmatpush1.msra.mxu0 0.0
      %2225 = vmatprep.subr.mxu0 0.0
      %2226 = vmatpush1.msra.mxu0 0.0
      %2227 = vmatprep.subr.mxu0 0.0
      %2228 = vmatpush1.msra.mxu0 0.0
      %2229 = vmatprep.subr.mxu0 0.0
      %2230 = vmatpush1.msra.mxu0 0.0
      %2231 = vmatprep.subr.mxu0 0.0
      %2232 = vmatpush1.msra.mxu0 0.0
      %2233 = vmatprep.subr.mxu0 0.0
      %2234 = vmatpush1.msra.mxu0 0.0
      %2235 = vmatprep.subr.mxu0 0.0
      %2236 = vmatpush1.msra.mxu0 0.0
      %2237 = vmatprep.subr.mxu0 0.0
      %2238 = vmatpush1.msra.mxu0 0.0
      %2239 = vmatprep.subr.mxu0 0.0
      %2240 = vmatpush1.msra.mxu0 0.0
      %2241 = vmatprep.subr.mxu0 0.0
      %2242 = vmatpush1.msra.mxu0 0.0
      %2243 = vmatprep.subr.mxu0 0.0
      %2244 = vmatpush1.msra.mxu0 0.0
      %2245 = vmatprep.subr.mxu0 0.0
      %2246 = vmatpush1.msra.mxu0 0.0
      %2247 = vmatprep.subr.mxu0 0.0
      %2248 = vmatpush1.msra.mxu0 0.0
      %2249 = vmatprep.subr.mxu0 0.0
      %2250 = vmatpush1.msra.mxu0 0.0
      %2251 = vmatprep.subr.mxu0 0.0
      %2252 = vmatpush1.msra.mxu0 0.0
      %2253 = vmatprep.subr.mxu0 0.0
      %2254 = vmatpush1.msra.mxu0 0.0
      %2255 = vmatprep.mubr.f32.mxu0 0.0
      %2256 = vmatmul.mubr.f32.gmra.mrb[0].mxu0 %v2189
      %v2257 = vpop.f32.mrb[0].mxu0
      %v2258 = vadd.f32 0.0, %v2257
      %v2259 = vpop.f32.mrb[0].mxu0
      %2260 = vdwg.mxu0
      %v2262 = vsel %vm583, %v2106, 0
      %v2265 = vsel %vm583, %v2182, 0
      %v2268 = vsel %vm583, %v2258, 0
      %2270 = vmatprep.subr.mxu0 0.0
      %2271 = vmatpush1.msra.mxu0 %v471
      %2272 = vmatprep.subr.mxu0 0.0
      %2273 = vmatpush1.msra.mxu0 0.0
      %2274 = vmatprep.subr.mxu0 0.0
      %2275 = vmatpush1.msra.mxu0 0.0
      %2276 = vmatprep.subr.mxu0 0.0
      %2277 = vmatpush1.msra.mxu0 0.0
      %2278 = vmatprep.subr.mxu0 0.0
      %2279 = vmatpush1.msra.mxu0 0.0
      %2280 = vmatprep.subr.mxu0 0.0
      %2281 = vmatpush1.msra.mxu0 0.0
      %2282 = vmatprep.subr.mxu0 0.0
      %2283 = vmatpush1.msra.mxu0 0.0
      %2284 = vmatprep.subr.mxu0 0.0
      %2285 = vmatpush1.msra.mxu0 0.0
      %2286 = vmatprep.subr.mxu0 0.0
      %2287 = vmatpush1.msra.mxu0 0.0
      %2288 = vmatprep.subr.mxu0 0.0
      %2289 = vmatpush1.msra.mxu0 0.0
      %2290 = vmatprep.subr.mxu0 0.0
      %2291 = vmatpush1.msra.mxu0 0.0
      %2292 = vmatprep.subr.mxu0 0.0
      %2293 = vmatpush1.msra.mxu0 0.0
      %2294 = vmatprep.subr.mxu0 0.0
      %2295 = vmatpush1.msra.mxu0 0.0
      %2296 = vmatprep.subr.mxu0 0.0
      %2297 = vmatpush1.msra.mxu0 0.0
      %2298 = vmatprep.subr.mxu0 0.0
      %2299 = vmatpush1.msra.mxu0 0.0
      %2300 = vmatprep.subr.mxu0 0.0
      %2301 = vmatpush1.msra.mxu0 0.0
      %2302 = vmatprep.subr.mxu0 0.0
      %2303 = vmatpush1.msra.mxu0 0.0
      %2304 = vmatprep.subr.mxu0 0.0
      %2305 = vmatpush1.msra.mxu0 0.0
      %2306 = vmatprep.subr.mxu0 0.0
      %2307 = vmatpush1.msra.mxu0 0.0
      %2308 = vmatprep.subr.mxu0 0.0
      %2309 = vmatpush1.msra.mxu0 0.0
      %2310 = vmatprep.subr.mxu0 0.0
      %2311 = vmatpush1.msra.mxu0 0.0
      %2312 = vmatprep.subr.mxu0 0.0
      %2313 = vmatpush1.msra.mxu0 0.0
      %2314 = vmatprep.subr.mxu0 0.0
      %2315 = vmatpush1.msra.mxu0 0.0
      %2316 = vmatprep.subr.mxu0 0.0
      %2317 = vmatpush1.msra.mxu0 0.0
      %2318 = vmatprep.subr.mxu0 0.0
      %2319 = vmatpush1.msra.mxu0 0.0
      %2320 = vmatprep.subr.mxu0 0.0
      %2321 = vmatpush1.msra.mxu0 0.0
      %2322 = vmatprep.subr.mxu0 0.0
      %2323 = vmatpush1.msra.mxu0 0.0
      %2324 = vmatprep.subr.mxu0 0.0
      %2325 = vmatpush1.msra.mxu0 0.0
      %2326 = vmatprep.subr.mxu0 0.0
      %2327 = vmatpush1.msra.mxu0 0.0
      %2328 = vmatprep.subr.mxu0 0.0
      %2329 = vmatpush1.msra.mxu0 0.0
      %2330 = vmatprep.subr.mxu0 0.0
      %2331 = vmatpush1.msra.mxu0 0.0
      %2332 = vmatprep.subr.mxu0 0.0
      %2333 = vmatpush1.msra.mxu0 0.0
      %2334 = vmatprep.mubr.f32.mxu0 0.0
      %2335 = vmatmul.mubr.f32.gmra.mrb[0].mxu0 %v2262
      %v2336 = vpop.f32.mrb[0].mxu0
      %v2337 = vadd.f32 0.0, %v2336
      %v2338 = vpop.f32.mrb[0].mxu0
      %2339 = vmatprep.mubr.f32.mxu0 0.0
      %2340 = vmatmul.mubr.f32.gmra.mrb[0].mxu0 %v2265
      %v2341 = vpop.f32.mrb[0].mxu0
      %v2342 = vadd.f32 0.0, %v2341
      %v2343 = vpop.f32.mrb[0].mxu0
      %2344 = vmatprep.mubr.f32.mxu0 0.0
      %2345 = vmatmul.mubr.f32.gmra.mrb[0].mxu0 %v2268
      %v2346 = vpop.f32.mrb[0].mxu0
      %v2347 = vadd.f32 0.0, %v2346
      %v2348 = vpop.f32.mrb[0].mxu0
      %2349 = vdwg.mxu0
      %v2350 = vadd.f32 %v1747, %v2337
      %v2351 = vadd.f32 %v1752, %v2342
      %v2352 = vadd.f32 %v1757, %v2347
      %2353 = vrot.lane.b32.xlu0 %v567, 104
      %v2354 = vpop.permute.xlu0 %2353
      %2355 = vrot.lane.b32.xlu0 %v567, 72
      %v2356 = vpop.permute.xlu0 %2355
      %v2357 = vsel %vm583, %v2354, 0
      %v2359 = vsel %vm583, %v2356, 0
      %2361 = vmatprep.subr.mxu0 0.0
      %2362 = vmatpush1.xpose.msra.mxu0 %v2359
      %2363 = vmatprep.subr.mxu0 0.0
      %2364 = vmatpush1.xpose.msra.mxu0 0.0
      %2365 = vmatprep.subr.mxu0 0.0
      %2366 = vmatpush1.xpose.msra.mxu0 0.0
      %2367 = vmatprep.subr.mxu0 0.0
      %2368 = vmatpush1.xpose.msra.mxu0 0.0
      %2369 = vmatprep.subr.mxu0 0.0
      %2370 = vmatpush1.xpose.msra.mxu0 0.0
      %2371 = vmatprep.subr.mxu0 0.0
      %2372 = vmatpush1.xpose.msra.mxu0 0.0
      %2373 = vmatprep.subr.mxu0 0.0
      %2374 = vmatpush1.xpose.msra.mxu0 0.0
      %2375 = vmatprep.subr.mxu0 0.0
      %2376 = vmatpush1.xpose.msra.mxu0 0.0
      %2377 = vmatprep.subr.mxu0 0.0
      %2378 = vmatpush1.xpose.msra.mxu0 0.0
      %2379 = vmatprep.subr.mxu0 0.0
      %2380 = vmatpush1.xpose.msra.mxu0 0.0
      %2381 = vmatprep.subr.mxu0 0.0
      %2382 = vmatpush1.xpose.msra.mxu0 0.0
      %2383 = vmatprep.subr.mxu0 0.0
      %2384 = vmatpush1.xpose.msra.mxu0 0.0
      %2385 = vmatprep.subr.mxu0 0.0
      %2386 = vmatpush1.xpose.msra.mxu0 0.0
      %2387 = vmatprep.subr.mxu0 0.0
      %2388 = vmatpush1.xpose.msra.mxu0 0.0
      %2389 = vmatprep.subr.mxu0 0.0
      %2390 = vmatpush1.xpose.msra.mxu0 0.0
      %2391 = vmatprep.subr.mxu0 0.0
      %2392 = vmatpush1.xpose.msra.mxu0 0.0
      %2393 = vmatprep.subr.mxu0 0.0
      %2394 = vmatpush1.xpose.msra.mxu0 0.0
      %2395 = vmatprep.subr.mxu0 0.0
      %2396 = vmatpush1.xpose.msra.mxu0 0.0
      %2397 = vmatprep.subr.mxu0 0.0
      %2398 = vmatpush1.xpose.msra.mxu0 0.0
      %2399 = vmatprep.subr.mxu0 0.0
      %2400 = vmatpush1.xpose.msra.mxu0 0.0
      %2401 = vmatprep.subr.mxu0 0.0
      %2402 = vmatpush1.xpose.msra.mxu0 0.0
      %2403 = vmatprep.subr.mxu0 0.0
      %2404 = vmatpush1.xpose.msra.mxu0 0.0
      %2405 = vmatprep.subr.mxu0 0.0
      %2406 = vmatpush1.xpose.msra.mxu0 0.0
      %2407 = vmatprep.subr.mxu0 0.0
      %2408 = vmatpush1.xpose.msra.mxu0 0.0
      %2409 = vmatprep.subr.mxu0 0.0
      %2410 = vmatpush1.xpose.msra.mxu0 0.0
      %2411 = vmatprep.subr.mxu0 0.0
      %2412 = vmatpush1.xpose.msra.mxu0 0.0
      %2413 = vmatprep.subr.mxu0 0.0
      %2414 = vmatpush1.xpose.msra.mxu0 0.0
      %2415 = vmatprep.subr.mxu0 0.0
      %2416 = vmatpush1.xpose.msra.mxu0 0.0
      %2417 = vmatprep.subr.mxu0 0.0
      %2418 = vmatpush1.xpose.msra.mxu0 0.0
      %2419 = vmatprep.subr.mxu0 0.0
      %2420 = vmatpush1.xpose.msra.mxu0 0.0
      %2421 = vmatprep.subr.mxu0 0.0
      %2422 = vmatpush1.xpose.msra.mxu0 0.0
      %2423 = vmatprep.subr.mxu0 0.0
      %2424 = vmatpush1.xpose.msra.mxu0 0.0
      %2425 = vmatprep.mubr.f32.mxu0 0.0
      %2426 = vmatmul.mubr.f32.gmra.mrb[0].mxu0 %v2357
      %v2427 = vpop.f32.mrb[0].mxu0
      %v2428 = vadd.f32 0.0, %v2427
      %v2429 = vpop.f32.mrb[0].mxu0
      %2430 = vdwg.mxu0
      %2431 = vrot.lane.b32.xlu0 %v572, 104
      %v2432 = vpop.permute.xlu0 %2431
      %2433 = vrot.lane.b32.xlu0 %v572, 72
      %v2434 = vpop.permute.xlu0 %2433
      %v2435 = vsel %vm583, %v2432, 0
      %v2437 = vsel %vm583, %v2434, 0
      %2439 = vmatprep.subr.mxu0 0.0
      %2440 = vmatpush1.xpose.msra.mxu0 %v2437
      %2441 = vmatprep.subr.mxu0 0.0
      %2442 = vmatpush1.xpose.msra.mxu0 0.0
      %2443 = vmatprep.subr.mxu0 0.0
      %2444 = vmatpush1.xpose.msra.mxu0 0.0
      %2445 = vmatprep.subr.mxu0 0.0
      %2446 = vmatpush1.xpose.msra.mxu0 0.0
      %2447 = vmatprep.subr.mxu0 0.0
      %2448 = vmatpush1.xpose.msra.mxu0 0.0
      %2449 = vmatprep.subr.mxu0 0.0
      %2450 = vmatpush1.xpose.msra.mxu0 0.0
      %2451 = vmatprep.subr.mxu0 0.0
      %2452 = vmatpush1.xpose.msra.mxu0 0.0
      %2453 = vmatprep.subr.mxu0 0.0
      %2454 = vmatpush1.xpose.msra.mxu0 0.0
      %2455 = vmatprep.subr.mxu0 0.0
      %2456 = vmatpush1.xpose.msra.mxu0 0.0
      %2457 = vmatprep.subr.mxu0 0.0
      %2458 = vmatpush1.xpose.msra.mxu0 0.0
      %2459 = vmatprep.subr.mxu0 0.0
      %2460 = vmatpush1.xpose.msra.mxu0 0.0
      %2461 = vmatprep.subr.mxu0 0.0
      %2462 = vmatpush1.xpose.msra.mxu0 0.0
      %2463 = vmatprep.subr.mxu0 0.0
      %2464 = vmatpush1.xpose.msra.mxu0 0.0
      %2465 = vmatprep.subr.mxu0 0.0
      %2466 = vmatpush1.xpose.msra.mxu0 0.0
      %2467 = vmatprep.subr.mxu0 0.0
      %2468 = vmatpush1.xpose.msra.mxu0 0.0
      %2469 = vmatprep.subr.mxu0 0.0
      %2470 = vmatpush1.xpose.msra.mxu0 0.0
      %2471 = vmatprep.subr.mxu0 0.0
      %2472 = vmatpush1.xpose.msra.mxu0 0.0
      %2473 = vmatprep.subr.mxu0 0.0
      %2474 = vmatpush1.xpose.msra.mxu0 0.0
      %2475 = vmatprep.subr.mxu0 0.0
      %2476 = vmatpush1.xpose.msra.mxu0 0.0
      %2477 = vmatprep.subr.mxu0 0.0
      %2478 = vmatpush1.xpose.msra.mxu0 0.0
      %2479 = vmatprep.subr.mxu0 0.0
      %2480 = vmatpush1.xpose.msra.mxu0 0.0
      %2481 = vmatprep.subr.mxu0 0.0
      %2482 = vmatpush1.xpose.msra.mxu0 0.0
      %2483 = vmatprep.subr.mxu0 0.0
      %2484 = vmatpush1.xpose.msra.mxu0 0.0
      %2485 = vmatprep.subr.mxu0 0.0
      %2486 = vmatpush1.xpose.msra.mxu0 0.0
      %2487 = vmatprep.subr.mxu0 0.0
      %2488 = vmatpush1.xpose.msra.mxu0 0.0
      %2489 = vmatprep.subr.mxu0 0.0
      %2490 = vmatpush1.xpose.msra.mxu0 0.0
      %2491 = vmatprep.subr.mxu0 0.0
      %2492 = vmatpush1.xpose.msra.mxu0 0.0
      %2493 = vmatprep.subr.mxu0 0.0
      %2494 = vmatpush1.xpose.msra.mxu0 0.0
      %2495 = vmatprep.subr.mxu0 0.0
      %2496 = vmatpush1.xpose.msra.mxu0 0.0
      %2497 = vmatprep.subr.mxu0 0.0
      %2498 = vmatpush1.xpose.msra.mxu0 0.0
      %2499 = vmatprep.subr.mxu0 0.0
      %2500 = vmatpush1.xpose.msra.mxu0 0.0
      %2501 = vmatprep.subr.mxu0 0.0
      %2502 = vmatpush1.xpose.msra.mxu0 0.0
      %2503 = vmatprep.mubr.f32.mxu0 0.0
      %2504 = vmatmul.mubr.f32.gmra.mrb[0].mxu0 %v2435
      %v2505 = vpop.f32.mrb[0].mxu0
      %v2506 = vadd.f32 0.0, %v2505
      %v2507 = vpop.f32.mrb[0].mxu0
      %2508 = vdwg.mxu0
      %2509 = vrot.lane.b32.xlu0 %v577, 104
      %v2510 = vpop.permute.xlu0 %2509
      %2511 = vrot.lane.b32.xlu0 %v577, 72
      %v2512 = vpop.permute.xlu0 %2511
      %v2513 = vsel %vm583, %v2510, 0
      %v2515 = vsel %vm583, %v2512, 0
      %2517 = vmatprep.subr.mxu0 0.0
      %2518 = vmatpush1.xpose.msra.mxu0 %v2515
      %2519 = vmatprep.subr.mxu0 0.0
      %2520 = vmatpush1.xpose.msra.mxu0 0.0
      %2521 = vmatprep.subr.mxu0 0.0
      %2522 = vmatpush1.xpose.msra.mxu0 0.0
      %2523 = vmatprep.subr.mxu0 0.0
      %2524 = vmatpush1.xpose.msra.mxu0 0.0
      %2525 = vmatprep.subr.mxu0 0.0
      %2526 = vmatpush1.xpose.msra.mxu0 0.0
      %2527 = vmatprep.subr.mxu0 0.0
      %2528 = vmatpush1.xpose.msra.mxu0 0.0
      %2529 = vmatprep.subr.mxu0 0.0
      %2530 = vmatpush1.xpose.msra.mxu0 0.0
      %2531 = vmatprep.subr.mxu0 0.0
      %2532 = vmatpush1.xpose.msra.mxu0 0.0
      %2533 = vmatprep.subr.mxu0 0.0
      %2534 = vmatpush1.xpose.msra.mxu0 0.0
      %2535 = vmatprep.subr.mxu0 0.0
      %2536 = vmatpush1.xpose.msra.mxu0 0.0
      %2537 = vmatprep.subr.mxu0 0.0
      %2538 = vmatpush1.xpose.msra.mxu0 0.0
      %2539 = vmatprep.subr.mxu0 0.0
      %2540 = vmatpush1.xpose.msra.mxu0 0.0
      %2541 = vmatprep.subr.mxu0 0.0
      %2542 = vmatpush1.xpose.msra.mxu0 0.0
      %2543 = vmatprep.subr.mxu0 0.0
      %2544 = vmatpush1.xpose.msra.mxu0 0.0
      %2545 = vmatprep.subr.mxu0 0.0
      %2546 = vmatpush1.xpose.msra.mxu0 0.0
      %2547 = vmatprep.subr.mxu0 0.0
      %2548 = vmatpush1.xpose.msra.mxu0 0.0
      %2549 = vmatprep.subr.mxu0 0.0
      %2550 = vmatpush1.xpose.msra.mxu0 0.0
      %2551 = vmatprep.subr.mxu0 0.0
      %2552 = vmatpush1.xpose.msra.mxu0 0.0
      %2553 = vmatprep.subr.mxu0 0.0
      %2554 = vmatpush1.xpose.msra.mxu0 0.0
      %2555 = vmatprep.subr.mxu0 0.0
      %2556 = vmatpush1.xpose.msra.mxu0 0.0
      %2557 = vmatprep.subr.mxu0 0.0
      %2558 = vmatpush1.xpose.msra.mxu0 0.0
      %2559 = vmatprep.subr.mxu0 0.0
      %2560 = vmatpush1.xpose.msra.mxu0 0.0
      %2561 = vmatprep.subr.mxu0 0.0
      %2562 = vmatpush1.xpose.msra.mxu0 0.0
      %2563 = vmatprep.subr.mxu0 0.0
      %2564 = vmatpush1.xpose.msra.mxu0 0.0
      %2565 = vmatprep.subr.mxu0 0.0
      %2566 = vmatpush1.xpose.msra.mxu0 0.0
      %2567 = vmatprep.subr.mxu0 0.0
      %2568 = vmatpush1.xpose.msra.mxu0 0.0
      %2569 = vmatprep.subr.mxu0 0.0
      %2570 = vmatpush1.xpose.msra.mxu0 0.0
      %2571 = vmatprep.subr.mxu0 0.0
      %2572 = vmatpush1.xpose.msra.mxu0 0.0
      %2573 = vmatprep.subr.mxu0 0.0
      %2574 = vmatpush1.xpose.msra.mxu0 0.0
      %2575 = vmatprep.subr.mxu0 0.0
      %2576 = vmatpush1.xpose.msra.mxu0 0.0
      %2577 = vmatprep.subr.mxu0 0.0
      %2578 = vmatpush1.xpose.msra.mxu0 0.0
      %2579 = vmatprep.subr.mxu0 0.0
      %2580 = vmatpush1.xpose.msra.mxu0 0.0
      %2581 = vmatprep.mubr.f32.mxu0 0.0
      %2582 = vmatmul.mubr.f32.gmra.mrb[0].mxu0 %v2513
      %v2583 = vpop.f32.mrb[0].mxu0
      %v2584 = vadd.f32 0.0, %v2583
      %v2585 = vpop.f32.mrb[0].mxu0
      %2586 = vdwg.mxu0
      %v2587 = vmul.f32 %v2428, 0.35355338
      %v2588 = vmul.f32 %v2506, 0.35355338
      %v2589 = vmul.f32 %v2584, 0.35355338
      %v2590 = vsel %vm816, %v2587, -1e+30
      %v2591 = vsel %vm816, %v2588, -1e+30
      %v2592 = vsel %vm816, %v2589, -1e+30
      %v2593 = vsel %vm583, %v2590, -inf
      %2594 = vmax.xlane.f32.xlu0 %v2593
      %v2595 = vpop.xlane.xlu0 %2594
      %v2596 = vsel %vm583, %v2591, -inf
      %2597 = vmax.xlane.f32.xlu0 %v2596
      %v2598 = vpop.xlane.xlu0 %2597
      %v2599 = vsel %vm583, %v2592, -inf
      %2600 = vmax.xlane.f32.xlu0 %v2599
      %v2601 = vpop.xlane.xlu0 %2600
      %v2602 = vsub.f32 %v2590, %v2595
      %v2603 = vsub.f32 %v2591, %v2598
      %v2604 = vsub.f32 %v2592, %v2601
      %v2605 = vmul.f32 %v2602, 1.442695
      %v2606 = vpow.pop %v2605
      %v2607 = vmul.f32 %v2603, 1.442695
      %v2608 = vpow.pop %v2607
      %v2609 = vmul.f32 %v2604, 1.442695
      %v2610 = vpow.pop %v2609
      %v2611 = vsel %vm583, %v2606, 0.0
      %2612 = vadd.xlane.f32.xlu0 %v2611
      %v2613 = vpop.xlane.xlu0 %2612
      %v2614 = vsel %vm583, %v2608, 0.0
      %2615 = vadd.xlane.f32.xlu0 %v2614
      %v2616 = vpop.xlane.xlu0 %2615
      %v2617 = vsel %vm583, %v2610, 0.0
      %2618 = vadd.xlane.f32.xlu0 %v2617
      %v2619 = vpop.xlane.xlu0 %2618
      %v2620 = vrcp.pop %v2613
      %v2621 = vrcp.pop %v2616
      %v2622 = vrcp.pop %v2619
      %v2623 = vmul.f32 %v2606, %v2620
      %v2624 = vmul.f32 %v2608, %v2621
      %v2625 = vmul.f32 %v2610, %v2622
      %2626 = vrot.lane.b32.xlu0 %v567, 40
      %v2627 = vpop.permute.xlu0 %2626
      %v2630 = vsel %vm583, %v2623, 0
      %2632 = vmatprep.subr.mxu0 0.0
      %2633 = vmatpush1.msra.mxu0 %v2627
      %2634 = vmatprep.subr.mxu0 0.0
      %2635 = vmatpush1.msra.mxu0 0.0
      %2636 = vmatprep.subr.mxu0 0.0
      %2637 = vmatpush1.msra.mxu0 0.0
      %2638 = vmatprep.subr.mxu0 0.0
      %2639 = vmatpush1.msra.mxu0 0.0
      %2640 = vmatprep.subr.mxu0 0.0
      %2641 = vmatpush1.msra.mxu0 0.0
      %2642 = vmatprep.subr.mxu0 0.0
      %2643 = vmatpush1.msra.mxu0 0.0
      %2644 = vmatprep.subr.mxu0 0.0
      %2645 = vmatpush1.msra.mxu0 0.0
      %2646 = vmatprep.subr.mxu0 0.0
      %2647 = vmatpush1.msra.mxu0 0.0
      %2648 = vmatprep.subr.mxu0 0.0
      %2649 = vmatpush1.msra.mxu0 0.0
      %2650 = vmatprep.subr.mxu0 0.0
      %2651 = vmatpush1.msra.mxu0 0.0
      %2652 = vmatprep.subr.mxu0 0.0
      %2653 = vmatpush1.msra.mxu0 0.0
      %2654 = vmatprep.subr.mxu0 0.0
      %2655 = vmatpush1.msra.mxu0 0.0
      %2656 = vmatprep.subr.mxu0 0.0
      %2657 = vmatpush1.msra.mxu0 0.0
      %2658 = vmatprep.subr.mxu0 0.0
      %2659 = vmatpush1.msra.mxu0 0.0
      %2660 = vmatprep.subr.mxu0 0.0
      %2661 = vmatpush1.msra.mxu0 0.0
      %2662 = vmatprep.subr.mxu0 0.0
      %2663 = vmatpush1.msra.mxu0 0.0
      %2664 = vmatprep.subr.mxu0 0.0
      %2665 = vmatpush1.msra.mxu0 0.0
      %2666 = vmatprep.subr.mxu0 0.0
      %2667 = vmatpush1.msra.mxu0 0.0
      %2668 = vmatprep.subr.mxu0 0.0
      %2669 = vmatpush1.msra.mxu0 0.0
      %2670 = vmatprep.subr.mxu0 0.0
      %2671 = vmatpush1.msra.mxu0 0.0
      %2672 = vmatprep.subr.mxu0 0.0
      %2673 = vmatpush1.msra.mxu0 0.0
      %2674 = vmatprep.subr.mxu0 0.0
      %2675 = vmatpush1.msra.mxu0 0.0
      %2676 = vmatprep.subr.mxu0 0.0
      %2677 = vmatpush1.msra.mxu0 0.0
      %2678 = vmatprep.subr.mxu0 0.0
      %2679 = vmatpush1.msra.mxu0 0.0
      %2680 = vmatprep.subr.mxu0 0.0
      %2681 = vmatpush1.msra.mxu0 0.0
      %2682 = vmatprep.subr.mxu0 0.0
      %2683 = vmatpush1.msra.mxu0 0.0
      %2684 = vmatprep.subr.mxu0 0.0
      %2685 = vmatpush1.msra.mxu0 0.0
      %2686 = vmatprep.subr.mxu0 0.0
      %2687 = vmatpush1.msra.mxu0 0.0
      %2688 = vmatprep.subr.mxu0 0.0
      %2689 = vmatpush1.msra.mxu0 0.0
      %2690 = vmatprep.subr.mxu0 0.0
      %2691 = vmatpush1.msra.mxu0 0.0
      %2692 = vmatprep.subr.mxu0 0.0
      %2693 = vmatpush1.msra.mxu0 0.0
      %2694 = vmatprep.subr.mxu0 0.0
      %2695 = vmatpush1.msra.mxu0 0.0
      %2696 = vmatprep.mubr.f32.mxu0 0.0
      %2697 = vmatmul.mubr.f32.gmra.mrb[0].mxu0 %v2630
      %v2698 = vpop.f32.mrb[0].mxu0
      %v2699 = vadd.f32 0.0, %v2698
      %v2700 = vpop.f32.mrb[0].mxu0
      %2701 = vdwg.mxu0
      %2702 = vrot.lane.b32.xlu0 %v572, 40
      %v2703 = vpop.permute.xlu0 %2702
      %v2706 = vsel %vm583, %v2624, 0
      %2708 = vmatprep.subr.mxu0 0.0
      %2709 = vmatpush1.msra.mxu0 %v2703
      %2710 = vmatprep.subr.mxu0 0.0
      %2711 = vmatpush1.msra.mxu0 0.0
      %2712 = vmatprep.subr.mxu0 0.0
      %2713 = vmatpush1.msra.mxu0 0.0
      %2714 = vmatprep.subr.mxu0 0.0
      %2715 = vmatpush1.msra.mxu0 0.0
      %2716 = vmatprep.subr.mxu0 0.0
      %2717 = vmatpush1.msra.mxu0 0.0
      %2718 = vmatprep.subr.mxu0 0.0
      %2719 = vmatpush1.msra.mxu0 0.0
      %2720 = vmatprep.subr.mxu0 0.0
      %2721 = vmatpush1.msra.mxu0 0.0
      %2722 = vmatprep.subr.mxu0 0.0
      %2723 = vmatpush1.msra.mxu0 0.0
      %2724 = vmatprep.subr.mxu0 0.0
      %2725 = vmatpush1.msra.mxu0 0.0
      %2726 = vmatprep.subr.mxu0 0.0
      %2727 = vmatpush1.msra.mxu0 0.0
      %2728 = vmatprep.subr.mxu0 0.0
      %2729 = vmatpush1.msra.mxu0 0.0
      %2730 = vmatprep.subr.mxu0 0.0
      %2731 = vmatpush1.msra.mxu0 0.0
      %2732 = vmatprep.subr.mxu0 0.0
      %2733 = vmatpush1.msra.mxu0 0.0
      %2734 = vmatprep.subr.mxu0 0.0
      %2735 = vmatpush1.msra.mxu0 0.0
      %2736 = vmatprep.subr.mxu0 0.0
      %2737 = vmatpush1.msra.mxu0 0.0
      %2738 = vmatprep.subr.mxu0 0.0
      %2739 = vmatpush1.msra.mxu0 0.0
      %2740 = vmatprep.subr.mxu0 0.0
      %2741 = vmatpush1.msra.mxu0 0.0
      %2742 = vmatprep.subr.mxu0 0.0
      %2743 = vmatpush1.msra.mxu0 0.0
      %2744 = vmatprep.subr.mxu0 0.0
      %2745 = vmatpush1.msra.mxu0 0.0
      %2746 = vmatprep.subr.mxu0 0.0
      %2747 = vmatpush1.msra.mxu0 0.0
      %2748 = vmatprep.subr.mxu0 0.0
      %2749 = vmatpush1.msra.mxu0 0.0
      %2750 = vmatprep.subr.mxu0 0.0
      %2751 = vmatpush1.msra.mxu0 0.0
      %2752 = vmatprep.subr.mxu0 0.0
      %2753 = vmatpush1.msra.mxu0 0.0
      %2754 = vmatprep.subr.mxu0 0.0
      %2755 = vmatpush1.msra.mxu0 0.0
      %2756 = vmatprep.subr.mxu0 0.0
      %2757 = vmatpush1.msra.mxu0 0.0
      %2758 = vmatprep.subr.mxu0 0.0
      %2759 = vmatpush1.msra.mxu0 0.0
      %2760 = vmatprep.subr.mxu0 0.0
      %2761 = vmatpush1.msra.mxu0 0.0
      %2762 = vmatprep.subr.mxu0 0.0
      %2763 = vmatpush1.msra.mxu0 0.0
      %2764 = vmatprep.subr.mxu0 0.0
      %2765 = vmatpush1.msra.mxu0 0.0
      %2766 = vmatprep.subr.mxu0 0.0
      %2767 = vmatpush1.msra.mxu0 0.0
      %2768 = vmatprep.subr.mxu0 0.0
      %2769 = vmatpush1.msra.mxu0 0.0
      %2770 = vmatprep.subr.mxu0 0.0
      %2771 = vmatpush1.msra.mxu0 0.0
      %2772 = vmatprep.mubr.f32.mxu0 0.0
      %2773 = vmatmul.mubr.f32.gmra.mrb[0].mxu0 %v2706
      %v2774 = vpop.f32.mrb[0].mxu0
      %v2775 = vadd.f32 0.0, %v2774
      %v2776 = vpop.f32.mrb[0].mxu0
      %2777 = vdwg.mxu0
      %2778 = vrot.lane.b32.xlu0 %v577, 40
      %v2779 = vpop.permute.xlu0 %2778
      %v2782 = vsel %vm583, %v2625, 0
      %2784 = vmatprep.subr.mxu0 0.0
      %2785 = vmatpush1.msra.mxu0 %v2779
      %2786 = vmatprep.subr.mxu0 0.0
      %2787 = vmatpush1.msra.mxu0 0.0
      %2788 = vmatprep.subr.mxu0 0.0
      %2789 = vmatpush1.msra.mxu0 0.0
      %2790 = vmatprep.subr.mxu0 0.0
      %2791 = vmatpush1.msra.mxu0 0.0
      %2792 = vmatprep.subr.mxu0 0.0
      %2793 = vmatpush1.msra.mxu0 0.0
      %2794 = vmatprep.subr.mxu0 0.0
      %2795 = vmatpush1.msra.mxu0 0.0
      %2796 = vmatprep.subr.mxu0 0.0
      %2797 = vmatpush1.msra.mxu0 0.0
      %2798 = vmatprep.subr.mxu0 0.0
      %2799 = vmatpush1.msra.mxu0 0.0
      %2800 = vmatprep.subr.mxu0 0.0
      %2801 = vmatpush1.msra.mxu0 0.0
      %2802 = vmatprep.subr.mxu0 0.0
      %2803 = vmatpush1.msra.mxu0 0.0
      %2804 = vmatprep.subr.mxu0 0.0
      %2805 = vmatpush1.msra.mxu0 0.0
      %2806 = vmatprep.subr.mxu0 0.0
      %2807 = vmatpush1.msra.mxu0 0.0
      %2808 = vmatprep.subr.mxu0 0.0
      %2809 = vmatpush1.msra.mxu0 0.0
      %2810 = vmatprep.subr.mxu0 0.0
      %2811 = vmatpush1.msra.mxu0 0.0
      %2812 = vmatprep.subr.mxu0 0.0
      %2813 = vmatpush1.msra.mxu0 0.0
      %2814 = vmatprep.subr.mxu0 0.0
      %2815 = vmatpush1.msra.mxu0 0.0
      %2816 = vmatprep.subr.mxu0 0.0
      %2817 = vmatpush1.msra.mxu0 0.0
      %2818 = vmatprep.subr.mxu0 0.0
      %2819 = vmatpush1.msra.mxu0 0.0
      %2820 = vmatprep.subr.mxu0 0.0
      %2821 = vmatpush1.msra.mxu0 0.0
      %2822 = vmatprep.subr.mxu0 0.0
      %2823 = vmatpush1.msra.mxu0 0.0
      %2824 = vmatprep.subr.mxu0 0.0
      %2825 = vmatpush1.msra.mxu0 0.0
      %2826 = vmatprep.subr.mxu0 0.0
      %2827 = vmatpush1.msra.mxu0 0.0
      %2828 = vmatprep.subr.mxu0 0.0
      %2829 = vmatpush1.msra.mxu0 0.0
      %2830 = vmatprep.subr.mxu0 0.0
      %2831 = vmatpush1.msra.mxu0 0.0
      %2832 = vmatprep.subr.mxu0 0.0
      %2833 = vmatpush1.msra.mxu0 0.0
      %2834 = vmatprep.subr.mxu0 0.0
      %2835 = vmatpush1.msra.mxu0 0.0
      %2836 = vmatprep.subr.mxu0 0.0
      %2837 = vmatpush1.msra.mxu0 0.0
      %2838 = vmatprep.subr.mxu0 0.0
      %2839 = vmatpush1.msra.mxu0 0.0
      %2840 = vmatprep.subr.mxu0 0.0
      %2841 = vmatpush1.msra.mxu0 0.0
      %2842 = vmatprep.subr.mxu0 0.0
      %2843 = vmatpush1.msra.mxu0 0.0
      %2844 = vmatprep.subr.mxu0 0.0
      %2845 = vmatpush1.msra.mxu0 0.0
      %2846 = vmatprep.subr.mxu0 0.0
      %2847 = vmatpush1.msra.mxu0 0.0
      %2848 = vmatprep.mubr.f32.mxu0 0.0
      %2849 = vmatmul.mubr.f32.gmra.mrb[0].mxu0 %v2782
      %v2850 = vpop.f32.mrb[0].mxu0
      %v2851 = vadd.f32 0.0, %v2850
      %v2852 = vpop.f32.mrb[0].mxu0
      %2853 = vdwg.mxu0
      %v2855 = vsel %vm583, %v2699, 0
      %v2858 = vsel %vm583, %v2775, 0
      %v2861 = vsel %vm583, %v2851, 0
      %2863 = vmatprep.subr.mxu0 0.0
      %2864 = vmatpush1.msra.mxu0 %v472
      %2865 = vmatprep.subr.mxu0 0.0
      %2866 = vmatpush1.msra.mxu0 0.0
      %2867 = vmatprep.subr.mxu0 0.0
      %2868 = vmatpush1.msra.mxu0 0.0
      %2869 = vmatprep.subr.mxu0 0.0
      %2870 = vmatpush1.msra.mxu0 0.0
      %2871 = vmatprep.subr.mxu0 0.0
      %2872 = vmatpush1.msra.mxu0 0.0
      %2873 = vmatprep.subr.mxu0 0.0
      %2874 = vmatpush1.msra.mxu0 0.0
      %2875 = vmatprep.subr.mxu0 0.0
      %2876 = vmatpush1.msra.mxu0 0.0
      %2877 = vmatprep.subr.mxu0 0.0
      %2878 = vmatpush1.msra.mxu0 0.0
      %2879 = vmatprep.subr.mxu0 0.0
      %2880 = vmatpush1.msra.mxu0 0.0
      %2881 = vmatprep.subr.mxu0 0.0
      %2882 = vmatpush1.msra.mxu0 0.0
      %2883 = vmatprep.subr.mxu0 0.0
      %2884 = vmatpush1.msra.mxu0 0.0
      %2885 = vmatprep.subr.mxu0 0.0
      %2886 = vmatpush1.msra.mxu0 0.0
      %2887 = vmatprep.subr.mxu0 0.0
      %2888 = vmatpush1.msra.mxu0 0.0
      %2889 = vmatprep.subr.mxu0 0.0
      %2890 = vmatpush1.msra.mxu0 0.0
      %2891 = vmatprep.subr.mxu0 0.0
      %2892 = vmatpush1.msra.mxu0 0.0
      %2893 = vmatprep.subr.mxu0 0.0
      %2894 = vmatpush1.msra.mxu0 0.0
      %2895 = vmatprep.subr.mxu0 0.0
      %2896 = vmatpush1.msra.mxu0 0.0
      %2897 = vmatprep.subr.mxu0 0.0
      %2898 = vmatpush1.msra.mxu0 0.0
      %2899 = vmatprep.subr.mxu0 0.0
      %2900 = vmatpush1.msra.mxu0 0.0
      %2901 = vmatprep.subr.mxu0 0.0
      %2902 = vmatpush1.msra.mxu0 0.0
      %2903 = vmatprep.subr.mxu0 0.0
      %2904 = vmatpush1.msra.mxu0 0.0
      %2905 = vmatprep.subr.mxu0 0.0
      %2906 = vmatpush1.msra.mxu0 0.0
      %2907 = vmatprep.subr.mxu0 0.0
      %2908 = vmatpush1.msra.mxu0 0.0
      %2909 = vmatprep.subr.mxu0 0.0
      %2910 = vmatpush1.msra.mxu0 0.0
      %2911 = vmatprep.subr.mxu0 0.0
      %2912 = vmatpush1.msra.mxu0 0.0
      %2913 = vmatprep.subr.mxu0 0.0
      %2914 = vmatpush1.msra.mxu0 0.0
      %2915 = vmatprep.subr.mxu0 0.0
      %2916 = vmatpush1.msra.mxu0 0.0
      %2917 = vmatprep.subr.mxu0 0.0
      %2918 = vmatpush1.msra.mxu0 0.0
      %2919 = vmatprep.subr.mxu0 0.0
      %2920 = vmatpush1.msra.mxu0 0.0
      %2921 = vmatprep.subr.mxu0 0.0
      %2922 = vmatpush1.msra.mxu0 0.0
      %2923 = vmatprep.subr.mxu0 0.0
      %2924 = vmatpush1.msra.mxu0 0.0
      %2925 = vmatprep.subr.mxu0 0.0
      %2926 = vmatpush1.msra.mxu0 0.0
      %2927 = vmatprep.mubr.f32.mxu0 0.0
      %2928 = vmatmul.mubr.f32.gmra.mrb[0].mxu0 %v2855
      %v2929 = vpop.f32.mrb[0].mxu0
      %v2930 = vadd.f32 0.0, %v2929
      %v2931 = vpop.f32.mrb[0].mxu0
      %2932 = vmatprep.mubr.f32.mxu0 0.0
      %2933 = vmatmul.mubr.f32.gmra.mrb[0].mxu0 %v2858
      %v2934 = vpop.f32.mrb[0].mxu0
      %v2935 = vadd.f32 0.0, %v2934
      %v2936 = vpop.f32.mrb[0].mxu0
      %2937 = vmatprep.mubr.f32.mxu0 0.0
      %2938 = vmatmul.mubr.f32.gmra.mrb[0].mxu0 %v2861
      %v2939 = vpop.f32.mrb[0].mxu0
      %v2940 = vadd.f32 0.0, %v2939
      %v2941 = vpop.f32.mrb[0].mxu0
      %2942 = vdwg.mxu0
      %v2943 = vadd.f32 %v2350, %v2930
      %v2944 = vadd.f32 %v2351, %v2935
      %v2945 = vadd.f32 %v2352, %v2940
      %v2946 = vlaneseq
      %v2947 = vshrl.u32 %v2946, 7
      %v2948 = vsub.s32 0, %v2947
      %v2949 = vrot.slane %v445, %v2948
      %v2950 = vadd.f32 %v2943, %v2949
      %v2951 = vadd.f32 %v2944, %v2949
      %v2952 = vadd.f32 %v2945, %v2949
      %v2953 = vadd.f32 %v483, %v2950
      %v2954 = vadd.f32 %v484, %v2951
      %v2955 = vadd.f32 %v485, %v2952
      %v2956 = vsel %vm490, %v2953, 0.0
      %2957 = vadd.xlane.f32.xlu0 %v2956
      %v2958 = vpop.xlane.xlu0 %2957
      %v2959 = vsel %vm490, %v2954, 0.0
      %2960 = vadd.xlane.f32.xlu0 %v2959
      %v2961 = vpop.xlane.xlu0 %2960
      %v2962 = vsel %vm490, %v2955, 0.0
      %2963 = vadd.xlane.f32.xlu0 %v2962
      %v2964 = vpop.xlane.xlu0 %2963
      %v2965 = vrcp.pop 32.0
      %v2966 = vmul.f32 %v2958, %v2965
      %v2967 = vmul.f32 %v2961, %v2965
      %v2968 = vmul.f32 %v2964, %v2965
      %v2969 = vsub.f32 %v2953, %v2966
      %v2970 = vsub.f32 %v2954, %v2967
      %v2971 = vsub.f32 %v2955, %v2968
      %v2972 = vmul.f32 %v2969, %v2969
      %v2973 = vmul.f32 %v2970, %v2970
      %v2974 = vmul.f32 %v2971, %v2971
      %v2975 = vsel %vm490, %v2972, 0.0
      %2976 = vadd.xlane.f32.xlu0 %v2975
      %v2977 = vpop.xlane.xlu0 %2976
      %v2978 = vsel %vm490, %v2973, 0.0
      %2979 = vadd.xlane.f32.xlu0 %v2978
      %v2980 = vpop.xlane.xlu0 %2979
      %v2981 = vsel %vm490, %v2974, 0.0
      %2982 = vadd.xlane.f32.xlu0 %v2981
      %v2983 = vpop.xlane.xlu0 %2982
      %v2984 = vmul.f32 %v2977, %v2965
      %v2985 = vmul.f32 %v2980, %v2965
      %v2986 = vmul.f32 %v2983, %v2965
      %v2987 = vadd.f32 %v2984, 1e-05
      %v2988 = vadd.f32 %v2985, 1e-05
      %v2989 = vadd.f32 %v2986, 1e-05
      %v2990 = vrsqrt.pop %v2987
      %v2991 = vrsqrt.pop %v2988
      %v2992 = vrsqrt.pop %v2989
      %v2993 = vmul.f32 %v2969, %v2990
      %v2994 = vmul.f32 %v2970, %v2991
      %v2995 = vmul.f32 %v2971, %v2992
      %v2997 = vlaneseq
      %v2998 = vshrl.u32 %v2997, 7
      %v2999 = vsub.s32 0, %v2998
      %v3000 = vrot.slane %v446, %v2999
      %v3002 = vmul.f32 %v2993, %v3000
      %v3003 = vmul.f32 %v2994, %v3000
      %v3004 = vmul.f32 %v2995, %v3000
      %v3006 = vlaneseq
      %v3007 = vshrl.u32 %v3006, 7
      %v3008 = vsub.s32 0, %v3007
      %v3009 = vrot.slane %v447, %v3008
      %v3011 = vadd.f32 %v3002, %v3009
      %v3012 = vadd.f32 %v3003, %v3009
      %v3013 = vadd.f32 %v3004, %v3009
      %v3014 = vlaneseq
      %v3015 = vshrl.u32 %v3014, 7
      %v3016 = vsub.s32 1, %v3015
      %v3017 = vrot.slane %v444, %v3016
      %v3019 = vsel %vm490, %v3011, 0
      %v3022 = vsel %vm490, %v3012, 0
      %v3025 = vsel %vm490, %v3013, 0
      %3027 = vmatprep.subr.mxu0 0.0
      %3028 = vmatpush1.msra.mxu0 %v465
      %3029 = vmatprep.subr.mxu0 0.0
      %3030 = vmatpush1.msra.mxu0 %v466
      %3031 = vmatprep.subr.mxu0 0.0
      %3032 = vmatpush1.msra.mxu0 %v467
      %3033 = vmatprep.subr.mxu0 0.0
      %3034 = vmatpush1.msra.mxu0 %v468
      %3035 = vmatprep.subr.mxu0 0.0
      %3036 = vmatpush1.msra.mxu0 0.0
      %3037 = vmatprep.subr.mxu0 0.0
      %3038 = vmatpush1.msra.mxu0 0.0
      %3039 = vmatprep.subr.mxu0 0.0
      %3040 = vmatpush1.msra.mxu0 0.0
      %3041 = vmatprep.subr.mxu0 0.0
      %3042 = vmatpush1.msra.mxu0 0.0
      %3043 = vmatprep.subr.mxu0 0.0
      %3044 = vmatpush1.msra.mxu0 0.0
      %3045 = vmatprep.subr.mxu0 0.0
      %3046 = vmatpush1.msra.mxu0 0.0
      %3047 = vmatprep.subr.mxu0 0.0
      %3048 = vmatpush1.msra.mxu0 0.0
      %3049 = vmatprep.subr.mxu0 0.0
      %3050 = vmatpush1.msra.mxu0 0.0
      %3051 = vmatprep.subr.mxu0 0.0
      %3052 = vmatpush1.msra.mxu0 0.0
      %3053 = vmatprep.subr.mxu0 0.0
      %3054 = vmatpush1.msra.mxu0 0.0
      %3055 = vmatprep.subr.mxu0 0.0
      %3056 = vmatpush1.msra.mxu0 0.0
      %3057 = vmatprep.subr.mxu0 0.0
      %3058 = vmatpush1.msra.mxu0 0.0
      %3059 = vmatprep.subr.mxu0 0.0
      %3060 = vmatpush1.msra.mxu0 0.0
      %3061 = vmatprep.subr.mxu0 0.0
      %3062 = vmatpush1.msra.mxu0 0.0
      %3063 = vmatprep.subr.mxu0 0.0
      %3064 = vmatpush1.msra.mxu0 0.0
      %3065 = vmatprep.subr.mxu0 0.0
      %3066 = vmatpush1.msra.mxu0 0.0
      %3067 = vmatprep.subr.mxu0 0.0
      %3068 = vmatpush1.msra.mxu0 0.0
      %3069 = vmatprep.subr.mxu0 0.0
      %3070 = vmatpush1.msra.mxu0 0.0
      %3071 = vmatprep.subr.mxu0 0.0
      %3072 = vmatpush1.msra.mxu0 0.0
      %3073 = vmatprep.subr.mxu0 0.0
      %3074 = vmatpush1.msra.mxu0 0.0
      %3075 = vmatprep.subr.mxu0 0.0
      %3076 = vmatpush1.msra.mxu0 0.0
      %3077 = vmatprep.subr.mxu0 0.0
      %3078 = vmatpush1.msra.mxu0 0.0
      %3079 = vmatprep.subr.mxu0 0.0
      %3080 = vmatpush1.msra.mxu0 0.0
      %3081 = vmatprep.subr.mxu0 0.0
      %3082 = vmatpush1.msra.mxu0 0.0
      %3083 = vmatprep.subr.mxu0 0.0
      %3084 = vmatpush1.msra.mxu0 0.0
      %3085 = vmatprep.subr.mxu0 0.0
      %3086 = vmatpush1.msra.mxu0 0.0
      %3087 = vmatprep.subr.mxu0 0.0
      %3088 = vmatpush1.msra.mxu0 0.0
      %3089 = vmatprep.subr.mxu0 0.0
      %3090 = vmatpush1.msra.mxu0 0.0
      %3091 = vmatprep.mubr.f32.mxu0 0.0
      %3092 = vmatmul.mubr.f32.gmra.mrb[0].mxu0 %v3019
      %v3093 = vpop.f32.mrb[0].mxu0
      %v3094 = vadd.f32 %v3017, %v3093
      %v3095 = vpop.f32.mrb[0].mxu0
      %3096 = vmatprep.mubr.f32.mxu0 0.0
      %3097 = vmatmul.mubr.f32.gmra.mrb[0].mxu0 %v3022
      %v3098 = vpop.f32.mrb[0].mxu0
      %v3099 = vadd.f32 %v3017, %v3098
      %v3100 = vpop.f32.mrb[0].mxu0
      %3101 = vmatprep.mubr.f32.mxu0 0.0
      %3102 = vmatmul.mubr.f32.gmra.mrb[0].mxu0 %v3025
      %v3103 = vpop.f32.mrb[0].mxu0
      %v3104 = vadd.f32 %v3017, %v3103
      %v3105 = vpop.f32.mrb[0].mxu0
      %3106 = vdwg.mxu0
      %3108 = vrot.lane.b32.xlu0 %v3094, 96
      %v3109 = vpop.permute.xlu0 %3108
      %v3110 = vsel %vm583, %v3094, 0
      %v3112 = vsel %vm583, %v3109, 0
      %3114 = vmatprep.subr.mxu0 0.0
      %3115 = vmatpush1.xpose.msra.mxu0 %v3112
      %3116 = vmatprep.subr.mxu0 0.0
      %3117 = vmatpush1.xpose.msra.mxu0 0.0
      %3118 = vmatprep.subr.mxu0 0.0
      %3119 = vmatpush1.xpose.msra.mxu0 0.0
      %3120 = vmatprep.subr.mxu0 0.0
      %3121 = vmatpush1.xpose.msra.mxu0 0.0
      %3122 = vmatprep.subr.mxu0 0.0
      %3123 = vmatpush1.xpose.msra.mxu0 0.0
      %3124 = vmatprep.subr.mxu0 0.0
      %3125 = vmatpush1.xpose.msra.mxu0 0.0
      %3126 = vmatprep.subr.mxu0 0.0
      %3127 = vmatpush1.xpose.msra.mxu0 0.0
      %3128 = vmatprep.subr.mxu0 0.0
      %3129 = vmatpush1.xpose.msra.mxu0 0.0
      %3130 = vmatprep.subr.mxu0 0.0
      %3131 = vmatpush1.xpose.msra.mxu0 0.0
      %3132 = vmatprep.subr.mxu0 0.0
      %3133 = vmatpush1.xpose.msra.mxu0 0.0
      %3134 = vmatprep.subr.mxu0 0.0
      %3135 = vmatpush1.xpose.msra.mxu0 0.0
      %3136 = vmatprep.subr.mxu0 0.0
      %3137 = vmatpush1.xpose.msra.mxu0 0.0
      %3138 = vmatprep.subr.mxu0 0.0
      %3139 = vmatpush1.xpose.msra.mxu0 0.0
      %3140 = vmatprep.subr.mxu0 0.0
      %3141 = vmatpush1.xpose.msra.mxu0 0.0
      %3142 = vmatprep.subr.mxu0 0.0
      %3143 = vmatpush1.xpose.msra.mxu0 0.0
      %3144 = vmatprep.subr.mxu0 0.0
      %3145 = vmatpush1.xpose.msra.mxu0 0.0
      %3146 = vmatprep.subr.mxu0 0.0
      %3147 = vmatpush1.xpose.msra.mxu0 0.0
      %3148 = vmatprep.subr.mxu0 0.0
      %3149 = vmatpush1.xpose.msra.mxu0 0.0
      %3150 = vmatprep.subr.mxu0 0.0
      %3151 = vmatpush1.xpose.msra.mxu0 0.0
      %3152 = vmatprep.subr.mxu0 0.0
      %3153 = vmatpush1.xpose.msra.mxu0 0.0
      %3154 = vmatprep.subr.mxu0 0.0
      %3155 = vmatpush1.xpose.msra.mxu0 0.0
      %3156 = vmatprep.subr.mxu0 0.0
      %3157 = vmatpush1.xpose.msra.mxu0 0.0
      %3158 = vmatprep.subr.mxu0 0.0
      %3159 = vmatpush1.xpose.msra.mxu0 0.0
      %3160 = vmatprep.subr.mxu0 0.0
      %3161 = vmatpush1.xpose.msra.mxu0 0.0
      %3162 = vmatprep.subr.mxu0 0.0
      %3163 = vmatpush1.xpose.msra.mxu0 0.0
      %3164 = vmatprep.subr.mxu0 0.0
      %3165 = vmatpush1.xpose.msra.mxu0 0.0
      %3166 = vmatprep.subr.mxu0 0.0
      %3167 = vmatpush1.xpose.msra.mxu0 0.0
      %3168 = vmatprep.subr.mxu0 0.0
      %3169 = vmatpush1.xpose.msra.mxu0 0.0
      %3170 = vmatprep.subr.mxu0 0.0
      %3171 = vmatpush1.xpose.msra.mxu0 0.0
      %3172 = vmatprep.subr.mxu0 0.0
      %3173 = vmatpush1.xpose.msra.mxu0 0.0
      %3174 = vmatprep.subr.mxu0 0.0
      %3175 = vmatpush1.xpose.msra.mxu0 0.0
      %3176 = vmatprep.subr.mxu0 0.0
      %3177 = vmatpush1.xpose.msra.mxu0 0.0
      %3178 = vmatprep.mubr.f32.mxu0 0.0
      %3179 = vmatmul.mubr.f32.gmra.mrb[0].mxu0 %v3110
      %v3180 = vpop.f32.mrb[0].mxu0
      %v3181 = vadd.f32 0.0, %v3180
      %v3182 = vpop.f32.mrb[0].mxu0
      %3183 = vdwg.mxu0
      %3185 = vrot.lane.b32.xlu0 %v3099, 96
      %v3186 = vpop.permute.xlu0 %3185
      %v3187 = vsel %vm583, %v3099, 0
      %v3189 = vsel %vm583, %v3186, 0
      %3191 = vmatprep.subr.mxu0 0.0
      %3192 = vmatpush1.xpose.msra.mxu0 %v3189
      %3193 = vmatprep.subr.mxu0 0.0
      %3194 = vmatpush1.xpose.msra.mxu0 0.0
      %3195 = vmatprep.subr.mxu0 0.0
      %3196 = vmatpush1.xpose.msra.mxu0 0.0
      %3197 = vmatprep.subr.mxu0 0.0
      %3198 = vmatpush1.xpose.msra.mxu0 0.0
      %3199 = vmatprep.subr.mxu0 0.0
      %3200 = vmatpush1.xpose.msra.mxu0 0.0
      %3201 = vmatprep.subr.mxu0 0.0
      %3202 = vmatpush1.xpose.msra.mxu0 0.0
      %3203 = vmatprep.subr.mxu0 0.0
      %3204 = vmatpush1.xpose.msra.mxu0 0.0
      %3205 = vmatprep.subr.mxu0 0.0
      %3206 = vmatpush1.xpose.msra.mxu0 0.0
      %3207 = vmatprep.subr.mxu0 0.0
      %3208 = vmatpush1.xpose.msra.mxu0 0.0
      %3209 = vmatprep.subr.mxu0 0.0
      %3210 = vmatpush1.xpose.msra.mxu0 0.0
      %3211 = vmatprep.subr.mxu0 0.0
      %3212 = vmatpush1.xpose.msra.mxu0 0.0
      %3213 = vmatprep.subr.mxu0 0.0
      %3214 = vmatpush1.xpose.msra.mxu0 0.0
      %3215 = vmatprep.subr.mxu0 0.0
      %3216 = vmatpush1.xpose.msra.mxu0 0.0
      %3217 = vmatprep.subr.mxu0 0.0
      %3218 = vmatpush1.xpose.msra.mxu0 0.0
      %3219 = vmatprep.subr.mxu0 0.0
      %3220 = vmatpush1.xpose.msra.mxu0 0.0
      %3221 = vmatprep.subr.mxu0 0.0
      %3222 = vmatpush1.xpose.msra.mxu0 0.0
      %3223 = vmatprep.subr.mxu0 0.0
      %3224 = vmatpush1.xpose.msra.mxu0 0.0
      %3225 = vmatprep.subr.mxu0 0.0
      %3226 = vmatpush1.xpose.msra.mxu0 0.0
      %3227 = vmatprep.subr.mxu0 0.0
      %3228 = vmatpush1.xpose.msra.mxu0 0.0
      %3229 = vmatprep.subr.mxu0 0.0
      %3230 = vmatpush1.xpose.msra.mxu0 0.0
      %3231 = vmatprep.subr.mxu0 0.0
      %3232 = vmatpush1.xpose.msra.mxu0 0.0
      %3233 = vmatprep.subr.mxu0 0.0
      %3234 = vmatpush1.xpose.msra.mxu0 0.0
      %3235 = vmatprep.subr.mxu0 0.0
      %3236 = vmatpush1.xpose.msra.mxu0 0.0
      %3237 = vmatprep.subr.mxu0 0.0
      %3238 = vmatpush1.xpose.msra.mxu0 0.0
      %3239 = vmatprep.subr.mxu0 0.0
      %3240 = vmatpush1.xpose.msra.mxu0 0.0
      %3241 = vmatprep.subr.mxu0 0.0
      %3242 = vmatpush1.xpose.msra.mxu0 0.0
      %3243 = vmatprep.subr.mxu0 0.0
      %3244 = vmatpush1.xpose.msra.mxu0 0.0
      %3245 = vmatprep.subr.mxu0 0.0
      %3246 = vmatpush1.xpose.msra.mxu0 0.0
      %3247 = vmatprep.subr.mxu0 0.0
      %3248 = vmatpush1.xpose.msra.mxu0 0.0
      %3249 = vmatprep.subr.mxu0 0.0
      %3250 = vmatpush1.xpose.msra.mxu0 0.0
      %3251 = vmatprep.subr.mxu0 0.0
      %3252 = vmatpush1.xpose.msra.mxu0 0.0
      %3253 = vmatprep.subr.mxu0 0.0
      %3254 = vmatpush1.xpose.msra.mxu0 0.0
      %3255 = vmatprep.mubr.f32.mxu0 0.0
      %3256 = vmatmul.mubr.f32.gmra.mrb[0].mxu0 %v3187
      %v3257 = vpop.f32.mrb[0].mxu0
      %v3258 = vadd.f32 0.0, %v3257
      %v3259 = vpop.f32.mrb[0].mxu0
      %3260 = vdwg.mxu0
      %3262 = vrot.lane.b32.xlu0 %v3104, 96
      %v3263 = vpop.permute.xlu0 %3262
      %v3264 = vsel %vm583, %v3104, 0
      %v3266 = vsel %vm583, %v3263, 0
      %3268 = vmatprep.subr.mxu0 0.0
      %3269 = vmatpush1.xpose.msra.mxu0 %v3266
      %3270 = vmatprep.subr.mxu0 0.0
      %3271 = vmatpush1.xpose.msra.mxu0 0.0
      %3272 = vmatprep.subr.mxu0 0.0
      %3273 = vmatpush1.xpose.msra.mxu0 0.0
      %3274 = vmatprep.subr.mxu0 0.0
      %3275 = vmatpush1.xpose.msra.mxu0 0.0
      %3276 = vmatprep.subr.mxu0 0.0
      %3277 = vmatpush1.xpose.msra.mxu0 0.0
      %3278 = vmatprep.subr.mxu0 0.0
      %3279 = vmatpush1.xpose.msra.mxu0 0.0
      %3280 = vmatprep.subr.mxu0 0.0
      %3281 = vmatpush1.xpose.msra.mxu0 0.0
      %3282 = vmatprep.subr.mxu0 0.0
      %3283 = vmatpush1.xpose.msra.mxu0 0.0
      %3284 = vmatprep.subr.mxu0 0.0
      %3285 = vmatpush1.xpose.msra.mxu0 0.0
      %3286 = vmatprep.subr.mxu0 0.0
      %3287 = vmatpush1.xpose.msra.mxu0 0.0
      %3288 = vmatprep.subr.mxu0 0.0
      %3289 = vmatpush1.xpose.msra.mxu0 0.0
      %3290 = vmatprep.subr.mxu0 0.0
      %3291 = vmatpush1.xpose.msra.mxu0 0.0
      %3292 = vmatprep.subr.mxu0 0.0
      %3293 = vmatpush1.xpose.msra.mxu0 0.0
      %3294 = vmatprep.subr.mxu0 0.0
      %3295 = vmatpush1.xpose.msra.mxu0 0.0
      %3296 = vmatprep.subr.mxu0 0.0
      %3297 = vmatpush1.xpose.msra.mxu0 0.0
      %3298 = vmatprep.subr.mxu0 0.0
      %3299 = vmatpush1.xpose.msra.mxu0 0.0
      %3300 = vmatprep.subr.mxu0 0.0
      %3301 = vmatpush1.xpose.msra.mxu0 0.0
      %3302 = vmatprep.subr.mxu0 0.0
      %3303 = vmatpush1.xpose.msra.mxu0 0.0
      %3304 = vmatprep.subr.mxu0 0.0
      %3305 = vmatpush1.xpose.msra.mxu0 0.0
      %3306 = vmatprep.subr.mxu0 0.0
      %3307 = vmatpush1.xpose.msra.mxu0 0.0
      %3308 = vmatprep.subr.mxu0 0.0
      %3309 = vmatpush1.xpose.msra.mxu0 0.0
      %3310 = vmatprep.subr.mxu0 0.0
      %3311 = vmatpush1.xpose.msra.mxu0 0.0
      %3312 = vmatprep.subr.mxu0 0.0
      %3313 = vmatpush1.xpose.msra.mxu0 0.0
      %3314 = vmatprep.subr.mxu0 0.0
      %3315 = vmatpush1.xpose.msra.mxu0 0.0
      %3316 = vmatprep.subr.mxu0 0.0
      %3317 = vmatpush1.xpose.msra.mxu0 0.0
      %3318 = vmatprep.subr.mxu0 0.0
      %3319 = vmatpush1.xpose.msra.mxu0 0.0
      %3320 = vmatprep.subr.mxu0 0.0
      %3321 = vmatpush1.xpose.msra.mxu0 0.0
      %3322 = vmatprep.subr.mxu0 0.0
      %3323 = vmatpush1.xpose.msra.mxu0 0.0
      %3324 = vmatprep.subr.mxu0 0.0
      %3325 = vmatpush1.xpose.msra.mxu0 0.0
      %3326 = vmatprep.subr.mxu0 0.0
      %3327 = vmatpush1.xpose.msra.mxu0 0.0
      %3328 = vmatprep.subr.mxu0 0.0
      %3329 = vmatpush1.xpose.msra.mxu0 0.0
      %3330 = vmatprep.subr.mxu0 0.0
      %3331 = vmatpush1.xpose.msra.mxu0 0.0
      %3332 = vmatprep.mubr.f32.mxu0 0.0
      %3333 = vmatmul.mubr.f32.gmra.mrb[0].mxu0 %v3264
      %v3334 = vpop.f32.mrb[0].mxu0
      %v3335 = vadd.f32 0.0, %v3334
      %v3336 = vpop.f32.mrb[0].mxu0
      %3337 = vdwg.mxu0
      %v3338 = vmul.f32 %v3181, 0.35355338
      %v3339 = vmul.f32 %v3258, 0.35355338
      %v3340 = vmul.f32 %v3335, 0.35355338
      %v3341 = vsel %vm816, %v3338, -1e+30
      %v3342 = vsel %vm816, %v3339, -1e+30
      %v3343 = vsel %vm816, %v3340, -1e+30
      %v3344 = vsel %vm583, %v3341, -inf
      %3345 = vmax.xlane.f32.xlu0 %v3344
      %v3346 = vpop.xlane.xlu0 %3345
      %v3347 = vsel %vm583, %v3342, -inf
      %3348 = vmax.xlane.f32.xlu0 %v3347
      %v3349 = vpop.xlane.xlu0 %3348
      %v3350 = vsel %vm583, %v3343, -inf
      %3351 = vmax.xlane.f32.xlu0 %v3350
      %v3352 = vpop.xlane.xlu0 %3351
      %v3353 = vsub.f32 %v3341, %v3346
      %v3354 = vsub.f32 %v3342, %v3349
      %v3355 = vsub.f32 %v3343, %v3352
      %v3356 = vmul.f32 %v3353, 1.442695
      %v3357 = vpow.pop %v3356
      %v3358 = vmul.f32 %v3354, 1.442695
      %v3359 = vpow.pop %v3358
      %v3360 = vmul.f32 %v3355, 1.442695
      %v3361 = vpow.pop %v3360
      %v3362 = vsel %vm583, %v3357, 0.0
      %3363 = vadd.xlane.f32.xlu0 %v3362
      %v3364 = vpop.xlane.xlu0 %3363
      %v3365 = vsel %vm583, %v3359, 0.0
      %3366 = vadd.xlane.f32.xlu0 %v3365
      %v3367 = vpop.xlane.xlu0 %3366
      %v3368 = vsel %vm583, %v3361, 0.0
      %3369 = vadd.xlane.f32.xlu0 %v3368
      %v3370 = vpop.xlane.xlu0 %3369
      %v3371 = vrcp.pop %v3364
      %v3372 = vrcp.pop %v3367
      %v3373 = vrcp.pop %v3370
      %v3374 = vmul.f32 %v3357, %v3371
      %v3375 = vmul.f32 %v3359, %v3372
      %v3376 = vmul.f32 %v3361, %v3373
      %3377 = vrot.lane.b32.xlu0 %v3094, 64
      %v3378 = vpop.permute.xlu0 %3377
      %v3381 = vsel %vm583, %v3374, 0
      %3383 = vmatprep.subr.mxu0 0.0
      %3384 = vmatpush1.msra.mxu0 %v3378
      %3385 = vmatprep.subr.mxu0 0.0
      %3386 = vmatpush1.msra.mxu0 0.0
      %3387 = vmatprep.subr.mxu0 0.0
      %3388 = vmatpush1.msra.mxu0 0.0
      %3389 = vmatprep.subr.mxu0 0.0
      %3390 = vmatpush1.msra.mxu0 0.0
      %3391 = vmatprep.subr.mxu0 0.0
      %3392 = vmatpush1.msra.mxu0 0.0
      %3393 = vmatprep.subr.mxu0 0.0
      %3394 = vmatpush1.msra.mxu0 0.0
      %3395 = vmatprep.subr.mxu0 0.0
      %3396 = vmatpush1.msra.mxu0 0.0
      %3397 = vmatprep.subr.mxu0 0.0
      %3398 = vmatpush1.msra.mxu0 0.0
      %3399 = vmatprep.subr.mxu0 0.0
      %3400 = vmatpush1.msra.mxu0 0.0
      %3401 = vmatprep.subr.mxu0 0.0
      %3402 = vmatpush1.msra.mxu0 0.0
      %3403 = vmatprep.subr.mxu0 0.0
      %3404 = vmatpush1.msra.mxu0 0.0
      %3405 = vmatprep.subr.mxu0 0.0
      %3406 = vmatpush1.msra.mxu0 0.0
      %3407 = vmatprep.subr.mxu0 0.0
      %3408 = vmatpush1.msra.mxu0 0.0
      %3409 = vmatprep.subr.mxu0 0.0
      %3410 = vmatpush1.msra.mxu0 0.0
      %3411 = vmatprep.subr.mxu0 0.0
      %3412 = vmatpush1.msra.mxu0 0.0
      %3413 = vmatprep.subr.mxu0 0.0
      %3414 = vmatpush1.msra.mxu0 0.0
      %3415 = vmatprep.subr.mxu0 0.0
      %3416 = vmatpush1.msra.mxu0 0.0
      %3417 = vmatprep.subr.mxu0 0.0
      %3418 = vmatpush1.msra.mxu0 0.0
      %3419 = vmatprep.subr.mxu0 0.0
      %3420 = vmatpush1.msra.mxu0 0.0
      %3421 = vmatprep.subr.mxu0 0.0
      %3422 = vmatpush1.msra.mxu0 0.0
      %3423 = vmatprep.subr.mxu0 0.0
      %3424 = vmatpush1.msra.mxu0 0.0
      %3425 = vmatprep.subr.mxu0 0.0
      %3426 = vmatpush1.msra.mxu0 0.0
      %3427 = vmatprep.subr.mxu0 0.0
      %3428 = vmatpush1.msra.mxu0 0.0
      %3429 = vmatprep.subr.mxu0 0.0
      %3430 = vmatpush1.msra.mxu0 0.0
      %3431 = vmatprep.subr.mxu0 0.0
      %3432 = vmatpush1.msra.mxu0 0.0
      %3433 = vmatprep.subr.mxu0 0.0
      %3434 = vmatpush1.msra.mxu0 0.0
      %3435 = vmatprep.subr.mxu0 0.0
      %3436 = vmatpush1.msra.mxu0 0.0
      %3437 = vmatprep.subr.mxu0 0.0
      %3438 = vmatpush1.msra.mxu0 0.0
      %3439 = vmatprep.subr.mxu0 0.0
      %3440 = vmatpush1.msra.mxu0 0.0
      %3441 = vmatprep.subr.mxu0 0.0
      %3442 = vmatpush1.msra.mxu0 0.0
      %3443 = vmatprep.subr.mxu0 0.0
      %3444 = vmatpush1.msra.mxu0 0.0
      %3445 = vmatprep.subr.mxu0 0.0
      %3446 = vmatpush1.msra.mxu0 0.0
      %3447 = vmatprep.mubr.f32.mxu0 0.0
      %3448 = vmatmul.mubr.f32.gmra.mrb[0].mxu0 %v3381
      %v3449 = vpop.f32.mrb[0].mxu0
      %v3450 = vadd.f32 0.0, %v3449
      %v3451 = vpop.f32.mrb[0].mxu0
      %3452 = vdwg.mxu0
      %3453 = vrot.lane.b32.xlu0 %v3099, 64
      %v3454 = vpop.permute.xlu0 %3453
      %v3457 = vsel %vm583, %v3375, 0
      %3459 = vmatprep.subr.mxu0 0.0
      %3460 = vmatpush1.msra.mxu0 %v3454
      %3461 = vmatprep.subr.mxu0 0.0
      %3462 = vmatpush1.msra.mxu0 0.0
      %3463 = vmatprep.subr.mxu0 0.0
      %3464 = vmatpush1.msra.mxu0 0.0
      %3465 = vmatprep.subr.mxu0 0.0
      %3466 = vmatpush1.msra.mxu0 0.0
      %3467 = vmatprep.subr.mxu0 0.0
      %3468 = vmatpush1.msra.mxu0 0.0
      %3469 = vmatprep.subr.mxu0 0.0
      %3470 = vmatpush1.msra.mxu0 0.0
      %3471 = vmatprep.subr.mxu0 0.0
      %3472 = vmatpush1.msra.mxu0 0.0
      %3473 = vmatprep.subr.mxu0 0.0
      %3474 = vmatpush1.msra.mxu0 0.0
      %3475 = vmatprep.subr.mxu0 0.0
      %3476 = vmatpush1.msra.mxu0 0.0
      %3477 = vmatprep.subr.mxu0 0.0
      %3478 = vmatpush1.msra.mxu0 0.0
      %3479 = vmatprep.subr.mxu0 0.0
      %3480 = vmatpush1.msra.mxu0 0.0
      %3481 = vmatprep.subr.mxu0 0.0
      %3482 = vmatpush1.msra.mxu0 0.0
      %3483 = vmatprep.subr.mxu0 0.0
      %3484 = vmatpush1.msra.mxu0 0.0
      %3485 = vmatprep.subr.mxu0 0.0
      %3486 = vmatpush1.msra.mxu0 0.0
      %3487 = vmatprep.subr.mxu0 0.0
      %3488 = vmatpush1.msra.mxu0 0.0
      %3489 = vmatprep.subr.mxu0 0.0
      %3490 = vmatpush1.msra.mxu0 0.0
      %3491 = vmatprep.subr.mxu0 0.0
      %3492 = vmatpush1.msra.mxu0 0.0
      %3493 = vmatprep.subr.mxu0 0.0
      %3494 = vmatpush1.msra.mxu0 0.0
      %3495 = vmatprep.subr.mxu0 0.0
      %3496 = vmatpush1.msra.mxu0 0.0
      %3497 = vmatprep.subr.mxu0 0.0
      %3498 = vmatpush1.msra.mxu0 0.0
      %3499 = vmatprep.subr.mxu0 0.0
      %3500 = vmatpush1.msra.mxu0 0.0
      %3501 = vmatprep.subr.mxu0 0.0
      %3502 = vmatpush1.msra.mxu0 0.0
      %3503 = vmatprep.subr.mxu0 0.0
      %3504 = vmatpush1.msra.mxu0 0.0
      %3505 = vmatprep.subr.mxu0 0.0
      %3506 = vmatpush1.msra.mxu0 0.0
      %3507 = vmatprep.subr.mxu0 0.0
      %3508 = vmatpush1.msra.mxu0 0.0
      %3509 = vmatprep.subr.mxu0 0.0
      %3510 = vmatpush1.msra.mxu0 0.0
      %3511 = vmatprep.subr.mxu0 0.0
      %3512 = vmatpush1.msra.mxu0 0.0
      %3513 = vmatprep.subr.mxu0 0.0
      %3514 = vmatpush1.msra.mxu0 0.0
      %3515 = vmatprep.subr.mxu0 0.0
      %3516 = vmatpush1.msra.mxu0 0.0
      %3517 = vmatprep.subr.mxu0 0.0
      %3518 = vmatpush1.msra.mxu0 0.0
      %3519 = vmatprep.subr.mxu0 0.0
      %3520 = vmatpush1.msra.mxu0 0.0
      %3521 = vmatprep.subr.mxu0 0.0
      %3522 = vmatpush1.msra.mxu0 0.0
      %3523 = vmatprep.mubr.f32.mxu0 0.0
      %3524 = vmatmul.mubr.f32.gmra.mrb[0].mxu0 %v3457
      %v3525 = vpop.f32.mrb[0].mxu0
      %v3526 = vadd.f32 0.0, %v3525
      %v3527 = vpop.f32.mrb[0].mxu0
      %3528 = vdwg.mxu0
      %3529 = vrot.lane.b32.xlu0 %v3104, 64
      %v3530 = vpop.permute.xlu0 %3529
      %v3533 = vsel %vm583, %v3376, 0
      %3535 = vmatprep.subr.mxu0 0.0
      %3536 = vmatpush1.msra.mxu0 %v3530
      %3537 = vmatprep.subr.mxu0 0.0
      %3538 = vmatpush1.msra.mxu0 0.0
      %3539 = vmatprep.subr.mxu0 0.0
      %3540 = vmatpush1.msra.mxu0 0.0
      %3541 = vmatprep.subr.mxu0 0.0
      %3542 = vmatpush1.msra.mxu0 0.0
      %3543 = vmatprep.subr.mxu0 0.0
      %3544 = vmatpush1.msra.mxu0 0.0
      %3545 = vmatprep.subr.mxu0 0.0
      %3546 = vmatpush1.msra.mxu0 0.0
      %3547 = vmatprep.subr.mxu0 0.0
      %3548 = vmatpush1.msra.mxu0 0.0
      %3549 = vmatprep.subr.mxu0 0.0
      %3550 = vmatpush1.msra.mxu0 0.0
      %3551 = vmatprep.subr.mxu0 0.0
      %3552 = vmatpush1.msra.mxu0 0.0
      %3553 = vmatprep.subr.mxu0 0.0
      %3554 = vmatpush1.msra.mxu0 0.0
      %3555 = vmatprep.subr.mxu0 0.0
      %3556 = vmatpush1.msra.mxu0 0.0
      %3557 = vmatprep.subr.mxu0 0.0
      %3558 = vmatpush1.msra.mxu0 0.0
      %3559 = vmatprep.subr.mxu0 0.0
      %3560 = vmatpush1.msra.mxu0 0.0
      %3561 = vmatprep.subr.mxu0 0.0
      %3562 = vmatpush1.msra.mxu0 0.0
      %3563 = vmatprep.subr.mxu0 0.0
      %3564 = vmatpush1.msra.mxu0 0.0
      %3565 = vmatprep.subr.mxu0 0.0
      %3566 = vmatpush1.msra.mxu0 0.0
      %3567 = vmatprep.subr.mxu0 0.0
      %3568 = vmatpush1.msra.mxu0 0.0
      %3569 = vmatprep.subr.mxu0 0.0
      %3570 = vmatpush1.msra.mxu0 0.0
      %3571 = vmatprep.subr.mxu0 0.0
      %3572 = vmatpush1.msra.mxu0 0.0
      %3573 = vmatprep.subr.mxu0 0.0
      %3574 = vmatpush1.msra.mxu0 0.0
      %3575 = vmatprep.subr.mxu0 0.0
      %3576 = vmatpush1.msra.mxu0 0.0
      %3577 = vmatprep.subr.mxu0 0.0
      %3578 = vmatpush1.msra.mxu0 0.0
      %3579 = vmatprep.subr.mxu0 0.0
      %3580 = vmatpush1.msra.mxu0 0.0
      %3581 = vmatprep.subr.mxu0 0.0
      %3582 = vmatpush1.msra.mxu0 0.0
      %3583 = vmatprep.subr.mxu0 0.0
      %3584 = vmatpush1.msra.mxu0 0.0
      %3585 = vmatprep.subr.mxu0 0.0
      %3586 = vmatpush1.msra.mxu0 0.0
      %3587 = vmatprep.subr.mxu0 0.0
      %3588 = vmatpush1.msra.mxu0 0.0
      %3589 = vmatprep.subr.mxu0 0.0
      %3590 = vmatpush1.msra.mxu0 0.0
      %3591 = vmatprep.subr.mxu0 0.0
      %3592 = vmatpush1.msra.mxu0 0.0
      %3593 = vmatprep.subr.mxu0 0.0
      %3594 = vmatpush1.msra.mxu0 0.0
      %3595 = vmatprep.subr.mxu0 0.0
      %3596 = vmatpush1.msra.mxu0 0.0
      %3597 = vmatprep.subr.mxu0 0.0
      %3598 = vmatpush1.msra.mxu0 0.0
      %3599 = vmatprep.mubr.f32.mxu0 0.0
      %3600 = vmatmul.mubr.f32.gmra.mrb[0].mxu0 %v3533
      %v3601 = vpop.f32.mrb[0].mxu0
      %v3602 = vadd.f32 0.0, %v3601
      %v3603 = vpop.f32.mrb[0].mxu0
      %3604 = vdwg.mxu0
      %3605 = vrot.lane.b32.xlu0 %v3094, 120
      %v3606 = vpop.permute.xlu0 %3605
      %3607 = vrot.lane.b32.xlu0 %v3094, 88
      %v3608 = vpop.permute.xlu0 %3607
      %v3609 = vsel %vm583, %v3606, 0
      %v3611 = vsel %vm583, %v3608, 0
      %3613 = vmatprep.subr.mxu0 0.0
      %3614 = vmatpush1.xpose.msra.mxu0 %v3611
      %3615 = vmatprep.subr.mxu0 0.0
      %3616 = vmatpush1.xpose.msra.mxu0 0.0
      %3617 = vmatprep.subr.mxu0 0.0
      %3618 = vmatpush1.xpose.msra.mxu0 0.0
      %3619 = vmatprep.subr.mxu0 0.0
      %3620 = vmatpush1.xpose.msra.mxu0 0.0
      %3621 = vmatprep.subr.mxu0 0.0
      %3622 = vmatpush1.xpose.msra.mxu0 0.0
      %3623 = vmatprep.subr.mxu0 0.0
      %3624 = vmatpush1.xpose.msra.mxu0 0.0
      %3625 = vmatprep.subr.mxu0 0.0
      %3626 = vmatpush1.xpose.msra.mxu0 0.0
      %3627 = vmatprep.subr.mxu0 0.0
      %3628 = vmatpush1.xpose.msra.mxu0 0.0
      %3629 = vmatprep.subr.mxu0 0.0
      %3630 = vmatpush1.xpose.msra.mxu0 0.0
      %3631 = vmatprep.subr.mxu0 0.0
      %3632 = vmatpush1.xpose.msra.mxu0 0.0
      %3633 = vmatprep.subr.mxu0 0.0
      %3634 = vmatpush1.xpose.msra.mxu0 0.0
      %3635 = vmatprep.subr.mxu0 0.0
      %3636 = vmatpush1.xpose.msra.mxu0 0.0
      %3637 = vmatprep.subr.mxu0 0.0
      %3638 = vmatpush1.xpose.msra.mxu0 0.0
      %3639 = vmatprep.subr.mxu0 0.0
      %3640 = vmatpush1.xpose.msra.mxu0 0.0
      %3641 = vmatprep.subr.mxu0 0.0
      %3642 = vmatpush1.xpose.msra.mxu0 0.0
      %3643 = vmatprep.subr.mxu0 0.0
      %3644 = vmatpush1.xpose.msra.mxu0 0.0
      %3645 = vmatprep.subr.mxu0 0.0
      %3646 = vmatpush1.xpose.msra.mxu0 0.0
      %3647 = vmatprep.subr.mxu0 0.0
      %3648 = vmatpush1.xpose.msra.mxu0 0.0
      %3649 = vmatprep.subr.mxu0 0.0
      %3650 = vmatpush1.xpose.msra.mxu0 0.0
      %3651 = vmatprep.subr.mxu0 0.0
      %3652 = vmatpush1.xpose.msra.mxu0 0.0
      %3653 = vmatprep.subr.mxu0 0.0
      %3654 = vmatpush1.xpose.msra.mxu0 0.0
      %3655 = vmatprep.subr.mxu0 0.0
      %3656 = vmatpush1.xpose.msra.mxu0 0.0
      %3657 = vmatprep.subr.mxu0 0.0
      %3658 = vmatpush1.xpose.msra.mxu0 0.0
      %3659 = vmatprep.subr.mxu0 0.0
      %3660 = vmatpush1.xpose.msra.mxu0 0.0
      %3661 = vmatprep.subr.mxu0 0.0
      %3662 = vmatpush1.xpose.msra.mxu0 0.0
      %3663 = vmatprep.subr.mxu0 0.0
      %3664 = vmatpush1.xpose.msra.mxu0 0.0
      %3665 = vmatprep.subr.mxu0 0.0
      %3666 = vmatpush1.xpose.msra.mxu0 0.0
      %3667 = vmatprep.subr.mxu0 0.0
      %3668 = vmatpush1.xpose.msra.mxu0 0.0
      %3669 = vmatprep.subr.mxu0 0.0
      %3670 = vmatpush1.xpose.msra.mxu0 0.0
      %3671 = vmatprep.subr.mxu0 0.0
      %3672 = vmatpush1.xpose.msra.mxu0 0.0
      %3673 = vmatprep.subr.mxu0 0.0
      %3674 = vmatpush1.xpose.msra.mxu0 0.0
      %3675 = vmatprep.subr.mxu0 0.0
      %3676 = vmatpush1.xpose.msra.mxu0 0.0
      %3677 = vmatprep.mubr.f32.mxu0 0.0
      %3678 = vmatmul.mubr.f32.gmra.mrb[0].mxu0 %v3609
      %v3679 = vpop.f32.mrb[0].mxu0
      %v3680 = vadd.f32 0.0, %v3679
      %v3681 = vpop.f32.mrb[0].mxu0
      %3682 = vdwg.mxu0
      %3683 = vrot.lane.b32.xlu0 %v3099, 120
      %v3684 = vpop.permute.xlu0 %3683
      %3685 = vrot.lane.b32.xlu0 %v3099, 88
      %v3686 = vpop.permute.xlu0 %3685
      %v3687 = vsel %vm583, %v3684, 0
      %v3689 = vsel %vm583, %v3686, 0
      %3691 = vmatprep.subr.mxu0 0.0
      %3692 = vmatpush1.xpose.msra.mxu0 %v3689
      %3693 = vmatprep.subr.mxu0 0.0
      %3694 = vmatpush1.xpose.msra.mxu0 0.0
      %3695 = vmatprep.subr.mxu0 0.0
      %3696 = vmatpush1.xpose.msra.mxu0 0.0
      %3697 = vmatprep.subr.mxu0 0.0
      %3698 = vmatpush1.xpose.msra.mxu0 0.0
      %3699 = vmatprep.subr.mxu0 0.0
      %3700 = vmatpush1.xpose.msra.mxu0 0.0
      %3701 = vmatprep.subr.mxu0 0.0
      %3702 = vmatpush1.xpose.msra.mxu0 0.0
      %3703 = vmatprep.subr.mxu0 0.0
      %3704 = vmatpush1.xpose.msra.mxu0 0.0
      %3705 = vmatprep.subr.mxu0 0.0
      %3706 = vmatpush1.xpose.msra.mxu0 0.0
      %3707 = vmatprep.subr.mxu0 0.0
      %3708 = vmatpush1.xpose.msra.mxu0 0.0
      %3709 = vmatprep.subr.mxu0 0.0
      %3710 = vmatpush1.xpose.msra.mxu0 0.0
      %3711 = vmatprep.subr.mxu0 0.0
      %3712 = vmatpush1.xpose.msra.mxu0 0.0
      %3713 = vmatprep.subr.mxu0 0.0
      %3714 = vmatpush1.xpose.msra.mxu0 0.0
      %3715 = vmatprep.subr.mxu0 0.0
      %3716 = vmatpush1.xpose.msra.mxu0 0.0
      %3717 = vmatprep.subr.mxu0 0.0
      %3718 = vmatpush1.xpose.msra.mxu0 0.0
      %3719 = vmatprep.subr.mxu0 0.0
      %3720 = vmatpush1.xpose.msra.mxu0 0.0
      %3721 = vmatprep.subr.mxu0 0.0
      %3722 = vmatpush1.xpose.msra.mxu0 0.0
      %3723 = vmatprep.subr.mxu0 0.0
      %3724 = vmatpush1.xpose.msra.mxu0 0.0
      %3725 = vmatprep.subr.mxu0 0.0
      %3726 = vmatpush1.xpose.msra.mxu0 0.0
      %3727 = vmatprep.subr.mxu0 0.0
      %3728 = vmatpush1.xpose.msra.mxu0 0.0
      %3729 = vmatprep.subr.mxu0 0.0
      %3730 = vmatpush1.xpose.msra.mxu0 0.0
      %3731 = vmatprep.subr.mxu0 0.0
      %3732 = vmatpush1.xpose.msra.mxu0 0.0
      %3733 = vmatprep.subr.mxu0 0.0
      %3734 = vmatpush1.xpose.msra.mxu0 0.0
      %3735 = vmatprep.subr.mxu0 0.0
      %3736 = vmatpush1.xpose.msra.mxu0 0.0
      %3737 = vmatprep.subr.mxu0 0.0
      %3738 = vmatpush1.xpose.msra.mxu0 0.0
      %3739 = vmatprep.subr.mxu0 0.0
      %3740 = vmatpush1.xpose.msra.mxu0 0.0
      %3741 = vmatprep.subr.mxu0 0.0
      %3742 = vmatpush1.xpose.msra.mxu0 0.0
      %3743 = vmatprep.subr.mxu0 0.0
      %3744 = vmatpush1.xpose.msra.mxu0 0.0
      %3745 = vmatprep.subr.mxu0 0.0
      %3746 = vmatpush1.xpose.msra.mxu0 0.0
      %3747 = vmatprep.subr.mxu0 0.0
      %3748 = vmatpush1.xpose.msra.mxu0 0.0
      %3749 = vmatprep.subr.mxu0 0.0
      %3750 = vmatpush1.xpose.msra.mxu0 0.0
      %3751 = vmatprep.subr.mxu0 0.0
      %3752 = vmatpush1.xpose.msra.mxu0 0.0
      %3753 = vmatprep.subr.mxu0 0.0
      %3754 = vmatpush1.xpose.msra.mxu0 0.0
      %3755 = vmatprep.mubr.f32.mxu0 0.0
      %3756 = vmatmul.mubr.f32.gmra.mrb[0].mxu0 %v3687
      %v3757 = vpop.f32.mrb[0].mxu0
      %v3758 = vadd.f32 0.0, %v3757
      %v3759 = vpop.f32.mrb[0].mxu0
      %3760 = vdwg.mxu0
      %3761 = vrot.lane.b32.xlu0 %v3104, 120
      %v3762 = vpop.permute.xlu0 %3761
      %3763 = vrot.lane.b32.xlu0 %v3104, 88
      %v3764 = vpop.permute.xlu0 %3763
      %v3765 = vsel %vm583, %v3762, 0
      %v3767 = vsel %vm583, %v3764, 0
      %3769 = vmatprep.subr.mxu0 0.0
      %3770 = vmatpush1.xpose.msra.mxu0 %v3767
      %3771 = vmatprep.subr.mxu0 0.0
      %3772 = vmatpush1.xpose.msra.mxu0 0.0
      %3773 = vmatprep.subr.mxu0 0.0
      %3774 = vmatpush1.xpose.msra.mxu0 0.0
      %3775 = vmatprep.subr.mxu0 0.0
      %3776 = vmatpush1.xpose.msra.mxu0 0.0
      %3777 = vmatprep.subr.mxu0 0.0
      %3778 = vmatpush1.xpose.msra.mxu0 0.0
      %3779 = vmatprep.subr.mxu0 0.0
      %3780 = vmatpush1.xpose.msra.mxu0 0.0
      %3781 = vmatprep.subr.mxu0 0.0
      %3782 = vmatpush1.xpose.msra.mxu0 0.0
      %3783 = vmatprep.subr.mxu0 0.0
      %3784 = vmatpush1.xpose.msra.mxu0 0.0
      %3785 = vmatprep.subr.mxu0 0.0
      %3786 = vmatpush1.xpose.msra.mxu0 0.0
      %3787 = vmatprep.subr.mxu0 0.0
      %3788 = vmatpush1.xpose.msra.mxu0 0.0
      %3789 = vmatprep.subr.mxu0 0.0
      %3790 = vmatpush1.xpose.msra.mxu0 0.0
      %3791 = vmatprep.subr.mxu0 0.0
      %3792 = vmatpush1.xpose.msra.mxu0 0.0
      %3793 = vmatprep.subr.mxu0 0.0
      %3794 = vmatpush1.xpose.msra.mxu0 0.0
      %3795 = vmatprep.subr.mxu0 0.0
      %3796 = vmatpush1.xpose.msra.mxu0 0.0
      %3797 = vmatprep.subr.mxu0 0.0
      %3798 = vmatpush1.xpose.msra.mxu0 0.0
      %3799 = vmatprep.subr.mxu0 0.0
      %3800 = vmatpush1.xpose.msra.mxu0 0.0
      %3801 = vmatprep.subr.mxu0 0.0
      %3802 = vmatpush1.xpose.msra.mxu0 0.0
      %3803 = vmatprep.subr.mxu0 0.0
      %3804 = vmatpush1.xpose.msra.mxu0 0.0
      %3805 = vmatprep.subr.mxu0 0.0
      %3806 = vmatpush1.xpose.msra.mxu0 0.0
      %3807 = vmatprep.subr.mxu0 0.0
      %3808 = vmatpush1.xpose.msra.mxu0 0.0
      %3809 = vmatprep.subr.mxu0 0.0
      %3810 = vmatpush1.xpose.msra.mxu0 0.0
      %3811 = vmatprep.subr.mxu0 0.0
      %3812 = vmatpush1.xpose.msra.mxu0 0.0
      %3813 = vmatprep.subr.mxu0 0.0
      %3814 = vmatpush1.xpose.msra.mxu0 0.0
      %3815 = vmatprep.subr.mxu0 0.0
      %3816 = vmatpush1.xpose.msra.mxu0 0.0
      %3817 = vmatprep.subr.mxu0 0.0
      %3818 = vmatpush1.xpose.msra.mxu0 0.0
      %3819 = vmatprep.subr.mxu0 0.0
      %3820 = vmatpush1.xpose.msra.mxu0 0.0
      %3821 = vmatprep.subr.mxu0 0.0
      %3822 = vmatpush1.xpose.msra.mxu0 0.0
      %3823 = vmatprep.subr.mxu0 0.0
      %3824 = vmatpush1.xpose.msra.mxu0 0.0
      %3825 = vmatprep.subr.mxu0 0.0
      %3826 = vmatpush1.xpose.msra.mxu0 0.0
      %3827 = vmatprep.subr.mxu0 0.0
      %3828 = vmatpush1.xpose.msra.mxu0 0.0
      %3829 = vmatprep.subr.mxu0 0.0
      %3830 = vmatpush1.xpose.msra.mxu0 0.0
      %3831 = vmatprep.subr.mxu0 0.0
      %3832 = vmatpush1.xpose.msra.mxu0 0.0
      %3833 = vmatprep.mubr.f32.mxu0 0.0
      %3834 = vmatmul.mubr.f32.gmra.mrb[0].mxu0 %v3765
      %v3835 = vpop.f32.mrb[0].mxu0
      %v3836 = vadd.f32 0.0, %v3835
      %v3837 = vpop.f32.mrb[0].mxu0
      %3838 = vdwg.mxu0
      %v3839 = vmul.f32 %v3680, 0.35355338
      %v3840 = vmul.f32 %v3758, 0.35355338
      %v3841 = vmul.f32 %v3836, 0.35355338
      %v3842 = vsel %vm816, %v3839, -1e+30
      %v3843 = vsel %vm816, %v3840, -1e+30
      %v3844 = vsel %vm816, %v3841, -1e+30
      %v3845 = vsel %vm583, %v3842, -inf
      %3846 = vmax.xlane.f32.xlu0 %v3845
      %v3847 = vpop.xlane.xlu0 %3846
      %v3848 = vsel %vm583, %v3843, -inf
      %3849 = vmax.xlane.f32.xlu0 %v3848
      %v3850 = vpop.xlane.xlu0 %3849
      %v3851 = vsel %vm583, %v3844, -inf
      %3852 = vmax.xlane.f32.xlu0 %v3851
      %v3853 = vpop.xlane.xlu0 %3852
      %v3854 = vsub.f32 %v3842, %v3847
      %v3855 = vsub.f32 %v3843, %v3850
      %v3856 = vsub.f32 %v3844, %v3853
      %v3857 = vmul.f32 %v3854, 1.442695
      %v3858 = vpow.pop %v3857
      %v3859 = vmul.f32 %v3855, 1.442695
      %v3860 = vpow.pop %v3859
      %v3861 = vmul.f32 %v3856, 1.442695
      %v3862 = vpow.pop %v3861
      %v3863 = vsel %vm583, %v3858, 0.0
      %3864 = vadd.xlane.f32.xlu0 %v3863
      %v3865 = vpop.xlane.xlu0 %3864
      %v3866 = vsel %vm583, %v3860, 0.0
      %3867 = vadd.xlane.f32.xlu0 %v3866
      %v3868 = vpop.xlane.xlu0 %3867
      %v3869 = vsel %vm583, %v3862, 0.0
      %3870 = vadd.xlane.f32.xlu0 %v3869
      %v3871 = vpop.xlane.xlu0 %3870
      %v3872 = vrcp.pop %v3865
      %v3873 = vrcp.pop %v3868
      %v3874 = vrcp.pop %v3871
      %v3875 = vmul.f32 %v3858, %v3872
      %v3876 = vmul.f32 %v3860, %v3873
      %v3877 = vmul.f32 %v3862, %v3874
      %3878 = vrot.lane.b32.xlu0 %v3094, 56
      %v3879 = vpop.permute.xlu0 %3878
      %v3882 = vsel %vm583, %v3875, 0
      %3884 = vmatprep.subr.mxu0 0.0
      %3885 = vmatpush1.msra.mxu0 %v3879
      %3886 = vmatprep.subr.mxu0 0.0
      %3887 = vmatpush1.msra.mxu0 0.0
      %3888 = vmatprep.subr.mxu0 0.0
      %3889 = vmatpush1.msra.mxu0 0.0
      %3890 = vmatprep.subr.mxu0 0.0
      %3891 = vmatpush1.msra.mxu0 0.0
      %3892 = vmatprep.subr.mxu0 0.0
      %3893 = vmatpush1.msra.mxu0 0.0
      %3894 = vmatprep.subr.mxu0 0.0
      %3895 = vmatpush1.msra.mxu0 0.0
      %3896 = vmatprep.subr.mxu0 0.0
      %3897 = vmatpush1.msra.mxu0 0.0
      %3898 = vmatprep.subr.mxu0 0.0
      %3899 = vmatpush1.msra.mxu0 0.0
      %3900 = vmatprep.subr.mxu0 0.0
      %3901 = vmatpush1.msra.mxu0 0.0
      %3902 = vmatprep.subr.mxu0 0.0
      %3903 = vmatpush1.msra.mxu0 0.0
      %3904 = vmatprep.subr.mxu0 0.0
      %3905 = vmatpush1.msra.mxu0 0.0
      %3906 = vmatprep.subr.mxu0 0.0
      %3907 = vmatpush1.msra.mxu0 0.0
      %3908 = vmatprep.subr.mxu0 0.0
      %3909 = vmatpush1.msra.mxu0 0.0
      %3910 = vmatprep.subr.mxu0 0.0
      %3911 = vmatpush1.msra.mxu0 0.0
      %3912 = vmatprep.subr.mxu0 0.0
      %3913 = vmatpush1.msra.mxu0 0.0
      %3914 = vmatprep.subr.mxu0 0.0
      %3915 = vmatpush1.msra.mxu0 0.0
      %3916 = vmatprep.subr.mxu0 0.0
      %3917 = vmatpush1.msra.mxu0 0.0
      %3918 = vmatprep.subr.mxu0 0.0
      %3919 = vmatpush1.msra.mxu0 0.0
      %3920 = vmatprep.subr.mxu0 0.0
      %3921 = vmatpush1.msra.mxu0 0.0
      %3922 = vmatprep.subr.mxu0 0.0
      %3923 = vmatpush1.msra.mxu0 0.0
      %3924 = vmatprep.subr.mxu0 0.0
      %3925 = vmatpush1.msra.mxu0 0.0
      %3926 = vmatprep.subr.mxu0 0.0
      %3927 = vmatpush1.msra.mxu0 0.0
      %3928 = vmatprep.subr.mxu0 0.0
      %3929 = vmatpush1.msra.mxu0 0.0
      %3930 = vmatprep.subr.mxu0 0.0
      %3931 = vmatpush1.msra.mxu0 0.0
      %3932 = vmatprep.subr.mxu0 0.0
      %3933 = vmatpush1.msra.mxu0 0.0
      %3934 = vmatprep.subr.mxu0 0.0
      %3935 = vmatpush1.msra.mxu0 0.0
      %3936 = vmatprep.subr.mxu0 0.0
      %3937 = vmatpush1.msra.mxu0 0.0
      %3938 = vmatprep.subr.mxu0 0.0
      %3939 = vmatpush1.msra.mxu0 0.0
      %3940 = vmatprep.subr.mxu0 0.0
      %3941 = vmatpush1.msra.mxu0 0.0
      %3942 = vmatprep.subr.mxu0 0.0
      %3943 = vmatpush1.msra.mxu0 0.0
      %3944 = vmatprep.subr.mxu0 0.0
      %3945 = vmatpush1.msra.mxu0 0.0
      %3946 = vmatprep.subr.mxu0 0.0
      %3947 = vmatpush1.msra.mxu0 0.0
      %3948 = vmatprep.mubr.f32.mxu0 0.0
      %3949 = vmatmul.mubr.f32.gmra.mrb[0].mxu0 %v3882
      %v3950 = vpop.f32.mrb[0].mxu0
      %v3951 = vadd.f32 0.0, %v3950
      %v3952 = vpop.f32.mrb[0].mxu0
      %3953 = vdwg.mxu0
      %3954 = vrot.lane.b32.xlu0 %v3099, 56
      %v3955 = vpop.permute.xlu0 %3954
      %v3958 = vsel %vm583, %v3876, 0
      %3960 = vmatprep.subr.mxu0 0.0
      %3961 = vmatpush1.msra.mxu0 %v3955
      %3962 = vmatprep.subr.mxu0 0.0
      %3963 = vmatpush1.msra.mxu0 0.0
      %3964 = vmatprep.subr.mxu0 0.0
      %3965 = vmatpush1.msra.mxu0 0.0
      %3966 = vmatprep.subr.mxu0 0.0
      %3967 = vmatpush1.msra.mxu0 0.0
      %3968 = vmatprep.subr.mxu0 0.0
      %3969 = vmatpush1.msra.mxu0 0.0
      %3970 = vmatprep.subr.mxu0 0.0
      %3971 = vmatpush1.msra.mxu0 0.0
      %3972 = vmatprep.subr.mxu0 0.0
      %3973 = vmatpush1.msra.mxu0 0.0
      %3974 = vmatprep.subr.mxu0 0.0
      %3975 = vmatpush1.msra.mxu0 0.0
      %3976 = vmatprep.subr.mxu0 0.0
      %3977 = vmatpush1.msra.mxu0 0.0
      %3978 = vmatprep.subr.mxu0 0.0
      %3979 = vmatpush1.msra.mxu0 0.0
      %3980 = vmatprep.subr.mxu0 0.0
      %3981 = vmatpush1.msra.mxu0 0.0
      %3982 = vmatprep.subr.mxu0 0.0
      %3983 = vmatpush1.msra.mxu0 0.0
      %3984 = vmatprep.subr.mxu0 0.0
      %3985 = vmatpush1.msra.mxu0 0.0
      %3986 = vmatprep.subr.mxu0 0.0
      %3987 = vmatpush1.msra.mxu0 0.0
      %3988 = vmatprep.subr.mxu0 0.0
      %3989 = vmatpush1.msra.mxu0 0.0
      %3990 = vmatprep.subr.mxu0 0.0
      %3991 = vmatpush1.msra.mxu0 0.0
      %3992 = vmatprep.subr.mxu0 0.0
      %3993 = vmatpush1.msra.mxu0 0.0
      %3994 = vmatprep.subr.mxu0 0.0
      %3995 = vmatpush1.msra.mxu0 0.0
      %3996 = vmatprep.subr.mxu0 0.0
      %3997 = vmatpush1.msra.mxu0 0.0
      %3998 = vmatprep.subr.mxu0 0.0
      %3999 = vmatpush1.msra.mxu0 0.0
      %4000 = vmatprep.subr.mxu0 0.0
      %4001 = vmatpush1.msra.mxu0 0.0
      %4002 = vmatprep.subr.mxu0 0.0
      %4003 = vmatpush1.msra.mxu0 0.0
      %4004 = vmatprep.subr.mxu0 0.0
      %4005 = vmatpush1.msra.mxu0 0.0
      %4006 = vmatprep.subr.mxu0 0.0
      %4007 = vmatpush1.msra.mxu0 0.0
      %4008 = vmatprep.subr.mxu0 0.0
      %4009 = vmatpush1.msra.mxu0 0.0
      %4010 = vmatprep.subr.mxu0 0.0
      %4011 = vmatpush1.msra.mxu0 0.0
      %4012 = vmatprep.subr.mxu0 0.0
      %4013 = vmatpush1.msra.mxu0 0.0
      %4014 = vmatprep.subr.mxu0 0.0
      %4015 = vmatpush1.msra.mxu0 0.0
      %4016 = vmatprep.subr.mxu0 0.0
      %4017 = vmatpush1.msra.mxu0 0.0
      %4018 = vmatprep.subr.mxu0 0.0
      %4019 = vmatpush1.msra.mxu0 0.0
      %4020 = vmatprep.subr.mxu0 0.0
      %4021 = vmatpush1.msra.mxu0 0.0
      %4022 = vmatprep.subr.mxu0 0.0
      %4023 = vmatpush1.msra.mxu0 0.0
      %4024 = vmatprep.mubr.f32.mxu0 0.0
      %4025 = vmatmul.mubr.f32.gmra.mrb[0].mxu0 %v3958
      %v4026 = vpop.f32.mrb[0].mxu0
      %v4027 = vadd.f32 0.0, %v4026
      %v4028 = vpop.f32.mrb[0].mxu0
      %4029 = vdwg.mxu0
      %4030 = vrot.lane.b32.xlu0 %v3104, 56
      %v4031 = vpop.permute.xlu0 %4030
      %v4034 = vsel %vm583, %v3877, 0
      %4036 = vmatprep.subr.mxu0 0.0
      %4037 = vmatpush1.msra.mxu0 %v4031
      %4038 = vmatprep.subr.mxu0 0.0
      %4039 = vmatpush1.msra.mxu0 0.0
      %4040 = vmatprep.subr.mxu0 0.0
      %4041 = vmatpush1.msra.mxu0 0.0
      %4042 = vmatprep.subr.mxu0 0.0
      %4043 = vmatpush1.msra.mxu0 0.0
      %4044 = vmatprep.subr.mxu0 0.0
      %4045 = vmatpush1.msra.mxu0 0.0
      %4046 = vmatprep.subr.mxu0 0.0
      %4047 = vmatpush1.msra.mxu0 0.0
      %4048 = vmatprep.subr.mxu0 0.0
      %4049 = vmatpush1.msra.mxu0 0.0
      %4050 = vmatprep.subr.mxu0 0.0
      %4051 = vmatpush1.msra.mxu0 0.0
      %4052 = vmatprep.subr.mxu0 0.0
      %4053 = vmatpush1.msra.mxu0 0.0
      %4054 = vmatprep.subr.mxu0 0.0
      %4055 = vmatpush1.msra.mxu0 0.0
      %4056 = vmatprep.subr.mxu0 0.0
      %4057 = vmatpush1.msra.mxu0 0.0
      %4058 = vmatprep.subr.mxu0 0.0
      %4059 = vmatpush1.msra.mxu0 0.0
      %4060 = vmatprep.subr.mxu0 0.0
      %4061 = vmatpush1.msra.mxu0 0.0
      %4062 = vmatprep.subr.mxu0 0.0
      %4063 = vmatpush1.msra.mxu0 0.0
      %4064 = vmatprep.subr.mxu0 0.0
      %4065 = vmatpush1.msra.mxu0 0.0
      %4066 = vmatprep.subr.mxu0 0.0
      %4067 = vmatpush1.msra.mxu0 0.0
      %4068 = vmatprep.subr.mxu0 0.0
      %4069 = vmatpush1.msra.mxu0 0.0
      %4070 = vmatprep.subr.mxu0 0.0
      %4071 = vmatpush1.msra.mxu0 0.0
      %4072 = vmatprep.subr.mxu0 0.0
      %4073 = vmatpush1.msra.mxu0 0.0
      %4074 = vmatprep.subr.mxu0 0.0
      %4075 = vmatpush1.msra.mxu0 0.0
      %4076 = vmatprep.subr.mxu0 0.0
      %4077 = vmatpush1.msra.mxu0 0.0
      %4078 = vmatprep.subr.mxu0 0.0
      %4079 = vmatpush1.msra.mxu0 0.0
      %4080 = vmatprep.subr.mxu0 0.0
      %4081 = vmatpush1.msra.mxu0 0.0
      %4082 = vmatprep.subr.mxu0 0.0
      %4083 = vmatpush1.msra.mxu0 0.0
      %4084 = vmatprep.subr.mxu0 0.0
      %4085 = vmatpush1.msra.mxu0 0.0
      %4086 = vmatprep.subr.mxu0 0.0
      %4087 = vmatpush1.msra.mxu0 0.0
      %4088 = vmatprep.subr.mxu0 0.0
      %4089 = vmatpush1.msra.mxu0 0.0
      %4090 = vmatprep.subr.mxu0 0.0
      %4091 = vmatpush1.msra.mxu0 0.0
      %4092 = vmatprep.subr.mxu0 0.0
      %4093 = vmatpush1.msra.mxu0 0.0
      %4094 = vmatprep.subr.mxu0 0.0
      %4095 = vmatpush1.msra.mxu0 0.0
      %4096 = vmatprep.subr.mxu0 0.0
      %4097 = vmatpush1.msra.mxu0 0.0
      %4098 = vmatprep.subr.mxu0 0.0
      %4099 = vmatpush1.msra.mxu0 0.0
      %4100 = vmatprep.mubr.f32.mxu0 0.0
      %4101 = vmatmul.mubr.f32.gmra.mrb[0].mxu0 %v4034
      %v4102 = vpop.f32.mrb[0].mxu0
      %v4103 = vadd.f32 0.0, %v4102
      %v4104 = vpop.f32.mrb[0].mxu0
      %4105 = vdwg.mxu0
      %v4107 = vsel %vm583, %v3951, 0
      %v4110 = vsel %vm583, %v4027, 0
      %v4113 = vsel %vm583, %v4103, 0
      %4115 = vmatprep.subr.mxu0 0.0
      %4116 = vmatpush1.msra.mxu0 %v475
      %4117 = vmatprep.subr.mxu0 0.0
      %4118 = vmatpush1.msra.mxu0 0.0
      %4119 = vmatprep.subr.mxu0 0.0
      %4120 = vmatpush1.msra.mxu0 0.0
      %4121 = vmatprep.subr.mxu0 0.0
      %4122 = vmatpush1.msra.mxu0 0.0
      %4123 = vmatprep.subr.mxu0 0.0
      %4124 = vmatpush1.msra.mxu0 0.0
      %4125 = vmatprep.subr.mxu0 0.0
      %4126 = vmatpush1.msra.mxu0 0.0
      %4127 = vmatprep.subr.mxu0 0.0
      %4128 = vmatpush1.msra.mxu0 0.0
      %4129 = vmatprep.subr.mxu0 0.0
      %4130 = vmatpush1.msra.mxu0 0.0
      %4131 = vmatprep.subr.mxu0 0.0
      %4132 = vmatpush1.msra.mxu0 0.0
      %4133 = vmatprep.subr.mxu0 0.0
      %4134 = vmatpush1.msra.mxu0 0.0
      %4135 = vmatprep.subr.mxu0 0.0
      %4136 = vmatpush1.msra.mxu0 0.0
      %4137 = vmatprep.subr.mxu0 0.0
      %4138 = vmatpush1.msra.mxu0 0.0
      %4139 = vmatprep.subr.mxu0 0.0
      %4140 = vmatpush1.msra.mxu0 0.0
      %4141 = vmatprep.subr.mxu0 0.0
      %4142 = vmatpush1.msra.mxu0 0.0
      %4143 = vmatprep.subr.mxu0 0.0
      %4144 = vmatpush1.msra.mxu0 0.0
      %4145 = vmatprep.subr.mxu0 0.0
      %4146 = vmatpush1.msra.mxu0 0.0
      %4147 = vmatprep.subr.mxu0 0.0
      %4148 = vmatpush1.msra.mxu0 0.0
      %4149 = vmatprep.subr.mxu0 0.0
      %4150 = vmatpush1.msra.mxu0 0.0
      %4151 = vmatprep.subr.mxu0 0.0
      %4152 = vmatpush1.msra.mxu0 0.0
      %4153 = vmatprep.subr.mxu0 0.0
      %4154 = vmatpush1.msra.mxu0 0.0
      %4155 = vmatprep.subr.mxu0 0.0
      %4156 = vmatpush1.msra.mxu0 0.0
      %4157 = vmatprep.subr.mxu0 0.0
      %4158 = vmatpush1.msra.mxu0 0.0
      %4159 = vmatprep.subr.mxu0 0.0
      %4160 = vmatpush1.msra.mxu0 0.0
      %4161 = vmatprep.subr.mxu0 0.0
      %4162 = vmatpush1.msra.mxu0 0.0
      %4163 = vmatprep.subr.mxu0 0.0
      %4164 = vmatpush1.msra.mxu0 0.0
      %4165 = vmatprep.subr.mxu0 0.0
      %4166 = vmatpush1.msra.mxu0 0.0
      %4167 = vmatprep.subr.mxu0 0.0
      %4168 = vmatpush1.msra.mxu0 0.0
      %4169 = vmatprep.subr.mxu0 0.0
      %4170 = vmatpush1.msra.mxu0 0.0
      %4171 = vmatprep.subr.mxu0 0.0
      %4172 = vmatpush1.msra.mxu0 0.0
      %4173 = vmatprep.subr.mxu0 0.0
      %4174 = vmatpush1.msra.mxu0 0.0
      %4175 = vmatprep.subr.mxu0 0.0
      %4176 = vmatpush1.msra.mxu0 0.0
      %4177 = vmatprep.subr.mxu0 0.0
      %4178 = vmatpush1.msra.mxu0 0.0
      %4179 = vmatprep.mubr.f32.mxu0 0.0
      %4180 = vmatmul.mubr.f32.gmra.mrb[0].mxu0 %v4107
      %v4181 = vpop.f32.mrb[0].mxu0
      %v4182 = vadd.f32 0.0, %v4181
      %v4183 = vpop.f32.mrb[0].mxu0
      %4184 = vmatprep.mubr.f32.mxu0 0.0
      %4185 = vmatmul.mubr.f32.gmra.mrb[0].mxu0 %v4110
      %v4186 = vpop.f32.mrb[0].mxu0
      %v4187 = vadd.f32 0.0, %v4186
      %v4188 = vpop.f32.mrb[0].mxu0
      %4189 = vmatprep.mubr.f32.mxu0 0.0
      %4190 = vmatmul.mubr.f32.gmra.mrb[0].mxu0 %v4113
      %v4191 = vpop.f32.mrb[0].mxu0
      %v4192 = vadd.f32 0.0, %v4191
      %v4193 = vpop.f32.mrb[0].mxu0
      %4194 = vdwg.mxu0
      %v4196 = vsel %vm583, %v3450, 0
      %v4199 = vsel %vm583, %v3526, 0
      %v4202 = vsel %vm583, %v3602, 0
      %4204 = vmatprep.subr.mxu0 0.0
      %4205 = vmatpush1.msra.mxu0 %v474
      %4206 = vmatprep.subr.mxu0 0.0
      %4207 = vmatpush1.msra.mxu0 0.0
      %4208 = vmatprep.subr.mxu0 0.0
      %4209 = vmatpush1.msra.mxu0 0.0
      %4210 = vmatprep.subr.mxu0 0.0
      %4211 = vmatpush1.msra.mxu0 0.0
      %4212 = vmatprep.subr.mxu0 0.0
      %4213 = vmatpush1.msra.mxu0 0.0
      %4214 = vmatprep.subr.mxu0 0.0
      %4215 = vmatpush1.msra.mxu0 0.0
      %4216 = vmatprep.subr.mxu0 0.0
      %4217 = vmatpush1.msra.mxu0 0.0
      %4218 = vmatprep.subr.mxu0 0.0
      %4219 = vmatpush1.msra.mxu0 0.0
      %4220 = vmatprep.subr.mxu0 0.0
      %4221 = vmatpush1.msra.mxu0 0.0
      %4222 = vmatprep.subr.mxu0 0.0
      %4223 = vmatpush1.msra.mxu0 0.0
      %4224 = vmatprep.subr.mxu0 0.0
      %4225 = vmatpush1.msra.mxu0 0.0
      %4226 = vmatprep.subr.mxu0 0.0
      %4227 = vmatpush1.msra.mxu0 0.0
      %4228 = vmatprep.subr.mxu0 0.0
      %4229 = vmatpush1.msra.mxu0 0.0
      %4230 = vmatprep.subr.mxu0 0.0
      %4231 = vmatpush1.msra.mxu0 0.0
      %4232 = vmatprep.subr.mxu0 0.0
      %4233 = vmatpush1.msra.mxu0 0.0
      %4234 = vmatprep.subr.mxu0 0.0
      %4235 = vmatpush1.msra.mxu0 0.0
      %4236 = vmatprep.subr.mxu0 0.0
      %4237 = vmatpush1.msra.mxu0 0.0
      %4238 = vmatprep.subr.mxu0 0.0
      %4239 = vmatpush1.msra.mxu0 0.0
      %4240 = vmatprep.subr.mxu0 0.0
      %4241 = vmatpush1.msra.mxu0 0.0
      %4242 = vmatprep.subr.mxu0 0.0
      %4243 = vmatpush1.msra.mxu0 0.0
      %4244 = vmatprep.subr.mxu0 0.0
      %4245 = vmatpush1.msra.mxu0 0.0
      %4246 = vmatprep.subr.mxu0 0.0
      %4247 = vmatpush1.msra.mxu0 0.0
      %4248 = vmatprep.subr.mxu0 0.0
      %4249 = vmatpush1.msra.mxu0 0.0
      %4250 = vmatprep.subr.mxu0 0.0
      %4251 = vmatpush1.msra.mxu0 0.0
      %4252 = vmatprep.subr.mxu0 0.0
      %4253 = vmatpush1.msra.mxu0 0.0
      %4254 = vmatprep.subr.mxu0 0.0
      %4255 = vmatpush1.msra.mxu0 0.0
      %4256 = vmatprep.subr.mxu0 0.0
      %4257 = vmatpush1.msra.mxu0 0.0
      %4258 = vmatprep.subr.mxu0 0.0
      %4259 = vmatpush1.msra.mxu0 0.0
      %4260 = vmatprep.subr.mxu0 0.0
      %4261 = vmatpush1.msra.mxu0 0.0
      %4262 = vmatprep.subr.mxu0 0.0
      %4263 = vmatpush1.msra.mxu0 0.0
      %4264 = vmatprep.subr.mxu0 0.0
      %4265 = vmatpush1.msra.mxu0 0.0
      %4266 = vmatprep.subr.mxu0 0.0
      %4267 = vmatpush1.msra.mxu0 0.0
      %4268 = vmatprep.mubr.f32.mxu0 0.0
      %4269 = vmatmul.mubr.f32.gmra.mrb[0].mxu0 %v4196
      %v4270 = vpop.f32.mrb[0].mxu0
      %v4271 = vadd.f32 %v4182, %v4270
      %v4272 = vpop.f32.mrb[0].mxu0
      %4273 = vmatprep.mubr.f32.mxu0 0.0
      %4274 = vmatmul.mubr.f32.gmra.mrb[0].mxu0 %v4199
      %v4275 = vpop.f32.mrb[0].mxu0
      %v4276 = vadd.f32 %v4187, %v4275
      %v4277 = vpop.f32.mrb[0].mxu0
      %4278 = vmatprep.mubr.f32.mxu0 0.0
      %4279 = vmatmul.mubr.f32.gmra.mrb[0].mxu0 %v4202
      %v4280 = vpop.f32.mrb[0].mxu0
      %v4281 = vadd.f32 %v4192, %v4280
      %v4282 = vpop.f32.mrb[0].mxu0
      %4283 = vdwg.mxu0
      %4284 = vrot.lane.b32.xlu0 %v3094, 112
      %v4285 = vpop.permute.xlu0 %4284
      %4286 = vrot.lane.b32.xlu0 %v3094, 80
      %v4287 = vpop.permute.xlu0 %4286
      %v4288 = vsel %vm583, %v4285, 0
      %v4290 = vsel %vm583, %v4287, 0
      %4292 = vmatprep.subr.mxu0 0.0
      %4293 = vmatpush1.xpose.msra.mxu0 %v4290
      %4294 = vmatprep.subr.mxu0 0.0
      %4295 = vmatpush1.xpose.msra.mxu0 0.0
      %4296 = vmatprep.subr.mxu0 0.0
      %4297 = vmatpush1.xpose.msra.mxu0 0.0
      %4298 = vmatprep.subr.mxu0 0.0
      %4299 = vmatpush1.xpose.msra.mxu0 0.0
      %4300 = vmatprep.subr.mxu0 0.0
      %4301 = vmatpush1.xpose.msra.mxu0 0.0
      %4302 = vmatprep.subr.mxu0 0.0
      %4303 = vmatpush1.xpose.msra.mxu0 0.0
      %4304 = vmatprep.subr.mxu0 0.0
      %4305 = vmatpush1.xpose.msra.mxu0 0.0
      %4306 = vmatprep.subr.mxu0 0.0
      %4307 = vmatpush1.xpose.msra.mxu0 0.0
      %4308 = vmatprep.subr.mxu0 0.0
      %4309 = vmatpush1.xpose.msra.mxu0 0.0
      %4310 = vmatprep.subr.mxu0 0.0
      %4311 = vmatpush1.xpose.msra.mxu0 0.0
      %4312 = vmatprep.subr.mxu0 0.0
      %4313 = vmatpush1.xpose.msra.mxu0 0.0
      %4314 = vmatprep.subr.mxu0 0.0
      %4315 = vmatpush1.xpose.msra.mxu0 0.0
      %4316 = vmatprep.subr.mxu0 0.0
      %4317 = vmatpush1.xpose.msra.mxu0 0.0
      %4318 = vmatprep.subr.mxu0 0.0
      %4319 = vmatpush1.xpose.msra.mxu0 0.0
      %4320 = vmatprep.subr.mxu0 0.0
      %4321 = vmatpush1.xpose.msra.mxu0 0.0
      %4322 = vmatprep.subr.mxu0 0.0
      %4323 = vmatpush1.xpose.msra.mxu0 0.0
      %4324 = vmatprep.subr.mxu0 0.0
      %4325 = vmatpush1.xpose.msra.mxu0 0.0
      %4326 = vmatprep.subr.mxu0 0.0
      %4327 = vmatpush1.xpose.msra.mxu0 0.0
      %4328 = vmatprep.subr.mxu0 0.0
      %4329 = vmatpush1.xpose.msra.mxu0 0.0
      %4330 = vmatprep.subr.mxu0 0.0
      %4331 = vmatpush1.xpose.msra.mxu0 0.0
      %4332 = vmatprep.subr.mxu0 0.0
      %4333 = vmatpush1.xpose.msra.mxu0 0.0
      %4334 = vmatprep.subr.mxu0 0.0
      %4335 = vmatpush1.xpose.msra.mxu0 0.0
      %4336 = vmatprep.subr.mxu0 0.0
      %4337 = vmatpush1.xpose.msra.mxu0 0.0
      %4338 = vmatprep.subr.mxu0 0.0
      %4339 = vmatpush1.xpose.msra.mxu0 0.0
      %4340 = vmatprep.subr.mxu0 0.0
      %4341 = vmatpush1.xpose.msra.mxu0 0.0
      %4342 = vmatprep.subr.mxu0 0.0
      %4343 = vmatpush1.xpose.msra.mxu0 0.0
      %4344 = vmatprep.subr.mxu0 0.0
      %4345 = vmatpush1.xpose.msra.mxu0 0.0
      %4346 = vmatprep.subr.mxu0 0.0
      %4347 = vmatpush1.xpose.msra.mxu0 0.0
      %4348 = vmatprep.subr.mxu0 0.0
      %4349 = vmatpush1.xpose.msra.mxu0 0.0
      %4350 = vmatprep.subr.mxu0 0.0
      %4351 = vmatpush1.xpose.msra.mxu0 0.0
      %4352 = vmatprep.subr.mxu0 0.0
      %4353 = vmatpush1.xpose.msra.mxu0 0.0
      %4354 = vmatprep.subr.mxu0 0.0
      %4355 = vmatpush1.xpose.msra.mxu0 0.0
      %4356 = vmatprep.mubr.f32.mxu0 0.0
      %4357 = vmatmul.mubr.f32.gmra.mrb[0].mxu0 %v4288
      %v4358 = vpop.f32.mrb[0].mxu0
      %v4359 = vadd.f32 0.0, %v4358
      %v4360 = vpop.f32.mrb[0].mxu0
      %4361 = vdwg.mxu0
      %4362 = vrot.lane.b32.xlu0 %v3099, 112
      %v4363 = vpop.permute.xlu0 %4362
      %4364 = vrot.lane.b32.xlu0 %v3099, 80
      %v4365 = vpop.permute.xlu0 %4364
      %v4366 = vsel %vm583, %v4363, 0
      %v4368 = vsel %vm583, %v4365, 0
      %4370 = vmatprep.subr.mxu0 0.0
      %4371 = vmatpush1.xpose.msra.mxu0 %v4368
      %4372 = vmatprep.subr.mxu0 0.0
      %4373 = vmatpush1.xpose.msra.mxu0 0.0
      %4374 = vmatprep.subr.mxu0 0.0
      %4375 = vmatpush1.xpose.msra.mxu0 0.0
      %4376 = vmatprep.subr.mxu0 0.0
      %4377 = vmatpush1.xpose.msra.mxu0 0.0
      %4378 = vmatprep.subr.mxu0 0.0
      %4379 = vmatpush1.xpose.msra.mxu0 0.0
      %4380 = vmatprep.subr.mxu0 0.0
      %4381 = vmatpush1.xpose.msra.mxu0 0.0
      %4382 = vmatprep.subr.mxu0 0.0
      %4383 = vmatpush1.xpose.msra.mxu0 0.0
      %4384 = vmatprep.subr.mxu0 0.0
      %4385 = vmatpush1.xpose.msra.mxu0 0.0
      %4386 = vmatprep.subr.mxu0 0.0
      %4387 = vmatpush1.xpose.msra.mxu0 0.0
      %4388 = vmatprep.subr.mxu0 0.0
      %4389 = vmatpush1.xpose.msra.mxu0 0.0
      %4390 = vmatprep.subr.mxu0 0.0
      %4391 = vmatpush1.xpose.msra.mxu0 0.0
      %4392 = vmatprep.subr.mxu0 0.0
      %4393 = vmatpush1.xpose.msra.mxu0 0.0
      %4394 = vmatprep.subr.mxu0 0.0
      %4395 = vmatpush1.xpose.msra.mxu0 0.0
      %4396 = vmatprep.subr.mxu0 0.0
      %4397 = vmatpush1.xpose.msra.mxu0 0.0
      %4398 = vmatprep.subr.mxu0 0.0
      %4399 = vmatpush1.xpose.msra.mxu0 0.0
      %4400 = vmatprep.subr.mxu0 0.0
      %4401 = vmatpush1.xpose.msra.mxu0 0.0
      %4402 = vmatprep.subr.mxu0 0.0
      %4403 = vmatpush1.xpose.msra.mxu0 0.0
      %4404 = vmatprep.subr.mxu0 0.0
      %4405 = vmatpush1.xpose.msra.mxu0 0.0
      %4406 = vmatprep.subr.mxu0 0.0
      %4407 = vmatpush1.xpose.msra.mxu0 0.0
      %4408 = vmatprep.subr.mxu0 0.0
      %4409 = vmatpush1.xpose.msra.mxu0 0.0
      %4410 = vmatprep.subr.mxu0 0.0
      %4411 = vmatpush1.xpose.msra.mxu0 0.0
      %4412 = vmatprep.subr.mxu0 0.0
      %4413 = vmatpush1.xpose.msra.mxu0 0.0
      %4414 = vmatprep.subr.mxu0 0.0
      %4415 = vmatpush1.xpose.msra.mxu0 0.0
      %4416 = vmatprep.subr.mxu0 0.0
      %4417 = vmatpush1.xpose.msra.mxu0 0.0
      %4418 = vmatprep.subr.mxu0 0.0
      %4419 = vmatpush1.xpose.msra.mxu0 0.0
      %4420 = vmatprep.subr.mxu0 0.0
      %4421 = vmatpush1.xpose.msra.mxu0 0.0
      %4422 = vmatprep.subr.mxu0 0.0
      %4423 = vmatpush1.xpose.msra.mxu0 0.0
      %4424 = vmatprep.subr.mxu0 0.0
      %4425 = vmatpush1.xpose.msra.mxu0 0.0
      %4426 = vmatprep.subr.mxu0 0.0
      %4427 = vmatpush1.xpose.msra.mxu0 0.0
      %4428 = vmatprep.subr.mxu0 0.0
      %4429 = vmatpush1.xpose.msra.mxu0 0.0
      %4430 = vmatprep.subr.mxu0 0.0
      %4431 = vmatpush1.xpose.msra.mxu0 0.0
      %4432 = vmatprep.subr.mxu0 0.0
      %4433 = vmatpush1.xpose.msra.mxu0 0.0
      %4434 = vmatprep.mubr.f32.mxu0 0.0
      %4435 = vmatmul.mubr.f32.gmra.mrb[0].mxu0 %v4366
      %v4436 = vpop.f32.mrb[0].mxu0
      %v4437 = vadd.f32 0.0, %v4436
      %v4438 = vpop.f32.mrb[0].mxu0
      %4439 = vdwg.mxu0
      %4440 = vrot.lane.b32.xlu0 %v3104, 112
      %v4441 = vpop.permute.xlu0 %4440
      %4442 = vrot.lane.b32.xlu0 %v3104, 80
      %v4443 = vpop.permute.xlu0 %4442
      %v4444 = vsel %vm583, %v4441, 0
      %v4446 = vsel %vm583, %v4443, 0
      %4448 = vmatprep.subr.mxu0 0.0
      %4449 = vmatpush1.xpose.msra.mxu0 %v4446
      %4450 = vmatprep.subr.mxu0 0.0
      %4451 = vmatpush1.xpose.msra.mxu0 0.0
      %4452 = vmatprep.subr.mxu0 0.0
      %4453 = vmatpush1.xpose.msra.mxu0 0.0
      %4454 = vmatprep.subr.mxu0 0.0
      %4455 = vmatpush1.xpose.msra.mxu0 0.0
      %4456 = vmatprep.subr.mxu0 0.0
      %4457 = vmatpush1.xpose.msra.mxu0 0.0
      %4458 = vmatprep.subr.mxu0 0.0
      %4459 = vmatpush1.xpose.msra.mxu0 0.0
      %4460 = vmatprep.subr.mxu0 0.0
      %4461 = vmatpush1.xpose.msra.mxu0 0.0
      %4462 = vmatprep.subr.mxu0 0.0
      %4463 = vmatpush1.xpose.msra.mxu0 0.0
      %4464 = vmatprep.subr.mxu0 0.0
      %4465 = vmatpush1.xpose.msra.mxu0 0.0
      %4466 = vmatprep.subr.mxu0 0.0
      %4467 = vmatpush1.xpose.msra.mxu0 0.0
      %4468 = vmatprep.subr.mxu0 0.0
      %4469 = vmatpush1.xpose.msra.mxu0 0.0
      %4470 = vmatprep.subr.mxu0 0.0
      %4471 = vmatpush1.xpose.msra.mxu0 0.0
      %4472 = vmatprep.subr.mxu0 0.0
      %4473 = vmatpush1.xpose.msra.mxu0 0.0
      %4474 = vmatprep.subr.mxu0 0.0
      %4475 = vmatpush1.xpose.msra.mxu0 0.0
      %4476 = vmatprep.subr.mxu0 0.0
      %4477 = vmatpush1.xpose.msra.mxu0 0.0
      %4478 = vmatprep.subr.mxu0 0.0
      %4479 = vmatpush1.xpose.msra.mxu0 0.0
      %4480 = vmatprep.subr.mxu0 0.0
      %4481 = vmatpush1.xpose.msra.mxu0 0.0
      %4482 = vmatprep.subr.mxu0 0.0
      %4483 = vmatpush1.xpose.msra.mxu0 0.0
      %4484 = vmatprep.subr.mxu0 0.0
      %4485 = vmatpush1.xpose.msra.mxu0 0.0
      %4486 = vmatprep.subr.mxu0 0.0
      %4487 = vmatpush1.xpose.msra.mxu0 0.0
      %4488 = vmatprep.subr.mxu0 0.0
      %4489 = vmatpush1.xpose.msra.mxu0 0.0
      %4490 = vmatprep.subr.mxu0 0.0
      %4491 = vmatpush1.xpose.msra.mxu0 0.0
      %4492 = vmatprep.subr.mxu0 0.0
      %4493 = vmatpush1.xpose.msra.mxu0 0.0
      %4494 = vmatprep.subr.mxu0 0.0
      %4495 = vmatpush1.xpose.msra.mxu0 0.0
      %4496 = vmatprep.subr.mxu0 0.0
      %4497 = vmatpush1.xpose.msra.mxu0 0.0
      %4498 = vmatprep.subr.mxu0 0.0
      %4499 = vmatpush1.xpose.msra.mxu0 0.0
      %4500 = vmatprep.subr.mxu0 0.0
      %4501 = vmatpush1.xpose.msra.mxu0 0.0
      %4502 = vmatprep.subr.mxu0 0.0
      %4503 = vmatpush1.xpose.msra.mxu0 0.0
      %4504 = vmatprep.subr.mxu0 0.0
      %4505 = vmatpush1.xpose.msra.mxu0 0.0
      %4506 = vmatprep.subr.mxu0 0.0
      %4507 = vmatpush1.xpose.msra.mxu0 0.0
      %4508 = vmatprep.subr.mxu0 0.0
      %4509 = vmatpush1.xpose.msra.mxu0 0.0
      %4510 = vmatprep.subr.mxu0 0.0
      %4511 = vmatpush1.xpose.msra.mxu0 0.0
      %4512 = vmatprep.mubr.f32.mxu0 0.0
      %4513 = vmatmul.mubr.f32.gmra.mrb[0].mxu0 %v4444
      %v4514 = vpop.f32.mrb[0].mxu0
      %v4515 = vadd.f32 0.0, %v4514
      %v4516 = vpop.f32.mrb[0].mxu0
      %4517 = vdwg.mxu0
      %v4518 = vmul.f32 %v4359, 0.35355338
      %v4519 = vmul.f32 %v4437, 0.35355338
      %v4520 = vmul.f32 %v4515, 0.35355338
      %v4521 = vsel %vm816, %v4518, -1e+30
      %v4522 = vsel %vm816, %v4519, -1e+30
      %v4523 = vsel %vm816, %v4520, -1e+30
      %v4524 = vsel %vm583, %v4521, -inf
      %4525 = vmax.xlane.f32.xlu0 %v4524
      %v4526 = vpop.xlane.xlu0 %4525
      %v4527 = vsel %vm583, %v4522, -inf
      %4528 = vmax.xlane.f32.xlu0 %v4527
      %v4529 = vpop.xlane.xlu0 %4528
      %v4530 = vsel %vm583, %v4523, -inf
      %4531 = vmax.xlane.f32.xlu0 %v4530
      %v4532 = vpop.xlane.xlu0 %4531
      %v4533 = vsub.f32 %v4521, %v4526
      %v4534 = vsub.f32 %v4522, %v4529
      %v4535 = vsub.f32 %v4523, %v4532
      %v4536 = vmul.f32 %v4533, 1.442695
      %v4537 = vpow.pop %v4536
      %v4538 = vmul.f32 %v4534, 1.442695
      %v4539 = vpow.pop %v4538
      %v4540 = vmul.f32 %v4535, 1.442695
      %v4541 = vpow.pop %v4540
      %v4542 = vsel %vm583, %v4537, 0.0
      %4543 = vadd.xlane.f32.xlu0 %v4542
      %v4544 = vpop.xlane.xlu0 %4543
      %v4545 = vsel %vm583, %v4539, 0.0
      %4546 = vadd.xlane.f32.xlu0 %v4545
      %v4547 = vpop.xlane.xlu0 %4546
      %v4548 = vsel %vm583, %v4541, 0.0
      %4549 = vadd.xlane.f32.xlu0 %v4548
      %v4550 = vpop.xlane.xlu0 %4549
      %v4551 = vrcp.pop %v4544
      %v4552 = vrcp.pop %v4547
      %v4553 = vrcp.pop %v4550
      %v4554 = vmul.f32 %v4537, %v4551
      %v4555 = vmul.f32 %v4539, %v4552
      %v4556 = vmul.f32 %v4541, %v4553
      %4557 = vrot.lane.b32.xlu0 %v3094, 48
      %v4558 = vpop.permute.xlu0 %4557
      %v4561 = vsel %vm583, %v4554, 0
      %4563 = vmatprep.subr.mxu0 0.0
      %4564 = vmatpush1.msra.mxu0 %v4558
      %4565 = vmatprep.subr.mxu0 0.0
      %4566 = vmatpush1.msra.mxu0 0.0
      %4567 = vmatprep.subr.mxu0 0.0
      %4568 = vmatpush1.msra.mxu0 0.0
      %4569 = vmatprep.subr.mxu0 0.0
      %4570 = vmatpush1.msra.mxu0 0.0
      %4571 = vmatprep.subr.mxu0 0.0
      %4572 = vmatpush1.msra.mxu0 0.0
      %4573 = vmatprep.subr.mxu0 0.0
      %4574 = vmatpush1.msra.mxu0 0.0
      %4575 = vmatprep.subr.mxu0 0.0
      %4576 = vmatpush1.msra.mxu0 0.0
      %4577 = vmatprep.subr.mxu0 0.0
      %4578 = vmatpush1.msra.mxu0 0.0
      %4579 = vmatprep.subr.mxu0 0.0
      %4580 = vmatpush1.msra.mxu0 0.0
      %4581 = vmatprep.subr.mxu0 0.0
      %4582 = vmatpush1.msra.mxu0 0.0
      %4583 = vmatprep.subr.mxu0 0.0
      %4584 = vmatpush1.msra.mxu0 0.0
      %4585 = vmatprep.subr.mxu0 0.0
      %4586 = vmatpush1.msra.mxu0 0.0
      %4587 = vmatprep.subr.mxu0 0.0
      %4588 = vmatpush1.msra.mxu0 0.0
      %4589 = vmatprep.subr.mxu0 0.0
      %4590 = vmatpush1.msra.mxu0 0.0
      %4591 = vmatprep.subr.mxu0 0.0
      %4592 = vmatpush1.msra.mxu0 0.0
      %4593 = vmatprep.subr.mxu0 0.0
      %4594 = vmatpush1.msra.mxu0 0.0
      %4595 = vmatprep.subr.mxu0 0.0
      %4596 = vmatpush1.msra.mxu0 0.0
      %4597 = vmatprep.subr.mxu0 0.0
      %4598 = vmatpush1.msra.mxu0 0.0
      %4599 = vmatprep.subr.mxu0 0.0
      %4600 = vmatpush1.msra.mxu0 0.0
      %4601 = vmatprep.subr.mxu0 0.0
      %4602 = vmatpush1.msra.mxu0 0.0
      %4603 = vmatprep.subr.mxu0 0.0
      %4604 = vmatpush1.msra.mxu0 0.0
      %4605 = vmatprep.subr.mxu0 0.0
      %4606 = vmatpush1.msra.mxu0 0.0
      %4607 = vmatprep.subr.mxu0 0.0
      %4608 = vmatpush1.msra.mxu0 0.0
      %4609 = vmatprep.subr.mxu0 0.0
      %4610 = vmatpush1.msra.mxu0 0.0
      %4611 = vmatprep.subr.mxu0 0.0
      %4612 = vmatpush1.msra.mxu0 0.0
      %4613 = vmatprep.subr.mxu0 0.0
      %4614 = vmatpush1.msra.mxu0 0.0
      %4615 = vmatprep.subr.mxu0 0.0
      %4616 = vmatpush1.msra.mxu0 0.0
      %4617 = vmatprep.subr.mxu0 0.0
      %4618 = vmatpush1.msra.mxu0 0.0
      %4619 = vmatprep.subr.mxu0 0.0
      %4620 = vmatpush1.msra.mxu0 0.0
      %4621 = vmatprep.subr.mxu0 0.0
      %4622 = vmatpush1.msra.mxu0 0.0
      %4623 = vmatprep.subr.mxu0 0.0
      %4624 = vmatpush1.msra.mxu0 0.0
      %4625 = vmatprep.subr.mxu0 0.0
      %4626 = vmatpush1.msra.mxu0 0.0
      %4627 = vmatprep.mubr.f32.mxu0 0.0
      %4628 = vmatmul.mubr.f32.gmra.mrb[0].mxu0 %v4561
      %v4629 = vpop.f32.mrb[0].mxu0
      %v4630 = vadd.f32 0.0, %v4629
      %v4631 = vpop.f32.mrb[0].mxu0
      %4632 = vdwg.mxu0
      %4633 = vrot.lane.b32.xlu0 %v3099, 48
      %v4634 = vpop.permute.xlu0 %4633
      %v4637 = vsel %vm583, %v4555, 0
      %4639 = vmatprep.subr.mxu0 0.0
      %4640 = vmatpush1.msra.mxu0 %v4634
      %4641 = vmatprep.subr.mxu0 0.0
      %4642 = vmatpush1.msra.mxu0 0.0
      %4643 = vmatprep.subr.mxu0 0.0
      %4644 = vmatpush1.msra.mxu0 0.0
      %4645 = vmatprep.subr.mxu0 0.0
      %4646 = vmatpush1.msra.mxu0 0.0
      %4647 = vmatprep.subr.mxu0 0.0
      %4648 = vmatpush1.msra.mxu0 0.0
      %4649 = vmatprep.subr.mxu0 0.0
      %4650 = vmatpush1.msra.mxu0 0.0
      %4651 = vmatprep.subr.mxu0 0.0
      %4652 = vmatpush1.msra.mxu0 0.0
      %4653 = vmatprep.subr.mxu0 0.0
      %4654 = vmatpush1.msra.mxu0 0.0
      %4655 = vmatprep.subr.mxu0 0.0
      %4656 = vmatpush1.msra.mxu0 0.0
      %4657 = vmatprep.subr.mxu0 0.0
      %4658 = vmatpush1.msra.mxu0 0.0
      %4659 = vmatprep.subr.mxu0 0.0
      %4660 = vmatpush1.msra.mxu0 0.0
      %4661 = vmatprep.subr.mxu0 0.0
      %4662 = vmatpush1.msra.mxu0 0.0
      %4663 = vmatprep.subr.mxu0 0.0
      %4664 = vmatpush1.msra.mxu0 0.0
      %4665 = vmatprep.subr.mxu0 0.0
      %4666 = vmatpush1.msra.mxu0 0.0
      %4667 = vmatprep.subr.mxu0 0.0
      %4668 = vmatpush1.msra.mxu0 0.0
      %4669 = vmatprep.subr.mxu0 0.0
      %4670 = vmatpush1.msra.mxu0 0.0
      %4671 = vmatprep.subr.mxu0 0.0
      %4672 = vmatpush1.msra.mxu0 0.0
      %4673 = vmatprep.subr.mxu0 0.0
      %4674 = vmatpush1.msra.mxu0 0.0
      %4675 = vmatprep.subr.mxu0 0.0
      %4676 = vmatpush1.msra.mxu0 0.0
      %4677 = vmatprep.subr.mxu0 0.0
      %4678 = vmatpush1.msra.mxu0 0.0
      %4679 = vmatprep.subr.mxu0 0.0
      %4680 = vmatpush1.msra.mxu0 0.0
      %4681 = vmatprep.subr.mxu0 0.0
      %4682 = vmatpush1.msra.mxu0 0.0
      %4683 = vmatprep.subr.mxu0 0.0
      %4684 = vmatpush1.msra.mxu0 0.0
      %4685 = vmatprep.subr.mxu0 0.0
      %4686 = vmatpush1.msra.mxu0 0.0
      %4687 = vmatprep.subr.mxu0 0.0
      %4688 = vmatpush1.msra.mxu0 0.0
      %4689 = vmatprep.subr.mxu0 0.0
      %4690 = vmatpush1.msra.mxu0 0.0
      %4691 = vmatprep.subr.mxu0 0.0
      %4692 = vmatpush1.msra.mxu0 0.0
      %4693 = vmatprep.subr.mxu0 0.0
      %4694 = vmatpush1.msra.mxu0 0.0
      %4695 = vmatprep.subr.mxu0 0.0
      %4696 = vmatpush1.msra.mxu0 0.0
      %4697 = vmatprep.subr.mxu0 0.0
      %4698 = vmatpush1.msra.mxu0 0.0
      %4699 = vmatprep.subr.mxu0 0.0
      %4700 = vmatpush1.msra.mxu0 0.0
      %4701 = vmatprep.subr.mxu0 0.0
      %4702 = vmatpush1.msra.mxu0 0.0
      %4703 = vmatprep.mubr.f32.mxu0 0.0
      %4704 = vmatmul.mubr.f32.gmra.mrb[0].mxu0 %v4637
      %v4705 = vpop.f32.mrb[0].mxu0
      %v4706 = vadd.f32 0.0, %v4705
      %v4707 = vpop.f32.mrb[0].mxu0
      %4708 = vdwg.mxu0
      %4709 = vrot.lane.b32.xlu0 %v3104, 48
      %v4710 = vpop.permute.xlu0 %4709
      %v4713 = vsel %vm583, %v4556, 0
      %4715 = vmatprep.subr.mxu0 0.0
      %4716 = vmatpush1.msra.mxu0 %v4710
      %4717 = vmatprep.subr.mxu0 0.0
      %4718 = vmatpush1.msra.mxu0 0.0
      %4719 = vmatprep.subr.mxu0 0.0
      %4720 = vmatpush1.msra.mxu0 0.0
      %4721 = vmatprep.subr.mxu0 0.0
      %4722 = vmatpush1.msra.mxu0 0.0
      %4723 = vmatprep.subr.mxu0 0.0
      %4724 = vmatpush1.msra.mxu0 0.0
      %4725 = vmatprep.subr.mxu0 0.0
      %4726 = vmatpush1.msra.mxu0 0.0
      %4727 = vmatprep.subr.mxu0 0.0
      %4728 = vmatpush1.msra.mxu0 0.0
      %4729 = vmatprep.subr.mxu0 0.0
      %4730 = vmatpush1.msra.mxu0 0.0
      %4731 = vmatprep.subr.mxu0 0.0
      %4732 = vmatpush1.msra.mxu0 0.0
      %4733 = vmatprep.subr.mxu0 0.0
      %4734 = vmatpush1.msra.mxu0 0.0
      %4735 = vmatprep.subr.mxu0 0.0
      %4736 = vmatpush1.msra.mxu0 0.0
      %4737 = vmatprep.subr.mxu0 0.0
      %4738 = vmatpush1.msra.mxu0 0.0
      %4739 = vmatprep.subr.mxu0 0.0
      %4740 = vmatpush1.msra.mxu0 0.0
      %4741 = vmatprep.subr.mxu0 0.0
      %4742 = vmatpush1.msra.mxu0 0.0
      %4743 = vmatprep.subr.mxu0 0.0
      %4744 = vmatpush1.msra.mxu0 0.0
      %4745 = vmatprep.subr.mxu0 0.0
      %4746 = vmatpush1.msra.mxu0 0.0
      %4747 = vmatprep.subr.mxu0 0.0
      %4748 = vmatpush1.msra.mxu0 0.0
      %4749 = vmatprep.subr.mxu0 0.0
      %4750 = vmatpush1.msra.mxu0 0.0
      %4751 = vmatprep.subr.mxu0 0.0
      %4752 = vmatpush1.msra.mxu0 0.0
      %4753 = vmatprep.subr.mxu0 0.0
      %4754 = vmatpush1.msra.mxu0 0.0
      %4755 = vmatprep.subr.mxu0 0.0
      %4756 = vmatpush1.msra.mxu0 0.0
      %4757 = vmatprep.subr.mxu0 0.0
      %4758 = vmatpush1.msra.mxu0 0.0
      %4759 = vmatprep.subr.mxu0 0.0
      %4760 = vmatpush1.msra.mxu0 0.0
      %4761 = vmatprep.subr.mxu0 0.0
      %4762 = vmatpush1.msra.mxu0 0.0
      %4763 = vmatprep.subr.mxu0 0.0
      %4764 = vmatpush1.msra.mxu0 0.0
      %4765 = vmatprep.subr.mxu0 0.0
      %4766 = vmatpush1.msra.mxu0 0.0
      %4767 = vmatprep.subr.mxu0 0.0
      %4768 = vmatpush1.msra.mxu0 0.0
      %4769 = vmatprep.subr.mxu0 0.0
      %4770 = vmatpush1.msra.mxu0 0.0
      %4771 = vmatprep.subr.mxu0 0.0
      %4772 = vmatpush1.msra.mxu0 0.0
      %4773 = vmatprep.subr.mxu0 0.0
      %4774 = vmatpush1.msra.mxu0 0.0
      %4775 = vmatprep.subr.mxu0 0.0
      %4776 = vmatpush1.msra.mxu0 0.0
      %4777 = vmatprep.subr.mxu0 0.0
      %4778 = vmatpush1.msra.mxu0 0.0
      %4779 = vmatprep.mubr.f32.mxu0 0.0
      %4780 = vmatmul.mubr.f32.gmra.mrb[0].mxu0 %v4713
      %v4781 = vpop.f32.mrb[0].mxu0
      %v4782 = vadd.f32 0.0, %v4781
      %v4783 = vpop.f32.mrb[0].mxu0
      %4784 = vdwg.mxu0
      %v4786 = vsel %vm583, %v4630, 0
      %v4789 = vsel %vm583, %v4706, 0
      %v4792 = vsel %vm583, %v4782, 0
      %4794 = vmatprep.subr.mxu0 0.0
      %4795 = vmatpush1.msra.mxu0 %v476
      %4796 = vmatprep.subr.mxu0 0.0
      %4797 = vmatpush1.msra.mxu0 0.0
      %4798 = vmatprep.subr.mxu0 0.0
      %4799 = vmatpush1.msra.mxu0 0.0
      %4800 = vmatprep.subr.mxu0 0.0
      %4801 = vmatpush1.msra.mxu0 0.0
      %4802 = vmatprep.subr.mxu0 0.0
      %4803 = vmatpush1.msra.mxu0 0.0
      %4804 = vmatprep.subr.mxu0 0.0
      %4805 = vmatpush1.msra.mxu0 0.0
      %4806 = vmatprep.subr.mxu0 0.0
      %4807 = vmatpush1.msra.mxu0 0.0
      %4808 = vmatprep.subr.mxu0 0.0
      %4809 = vmatpush1.msra.mxu0 0.0
      %4810 = vmatprep.subr.mxu0 0.0
      %4811 = vmatpush1.msra.mxu0 0.0
      %4812 = vmatprep.subr.mxu0 0.0
      %4813 = vmatpush1.msra.mxu0 0.0
      %4814 = vmatprep.subr.mxu0 0.0
      %4815 = vmatpush1.msra.mxu0 0.0
      %4816 = vmatprep.subr.mxu0 0.0
      %4817 = vmatpush1.msra.mxu0 0.0
      %4818 = vmatprep.subr.mxu0 0.0
      %4819 = vmatpush1.msra.mxu0 0.0
      %4820 = vmatprep.subr.mxu0 0.0
      %4821 = vmatpush1.msra.mxu0 0.0
      %4822 = vmatprep.subr.mxu0 0.0
      %4823 = vmatpush1.msra.mxu0 0.0
      %4824 = vmatprep.subr.mxu0 0.0
      %4825 = vmatpush1.msra.mxu0 0.0
      %4826 = vmatprep.subr.mxu0 0.0
      %4827 = vmatpush1.msra.mxu0 0.0
      %4828 = vmatprep.subr.mxu0 0.0
      %4829 = vmatpush1.msra.mxu0 0.0
      %4830 = vmatprep.subr.mxu0 0.0
      %4831 = vmatpush1.msra.mxu0 0.0
      %4832 = vmatprep.subr.mxu0 0.0
      %4833 = vmatpush1.msra.mxu0 0.0
      %4834 = vmatprep.subr.mxu0 0.0
      %4835 = vmatpush1.msra.mxu0 0.0
      %4836 = vmatprep.subr.mxu0 0.0
      %4837 = vmatpush1.msra.mxu0 0.0
      %4838 = vmatprep.subr.mxu0 0.0
      %4839 = vmatpush1.msra.mxu0 0.0
      %4840 = vmatprep.subr.mxu0 0.0
      %4841 = vmatpush1.msra.mxu0 0.0
      %4842 = vmatprep.subr.mxu0 0.0
      %4843 = vmatpush1.msra.mxu0 0.0
      %4844 = vmatprep.subr.mxu0 0.0
      %4845 = vmatpush1.msra.mxu0 0.0
      %4846 = vmatprep.subr.mxu0 0.0
      %4847 = vmatpush1.msra.mxu0 0.0
      %4848 = vmatprep.subr.mxu0 0.0
      %4849 = vmatpush1.msra.mxu0 0.0
      %4850 = vmatprep.subr.mxu0 0.0
      %4851 = vmatpush1.msra.mxu0 0.0
      %4852 = vmatprep.subr.mxu0 0.0
      %4853 = vmatpush1.msra.mxu0 0.0
      %4854 = vmatprep.subr.mxu0 0.0
      %4855 = vmatpush1.msra.mxu0 0.0
      %4856 = vmatprep.subr.mxu0 0.0
      %4857 = vmatpush1.msra.mxu0 0.0
      %4858 = vmatprep.mubr.f32.mxu0 0.0
      %4859 = vmatmul.mubr.f32.gmra.mrb[0].mxu0 %v4786
      %v4860 = vpop.f32.mrb[0].mxu0
      %v4861 = vadd.f32 0.0, %v4860
      %v4862 = vpop.f32.mrb[0].mxu0
      %4863 = vmatprep.mubr.f32.mxu0 0.0
      %4864 = vmatmul.mubr.f32.gmra.mrb[0].mxu0 %v4789
      %v4865 = vpop.f32.mrb[0].mxu0
      %v4866 = vadd.f32 0.0, %v4865
      %v4867 = vpop.f32.mrb[0].mxu0
      %4868 = vmatprep.mubr.f32.mxu0 0.0
      %4869 = vmatmul.mubr.f32.gmra.mrb[0].mxu0 %v4792
      %v4870 = vpop.f32.mrb[0].mxu0
      %v4871 = vadd.f32 0.0, %v4870
      %v4872 = vpop.f32.mrb[0].mxu0
      %4873 = vdwg.mxu0
      %v4874 = vadd.f32 %v4271, %v4861
      %v4875 = vadd.f32 %v4276, %v4866
      %v4876 = vadd.f32 %v4281, %v4871
      %4877 = vrot.lane.b32.xlu0 %v3094, 104
      %v4878 = vpop.permute.xlu0 %4877
      %4879 = vrot.lane.b32.xlu0 %v3094, 72
      %v4880 = vpop.permute.xlu0 %4879
      %v4881 = vsel %vm583, %v4878, 0
      %v4883 = vsel %vm583, %v4880, 0
      %4885 = vmatprep.subr.mxu0 0.0
      %4886 = vmatpush1.xpose.msra.mxu0 %v4883
      %4887 = vmatprep.subr.mxu0 0.0
      %4888 = vmatpush1.xpose.msra.mxu0 0.0
      %4889 = vmatprep.subr.mxu0 0.0
      %4890 = vmatpush1.xpose.msra.mxu0 0.0
      %4891 = vmatprep.subr.mxu0 0.0
      %4892 = vmatpush1.xpose.msra.mxu0 0.0
      %4893 = vmatprep.subr.mxu0 0.0
      %4894 = vmatpush1.xpose.msra.mxu0 0.0
      %4895 = vmatprep.subr.mxu0 0.0
      %4896 = vmatpush1.xpose.msra.mxu0 0.0
      %4897 = vmatprep.subr.mxu0 0.0
      %4898 = vmatpush1.xpose.msra.mxu0 0.0
      %4899 = vmatprep.subr.mxu0 0.0
      %4900 = vmatpush1.xpose.msra.mxu0 0.0
      %4901 = vmatprep.subr.mxu0 0.0
      %4902 = vmatpush1.xpose.msra.mxu0 0.0
      %4903 = vmatprep.subr.mxu0 0.0
      %4904 = vmatpush1.xpose.msra.mxu0 0.0
      %4905 = vmatprep.subr.mxu0 0.0
      %4906 = vmatpush1.xpose.msra.mxu0 0.0
      %4907 = vmatprep.subr.mxu0 0.0
      %4908 = vmatpush1.xpose.msra.mxu0 0.0
      %4909 = vmatprep.subr.mxu0 0.0
      %4910 = vmatpush1.xpose.msra.mxu0 0.0
      %4911 = vmatprep.subr.mxu0 0.0
      %4912 = vmatpush1.xpose.msra.mxu0 0.0
      %4913 = vmatprep.subr.mxu0 0.0
      %4914 = vmatpush1.xpose.msra.mxu0 0.0
      %4915 = vmatprep.subr.mxu0 0.0
      %4916 = vmatpush1.xpose.msra.mxu0 0.0
      %4917 = vmatprep.subr.mxu0 0.0
      %4918 = vmatpush1.xpose.msra.mxu0 0.0
      %4919 = vmatprep.subr.mxu0 0.0
      %4920 = vmatpush1.xpose.msra.mxu0 0.0
      %4921 = vmatprep.subr.mxu0 0.0
      %4922 = vmatpush1.xpose.msra.mxu0 0.0
      %4923 = vmatprep.subr.mxu0 0.0
      %4924 = vmatpush1.xpose.msra.mxu0 0.0
      %4925 = vmatprep.subr.mxu0 0.0
      %4926 = vmatpush1.xpose.msra.mxu0 0.0
      %4927 = vmatprep.subr.mxu0 0.0
      %4928 = vmatpush1.xpose.msra.mxu0 0.0
      %4929 = vmatprep.subr.mxu0 0.0
      %4930 = vmatpush1.xpose.msra.mxu0 0.0
      %4931 = vmatprep.subr.mxu0 0.0
      %4932 = vmatpush1.xpose.msra.mxu0 0.0
      %4933 = vmatprep.subr.mxu0 0.0
      %4934 = vmatpush1.xpose.msra.mxu0 0.0
      %4935 = vmatprep.subr.mxu0 0.0
      %4936 = vmatpush1.xpose.msra.mxu0 0.0
      %4937 = vmatprep.subr.mxu0 0.0
      %4938 = vmatpush1.xpose.msra.mxu0 0.0
      %4939 = vmatprep.subr.mxu0 0.0
      %4940 = vmatpush1.xpose.msra.mxu0 0.0
      %4941 = vmatprep.subr.mxu0 0.0
      %4942 = vmatpush1.xpose.msra.mxu0 0.0
      %4943 = vmatprep.subr.mxu0 0.0
      %4944 = vmatpush1.xpose.msra.mxu0 0.0
      %4945 = vmatprep.subr.mxu0 0.0
      %4946 = vmatpush1.xpose.msra.mxu0 0.0
      %4947 = vmatprep.subr.mxu0 0.0
      %4948 = vmatpush1.xpose.msra.mxu0 0.0
      %4949 = vmatprep.mubr.f32.mxu0 0.0
      %4950 = vmatmul.mubr.f32.gmra.mrb[0].mxu0 %v4881
      %v4951 = vpop.f32.mrb[0].mxu0
      %v4952 = vadd.f32 0.0, %v4951
      %v4953 = vpop.f32.mrb[0].mxu0
      %4954 = vdwg.mxu0
      %4955 = vrot.lane.b32.xlu0 %v3099, 104
      %v4956 = vpop.permute.xlu0 %4955
      %4957 = vrot.lane.b32.xlu0 %v3099, 72
      %v4958 = vpop.permute.xlu0 %4957
      %v4959 = vsel %vm583, %v4956, 0
      %v4961 = vsel %vm583, %v4958, 0
      %4963 = vmatprep.subr.mxu0 0.0
      %4964 = vmatpush1.xpose.msra.mxu0 %v4961
      %4965 = vmatprep.subr.mxu0 0.0
      %4966 = vmatpush1.xpose.msra.mxu0 0.0
      %4967 = vmatprep.subr.mxu0 0.0
      %4968 = vmatpush1.xpose.msra.mxu0 0.0
      %4969 = vmatprep.subr.mxu0 0.0
      %4970 = vmatpush1.xpose.msra.mxu0 0.0
      %4971 = vmatprep.subr.mxu0 0.0
      %4972 = vmatpush1.xpose.msra.mxu0 0.0
      %4973 = vmatprep.subr.mxu0 0.0
      %4974 = vmatpush1.xpose.msra.mxu0 0.0
      %4975 = vmatprep.subr.mxu0 0.0
      %4976 = vmatpush1.xpose.msra.mxu0 0.0
      %4977 = vmatprep.subr.mxu0 0.0
      %4978 = vmatpush1.xpose.msra.mxu0 0.0
      %4979 = vmatprep.subr.mxu0 0.0
      %4980 = vmatpush1.xpose.msra.mxu0 0.0
      %4981 = vmatprep.subr.mxu0 0.0
      %4982 = vmatpush1.xpose.msra.mxu0 0.0
      %4983 = vmatprep.subr.mxu0 0.0
      %4984 = vmatpush1.xpose.msra.mxu0 0.0
      %4985 = vmatprep.subr.mxu0 0.0
      %4986 = vmatpush1.xpose.msra.mxu0 0.0
      %4987 = vmatprep.subr.mxu0 0.0
      %4988 = vmatpush1.xpose.msra.mxu0 0.0
      %4989 = vmatprep.subr.mxu0 0.0
      %4990 = vmatpush1.xpose.msra.mxu0 0.0
      %4991 = vmatprep.subr.mxu0 0.0
      %4992 = vmatpush1.xpose.msra.mxu0 0.0
      %4993 = vmatprep.subr.mxu0 0.0
      %4994 = vmatpush1.xpose.msra.mxu0 0.0
      %4995 = vmatprep.subr.mxu0 0.0
      %4996 = vmatpush1.xpose.msra.mxu0 0.0
      %4997 = vmatprep.subr.mxu0 0.0
      %4998 = vmatpush1.xpose.msra.mxu0 0.0
      %4999 = vmatprep.subr.mxu0 0.0
      %5000 = vmatpush1.xpose.msra.mxu0 0.0
      %5001 = vmatprep.subr.mxu0 0.0
      %5002 = vmatpush1.xpose.msra.mxu0 0.0
      %5003 = vmatprep.subr.mxu0 0.0
      %5004 = vmatpush1.xpose.msra.mxu0 0.0
      %5005 = vmatprep.subr.mxu0 0.0
      %5006 = vmatpush1.xpose.msra.mxu0 0.0
      %5007 = vmatprep.subr.mxu0 0.0
      %5008 = vmatpush1.xpose.msra.mxu0 0.0
      %5009 = vmatprep.subr.mxu0 0.0
      %5010 = vmatpush1.xpose.msra.mxu0 0.0
      %5011 = vmatprep.subr.mxu0 0.0
      %5012 = vmatpush1.xpose.msra.mxu0 0.0
      %5013 = vmatprep.subr.mxu0 0.0
      %5014 = vmatpush1.xpose.msra.mxu0 0.0
      %5015 = vmatprep.subr.mxu0 0.0
      %5016 = vmatpush1.xpose.msra.mxu0 0.0
      %5017 = vmatprep.subr.mxu0 0.0
      %5018 = vmatpush1.xpose.msra.mxu0 0.0
      %5019 = vmatprep.subr.mxu0 0.0
      %5020 = vmatpush1.xpose.msra.mxu0 0.0
      %5021 = vmatprep.subr.mxu0 0.0
      %5022 = vmatpush1.xpose.msra.mxu0 0.0
      %5023 = vmatprep.subr.mxu0 0.0
      %5024 = vmatpush1.xpose.msra.mxu0 0.0
      %5025 = vmatprep.subr.mxu0 0.0
      %5026 = vmatpush1.xpose.msra.mxu0 0.0
      %5027 = vmatprep.mubr.f32.mxu0 0.0
      %5028 = vmatmul.mubr.f32.gmra.mrb[0].mxu0 %v4959
      %v5029 = vpop.f32.mrb[0].mxu0
      %v5030 = vadd.f32 0.0, %v5029
      %v5031 = vpop.f32.mrb[0].mxu0
      %5032 = vdwg.mxu0
      %5033 = vrot.lane.b32.xlu0 %v3104, 104
      %v5034 = vpop.permute.xlu0 %5033
      %5035 = vrot.lane.b32.xlu0 %v3104, 72
      %v5036 = vpop.permute.xlu0 %5035
      %v5037 = vsel %vm583, %v5034, 0
      %v5039 = vsel %vm583, %v5036, 0
      %5041 = vmatprep.subr.mxu0 0.0
      %5042 = vmatpush1.xpose.msra.mxu0 %v5039
      %5043 = vmatprep.subr.mxu0 0.0
      %5044 = vmatpush1.xpose.msra.mxu0 0.0
      %5045 = vmatprep.subr.mxu0 0.0
      %5046 = vmatpush1.xpose.msra.mxu0 0.0
      %5047 = vmatprep.subr.mxu0 0.0
      %5048 = vmatpush1.xpose.msra.mxu0 0.0
      %5049 = vmatprep.subr.mxu0 0.0
      %5050 = vmatpush1.xpose.msra.mxu0 0.0
      %5051 = vmatprep.subr.mxu0 0.0
      %5052 = vmatpush1.xpose.msra.mxu0 0.0
      %5053 = vmatprep.subr.mxu0 0.0
      %5054 = vmatpush1.xpose.msra.mxu0 0.0
      %5055 = vmatprep.subr.mxu0 0.0
      %5056 = vmatpush1.xpose.msra.mxu0 0.0
      %5057 = vmatprep.subr.mxu0 0.0
      %5058 = vmatpush1.xpose.msra.mxu0 0.0
      %5059 = vmatprep.subr.mxu0 0.0
      %5060 = vmatpush1.xpose.msra.mxu0 0.0
      %5061 = vmatprep.subr.mxu0 0.0
      %5062 = vmatpush1.xpose.msra.mxu0 0.0
      %5063 = vmatprep.subr.mxu0 0.0
      %5064 = vmatpush1.xpose.msra.mxu0 0.0
      %5065 = vmatprep.subr.mxu0 0.0
      %5066 = vmatpush1.xpose.msra.mxu0 0.0
      %5067 = vmatprep.subr.mxu0 0.0
      %5068 = vmatpush1.xpose.msra.mxu0 0.0
      %5069 = vmatprep.subr.mxu0 0.0
      %5070 = vmatpush1.xpose.msra.mxu0 0.0
      %5071 = vmatprep.subr.mxu0 0.0
      %5072 = vmatpush1.xpose.msra.mxu0 0.0
      %5073 = vmatprep.subr.mxu0 0.0
      %5074 = vmatpush1.xpose.msra.mxu0 0.0
      %5075 = vmatprep.subr.mxu0 0.0
      %5076 = vmatpush1.xpose.msra.mxu0 0.0
      %5077 = vmatprep.subr.mxu0 0.0
      %5078 = vmatpush1.xpose.msra.mxu0 0.0
      %5079 = vmatprep.subr.mxu0 0.0
      %5080 = vmatpush1.xpose.msra.mxu0 0.0
      %5081 = vmatprep.subr.mxu0 0.0
      %5082 = vmatpush1.xpose.msra.mxu0 0.0
      %5083 = vmatprep.subr.mxu0 0.0
      %5084 = vmatpush1.xpose.msra.mxu0 0.0
      %5085 = vmatprep.subr.mxu0 0.0
      %5086 = vmatpush1.xpose.msra.mxu0 0.0
      %5087 = vmatprep.subr.mxu0 0.0
      %5088 = vmatpush1.xpose.msra.mxu0 0.0
      %5089 = vmatprep.subr.mxu0 0.0
      %5090 = vmatpush1.xpose.msra.mxu0 0.0
      %5091 = vmatprep.subr.mxu0 0.0
      %5092 = vmatpush1.xpose.msra.mxu0 0.0
      %5093 = vmatprep.subr.mxu0 0.0
      %5094 = vmatpush1.xpose.msra.mxu0 0.0
      %5095 = vmatprep.subr.mxu0 0.0
      %5096 = vmatpush1.xpose.msra.mxu0 0.0
      %5097 = vmatprep.subr.mxu0 0.0
      %5098 = vmatpush1.xpose.msra.mxu0 0.0
      %5099 = vmatprep.subr.mxu0 0.0
      %5100 = vmatpush1.xpose.msra.mxu0 0.0
      %5101 = vmatprep.subr.mxu0 0.0
      %5102 = vmatpush1.xpose.msra.mxu0 0.0
      %5103 = vmatprep.subr.mxu0 0.0
      %5104 = vmatpush1.xpose.msra.mxu0 0.0
      %5105 = vmatprep.mubr.f32.mxu0 0.0
      %5106 = vmatmul.mubr.f32.gmra.mrb[0].mxu0 %v5037
      %v5107 = vpop.f32.mrb[0].mxu0
      %v5108 = vadd.f32 0.0, %v5107
      %v5109 = vpop.f32.mrb[0].mxu0
      %5110 = vdwg.mxu0
      %v5111 = vmul.f32 %v4952, 0.35355338
      %v5112 = vmul.f32 %v5030, 0.35355338
      %v5113 = vmul.f32 %v5108, 0.35355338
      %v5114 = vsel %vm816, %v5111, -1e+30
      %v5115 = vsel %vm816, %v5112, -1e+30
      %v5116 = vsel %vm816, %v5113, -1e+30
      %v5117 = vsel %vm583, %v5114, -inf
      %5118 = vmax.xlane.f32.xlu0 %v5117
      %v5119 = vpop.xlane.xlu0 %5118
      %v5120 = vsel %vm583, %v5115, -inf
      %5121 = vmax.xlane.f32.xlu0 %v5120
      %v5122 = vpop.xlane.xlu0 %5121
      %v5123 = vsel %vm583, %v5116, -inf
      %5124 = vmax.xlane.f32.xlu0 %v5123
      %v5125 = vpop.xlane.xlu0 %5124
      %v5126 = vsub.f32 %v5114, %v5119
      %v5127 = vsub.f32 %v5115, %v5122
      %v5128 = vsub.f32 %v5116, %v5125
      %v5129 = vmul.f32 %v5126, 1.442695
      %v5130 = vpow.pop %v5129
      %v5131 = vmul.f32 %v5127, 1.442695
      %v5132 = vpow.pop %v5131
      %v5133 = vmul.f32 %v5128, 1.442695
      %v5134 = vpow.pop %v5133
      %v5135 = vsel %vm583, %v5130, 0.0
      %5136 = vadd.xlane.f32.xlu0 %v5135
      %v5137 = vpop.xlane.xlu0 %5136
      %v5138 = vsel %vm583, %v5132, 0.0
      %5139 = vadd.xlane.f32.xlu0 %v5138
      %v5140 = vpop.xlane.xlu0 %5139
      %v5141 = vsel %vm583, %v5134, 0.0
      %5142 = vadd.xlane.f32.xlu0 %v5141
      %v5143 = vpop.xlane.xlu0 %5142
      %v5144 = vrcp.pop %v5137
      %v5145 = vrcp.pop %v5140
      %v5146 = vrcp.pop %v5143
      %v5147 = vmul.f32 %v5130, %v5144
      %v5148 = vmul.f32 %v5132, %v5145
      %v5149 = vmul.f32 %v5134, %v5146
      %5150 = vrot.lane.b32.xlu0 %v3094, 40
      %v5151 = vpop.permute.xlu0 %5150
      %v5154 = vsel %vm583, %v5147, 0
      %5156 = vmatprep.subr.mxu0 0.0
      %5157 = vmatpush1.msra.mxu0 %v5151
      %5158 = vmatprep.subr.mxu0 0.0
      %5159 = vmatpush1.msra.mxu0 0.0
      %5160 = vmatprep.subr.mxu0 0.0
      %5161 = vmatpush1.msra.mxu0 0.0
      %5162 = vmatprep.subr.mxu0 0.0
      %5163 = vmatpush1.msra.mxu0 0.0
      %5164 = vmatprep.subr.mxu0 0.0
      %5165 = vmatpush1.msra.mxu0 0.0
      %5166 = vmatprep.subr.mxu0 0.0
      %5167 = vmatpush1.msra.mxu0 0.0
      %5168 = vmatprep.subr.mxu0 0.0
      %5169 = vmatpush1.msra.mxu0 0.0
      %5170 = vmatprep.subr.mxu0 0.0
      %5171 = vmatpush1.msra.mxu0 0.0
      %5172 = vmatprep.subr.mxu0 0.0
      %5173 = vmatpush1.msra.mxu0 0.0
      %5174 = vmatprep.subr.mxu0 0.0
      %5175 = vmatpush1.msra.mxu0 0.0
      %5176 = vmatprep.subr.mxu0 0.0
      %5177 = vmatpush1.msra.mxu0 0.0
      %5178 = vmatprep.subr.mxu0 0.0
      %5179 = vmatpush1.msra.mxu0 0.0
      %5180 = vmatprep.subr.mxu0 0.0
      %5181 = vmatpush1.msra.mxu0 0.0
      %5182 = vmatprep.subr.mxu0 0.0
      %5183 = vmatpush1.msra.mxu0 0.0
      %5184 = vmatprep.subr.mxu0 0.0
      %5185 = vmatpush1.msra.mxu0 0.0
      %5186 = vmatprep.subr.mxu0 0.0
      %5187 = vmatpush1.msra.mxu0 0.0
      %5188 = vmatprep.subr.mxu0 0.0
      %5189 = vmatpush1.msra.mxu0 0.0
      %5190 = vmatprep.subr.mxu0 0.0
      %5191 = vmatpush1.msra.mxu0 0.0
      %5192 = vmatprep.subr.mxu0 0.0
      %5193 = vmatpush1.msra.mxu0 0.0
      %5194 = vmatprep.subr.mxu0 0.0
      %5195 = vmatpush1.msra.mxu0 0.0
      %5196 = vmatprep.subr.mxu0 0.0
      %5197 = vmatpush1.msra.mxu0 0.0
      %5198 = vmatprep.subr.mxu0 0.0
      %5199 = vmatpush1.msra.mxu0 0.0
      %5200 = vmatprep.subr.mxu0 0.0
      %5201 = vmatpush1.msra.mxu0 0.0
      %5202 = vmatprep.subr.mxu0 0.0
      %5203 = vmatpush1.msra.mxu0 0.0
      %5204 = vmatprep.subr.mxu0 0.0
      %5205 = vmatpush1.msra.mxu0 0.0
      %5206 = vmatprep.subr.mxu0 0.0
      %5207 = vmatpush1.msra.mxu0 0.0
      %5208 = vmatprep.subr.mxu0 0.0
      %5209 = vmatpush1.msra.mxu0 0.0
      %5210 = vmatprep.subr.mxu0 0.0
      %5211 = vmatpush1.msra.mxu0 0.0
      %5212 = vmatprep.subr.mxu0 0.0
      %5213 = vmatpush1.msra.mxu0 0.0
      %5214 = vmatprep.subr.mxu0 0.0
      %5215 = vmatpush1.msra.mxu0 0.0
      %5216 = vmatprep.subr.mxu0 0.0
      %5217 = vmatpush1.msra.mxu0 0.0
      %5218 = vmatprep.subr.mxu0 0.0
      %5219 = vmatpush1.msra.mxu0 0.0
      %5220 = vmatprep.mubr.f32.mxu0 0.0
      %5221 = vmatmul.mubr.f32.gmra.mrb[0].mxu0 %v5154
      %v5222 = vpop.f32.mrb[0].mxu0
      %v5223 = vadd.f32 0.0, %v5222
      %v5224 = vpop.f32.mrb[0].mxu0
      %5225 = vdwg.mxu0
      %5226 = vrot.lane.b32.xlu0 %v3099, 40
      %v5227 = vpop.permute.xlu0 %5226
      %v5230 = vsel %vm583, %v5148, 0
      %5232 = vmatprep.subr.mxu0 0.0
      %5233 = vmatpush1.msra.mxu0 %v5227
      %5234 = vmatprep.subr.mxu0 0.0
      %5235 = vmatpush1.msra.mxu0 0.0
      %5236 = vmatprep.subr.mxu0 0.0
      %5237 = vmatpush1.msra.mxu0 0.0
      %5238 = vmatprep.subr.mxu0 0.0
      %5239 = vmatpush1.msra.mxu0 0.0
      %5240 = vmatprep.subr.mxu0 0.0
      %5241 = vmatpush1.msra.mxu0 0.0
      %5242 = vmatprep.subr.mxu0 0.0
      %5243 = vmatpush1.msra.mxu0 0.0
      %5244 = vmatprep.subr.mxu0 0.0
      %5245 = vmatpush1.msra.mxu0 0.0
      %5246 = vmatprep.subr.mxu0 0.0
      %5247 = vmatpush1.msra.mxu0 0.0
      %5248 = vmatprep.subr.mxu0 0.0
      %5249 = vmatpush1.msra.mxu0 0.0
      %5250 = vmatprep.subr.mxu0 0.0
      %5251 = vmatpush1.msra.mxu0 0.0
      %5252 = vmatprep.subr.mxu0 0.0
      %5253 = vmatpush1.msra.mxu0 0.0
      %5254 = vmatprep.subr.mxu0 0.0
      %5255 = vmatpush1.msra.mxu0 0.0
      %5256 = vmatprep.subr.mxu0 0.0
      %5257 = vmatpush1.msra.mxu0 0.0
      %5258 = vmatprep.subr.mxu0 0.0
      %5259 = vmatpush1.msra.mxu0 0.0
      %5260 = vmatprep.subr.mxu0 0.0
      %5261 = vmatpush1.msra.mxu0 0.0
      %5262 = vmatprep.subr.mxu0 0.0
      %5263 = vmatpush1.msra.mxu0 0.0
      %5264 = vmatprep.subr.mxu0 0.0
      %5265 = vmatpush1.msra.mxu0 0.0
      %5266 = vmatprep.subr.mxu0 0.0
      %5267 = vmatpush1.msra.mxu0 0.0
      %5268 = vmatprep.subr.mxu0 0.0
      %5269 = vmatpush1.msra.mxu0 0.0
      %5270 = vmatprep.subr.mxu0 0.0
      %5271 = vmatpush1.msra.mxu0 0.0
      %5272 = vmatprep.subr.mxu0 0.0
      %5273 = vmatpush1.msra.mxu0 0.0
      %5274 = vmatprep.subr.mxu0 0.0
      %5275 = vmatpush1.msra.mxu0 0.0
      %5276 = vmatprep.subr.mxu0 0.0
      %5277 = vmatpush1.msra.mxu0 0.0
      %5278 = vmatprep.subr.mxu0 0.0
      %5279 = vmatpush1.msra.mxu0 0.0
      %5280 = vmatprep.subr.mxu0 0.0
      %5281 = vmatpush1.msra.mxu0 0.0
      %5282 = vmatprep.subr.mxu0 0.0
      %5283 = vmatpush1.msra.mxu0 0.0
      %5284 = vmatprep.subr.mxu0 0.0
      %5285 = vmatpush1.msra.mxu0 0.0
      %5286 = vmatprep.subr.mxu0 0.0
      %5287 = vmatpush1.msra.mxu0 0.0
      %5288 = vmatprep.subr.mxu0 0.0
      %5289 = vmatpush1.msra.mxu0 0.0
      %5290 = vmatprep.subr.mxu0 0.0
      %5291 = vmatpush1.msra.mxu0 0.0
      %5292 = vmatprep.subr.mxu0 0.0
      %5293 = vmatpush1.msra.mxu0 0.0
      %5294 = vmatprep.subr.mxu0 0.0
      %5295 = vmatpush1.msra.mxu0 0.0
      %5296 = vmatprep.mubr.f32.mxu0 0.0
      %5297 = vmatmul.mubr.f32.gmra.mrb[0].mxu0 %v5230
      %v5298 = vpop.f32.mrb[0].mxu0
      %v5299 = vadd.f32 0.0, %v5298
      %v5300 = vpop.f32.mrb[0].mxu0
      %5301 = vdwg.mxu0
      %5302 = vrot.lane.b32.xlu0 %v3104, 40
      %v5303 = vpop.permute.xlu0 %5302
      %v5306 = vsel %vm583, %v5149, 0
      %5308 = vmatprep.subr.mxu0 0.0
      %5309 = vmatpush1.msra.mxu0 %v5303
      %5310 = vmatprep.subr.mxu0 0.0
      %5311 = vmatpush1.msra.mxu0 0.0
      %5312 = vmatprep.subr.mxu0 0.0
      %5313 = vmatpush1.msra.mxu0 0.0
      %5314 = vmatprep.subr.mxu0 0.0
      %5315 = vmatpush1.msra.mxu0 0.0
      %5316 = vmatprep.subr.mxu0 0.0
      %5317 = vmatpush1.msra.mxu0 0.0
      %5318 = vmatprep.subr.mxu0 0.0
      %5319 = vmatpush1.msra.mxu0 0.0
      %5320 = vmatprep.subr.mxu0 0.0
      %5321 = vmatpush1.msra.mxu0 0.0
      %5322 = vmatprep.subr.mxu0 0.0
      %5323 = vmatpush1.msra.mxu0 0.0
      %5324 = vmatprep.subr.mxu0 0.0
      %5325 = vmatpush1.msra.mxu0 0.0
      %5326 = vmatprep.subr.mxu0 0.0
      %5327 = vmatpush1.msra.mxu0 0.0
      %5328 = vmatprep.subr.mxu0 0.0
      %5329 = vmatpush1.msra.mxu0 0.0
      %5330 = vmatprep.subr.mxu0 0.0
      %5331 = vmatpush1.msra.mxu0 0.0
      %5332 = vmatprep.subr.mxu0 0.0
      %5333 = vmatpush1.msra.mxu0 0.0
      %5334 = vmatprep.subr.mxu0 0.0
      %5335 = vmatpush1.msra.mxu0 0.0
      %5336 = vmatprep.subr.mxu0 0.0
      %5337 = vmatpush1.msra.mxu0 0.0
      %5338 = vmatprep.subr.mxu0 0.0
      %5339 = vmatpush1.msra.mxu0 0.0
      %5340 = vmatprep.subr.mxu0 0.0
      %5341 = vmatpush1.msra.mxu0 0.0
      %5342 = vmatprep.subr.mxu0 0.0
      %5343 = vmatpush1.msra.mxu0 0.0
      %5344 = vmatprep.subr.mxu0 0.0
      %5345 = vmatpush1.msra.mxu0 0.0
      %5346 = vmatprep.subr.mxu0 0.0
      %5347 = vmatpush1.msra.mxu0 0.0
      %5348 = vmatprep.subr.mxu0 0.0
      %5349 = vmatpush1.msra.mxu0 0.0
      %5350 = vmatprep.subr.mxu0 0.0
      %5351 = vmatpush1.msra.mxu0 0.0
      %5352 = vmatprep.subr.mxu0 0.0
      %5353 = vmatpush1.msra.mxu0 0.0
      %5354 = vmatprep.subr.mxu0 0.0
      %5355 = vmatpush1.msra.mxu0 0.0
      %5356 = vmatprep.subr.mxu0 0.0
      %5357 = vmatpush1.msra.mxu0 0.0
      %5358 = vmatprep.subr.mxu0 0.0
      %5359 = vmatpush1.msra.mxu0 0.0
      %5360 = vmatprep.subr.mxu0 0.0
      %5361 = vmatpush1.msra.mxu0 0.0
      %5362 = vmatprep.subr.mxu0 0.0
      %5363 = vmatpush1.msra.mxu0 0.0
      %5364 = vmatprep.subr.mxu0 0.0
      %5365 = vmatpush1.msra.mxu0 0.0
      %5366 = vmatprep.subr.mxu0 0.0
      %5367 = vmatpush1.msra.mxu0 0.0
      %5368 = vmatprep.subr.mxu0 0.0
      %5369 = vmatpush1.msra.mxu0 0.0
      %5370 = vmatprep.subr.mxu0 0.0
      %5371 = vmatpush1.msra.mxu0 0.0
      %5372 = vmatprep.mubr.f32.mxu0 0.0
      %5373 = vmatmul.mubr.f32.gmra.mrb[0].mxu0 %v5306
      %v5374 = vpop.f32.mrb[0].mxu0
      %v5375 = vadd.f32 0.0, %v5374
      %v5376 = vpop.f32.mrb[0].mxu0
      %5377 = vdwg.mxu0
      %v5379 = vsel %vm583, %v5223, 0
      %v5382 = vsel %vm583, %v5299, 0
      %v5385 = vsel %vm583, %v5375, 0
      %5387 = vmatprep.subr.mxu0 0.0
      %5388 = vmatpush1.msra.mxu0 %v477
      %5389 = vmatprep.subr.mxu0 0.0
      %5390 = vmatpush1.msra.mxu0 0.0
      %5391 = vmatprep.subr.mxu0 0.0
      %5392 = vmatpush1.msra.mxu0 0.0
      %5393 = vmatprep.subr.mxu0 0.0
      %5394 = vmatpush1.msra.mxu0 0.0
      %5395 = vmatprep.subr.mxu0 0.0
      %5396 = vmatpush1.msra.mxu0 0.0
      %5397 = vmatprep.subr.mxu0 0.0
      %5398 = vmatpush1.msra.mxu0 0.0
      %5399 = vmatprep.subr.mxu0 0.0
      %5400 = vmatpush1.msra.mxu0 0.0
      %5401 = vmatprep.subr.mxu0 0.0
      %5402 = vmatpush1.msra.mxu0 0.0
      %5403 = vmatprep.subr.mxu0 0.0
      %5404 = vmatpush1.msra.mxu0 0.0
      %5405 = vmatprep.subr.mxu0 0.0
      %5406 = vmatpush1.msra.mxu0 0.0
      %5407 = vmatprep.subr.mxu0 0.0
      %5408 = vmatpush1.msra.mxu0 0.0
      %5409 = vmatprep.subr.mxu0 0.0
      %5410 = vmatpush1.msra.mxu0 0.0
      %5411 = vmatprep.subr.mxu0 0.0
      %5412 = vmatpush1.msra.mxu0 0.0
      %5413 = vmatprep.subr.mxu0 0.0
      %5414 = vmatpush1.msra.mxu0 0.0
      %5415 = vmatprep.subr.mxu0 0.0
      %5416 = vmatpush1.msra.mxu0 0.0
      %5417 = vmatprep.subr.mxu0 0.0
      %5418 = vmatpush1.msra.mxu0 0.0
      %5419 = vmatprep.subr.mxu0 0.0
      %5420 = vmatpush1.msra.mxu0 0.0
      %5421 = vmatprep.subr.mxu0 0.0
      %5422 = vmatpush1.msra.mxu0 0.0
      %5423 = vmatprep.subr.mxu0 0.0
      %5424 = vmatpush1.msra.mxu0 0.0
      %5425 = vmatprep.subr.mxu0 0.0
      %5426 = vmatpush1.msra.mxu0 0.0
      %5427 = vmatprep.subr.mxu0 0.0
      %5428 = vmatpush1.msra.mxu0 0.0
      %5429 = vmatprep.subr.mxu0 0.0
      %5430 = vmatpush1.msra.mxu0 0.0
      %5431 = vmatprep.subr.mxu0 0.0
      %5432 = vmatpush1.msra.mxu0 0.0
      %5433 = vmatprep.subr.mxu0 0.0
      %5434 = vmatpush1.msra.mxu0 0.0
      %5435 = vmatprep.subr.mxu0 0.0
      %5436 = vmatpush1.msra.mxu0 0.0
      %5437 = vmatprep.subr.mxu0 0.0
      %5438 = vmatpush1.msra.mxu0 0.0
      %5439 = vmatprep.subr.mxu0 0.0
      %5440 = vmatpush1.msra.mxu0 0.0
      %5441 = vmatprep.subr.mxu0 0.0
      %5442 = vmatpush1.msra.mxu0 0.0
      %5443 = vmatprep.subr.mxu0 0.0
      %5444 = vmatpush1.msra.mxu0 0.0
      %5445 = vmatprep.subr.mxu0 0.0
      %5446 = vmatpush1.msra.mxu0 0.0
      %5447 = vmatprep.subr.mxu0 0.0
      %5448 = vmatpush1.msra.mxu0 0.0
      %5449 = vmatprep.subr.mxu0 0.0
      %5450 = vmatpush1.msra.mxu0 0.0
      %5451 = vmatprep.mubr.f32.mxu0 0.0
      %5452 = vmatmul.mubr.f32.gmra.mrb[0].mxu0 %v5379
      %v5453 = vpop.f32.mrb[0].mxu0
      %v5454 = vadd.f32 0.0, %v5453
      %v5455 = vpop.f32.mrb[0].mxu0
      %5456 = vmatprep.mubr.f32.mxu0 0.0
      %5457 = vmatmul.mubr.f32.gmra.mrb[0].mxu0 %v5382
      %v5458 = vpop.f32.mrb[0].mxu0
      %v5459 = vadd.f32 0.0, %v5458
      %v5460 = vpop.f32.mrb[0].mxu0
      %5461 = vmatprep.mubr.f32.mxu0 0.0
      %5462 = vmatmul.mubr.f32.gmra.mrb[0].mxu0 %v5385
      %v5463 = vpop.f32.mrb[0].mxu0
      %v5464 = vadd.f32 0.0, %v5463
      %v5465 = vpop.f32.mrb[0].mxu0
      %5466 = vdwg.mxu0
      %v5467 = vadd.f32 %v4874, %v5454
      %v5468 = vadd.f32 %v4875, %v5459
      %v5469 = vadd.f32 %v4876, %v5464
      %v5470 = vlaneseq
      %v5471 = vshrl.u32 %v5470, 7
      %v5472 = vsub.s32 1, %v5471
      %v5473 = vrot.slane %v445, %v5472
      %v5474 = vadd.f32 %v5467, %v5473
      %v5475 = vadd.f32 %v5468, %v5473
      %v5476 = vadd.f32 %v5469, %v5473
      %v5477 = vadd.f32 %v3011, %v5474
      %v5478 = vadd.f32 %v3012, %v5475
      %v5479 = vadd.f32 %v3013, %v5476
      %v5480 = vsel %vm490, %v5477, 0.0
      %5481 = vadd.xlane.f32.xlu0 %v5480
      %v5482 = vpop.xlane.xlu0 %5481
      %v5483 = vsel %vm490, %v5478, 0.0
      %5484 = vadd.xlane.f32.xlu0 %v5483
      %v5485 = vpop.xlane.xlu0 %5484
      %v5486 = vsel %vm490, %v5479, 0.0
      %5487 = vadd.xlane.f32.xlu0 %v5486
      %v5488 = vpop.xlane.xlu0 %5487
      %v5489 = vmul.f32 %v5482, %v2965
      %v5490 = vmul.f32 %v5485, %v2965
      %v5491 = vmul.f32 %v5488, %v2965
      %v5492 = vsub.f32 %v5477, %v5489
      %v5493 = vsub.f32 %v5478, %v5490
      %v5494 = vsub.f32 %v5479, %v5491
      %v5495 = vmul.f32 %v5492, %v5492
      %v5496 = vmul.f32 %v5493, %v5493
      %v5497 = vmul.f32 %v5494, %v5494
      %v5498 = vsel %vm490, %v5495, 0.0
      %5499 = vadd.xlane.f32.xlu0 %v5498
      %v5500 = vpop.xlane.xlu0 %5499
      %v5501 = vsel %vm490, %v5496, 0.0
      %5502 = vadd.xlane.f32.xlu0 %v5501
      %v5503 = vpop.xlane.xlu0 %5502
      %v5504 = vsel %vm490, %v5497, 0.0
      %5505 = vadd.xlane.f32.xlu0 %v5504
      %v5506 = vpop.xlane.xlu0 %5505
      %v5507 = vmul.f32 %v5500, %v2965
      %v5508 = vmul.f32 %v5503, %v2965
      %v5509 = vmul.f32 %v5506, %v2965
      %v5510 = vadd.f32 %v5507, 1e-05
      %v5511 = vadd.f32 %v5508, 1e-05
      %v5512 = vadd.f32 %v5509, 1e-05
      %v5513 = vrsqrt.pop %v5510
      %v5514 = vrsqrt.pop %v5511
      %v5515 = vrsqrt.pop %v5512
      %v5516 = vmul.f32 %v5492, %v5513
      %v5517 = vmul.f32 %v5493, %v5514
      %v5518 = vmul.f32 %v5494, %v5515
      %v5519 = vmul.f32 %v5516, %v3000
      %v5520 = vmul.f32 %v5517, %v3000
      %v5521 = vmul.f32 %v5518, %v3000
      %v5522 = vadd.f32 %v5519, %v3009
      %v5523 = vadd.f32 %v5520, %v3009
      %v5524 = vadd.f32 %v5521, %v3009
      %v5526 = vlaneseq
      %v5527 = vshrl.u32 %v5526, 7
      %v5528 = vsub.s32 0, %v5527
      %v5529 = vrot.slane %v454, %v5528
      %v5532 = vsel %vm490, %v5522, 0
      %v5535 = vsel %vm490, %v5523, 0
      %v5538 = vsel %vm490, %v5524, 0
      %5540 = vmatprep.subr.mxu0 0.0
      %5541 = vmatpush1.msra.mxu0 %v450
      %5542 = vmatprep.subr.mxu0 0.0
      %5543 = vmatpush1.msra.mxu0 %v451
      %5544 = vmatprep.subr.mxu0 0.0
      %5545 = vmatpush1.msra.mxu0 %v452
      %5546 = vmatprep.subr.mxu0 0.0
      %5547 = vmatpush1.msra.mxu0 %v453
      %5548 = vmatprep.subr.mxu0 0.0
      %5549 = vmatpush1.msra.mxu0 0.0
      %5550 = vmatprep.subr.mxu0 0.0
      %5551 = vmatpush1.msra.mxu0 0.0
      %5552 = vmatprep.subr.mxu0 0.0
      %5553 = vmatpush1.msra.mxu0 0.0
      %5554 = vmatprep.subr.mxu0 0.0
      %5555 = vmatpush1.msra.mxu0 0.0
      %5556 = vmatprep.subr.mxu0 0.0
      %5557 = vmatpush1.msra.mxu0 0.0
      %5558 = vmatprep.subr.mxu0 0.0
      %5559 = vmatpush1.msra.mxu0 0.0
      %5560 = vmatprep.subr.mxu0 0.0
      %5561 = vmatpush1.msra.mxu0 0.0
      %5562 = vmatprep.subr.mxu0 0.0
      %5563 = vmatpush1.msra.mxu0 0.0
      %5564 = vmatprep.subr.mxu0 0.0
      %5565 = vmatpush1.msra.mxu0 0.0
      %5566 = vmatprep.subr.mxu0 0.0
      %5567 = vmatpush1.msra.mxu0 0.0
      %5568 = vmatprep.subr.mxu0 0.0
      %5569 = vmatpush1.msra.mxu0 0.0
      %5570 = vmatprep.subr.mxu0 0.0
      %5571 = vmatpush1.msra.mxu0 0.0
      %5572 = vmatprep.subr.mxu0 0.0
      %5573 = vmatpush1.msra.mxu0 0.0
      %5574 = vmatprep.subr.mxu0 0.0
      %5575 = vmatpush1.msra.mxu0 0.0
      %5576 = vmatprep.subr.mxu0 0.0
      %5577 = vmatpush1.msra.mxu0 0.0
      %5578 = vmatprep.subr.mxu0 0.0
      %5579 = vmatpush1.msra.mxu0 0.0
      %5580 = vmatprep.subr.mxu0 0.0
      %5581 = vmatpush1.msra.mxu0 0.0
      %5582 = vmatprep.subr.mxu0 0.0
      %5583 = vmatpush1.msra.mxu0 0.0
      %5584 = vmatprep.subr.mxu0 0.0
      %5585 = vmatpush1.msra.mxu0 0.0
      %5586 = vmatprep.subr.mxu0 0.0
      %5587 = vmatpush1.msra.mxu0 0.0
      %5588 = vmatprep.subr.mxu0 0.0
      %5589 = vmatpush1.msra.mxu0 0.0
      %5590 = vmatprep.subr.mxu0 0.0
      %5591 = vmatpush1.msra.mxu0 0.0
      %5592 = vmatprep.subr.mxu0 0.0
      %5593 = vmatpush1.msra.mxu0 0.0
      %5594 = vmatprep.subr.mxu0 0.0
      %5595 = vmatpush1.msra.mxu0 0.0
      %5596 = vmatprep.subr.mxu0 0.0
      %5597 = vmatpush1.msra.mxu0 0.0
      %5598 = vmatprep.subr.mxu0 0.0
      %5599 = vmatpush1.msra.mxu0 0.0
      %5600 = vmatprep.subr.mxu0 0.0
      %5601 = vmatpush1.msra.mxu0 0.0
      %5602 = vmatprep.subr.mxu0 0.0
      %5603 = vmatpush1.msra.mxu0 0.0
      %5604 = vmatprep.mubr.f32.mxu0 0.0
      %5605 = vmatmul.mubr.f32.gmra.mrb[0].mxu0 %v5532
      %v5606 = vpop.f32.mrb[0].mxu0
      %v5607 = vadd.f32 %v5529, %v5606
      %v5608 = vpop.f32.mrb[0].mxu0
      %5609 = vmatprep.mubr.f32.mxu0 0.0
      %5610 = vmatmul.mubr.f32.gmra.mrb[0].mxu0 %v5535
      %v5611 = vpop.f32.mrb[0].mxu0
      %v5612 = vadd.f32 %v5529, %v5611
      %v5613 = vpop.f32.mrb[0].mxu0
      %5614 = vmatprep.mubr.f32.mxu0 0.0
      %5615 = vmatmul.mubr.f32.gmra.mrb[0].mxu0 %v5538
      %v5616 = vpop.f32.mrb[0].mxu0
      %v5617 = vadd.f32 %v5529, %v5616
      %v5618 = vpop.f32.mrb[0].mxu0
      %5619 = vdwg.mxu0
      %v5620 = vmax.f32 %v5607, 0.0
      %v5621 = vmax.f32 %v5612, 0.0
      %v5622 = vmax.f32 %v5617, 0.0
      %v5624 = vlaneseq
      %v5625 = vshrl.u32 %v5624, 7
      %v5626 = vsub.s32 0, %v5625
      %v5627 = vrot.slane %v459, %v5626
      %v5630 = vsel %vm490, %v5620, 0
      %v5633 = vsel %vm490, %v5621, 0
      %v5636 = vsel %vm490, %v5622, 0
      %5638 = vmatprep.subr.mxu0 0.0
      %5639 = vmatpush1.msra.mxu0 %v455
      %5640 = vmatprep.subr.mxu0 0.0
      %5641 = vmatpush1.msra.mxu0 %v456
      %5642 = vmatprep.subr.mxu0 0.0
      %5643 = vmatpush1.msra.mxu0 %v457
      %5644 = vmatprep.subr.mxu0 0.0
      %5645 = vmatpush1.msra.mxu0 %v458
      %5646 = vmatprep.subr.mxu0 0.0
      %5647 = vmatpush1.msra.mxu0 0.0
      %5648 = vmatprep.subr.mxu0 0.0
      %5649 = vmatpush1.msra.mxu0 0.0
      %5650 = vmatprep.subr.mxu0 0.0
      %5651 = vmatpush1.msra.mxu0 0.0
      %5652 = vmatprep.subr.mxu0 0.0
      %5653 = vmatpush1.msra.mxu0 0.0
      %5654 = vmatprep.subr.mxu0 0.0
      %5655 = vmatpush1.msra.mxu0 0.0
      %5656 = vmatprep.subr.mxu0 0.0
      %5657 = vmatpush1.msra.mxu0 0.0
      %5658 = vmatprep.subr.mxu0 0.0
      %5659 = vmatpush1.msra.mxu0 0.0
      %5660 = vmatprep.subr.mxu0 0.0
      %5661 = vmatpush1.msra.mxu0 0.0
      %5662 = vmatprep.subr.mxu0 0.0
      %5663 = vmatpush1.msra.mxu0 0.0
      %5664 = vmatprep.subr.mxu0 0.0
      %5665 = vmatpush1.msra.mxu0 0.0
      %5666 = vmatprep.subr.mxu0 0.0
      %5667 = vmatpush1.msra.mxu0 0.0
      %5668 = vmatprep.subr.mxu0 0.0
      %5669 = vmatpush1.msra.mxu0 0.0
      %5670 = vmatprep.subr.mxu0 0.0
      %5671 = vmatpush1.msra.mxu0 0.0
      %5672 = vmatprep.subr.mxu0 0.0
      %5673 = vmatpush1.msra.mxu0 0.0
      %5674 = vmatprep.subr.mxu0 0.0
      %5675 = vmatpush1.msra.mxu0 0.0
      %5676 = vmatprep.subr.mxu0 0.0
      %5677 = vmatpush1.msra.mxu0 0.0
      %5678 = vmatprep.subr.mxu0 0.0
      %5679 = vmatpush1.msra.mxu0 0.0
      %5680 = vmatprep.subr.mxu0 0.0
      %5681 = vmatpush1.msra.mxu0 0.0
      %5682 = vmatprep.subr.mxu0 0.0
      %5683 = vmatpush1.msra.mxu0 0.0
      %5684 = vmatprep.subr.mxu0 0.0
      %5685 = vmatpush1.msra.mxu0 0.0
      %5686 = vmatprep.subr.mxu0 0.0
      %5687 = vmatpush1.msra.mxu0 0.0
      %5688 = vmatprep.subr.mxu0 0.0
      %5689 = vmatpush1.msra.mxu0 0.0
      %5690 = vmatprep.subr.mxu0 0.0
      %5691 = vmatpush1.msra.mxu0 0.0
      %5692 = vmatprep.subr.mxu0 0.0
      %5693 = vmatpush1.msra.mxu0 0.0
      %5694 = vmatprep.subr.mxu0 0.0
      %5695 = vmatpush1.msra.mxu0 0.0
      %5696 = vmatprep.subr.mxu0 0.0
      %5697 = vmatpush1.msra.mxu0 0.0
      %5698 = vmatprep.subr.mxu0 0.0
      %5699 = vmatpush1.msra.mxu0 0.0
      %5700 = vmatprep.subr.mxu0 0.0
      %5701 = vmatpush1.msra.mxu0 0.0
      %5702 = vmatprep.mubr.f32.mxu0 0.0
      %5703 = vmatmul.mubr.f32.gmra.mrb[0].mxu0 %v5630
      %v5704 = vpop.f32.mrb[0].mxu0
      %v5705 = vadd.f32 %v5627, %v5704
      %v5706 = vpop.f32.mrb[0].mxu0
      %5707 = vmatprep.mubr.f32.mxu0 0.0
      %5708 = vmatmul.mubr.f32.gmra.mrb[0].mxu0 %v5633
      %v5709 = vpop.f32.mrb[0].mxu0
      %v5710 = vadd.f32 %v5627, %v5709
      %v5711 = vpop.f32.mrb[0].mxu0
      %5712 = vmatprep.mubr.f32.mxu0 0.0
      %5713 = vmatmul.mubr.f32.gmra.mrb[0].mxu0 %v5636
      %v5714 = vpop.f32.mrb[0].mxu0
      %v5715 = vadd.f32 %v5627, %v5714
      %v5716 = vpop.f32.mrb[0].mxu0
      %5717 = vdwg.mxu0
      %v5718 = vadd.f32 %v5522, %v5705
      %v5719 = vadd.f32 %v5523, %v5710
      %v5720 = vadd.f32 %v5524, %v5715
      %v5721 = vsel %vm490, %v5718, 0.0
      %5722 = vadd.xlane.f32.xlu0 %v5721
      %v5723 = vpop.xlane.xlu0 %5722
      %v5724 = vsel %vm490, %v5719, 0.0
      %5725 = vadd.xlane.f32.xlu0 %v5724
      %v5726 = vpop.xlane.xlu0 %5725
      %v5727 = vsel %vm490, %v5720, 0.0
      %5728 = vadd.xlane.f32.xlu0 %v5727
      %v5729 = vpop.xlane.xlu0 %5728
      %v5730 = vmul.f32 %v5723, %v2965
      %v5731 = vmul.f32 %v5726, %v2965
      %v5732 = vmul.f32 %v5729, %v2965
      %v5733 = vsub.f32 %v5718, %v5730
      %v5734 = vsub.f32 %v5719, %v5731
      %v5735 = vsub.f32 %v5720, %v5732
      %v5736 = vmul.f32 %v5733, %v5733
      %v5737 = vmul.f32 %v5734, %v5734
      %v5738 = vmul.f32 %v5735, %v5735
      %v5739 = vsel %vm490, %v5736, 0.0
      %5740 = vadd.xlane.f32.xlu0 %v5739
      %v5741 = vpop.xlane.xlu0 %5740
      %v5742 = vsel %vm490, %v5737, 0.0
      %5743 = vadd.xlane.f32.xlu0 %v5742
      %v5744 = vpop.xlane.xlu0 %5743
      %v5745 = vsel %vm490, %v5738, 0.0
      %5746 = vadd.xlane.f32.xlu0 %v5745
      %v5747 = vpop.xlane.xlu0 %5746
      %v5748 = vmul.f32 %v5741, %v2965
      %v5749 = vmul.f32 %v5744, %v2965
      %v5750 = vmul.f32 %v5747, %v2965
      %v5751 = vadd.f32 %v5748, 1e-05
      %v5752 = vadd.f32 %v5749, 1e-05
      %v5753 = vadd.f32 %v5750, 1e-05
      %v5754 = vrsqrt.pop %v5751
      %v5755 = vrsqrt.pop %v5752
      %v5756 = vrsqrt.pop %v5753
      %v5757 = vmul.f32 %v5733, %v5754
      %v5758 = vmul.f32 %v5734, %v5755
      %v5759 = vmul.f32 %v5735, %v5756
      %v5761 = vlaneseq
      %v5762 = vshrl.u32 %v5761, 7
      %v5763 = vsub.s32 0, %v5762
      %v5764 = vrot.slane %v448, %v5763
      %v5766 = vmul.f32 %v5757, %v5764
      %v5767 = vmul.f32 %v5758, %v5764
      %v5768 = vmul.f32 %v5759, %v5764
      %v5770 = vlaneseq
      %v5771 = vshrl.u32 %v5770, 7
      %v5772 = vsub.s32 0, %v5771
      %v5773 = vrot.slane %v449, %v5772
      %v5775 = vadd.f32 %v5766, %v5773
      %v5776 = vadd.f32 %v5767, %v5773
      %v5777 = vadd.f32 %v5768, %v5773
      %5778 = vst.msk [vmem:[%s442] sm:$0xff] %vm490, %v5775
      %5779 = vst.msk [vmem:[%s442 + $0x8] sm:$0xff] %vm490, %v5776
      %5780 = vst.msk [vmem:[%s442 + $0x10] sm:$0xff] %vm490, %v5777
      %s5781 = smul.u32 3, %s24
      %p5782 = scmp.lt.s32.totalorder %s5781, 5
      %s5783 = scalar_select %p5782, %s5781, 5
      %s5784 = smul.addr %s5783, 8
      %s5785 = scalar_lea.vmem %s13, %s5784
      // Predicated region
      $region73: #{model_forward.4} parent=71 // pred_check
        %p5786 = pneg %p320
      $region74: #{model_forward.4} parent=71 // pred_check_branch
        %5788 = sbr.rel (%p5786) target = $region76
      $region75: #{model_forward.4} parent=71 // pred_region
        %s5789 = smul.u32 3, %s24
      $region76: #{model_forward.4} parent=71 // pred_fallthru
        _
    $region72: #{model_forward.4} parent=5 // pred_fallthru
      _
    %p5790 = scmp.le.s32.totalorder 2, %s19
    // Predicated region
    $region77: #{model_forward.4} parent=5 // pred_check
      %p5791 = pneg %p5790
    $region78: #{model_forward.4} parent=5 // pred_check_branch
      %5793 = sbr.rel (%p5791) target = $region80
    $region79: #{model_forward.4} parent=5 // pred_region
      %s5794 = ssub.s32 %s19, 2
      // Predicated region
      $region81: #{model_forward.4} parent=79 // pred_check
        %p5795 = pneg %p326
      $region82: #{model_forward.4} parent=79 // pred_check_branch
        %5797 = sbr.rel (%p5795) target = $region84
      $region83: #{model_forward.4} parent=79 // pred_region
        %s5798 = smul.u32 3, %s25
        %p5799 = scmp.lt.s32.totalorder %s5798, 5
        %s5800 = scalar_select %p5799, %s5798, 5
        %s5801 = smul.addr %s5800, 8
        %s5802 = scalar_lea.vmem %s13, %s5801
      $region84: #{model_forward.4} parent=79 // pred_fallthru
        _
    $region80: #{model_forward.4} parent=5 // pred_fallthru
      _
  $region6: #{model_forward.4} parent=0 // loop_footer
    %s23 = sadd.s32 1, %s19
  $region7: #{model_forward.4} parent=0 // loop_footer_branch
    %18 = sbr.rel target = $region3
  $region8: #{model_forward.4} parent=0 // loop_exit
    _

</llo_original>
